<compile_context>
chip_gen: v6e
topology: v6e:2x2x1
jax: 0.10.0
libtpu: 0.0.40
codegen_flags: <defaults>
</compile_context>

<pallas_src>
import functools

import numpy as np
import jax
import jax.numpy as jnp
from jax.experimental import pallas as pl
from jax.experimental.pallas import tpu as pltpu  # noqa: F401  (TPU backend assumed)


# ------------------------------------------------------------------ helpers
def _spec(shape):
    nd = len(shape)
    return pl.BlockSpec(shape, lambda *_: (0,) * nd)


def _pad_rows(slab, rows):
    """Pad a 2-D slab with zero rows at the bottom so tap slices never go OOB."""
    r = slab.shape[0]
    if rows > r:
        slab = jnp.pad(slab, ((0, rows - r), (0, 0)))
    return slab


def _col_mask(Q, N, Wext, Wvalid, reps=1):
    """(reps*Q, 1) f32 mask: row (y, x_ext, n) is valid iff x_ext < Wvalid."""
    r = np.arange(Q)
    m = (((r // N) % Wext) < Wvalid).astype(np.float32)
    m = np.tile(m, reps)
    return jnp.asarray(m).reshape(reps * Q, 1)


# ------------------------------------------------------------------ in-kernel building blocks
def _conv_taps(x, w_ref, offs, w_base, Q):
    """Tap-sum convolution on a (rows, Cin) slab.

    x: (R, Cin) value (R >= Q + max(offs)); w_ref: (T, Cin, Cout) ref.
    Each tap is a contiguous row-slice of x -> MXU matmul, f32 accumulation.
    """
    xb = x.astype(w_ref.dtype)
    n_out = w_ref.shape[-1]
    acc = jnp.zeros((Q, n_out), jnp.float32)
    for t, off in enumerate(offs):
        acc = acc + jnp.dot(xb[off:off + Q, :], w_ref[w_base + t],
                            preferred_element_type=jnp.float32)
    return acc


def _bn_rows(h, mask, gamma, beta, *, inv_cnt, eps):
    """Training-mode BatchNorm over valid rows (one-pass masked sum / sum-of-squares)."""
    hm = h * mask
    mean = jnp.sum(hm, axis=0, keepdims=True) * inv_cnt
    var = jnp.sum(hm * h, axis=0, keepdims=True) * inv_cnt - mean * mean
    return (h - mean) * jax.lax.rsqrt(var + eps) * gamma + beta


# ------------------------------------------------------------------ Pallas kernels
def _conv_bn_act_kernel(x_ref, w_ref, b_ref, g_ref, be_ref, m_ref, o_ref, *,
                        offs, Q, inv_cnt, eps, act):
    h = _conv_taps(x_ref[...], w_ref, offs, 0, Q) + b_ref[...]
    h = _bn_rows(h, m_ref[...], g_ref[...], be_ref[...], inv_cnt=inv_cnt, eps=eps)
    if act == "relu":
        h = jnp.maximum(h, 0.0)
    o_ref[...] = h


def _conv_bias_kernel(x_ref, w_ref, b_ref, o_ref, *, offs, Q):
    o_ref[...] = _conv_taps(x_ref[...], w_ref, offs, 0, Q) + b_ref[...]


def _resblock_kernel(x_ref, w1_ref, b1_ref, g1_ref, be1_ref,
                     w2_ref, b2_ref, g2_ref, be2_ref, m_ref, o_ref, *,
                     offs, Q, center, inv_cnt, eps):
    """Fused ResBlock: ReLU -> 3x3 conv -> BN+ReLU -> 1x1 conv -> BN -> + residual."""
    x_raw = x_ref[...]                                   # padded slab, (h, w, n, c) rows
    x_act = jnp.maximum(x_raw, 0.0)                      # leading ReLU (pad stays 0)
    mask = m_ref[...]
    h = _conv_taps(x_act, w1_ref, offs, 0, Q) + b1_ref[...]
    h = _bn_rows(h, mask, g1_ref[...], be1_ref[...], inv_cnt=inv_cnt, eps=eps)
    h = jnp.maximum(h, 0.0)
    y = jnp.dot(h.astype(w2_ref.dtype), w2_ref[...],
                preferred_element_type=jnp.float32) + b2_ref[...]
    y = _bn_rows(y, mask, g2_ref[...], be2_ref[...], inv_cnt=inv_cnt, eps=eps)
    # residual = the (un-ReLU'd) input at the output positions = center-tap slice
    o_ref[...] = y + x_raw[center:center + Q, :]


def _convt_bn_relu_kernel(x_ref, w_ref, b_ref, g_ref, be_ref, m_ref, o_ref, *,
                          par_offs, Q, inv_cnt, eps):
    """Fused: leading ReLU -> ConvTranspose (4 subpixel parities) -> BN -> ReLU."""
    x_act = jnp.maximum(x_ref[...], 0.0)
    parts = [_conv_taps(x_act, w_ref, par_offs[p], 4 * p, Q) for p in range(4)]
    h = jnp.concatenate(parts, axis=0) + b_ref[...]      # (4*Q, Cout)
    h = _bn_rows(h, m_ref[...], g_ref[...], be_ref[...], inv_cnt=inv_cnt, eps=eps)
    o_ref[...] = jnp.maximum(h, 0.0)


def _convt_sigmoid_kernel(x_ref, w_ref, b_ref, o_ref, *, par_offs, Q):
    """ConvTranspose (4 subpixel parities) + bias + sigmoid."""
    x = x_ref[...]
    parts = [_conv_taps(x, w_ref, par_offs[p], 4 * p, Q) for p in range(4)]
    h = jnp.concatenate(parts, axis=0) + b_ref[...]      # (4*Q, Cout)
    o_ref[...] = jax.nn.sigmoid(h)


def _vq_kernel(x_ref, cbt_ref, cb_ref, c2_ref, idx_ref, codes_ref, *, K):
    x = x_ref[...]                                       # (M, D) f32
    # squared distance up to a per-row constant (||x||^2 dropped: argmin-invariant)
    dist = c2_ref[...] - 2.0 * jnp.dot(x, cbt_ref[...], preferred_element_type=jnp.float32)
    kid = jax.lax.broadcasted_iota(jnp.int32, dist.shape, 1)
    dmin = jnp.min(dist, axis=1, keepdims=True)
    idx = jnp.min(jnp.where(dist <= dmin, kid, K), axis=1, keepdims=True)  # first argmin
    idx_ref[...] = idx
    onehot = (kid == idx).astype(jnp.float32)
    codes_ref[...] = jnp.dot(onehot, cb_ref[...], preferred_element_type=jnp.float32)


# ------------------------------------------------------------------ kernel wrappers
def conv_s2_4x4(x, w, b, bn=None, act="none", eps=1e-5):
    """Conv2d(k=4, stride=2, pad=1) on NHWC x, optionally fused with BN(+act).

    Wrapper does pad + space-to-depth (cheap, tiny); the kernel does the 2x2-tap
    conv as contiguous-slice matmuls on a VMEM-resident slab.
    """
    N, H, W, C = x.shape
    Cout = w.shape[0]
    xp = jnp.pad(x, ((0, 0), (1, 1), (1, 1), (0, 0)))
    H2, W2 = (H + 2) // 2, (W + 2) // 2
    # space-to-depth, channel order (py, px, c)
    xs = xp.reshape(N, H2, 2, W2, 2, C)
    xs = jnp.transpose(xs, (0, 1, 3, 2, 4, 5)).reshape(N, H2, W2, 4 * C)
    slab = jnp.transpose(xs, (1, 2, 0, 3)).reshape(H2 * W2 * N, 4 * C)
    Q = (H2 - 1) * W2 * N
    offs = tuple((a * W2 + bb) * N for a in (0, 1) for bb in (0, 1))
    slab = _pad_rows(slab, Q + max(offs))
    # weights: (Cout,Cin,4,4) -> (4 taps, 4*Cin, Cout); bf16 operands if K is big enough
    mm_dtype = jnp.bfloat16 if (4 * C) >= 32 and Cout >= 8 else jnp.float32
    wr = w.reshape(Cout, C, 2, 2, 2, 2)                              # (co,c,a,py,b,px)
    wt = jnp.transpose(wr, (2, 4, 3, 5, 1, 0)).reshape(4, 4 * C, Cout).astype(mm_dtype)
    b2 = b.reshape(1, Cout).astype(jnp.float32)
    Ho, Wo = H2 - 1, W2 - 1

    if bn is None:
        out = pl.pallas_call(
            functools.partial(_conv_bias_kernel, offs=offs, Q=Q),
            out_shape=jax.ShapeDtypeStruct((Q, Cout), jnp.float32),
            in_specs=[_spec(s.shape) for s in (slab, wt, b2)],
            out_specs=_spec((Q, Cout)),
        )(slab, wt, b2)
    else:
        g2 = bn[0].reshape(1, Cout).astype(jnp.float32)
        be2 = bn[1].reshape(1, Cout).astype(jnp.float32)
        mask = _col_mask(Q, N, W2, Wo)
        inv_cnt = 1.0 / float(N * Ho * Wo)
        out = pl.pallas_call(
            functools.partial(_conv_bn_act_kernel, offs=offs, Q=Q,
                              inv_cnt=inv_cnt, eps=eps, act=act),
            out_shape=jax.ShapeDtypeStruct((Q, Cout), jnp.float32),
            in_specs=[_spec(s.shape) for s in (slab, wt, b2, g2, be2, mask)],
            out_specs=_spec((Q, Cout)),
        )(slab, wt, b2, g2, be2, mask)
    out = out.reshape(Ho, W2, N, Cout)[:, :Wo]
    return jnp.transpose(out, (2, 0, 1, 3))              # (N, Ho, Wo, Cout)


def resblock(x, p, eps=1e-5):
    """Whole ResBlock in one fused Pallas kernel."""
    N, H, W, C = x.shape
    xp = jnp.pad(x, ((0, 0), (1, 1), (1, 1), (0, 0)))
    Hp, Wp = H + 2, W + 2
    slab = jnp.transpose(xp, (1, 2, 0, 3)).reshape(Hp * Wp * N, C)
    Q = H * Wp * N
    offs = tuple((dy * Wp + dx) * N for dy in range(3) for dx in range(3))
    slab = _pad_rows(slab, Q + max(offs))
    center = (Wp + 1) * N
    mask = _col_mask(Q, N, Wp, W)
    inv_cnt = 1.0 / float(N * H * W)
    w1 = jnp.transpose(p["w1"], (2, 3, 1, 0)).reshape(9, C, C).astype(jnp.bfloat16)
    w2 = jnp.transpose(p["w2"][:, :, 0, 0], (1, 0)).astype(jnp.bfloat16)
    b1 = p["b1"].reshape(1, C)
    b2 = p["b2"].reshape(1, C)
    g1 = p["g1"].reshape(1, C)
    be1 = p["be1"].reshape(1, C)
    g2 = p["g2"].reshape(1, C)
    be2 = p["be2"].reshape(1, C)
    out = pl.pallas_call(
        functools.partial(_resblock_kernel, offs=offs, Q=Q, center=center,
                          inv_cnt=inv_cnt, eps=eps),
        out_shape=jax.ShapeDtypeStruct((Q, C), jnp.float32),
        in_specs=[_spec(s.shape) for s in (slab, w1, b1, g1, be1, w2, b2, g2, be2, mask)],
        out_specs=_spec((Q, C)),
    )(slab, w1, b1, g1, be1, w2, b2, g2, be2, mask)
    out = out.reshape(H, Wp, N, C)[:, :W]
    return jnp.transpose(out, (2, 0, 1, 3))


def convt_s2_4x4(x, w, b, bn=None, eps=1e-5):
    """ConvTranspose2d(k=4, stride=2, pad=1) via the stride^2 subpixel decomposition.

    bn=(gamma, beta): fused leading-ReLU + convT + BN + ReLU (decoder first convT).
    bn=None        : convT + sigmoid (final layer).
    """
    N, H, W, C = x.shape
    Cin, Cout = w.shape[0], w.shape[1]
    xp = jnp.pad(x, ((0, 0), (1, 1), (1, 1), (0, 0)))
    Hp, Wp = H + 2, W + 2
    slab = jnp.transpose(xp, (1, 2, 0, 3)).reshape(Hp * Wp * N, C)
    Q = H * Wp * N
    par_offs = tuple(tuple(((p // 2 + a) * Wp + (p % 2) + bb) * N
                           for a in (0, 1) for bb in (0, 1)) for p in range(4))
    slab = _pad_rows(slab, Q + max(max(po) for po in par_offs))
    # subpixel weights: (Cin,Cout,4,4) -> (16, Cin, Cout) ordered (ry, rx, a, b)
    mm_dtype = jnp.bfloat16 if Cin >= 32 and Cout >= 8 else jnp.float32
    wf = w[:, :, ::-1, ::-1].reshape(Cin, Cout, 2, 2, 2, 2)           # (ci,co,a,ry,b,rx)
    wt = jnp.transpose(wf, (3, 5, 2, 4, 0, 1)).reshape(16, Cin, Cout).astype(mm_dtype)
    b2 = b.reshape(1, Cout).astype(jnp.float32)

    if bn is not None:
        g2 = bn[0].reshape(1, Cout).astype(jnp.float32)
        be2 = bn[1].reshape(1, Cout).astype(jnp.float32)
        mask = _col_mask(Q, N, Wp, W, reps=4)
        inv_cnt = 1.0 / float(N * 2 * H * 2 * W)
        out = pl.pallas_call(
            functools.partial(_convt_bn_relu_kernel, par_offs=par_offs, Q=Q,
                              inv_cnt=inv_cnt, eps=eps),
            out_shape=jax.ShapeDtypeStruct((4 * Q, Cout), jnp.float32),
            in_specs=[_spec(s.shape) for s in (slab, wt, b2, g2, be2, mask)],
            out_specs=_spec((4 * Q, Cout)),
        )(slab, wt, b2, g2, be2, mask)
    else:
        out = pl.pallas_call(
            functools.partial(_convt_sigmoid_kernel, par_offs=par_offs, Q=Q),
            out_shape=jax.ShapeDtypeStruct((4 * Q, Cout), jnp.float32),
            in_specs=[_spec(s.shape) for s in (slab, wt, b2)],
            out_specs=_spec((4 * Q, Cout)),
        )(slab, wt, b2)
    # interleave the 4 parities back into (N, 2H, 2W, Cout)
    out = out.reshape(4, H, Wp, N, Cout)[:, :, :W]
    out = out.reshape(2, 2, H, W, N, Cout)                            # (ry,rx,my,mx,n,c)
    out = jnp.transpose(out, (4, 2, 0, 3, 1, 5)).reshape(N, 2 * H, 2 * W, Cout)
    return out


def vq_straight_through(z_e, codebook):
    """z_e: (N,H,W,D) NHWC.  Returns (flat indices, codes NHWC)."""
    N, H, W, D = z_e.shape
    flat = z_e.reshape(N * H * W, D)
    M = flat.shape[0]
    K = codebook.shape[0]
    cbt = jnp.transpose(codebook, (1, 0))                             # (D, K)
    c2 = jnp.sum(codebook * codebook, axis=1).reshape(1, K)           # (1, K)
    idx, codes = pl.pallas_call(
        functools.partial(_vq_kernel, K=K),
        out_shape=(jax.ShapeDtypeStruct((M, 1), jnp.int32),
                   jax.ShapeDtypeStruct((M, D), jnp.float32)),
        in_specs=[_spec(s.shape) for s in (flat, cbt, codebook, c2)],
        out_specs=(_spec((M, 1)), _spec((M, D))),
    )(flat, cbt, codebook, c2)
    return idx.reshape(-1), codes.reshape(N, H, W, D)


# ------------------------------------------------------------------ full forward
def vqvae_forward(params, x_nchw):
    x = jnp.transpose(x_nchw, (0, 2, 3, 1))                           # NCHW -> NHWC
    # --- encoder ---
    h = conv_s2_4x4(x, params["enc_conv0_w"], params["enc_conv0_b"],
                    bn=(params["enc_bn0_g"], params["enc_bn0_b"]), act="relu")
    h = conv_s2_4x4(h, params["enc_conv1_w"], params["enc_conv1_b"], bn=None)
    h = resblock(h, params["enc_res0"])
    z_e = resblock(h, params["enc_res1"])
    # --- vector quantization (straight-through; forward values only) ---
    indices, z_q = vq_straight_through(z_e, params["codebook"])
    # --- decoder ---
    d = resblock(z_q, params["dec_res0"])
    d = resblock(d, params["dec_res1"])
    d = convt_s2_4x4(d, params["dec_convt0_w"], params["dec_convt0_b"],
                     bn=(params["dec_bn0_g"], params["dec_bn0_b"]))   # ReLU+convT+BN+ReLU
    d = convt_s2_4x4(d, params["dec_convt1_w"], params["dec_convt1_b"], bn=None)  # +sigmoid
    x_tilde = jnp.transpose(d, (0, 3, 1, 2))                          # NHWC -> NCHW
    z_e_x = jnp.transpose(z_e, (0, 3, 1, 2))
    z_q_x = jnp.transpose(z_q, (0, 3, 1, 2))
    return x_tilde, z_e_x, z_q_x, indices


# ------------------------------------------------------------------ parameter init
def init_params(key, input_dim=1, dim=32, K=64):
    keys = iter(jax.random.split(key, 32))

    def conv_w(shape):  # xavier_uniform_, PyTorch fan convention
        rec = shape[2] * shape[3]
        fan_in, fan_out = shape[1] * rec, shape[0] * rec
        bound = (6.0 / (fan_in + fan_out)) ** 0.5
        return jax.random.uniform(next(keys), shape, jnp.float32, -bound, bound)

    def res_params(d):
        return dict(
            w1=conv_w((d, d, 3, 3)), b1=jnp.zeros((d,), jnp.float32),
            g1=jnp.ones((d,), jnp.float32), be1=jnp.zeros((d,), jnp.float32),
            w2=conv_w((d, d, 1, 1)), b2=jnp.zeros((d,), jnp.float32),
            g2=jnp.ones((d,), jnp.float32), be2=jnp.zeros((d,), jnp.float32),
        )

    return dict(
        enc_conv0_w=conv_w((dim, input_dim, 4, 4)),
        enc_conv0_b=jnp.zeros((dim,), jnp.float32),
        enc_bn0_g=jnp.ones((dim,), jnp.float32),
        enc_bn0_b=jnp.zeros((dim,), jnp.float32),
        enc_conv1_w=conv_w((dim, dim, 4, 4)),
        enc_conv1_b=jnp.zeros((dim,), jnp.float32),
        enc_res0=res_params(dim), enc_res1=res_params(dim),
        dec_res0=res_params(dim), dec_res1=res_params(dim),
        dec_convt0_w=conv_w((dim, dim, 4, 4)),            # ConvTranspose2d layout (Cin,Cout,kh,kw)
        dec_convt0_b=jnp.zeros((dim,), jnp.float32),
        dec_bn0_g=jnp.ones((dim,), jnp.float32),
        dec_bn0_b=jnp.zeros((dim,), jnp.float32),
        dec_convt1_w=conv_w((dim, input_dim, 4, 4)),
        dec_convt1_b=jnp.zeros((input_dim,), jnp.float32),
        codebook=jax.random.uniform(next(keys), (K, dim), jnp.float32, -1.0 / K, 1.0 / K),
    )


# ------------------------------------------------------------------ main
if __name__ == "__main__":
    key = jax.random.PRNGKey(0)
    pkey, xkey = jax.random.split(key)

    B, C_IN, IMG, DIM, K = 2, 1, 16, 32, 64
    params = init_params(pkey, input_dim=C_IN, dim=DIM, K=K)
    x = jax.random.uniform(xkey, (B, C_IN, IMG, IMG), jnp.float32)

    fwd = jax.jit(vqvae_forward)
    x_tilde, z_e_x, z_q_x, indices = fwd(params, x)
    jax.block_until_ready((x_tilde, z_e_x, z_q_x, indices))

    assert x_tilde.shape == (B, C_IN, IMG, IMG)
    assert z_e_x.shape == (B, DIM, IMG // 4, IMG // 4)
    assert z_q_x.shape == (B, DIM, IMG // 4, IMG // 4)
    assert indices.shape == (B * (IMG // 4) * (IMG // 4),)
    assert bool(jnp.all(jnp.isfinite(x_tilde)))
    assert bool(jnp.all((x_tilde >= 0.0) & (x_tilde <= 1.0)))        # sigmoid output
    assert bool(jnp.all((indices >= 0) & (indices < K)))
    # TODO(synk): BatchNorm running-stat updates (module state mutation) are not modeled;
    # forward values follow PyTorch training-mode batch statistics.
    print("KERNEL_OK")
</pallas_src>

<mosaic_0001>
module attributes {stable_mosaic.version = 11 : i64} {
  func.func @_conv_bn_act_kernel(%arg0: memref<164x4xf32, #tpu.memory_space<vmem>>, %arg1: memref<4x4x32xf32, #tpu.memory_space<vmem>>, %arg2: memref<1x32xf32, #tpu.memory_space<vmem>>, %arg3: memref<1x32xf32, #tpu.memory_space<vmem>>, %arg4: memref<1x32xf32, #tpu.memory_space<vmem>>, %arg5: memref<144x1xf32, #tpu.memory_space<vmem>>, %arg6: memref<144x32xf32, #tpu.memory_space<vmem>>) attributes {dimension_semantics = [], scalar_prefetch = 0 : i64, scratch_operands = 0 : i64, tpu.core_type = #tpu.core_type<tc>} {
    %c0 = arith.constant 0 : index
    %c0_0 = arith.constant 0 : index
    %0 = vector.load %arg0[%c0, %c0_0] : memref<164x4xf32, #tpu.memory_space<vmem>>, vector<164x4xf32>
    %cst = arith.constant 0.000000e+00 : f32
    %1 = vector.broadcast %cst : f32 to vector<144x32xf32>
    %2 = vector.extract_strided_slice %0 {offsets = [0, 0], sizes = [144, 4], strides = [1, 1]} : vector<164x4xf32> to vector<144x4xf32>
    %c0_1 = arith.constant 0 : index
    %c0_2 = arith.constant 0 : index
    %c0_3 = arith.constant 0 : index
    %3 = vector.load %arg1[%c0_1, %c0_2, %c0_3] : memref<4x4x32xf32, #tpu.memory_space<vmem>>, vector<1x4x32xf32>
    %4 = vector.shape_cast %3 : vector<1x4x32xf32> to vector<4x32xf32>
    %cst_4 = arith.constant dense<0.000000e+00> : vector<144x32xf32>
    %5 = tpu.matmul %2, %4, %cst_4 {dimension_numbers = #tpu.dot_dimension_numbers<[1], [0], [0], [1], [0, 0, 1, 1], [], []>} : vector<144x4xf32>, vector<4x32xf32>, vector<144x32xf32> -> vector<144x32xf32>
    %6 = arith.addf %1, %5 : vector<144x32xf32>
    %7 = vector.extract_strided_slice %0 {offsets = [2, 0], sizes = [144, 4], strides = [1, 1]} : vector<164x4xf32> to vector<144x4xf32>
    %c1 = arith.constant 1 : index
    %c0_5 = arith.constant 0 : index
    %c0_6 = arith.constant 0 : index
    %8 = vector.load %arg1[%c1, %c0_5, %c0_6] : memref<4x4x32xf32, #tpu.memory_space<vmem>>, vector<1x4x32xf32>
    %9 = vector.shape_cast %8 : vector<1x4x32xf32> to vector<4x32xf32>
    %cst_7 = arith.constant dense<0.000000e+00> : vector<144x32xf32>
    %10 = tpu.matmul %7, %9, %cst_7 {dimension_numbers = #tpu.dot_dimension_numbers<[1], [0], [0], [1], [0, 0, 1, 1], [], []>} : vector<144x4xf32>, vector<4x32xf32>, vector<144x32xf32> -> vector<144x32xf32>
    %11 = arith.addf %6, %10 : vector<144x32xf32>
    %12 = vector.extract_strided_slice %0 {offsets = [18, 0], sizes = [144, 4], strides = [1, 1]} : vector<164x4xf32> to vector<144x4xf32>
    %c2 = arith.constant 2 : index
    %c0_8 = arith.constant 0 : index
    %c0_9 = arith.constant 0 : index
    %13 = vector.load %arg1[%c2, %c0_8, %c0_9] : memref<4x4x32xf32, #tpu.memory_space<vmem>>, vector<1x4x32xf32>
    %14 = vector.shape_cast %13 : vector<1x4x32xf32> to vector<4x32xf32>
    %cst_10 = arith.constant dense<0.000000e+00> : vector<144x32xf32>
    %15 = tpu.matmul %12, %14, %cst_10 {dimension_numbers = #tpu.dot_dimension_numbers<[1], [0], [0], [1], [0, 0, 1, 1], [], []>} : vector<144x4xf32>, vector<4x32xf32>, vector<144x32xf32> -> vector<144x32xf32>
    %16 = arith.addf %11, %15 : vector<144x32xf32>
    %17 = vector.extract_strided_slice %0 {offsets = [20, 0], sizes = [144, 4], strides = [1, 1]} : vector<164x4xf32> to vector<144x4xf32>
    %c3 = arith.constant 3 : index
    %c0_11 = arith.constant 0 : index
    %c0_12 = arith.constant 0 : index
    %18 = vector.load %arg1[%c3, %c0_11, %c0_12] : memref<4x4x32xf32, #tpu.memory_space<vmem>>, vector<1x4x32xf32>
    %19 = vector.shape_cast %18 : vector<1x4x32xf32> to vector<4x32xf32>
    %cst_13 = arith.constant dense<0.000000e+00> : vector<144x32xf32>
    %20 = tpu.matmul %17, %19, %cst_13 {dimension_numbers = #tpu.dot_dimension_numbers<[1], [0], [0], [1], [0, 0, 1, 1], [], []>} : vector<144x4xf32>, vector<4x32xf32>, vector<144x32xf32> -> vector<144x32xf32>
    %21 = arith.addf %16, %20 : vector<144x32xf32>
    %c0_14 = arith.constant 0 : index
    %c0_15 = arith.constant 0 : index
    %22 = vector.load %arg2[%c0_14, %c0_15] : memref<1x32xf32, #tpu.memory_space<vmem>>, vector<1x32xf32>
    %23 = vector.broadcast %22 : vector<1x32xf32> to vector<144x32xf32>
    %24 = arith.addf %21, %23 : vector<144x32xf32>
    %c0_16 = arith.constant 0 : index
    %c0_17 = arith.constant 0 : index
    %25 = vector.load %arg5[%c0_16, %c0_17] : memref<144x1xf32, #tpu.memory_space<vmem>>, vector<144x1xf32>
    %c0_18 = arith.constant 0 : index
    %c0_19 = arith.constant 0 : index
    %26 = vector.load %arg3[%c0_18, %c0_19] : memref<1x32xf32, #tpu.memory_space<vmem>>, vector<1x32xf32>
    %c0_20 = arith.constant 0 : index
    %c0_21 = arith.constant 0 : index
    %27 = vector.load %arg4[%c0_20, %c0_21] : memref<1x32xf32, #tpu.memory_space<vmem>>, vector<1x32xf32>
    %28 = vector.broadcast %25 : vector<144x1xf32> to vector<144x32xf32>
    %29 = arith.mulf %24, %28 : vector<144x32xf32>
    %cst_22 = arith.constant dense<0.000000e+00> : vector<32xf32>
    %30 = vector.multi_reduction <add>, %29, %cst_22 [0] : vector<144x32xf32> to vector<32xf32>
    %31 = vector.shape_cast %30 : vector<32xf32> to vector<1x32xf32>
    %cst_23 = arith.constant 7.812500e-03 : f32
    %32 = vector.broadcast %cst_23 : f32 to vector<1x32xf32>
    %33 = arith.mulf %31, %32 : vector<1x32xf32>
    %34 = arith.mulf %29, %24 : vector<144x32xf32>
    %cst_24 = arith.constant dense<0.000000e+00> : vector<32xf32>
    %35 = vector.multi_reduction <add>, %34, %cst_24 [0] : vector<144x32xf32> to vector<32xf32>
    %36 = vector.shape_cast %35 : vector<32xf32> to vector<1x32xf32>
    %cst_25 = arith.constant 7.812500e-03 : f32
    %37 = vector.broadcast %cst_25 : f32 to vector<1x32xf32>
    %38 = arith.mulf %36, %37 : vector<1x32xf32>
    %39 = arith.mulf %33, %33 : vector<1x32xf32>
    %40 = arith.subf %38, %39 : vector<1x32xf32>
    %41 = vector.broadcast %33 : vector<1x32xf32> to vector<144x32xf32>
    %42 = arith.subf %24, %41 : vector<144x32xf32>
    %cst_26 = arith.constant 9.99999974E-6 : f32
    %43 = vector.broadcast %cst_26 : f32 to vector<1x32xf32>
    %44 = arith.addf %40, %43 : vector<1x32xf32>
    %45 = math.rsqrt %44 : vector<1x32xf32>
    %46 = vector.broadcast %45 : vector<1x32xf32> to vector<144x32xf32>
    %47 = arith.mulf %42, %46 : vector<144x32xf32>
    %48 = vector.broadcast %26 : vector<1x32xf32> to vector<144x32xf32>
    %49 = arith.mulf %47, %48 : vector<144x32xf32>
    %50 = vector.broadcast %27 : vector<1x32xf32> to vector<144x32xf32>
    %51 = arith.addf %49, %50 : vector<144x32xf32>
    %cst_27 = arith.constant 0.000000e+00 : f32
    %52 = vector.broadcast %cst_27 : f32 to vector<144x32xf32>
    %53 = arith.maximumf %51, %52 : vector<144x32xf32>
    %c0_28 = arith.constant 0 : index
    %c0_29 = arith.constant 0 : index
    %54 = vector.load %arg6[%c0_28, %c0_29] : memref<144x32xf32, #tpu.memory_space<vmem>>, vector<144x32xf32>
    tpu.vector_store %arg6[%c0_28, %c0_29], %53 {strides = array<i32>} : memref<144x32xf32, #tpu.memory_space<vmem>>, vector<144x32xf32>,
    return
  }
}

module attributes {stable_mosaic.version = 11 : i64} {
  func.func @_conv_bias_kernel(%arg0: memref<52x128xf32, #tpu.memory_space<vmem>>, %arg1: memref<4x128x32xbf16, #tpu.memory_space<vmem>>, %arg2: memref<1x32xf32, #tpu.memory_space<vmem>>, %arg3: memref<40x32xf32, #tpu.memory_space<vmem>>) attributes {dimension_semantics = [], scalar_prefetch = 0 : i64, scratch_operands = 0 : i64, tpu.core_type = #tpu.core_type<tc>} {
    %c0 = arith.constant 0 : index
    %c0_0 = arith.constant 0 : index
    %0 = vector.load %arg0[%c0, %c0_0] : memref<52x128xf32, #tpu.memory_space<vmem>>, vector<52x128xf32>
    %1 = arith.truncf %0 : vector<52x128xf32> to vector<52x128xbf16>
    %cst = arith.constant 0.000000e+00 : f32
    %2 = vector.broadcast %cst : f32 to vector<40x32xf32>
    %3 = vector.extract_strided_slice %1 {offsets = [0, 0], sizes = [40, 128], strides = [1, 1]} : vector<52x128xbf16> to vector<40x128xbf16>
    %c0_1 = arith.constant 0 : index
    %c0_2 = arith.constant 0 : index
    %c0_3 = arith.constant 0 : index
    %4 = vector.load %arg1[%c0_1, %c0_2, %c0_3] : memref<4x128x32xbf16, #tpu.memory_space<vmem>>, vector<1x128x32xbf16>
    %5 = vector.shape_cast %4 : vector<1x128x32xbf16> to vector<128x32xbf16>
    %cst_4 = arith.constant dense<0.000000e+00> : vector<40x32xf32>
    %6 = tpu.matmul %3, %5, %cst_4 {dimension_numbers = #tpu.dot_dimension_numbers<[1], [0], [0], [1], [0, 0, 1, 1], [], []>} : vector<40x128xbf16>, vector<128x32xbf16>, vector<40x32xf32> -> vector<40x32xf32>
    %7 = arith.addf %2, %6 : vector<40x32xf32>
    %8 = vector.extract_strided_slice %1 {offsets = [2, 0], sizes = [40, 128], strides = [1, 1]} : vector<52x128xbf16> to vector<40x128xbf16>
    %c1 = arith.constant 1 : index
    %c0_5 = arith.constant 0 : index
    %c0_6 = arith.constant 0 : index
    %9 = vector.load %arg1[%c1, %c0_5, %c0_6] : memref<4x128x32xbf16, #tpu.memory_space<vmem>>, vector<1x128x32xbf16>
    %10 = vector.shape_cast %9 : vector<1x128x32xbf16> to vector<128x32xbf16>
    %cst_7 = arith.constant dense<0.000000e+00> : vector<40x32xf32>
    %11 = tpu.matmul %8, %10, %cst_7 {dimension_numbers = #tpu.dot_dimension_numbers<[1], [0], [0], [1], [0, 0, 1, 1], [], []>} : vector<40x128xbf16>, vector<128x32xbf16>, vector<40x32xf32> -> vector<40x32xf32>
    %12 = arith.addf %7, %11 : vector<40x32xf32>
    %13 = vector.extract_strided_slice %1 {offsets = [10, 0], sizes = [40, 128], strides = [1, 1]} : vector<52x128xbf16> to vector<40x128xbf16>
    %c2 = arith.constant 2 : index
    %c0_8 = arith.constant 0 : index
    %c0_9 = arith.constant 0 : index
    %14 = vector.load %arg1[%c2, %c0_8, %c0_9] : memref<4x128x32xbf16, #tpu.memory_space<vmem>>, vector<1x128x32xbf16>
    %15 = vector.shape_cast %14 : vector<1x128x32xbf16> to vector<128x32xbf16>
    %cst_10 = arith.constant dense<0.000000e+00> : vector<40x32xf32>
    %16 = tpu.matmul %13, %15, %cst_10 {dimension_numbers = #tpu.dot_dimension_numbers<[1], [0], [0], [1], [0, 0, 1, 1], [], []>} : vector<40x128xbf16>, vector<128x32xbf16>, vector<40x32xf32> -> vector<40x32xf32>
    %17 = arith.addf %12, %16 : vector<40x32xf32>
    %18 = vector.extract_strided_slice %1 {offsets = [12, 0], sizes = [40, 128], strides = [1, 1]} : vector<52x128xbf16> to vector<40x128xbf16>
    %c3 = arith.constant 3 : index
    %c0_11 = arith.constant 0 : index
    %c0_12 = arith.constant 0 : index
    %19 = vector.load %arg1[%c3, %c0_11, %c0_12] : memref<4x128x32xbf16, #tpu.memory_space<vmem>>, vector<1x128x32xbf16>
    %20 = vector.shape_cast %19 : vector<1x128x32xbf16> to vector<128x32xbf16>
    %cst_13 = arith.constant dense<0.000000e+00> : vector<40x32xf32>
    %21 = tpu.matmul %18, %20, %cst_13 {dimension_numbers = #tpu.dot_dimension_numbers<[1], [0], [0], [1], [0, 0, 1, 1], [], []>} : vector<40x128xbf16>, vector<128x32xbf16>, vector<40x32xf32> -> vector<40x32xf32>
    %22 = arith.addf %17, %21 : vector<40x32xf32>
    %c0_14 = arith.constant 0 : index
    %c0_15 = arith.constant 0 : index
    %23 = vector.load %arg2[%c0_14, %c0_15] : memref<1x32xf32, #tpu.memory_space<vmem>>, vector<1x32xf32>
    %24 = vector.broadcast %23 : vector<1x32xf32> to vector<40x32xf32>
    %25 = arith.addf %22, %24 : vector<40x32xf32>
    %c0_16 = arith.constant 0 : index
    %c0_17 = arith.constant 0 : index
    %26 = vector.load %arg3[%c0_16, %c0_17] : memref<40x32xf32, #tpu.memory_space<vmem>>, vector<40x32xf32>
    tpu.vector_store %arg3[%c0_16, %c0_17], %25 {strides = array<i32>} : memref<40x32xf32, #tpu.memory_space<vmem>>, vector<40x32xf32>,
    return
  }
}

module attributes {stable_mosaic.version = 11 : i64} {
  func.func @_resblock_kernel(%arg0: memref<76x32xf32, #tpu.memory_space<vmem>>, %arg1: memref<9x32x32xbf16, #tpu.memory_space<vmem>>, %arg2: memref<1x32xf32, #tpu.memory_space<vmem>>, %arg3: memref<1x32xf32, #tpu.memory_space<vmem>>, %arg4: memref<1x32xf32, #tpu.memory_space<vmem>>, %arg5: memref<32x32xbf16, #tpu.memory_space<vmem>>, %arg6: memref<1x32xf32, #tpu.memory_space<vmem>>, %arg7: memref<1x32xf32, #tpu.memory_space<vmem>>, %arg8: memref<1x32xf32, #tpu.memory_space<vmem>>, %arg9: memref<48x1xf32, #tpu.memory_space<vmem>>, %arg10: memref<48x32xf32, #tpu.memory_space<vmem>>) attributes {dimension_semantics = [], scalar_prefetch = 0 : i64, scratch_operands = 0 : i64, tpu.core_type = #tpu.core_type<tc>} {
    %c0 = arith.constant 0 : index
    %c0_0 = arith.constant 0 : index
    %0 = vector.load %arg0[%c0, %c0_0] : memref<76x32xf32, #tpu.memory_space<vmem>>, vector<76x32xf32>
    %cst = arith.constant 0.000000e+00 : f32
    %1 = vector.broadcast %cst : f32 to vector<76x32xf32>
    %2 = arith.maximumf %0, %1 : vector<76x32xf32>
    %c0_1 = arith.constant 0 : index
    %c0_2 = arith.constant 0 : index
    %3 = vector.load %arg9[%c0_1, %c0_2] : memref<48x1xf32, #tpu.memory_space<vmem>>, vector<48x1xf32>
    %4 = arith.truncf %2 : vector<76x32xf32> to vector<76x32xbf16>
    %cst_3 = arith.constant 0.000000e+00 : f32
    %5 = vector.broadcast %cst_3 : f32 to vector<48x32xf32>
    %6 = vector.extract_strided_slice %4 {offsets = [0, 0], sizes = [48, 32], strides = [1, 1]} : vector<76x32xbf16> to vector<48x32xbf16>
    %c0_4 = arith.constant 0 : index
    %c0_5 = arith.constant 0 : index
    %c0_6 = arith.constant 0 : index
    %7 = vector.load %arg1[%c0_4, %c0_5, %c0_6] : memref<9x32x32xbf16, #tpu.memory_space<vmem>>, vector<1x32x32xbf16>
    %8 = vector.shape_cast %7 : vector<1x32x32xbf16> to vector<32x32xbf16>
    %cst_7 = arith.constant dense<0.000000e+00> : vector<48x32xf32>
    %9 = tpu.matmul %6, %8, %cst_7 {dimension_numbers = #tpu.dot_dimension_numbers<[1], [0], [0], [1], [0, 0, 1, 1], [], []>} : vector<48x32xbf16>, vector<32x32xbf16>, vector<48x32xf32> -> vector<48x32xf32>
    %10 = arith.addf %5, %9 : vector<48x32xf32>
    %11 = vector.extract_strided_slice %4 {offsets = [2, 0], sizes = [48, 32], strides = [1, 1]} : vector<76x32xbf16> to vector<48x32xbf16>
    %c1 = arith.constant 1 : index
    %c0_8 = arith.constant 0 : index
    %c0_9 = arith.constant 0 : index
    %12 = vector.load %arg1[%c1, %c0_8, %c0_9] : memref<9x32x32xbf16, #tpu.memory_space<vmem>>, vector<1x32x32xbf16>
    %13 = vector.shape_cast %12 : vector<1x32x32xbf16> to vector<32x32xbf16>
    %cst_10 = arith.constant dense<0.000000e+00> : vector<48x32xf32>
    %14 = tpu.matmul %11, %13, %cst_10 {dimension_numbers = #tpu.dot_dimension_numbers<[1], [0], [0], [1], [0, 0, 1, 1], [], []>} : vector<48x32xbf16>, vector<32x32xbf16>, vector<48x32xf32> -> vector<48x32xf32>
    %15 = arith.addf %10, %14 : vector<48x32xf32>
    %16 = vector.extract_strided_slice %4 {offsets = [4, 0], sizes = [48, 32], strides = [1, 1]} : vector<76x32xbf16> to vector<48x32xbf16>
    %c2 = arith.constant 2 : index
    %c0_11 = arith.constant 0 : index
    %c0_12 = arith.constant 0 : index
    %17 = vector.load %arg1[%c2, %c0_11, %c0_12] : memref<9x32x32xbf16, #tpu.memory_space<vmem>>, vector<1x32x32xbf16>
    %18 = vector.shape_cast %17 : vector<1x32x32xbf16> to vector<32x32xbf16>
    %cst_13 = arith.constant dense<0.000000e+00> : vector<48x32xf32>
    %19 = tpu.matmul %16, %18, %cst_13 {dimension_numbers = #tpu.dot_dimension_numbers<[1], [0], [0], [1], [0, 0, 1, 1], [], []>} : vector<48x32xbf16>, vector<32x32xbf16>, vector<48x32xf32> -> vector<48x32xf32>
    %20 = arith.addf %15, %19 : vector<48x32xf32>
    %21 = vector.extract_strided_slice %4 {offsets = [12, 0], sizes = [48, 32], strides = [1, 1]} : vector<76x32xbf16> to vector<48x32xbf16>
    %c3 = arith.constant 3 : index
    %c0_14 = arith.constant 0 : index
    %c0_15 = arith.constant 0 : index
    %22 = vector.load %arg1[%c3, %c0_14, %c0_15] : memref<9x32x32xbf16, #tpu.memory_space<vmem>>, vector<1x32x32xbf16>
    %23 = vector.shape_cast %22 : vector<1x32x32xbf16> to vector<32x32xbf16>
    %cst_16 = arith.constant dense<0.000000e+00> : vector<48x32xf32>
    %24 = tpu.matmul %21, %23, %cst_16 {dimension_numbers = #tpu.dot_dimension_numbers<[1], [0], [0], [1], [0, 0, 1, 1], [], []>} : vector<48x32xbf16>, vector<32x32xbf16>, vector<48x32xf32> -> vector<48x32xf32>
    %25 = arith.addf %20, %24 : vector<48x32xf32>
    %26 = vector.extract_strided_slice %4 {offsets = [14, 0], sizes = [48, 32], strides = [1, 1]} : vector<76x32xbf16> to vector<48x32xbf16>
    %c4 = arith.constant 4 : index
    %c0_17 = arith.constant 0 : index
    %c0_18 = arith.constant 0 : index
    %27 = vector.load %arg1[%c4, %c0_17, %c0_18] : memref<9x32x32xbf16, #tpu.memory_space<vmem>>, vector<1x32x32xbf16>
    %28 = vector.shape_cast %27 : vector<1x32x32xbf16> to vector<32x32xbf16>
    %cst_19 = arith.constant dense<0.000000e+00> : vector<48x32xf32>
    %29 = tpu.matmul %26, %28, %cst_19 {dimension_numbers = #tpu.dot_dimension_numbers<[1], [0], [0], [1], [0, 0, 1, 1], [], []>} : vector<48x32xbf16>, vector<32x32xbf16>, vector<48x32xf32> -> vector<48x32xf32>
    %30 = arith.addf %25, %29 : vector<48x32xf32>
    %31 = vector.extract_strided_slice %4 {offsets = [16, 0], sizes = [48, 32], strides = [1, 1]} : vector<76x32xbf16> to vector<48x32xbf16>
    %c5 = arith.constant 5 : index
    %c0_20 = arith.constant 0 : index
    %c0_21 = arith.constant 0 : index
    %32 = vector.load %arg1[%c5, %c0_20, %c0_21] : memref<9x32x32xbf16, #tpu.memory_space<vmem>>, vector<1x32x32xbf16>
    %33 = vector.shape_cast %32 : vector<1x32x32xbf16> to vector<32x32xbf16>
    %cst_22 = arith.constant dense<0.000000e+00> : vector<48x32xf32>
    %34 = tpu.matmul %31, %33, %cst_22 {dimension_numbers = #tpu.dot_dimension_numbers<[1], [0], [0], [1], [0, 0, 1, 1], [], []>} : vector<48x32xbf16>, vector<32x32xbf16>, vector<48x32xf32> -> vector<48x32xf32>
    %35 = arith.addf %30, %34 : vector<48x32xf32>
    %36 = vector.extract_strided_slice %4 {offsets = [24, 0], sizes = [48, 32], strides = [1, 1]} : vector<76x32xbf16> to vector<48x32xbf16>
    %c6 = arith.constant 6 : index
    %c0_23 = arith.constant 0 : index
    %c0_24 = arith.constant 0 : index
    %37 = vector.load %arg1[%c6, %c0_23, %c0_24] : memref<9x32x32xbf16, #tpu.memory_space<vmem>>, vector<1x32x32xbf16>
    %38 = vector.shape_cast %37 : vector<1x32x32xbf16> to vector<32x32xbf16>
    %cst_25 = arith.constant dense<0.000000e+00> : vector<48x32xf32>
    %39 = tpu.matmul %36, %38, %cst_25 {dimension_numbers = #tpu.dot_dimension_numbers<[1], [0], [0], [1], [0, 0, 1, 1], [], []>} : vector<48x32xbf16>, vector<32x32xbf16>, vector<48x32xf32> -> vector<48x32xf32>
    %40 = arith.addf %35, %39 : vector<48x32xf32>
    %41 = vector.extract_strided_slice %4 {offsets = [26, 0], sizes = [48, 32], strides = [1, 1]} : vector<76x32xbf16> to vector<48x32xbf16>
    %c7 = arith.constant 7 : index
    %c0_26 = arith.constant 0 : index
    %c0_27 = arith.constant 0 : index
    %42 = vector.load %arg1[%c7, %c0_26, %c0_27] : memref<9x32x32xbf16, #tpu.memory_space<vmem>>, vector<1x32x32xbf16>
    %43 = vector.shape_cast %42 : vector<1x32x32xbf16> to vector<32x32xbf16>
    %cst_28 = arith.constant dense<0.000000e+00> : vector<48x32xf32>
    %44 = tpu.matmul %41, %43, %cst_28 {dimension_numbers = #tpu.dot_dimension_numbers<[1], [0], [0], [1], [0, 0, 1, 1], [], []>} : vector<48x32xbf16>, vector<32x32xbf16>, vector<48x32xf32> -> vector<48x32xf32>
    %45 = arith.addf %40, %44 : vector<48x32xf32>
    %46 = vector.extract_strided_slice %4 {offsets = [28, 0], sizes = [48, 32], strides = [1, 1]} : vector<76x32xbf16> to vector<48x32xbf16>
    %c8 = arith.constant 8 : index
    %c0_29 = arith.constant 0 : index
    %c0_30 = arith.constant 0 : index
    %47 = vector.load %arg1[%c8, %c0_29, %c0_30] : memref<9x32x32xbf16, #tpu.memory_space<vmem>>, vector<1x32x32xbf16>
    %48 = vector.shape_cast %47 : vector<1x32x32xbf16> to vector<32x32xbf16>
    %cst_31 = arith.constant dense<0.000000e+00> : vector<48x32xf32>
    %49 = tpu.matmul %46, %48, %cst_31 {dimension_numbers = #tpu.dot_dimension_numbers<[1], [0], [0], [1], [0, 0, 1, 1], [], []>} : vector<48x32xbf16>, vector<32x32xbf16>, vector<48x32xf32> -> vector<48x32xf32>
    %50 = arith.addf %45, %49 : vector<48x32xf32>
    %c0_32 = arith.constant 0 : index
    %c0_33 = arith.constant 0 : index
    %51 = vector.load %arg2[%c0_32, %c0_33] : memref<1x32xf32, #tpu.memory_space<vmem>>, vector<1x32xf32>
    %52 = vector.broadcast %51 : vector<1x32xf32> to vector<48x32xf32>
    %53 = arith.addf %50, %52 : vector<48x32xf32>
    %c0_34 = arith.constant 0 : index
    %c0_35 = arith.constant 0 : index
    %54 = vector.load %arg3[%c0_34, %c0_35] : memref<1x32xf32, #tpu.memory_space<vmem>>, vector<1x32xf32>
    %c0_36 = arith.constant 0 : index
    %c0_37 = arith.constant 0 : index
    %55 = vector.load %arg4[%c0_36, %c0_37] : memref<1x32xf32, #tpu.memory_space<vmem>>, vector<1x32xf32>
    %56 = vector.broadcast %3 : vector<48x1xf32> to vector<48x32xf32>
    %57 = arith.mulf %53, %56 : vector<48x32xf32>
    %cst_38 = arith.constant dense<0.000000e+00> : vector<32xf32>
    %58 = vector.multi_reduction <add>, %57, %cst_38 [0] : vector<48x32xf32> to vector<32xf32>
    %59 = vector.shape_cast %58 : vector<32xf32> to vector<1x32xf32>
    %cst_39 = arith.constant 3.125000e-02 : f32
    %60 = vector.broadcast %cst_39 : f32 to vector<1x32xf32>
    %61 = arith.mulf %59, %60 : vector<1x32xf32>
    %62 = arith.mulf %57, %53 : vector<48x32xf32>
    %cst_40 = arith.constant dense<0.000000e+00> : vector<32xf32>
    %63 = vector.multi_reduction <add>, %62, %cst_40 [0] : vector<48x32xf32> to vector<32xf32>
    %64 = vector.shape_cast %63 : vector<32xf32> to vector<1x32xf32>
    %cst_41 = arith.constant 3.125000e-02 : f32
    %65 = vector.broadcast %cst_41 : f32 to vector<1x32xf32>
    %66 = arith.mulf %64, %65 : vector<1x32xf32>
    %67 = arith.mulf %61, %61 : vector<1x32xf32>
    %68 = arith.subf %66, %67 : vector<1x32xf32>
    %69 = vector.broadcast %61 : vector<1x32xf32> to vector<48x32xf32>
    %70 = arith.subf %53, %69 : vector<48x32xf32>
    %cst_42 = arith.constant 9.99999974E-6 : f32
    %71 = vector.broadcast %cst_42 : f32 to vector<1x32xf32>
    %72 = arith.addf %68, %71 : vector<1x32xf32>
    %73 = math.rsqrt %72 : vector<1x32xf32>
    %74 = vector.broadcast %73 : vector<1x32xf32> to vector<48x32xf32>
    %75 = arith.mulf %70, %74 : vector<48x32xf32>
    %76 = vector.broadcast %54 : vector<1x32xf32> to vector<48x32xf32>
    %77 = arith.mulf %75, %76 : vector<48x32xf32>
    %78 = vector.broadcast %55 : vector<1x32xf32> to vector<48x32xf32>
    %79 = arith.addf %77, %78 : vector<48x32xf32>
    %cst_43 = arith.constant 0.000000e+00 : f32
    %80 = vector.broadcast %cst_43 : f32 to vector<48x32xf32>
    %81 = arith.maximumf %79, %80 : vector<48x32xf32>
    %82 = arith.truncf %81 : vector<48x32xf32> to vector<48x32xbf16>
    %c0_44 = arith.constant 0 : index
    %c0_45 = arith.constant 0 : index
    %83 = vector.load %arg5[%c0_44, %c0_45] : memref<32x32xbf16, #tpu.memory_space<vmem>>, vector<32x32xbf16>
    %cst_46 = arith.constant dense<0.000000e+00> : vector<48x32xf32>
    %84 = tpu.matmul %82, %83, %cst_46 {dimension_numbers = #tpu.dot_dimension_numbers<[1], [0], [0], [1], [0, 0, 1, 1], [], []>} : vector<48x32xbf16>, vector<32x32xbf16>, vector<48x32xf32> -> vector<48x32xf32>
    %c0_47 = arith.constant 0 : index
    %c0_48 = arith.constant 0 : index
    %85 = vector.load %arg6[%c0_47, %c0_48] : memref<1x32xf32, #tpu.memory_space<vmem>>, vector<1x32xf32>
    %86 = vector.broadcast %85 : vector<1x32xf32> to vector<48x32xf32>
    %87 = arith.addf %84, %86 : vector<48x32xf32>
    %c0_49 = arith.constant 0 : index
    %c0_50 = arith.constant 0 : index
    %88 = vector.load %arg7[%c0_49, %c0_50] : memref<1x32xf32, #tpu.memory_space<vmem>>, vector<1x32xf32>
    %c0_51 = arith.constant 0 : index
    %c0_52 = arith.constant 0 : index
    %89 = vector.load %arg8[%c0_51, %c0_52] : memref<1x32xf32, #tpu.memory_space<vmem>>, vector<1x32xf32>
    %90 = vector.broadcast %3 : vector<48x1xf32> to vector<48x32xf32>
    %91 = arith.mulf %87, %90 : vector<48x32xf32>
    %cst_53 = arith.constant dense<0.000000e+00> : vector<32xf32>
    %92 = vector.multi_reduction <add>, %91, %cst_53 [0] : vector<48x32xf32> to vector<32xf32>
    %93 = vector.shape_cast %92 : vector<32xf32> to vector<1x32xf32>
    %cst_54 = arith.constant 3.125000e-02 : f32
    %94 = vector.broadcast %cst_54 : f32 to vector<1x32xf32>
    %95 = arith.mulf %93, %94 : vector<1x32xf32>
    %96 = arith.mulf %91, %87 : vector<48x32xf32>
    %cst_55 = arith.constant dense<0.000000e+00> : vector<32xf32>
    %97 = vector.multi_reduction <add>, %96, %cst_55 [0] : vector<48x32xf32> to vector<32xf32>
    %98 = vector.shape_cast %97 : vector<32xf32> to vector<1x32xf32>
    %cst_56 = arith.constant 3.125000e-02 : f32
    %99 = vector.broadcast %cst_56 : f32 to vector<1x32xf32>
    %100 = arith.mulf %98, %99 : vector<1x32xf32>
    %101 = arith.mulf %95, %95 : vector<1x32xf32>
    %102 = arith.subf %100, %101 : vector<1x32xf32>
    %103 = vector.broadcast %95 : vector<1x32xf32> to vector<48x32xf32>
    %104 = arith.subf %87, %103 : vector<48x32xf32>
    %cst_57 = arith.constant 9.99999974E-6 : f32
    %105 = vector.broadcast %cst_57 : f32 to vector<1x32xf32>
    %106 = arith.addf %102, %105 : vector<1x32xf32>
    %107 = math.rsqrt %106 : vector<1x32xf32>
    %108 = vector.broadcast %107 : vector<1x32xf32> to vector<48x32xf32>
    %109 = arith.mulf %104, %108 : vector<48x32xf32>
    %110 = vector.broadcast %88 : vector<1x32xf32> to vector<48x32xf32>
    %111 = arith.mulf %109, %110 : vector<48x32xf32>
    %112 = vector.broadcast %89 : vector<1x32xf32> to vector<48x32xf32>
    %113 = arith.addf %111, %112 : vector<48x32xf32>
    %114 = vector.extract_strided_slice %0 {offsets = [14, 0], sizes = [48, 32], strides = [1, 1]} : vector<76x32xf32> to vector<48x32xf32>
    %115 = arith.addf %113, %114 : vector<48x32xf32>
    %c0_58 = arith.constant 0 : index
    %c0_59 = arith.constant 0 : index
    %116 = vector.load %arg10[%c0_58, %c0_59] : memref<48x32xf32, #tpu.memory_space<vmem>>, vector<48x32xf32>
    tpu.vector_store %arg10[%c0_58, %c0_59], %115 {strides = array<i32>} : memref<48x32xf32, #tpu.memory_space<vmem>>, vector<48x32xf32>,
    return
  }
}

module attributes {stable_mosaic.version = 11 : i64} {
  func.func @_vq_kernel(%arg0: memref<32x32xf32, #tpu.memory_space<vmem>>, %arg1: memref<32x64xf32, #tpu.memory_space<vmem>>, %arg2: memref<64x32xf32, #tpu.memory_space<vmem>>, %arg3: memref<1x64xf32, #tpu.memory_space<vmem>>, %arg4: memref<32x1xi32, #tpu.memory_space<vmem>>, %arg5: memref<32x32xf32, #tpu.memory_space<vmem>>) attributes {dimension_semantics = [], scalar_prefetch = 0 : i64, scratch_operands = 0 : i64, tpu.core_type = #tpu.core_type<tc>} {
    %c0 = arith.constant 0 : index
    %c0_0 = arith.constant 0 : index
    %0 = vector.load %arg0[%c0, %c0_0] : memref<32x32xf32, #tpu.memory_space<vmem>>, vector<32x32xf32>
    %c0_1 = arith.constant 0 : index
    %c0_2 = arith.constant 0 : index
    %1 = vector.load %arg3[%c0_1, %c0_2] : memref<1x64xf32, #tpu.memory_space<vmem>>, vector<1x64xf32>
    %c0_3 = arith.constant 0 : index
    %c0_4 = arith.constant 0 : index
    %2 = vector.load %arg1[%c0_3, %c0_4] : memref<32x64xf32, #tpu.memory_space<vmem>>, vector<32x64xf32>
    %cst = arith.constant dense<0.000000e+00> : vector<32x64xf32>
    %3 = tpu.matmul %0, %2, %cst {dimension_numbers = #tpu.dot_dimension_numbers<[1], [0], [0], [1], [0, 0, 1, 1], [], []>} : vector<32x32xf32>, vector<32x64xf32>, vector<32x64xf32> -> vector<32x64xf32>
    %cst_5 = arith.constant 2.000000e+00 : f32
    %4 = vector.broadcast %cst_5 : f32 to vector<32x64xf32>
    %5 = arith.mulf %4, %3 : vector<32x64xf32>
    %6 = vector.broadcast %1 : vector<1x64xf32> to vector<32x64xf32>
    %7 = arith.subf %6, %5 : vector<32x64xf32>
    %8 = tpu.iota {dimensions = array<i32: 1>} : vector<32x64xi32>
    %cst_6 = arith.constant dense<0x7F800000> : vector<32xf32>
    %9 = vector.multi_reduction <minimumf>, %7, %cst_6 [1] : vector<32x64xf32> to vector<32xf32>
    %10 = vector.shape_cast %9 : vector<32xf32> to vector<32x1xf32>
    %11 = vector.broadcast %10 : vector<32x1xf32> to vector<32x64xf32>
    %12 = arith.cmpf ole, %7, %11 : vector<32x64xf32>
    %c64_i32 = arith.constant 64 : i32
    %13 = vector.broadcast %c64_i32 : i32 to vector<32x64xi32>
    %14 = arith.select %12, %8, %13 : vector<32x64xi1>, vector<32x64xi32>
    %cst_7 = arith.constant dense<2147483647> : vector<32xi32>
    %15 = vector.multi_reduction <minsi>, %14, %cst_7 [1] : vector<32x64xi32> to vector<32xi32>
    %16 = vector.shape_cast %15 : vector<32xi32> to vector<32x1xi32>
    %c0_8 = arith.constant 0 : index
    %c0_9 = arith.constant 0 : index
    %17 = vector.load %arg4[%c0_8, %c0_9] : memref<32x1xi32, #tpu.memory_space<vmem>>, vector<32x1xi32>
    tpu.vector_store %arg4[%c0_8, %c0_9], %16 {strides = array<i32>} : memref<32x1xi32, #tpu.memory_space<vmem>>, vector<32x1xi32>,
    %18 = vector.broadcast %16 : vector<32x1xi32> to vector<32x64xi32>
    %19 = arith.cmpi eq, %8, %18 : vector<32x64xi32>
    %20 = arith.extui %19 : vector<32x64xi1> to vector<32x64xi32>
    %21 = arith.sitofp %20 : vector<32x64xi32> to vector<32x64xf32>
    %c0_10 = arith.constant 0 : index
    %c0_11 = arith.constant 0 : index
    %22 = vector.load %arg2[%c0_10, %c0_11] : memref<64x32xf32, #tpu.memory_space<vmem>>, vector<64x32xf32>
    %cst_12 = arith.constant dense<0.000000e+00> : vector<32x32xf32>
    %23 = tpu.matmul %21, %22, %cst_12 {dimension_numbers = #tpu.dot_dimension_numbers<[1], [0], [0], [1], [0, 0, 1, 1], [], []>} : vector<32x64xf32>, vector<64x32xf32>, vector<32x32xf32> -> vector<32x32xf32>
    %c0_13 = arith.constant 0 : index
    %c0_14 = arith.constant 0 : index
    %24 = vector.load %arg5[%c0_13, %c0_14] : memref<32x32xf32, #tpu.memory_space<vmem>>, vector<32x32xf32>
    tpu.vector_store %arg5[%c0_13, %c0_14], %23 {strides = array<i32>} : memref<32x32xf32, #tpu.memory_space<vmem>>, vector<32x32xf32>,
    return
  }
}

module attributes {stable_mosaic.version = 11 : i64} {
  func.func @_convt_bn_relu_kernel(%arg0: memref<76x32xf32, #tpu.memory_space<vmem>>, %arg1: memref<16x32x32xbf16, #tpu.memory_space<vmem>>, %arg2: memref<1x32xf32, #tpu.memory_space<vmem>>, %arg3: memref<1x32xf32, #tpu.memory_space<vmem>>, %arg4: memref<1x32xf32, #tpu.memory_space<vmem>>, %arg5: memref<192x1xf32, #tpu.memory_space<vmem>>, %arg6: memref<192x32xf32, #tpu.memory_space<vmem>>) attributes {dimension_semantics = [], scalar_prefetch = 0 : i64, scratch_operands = 0 : i64, tpu.core_type = #tpu.core_type<tc>} {
    %c0 = arith.constant 0 : index
    %c0_0 = arith.constant 0 : index
    %0 = vector.load %arg0[%c0, %c0_0] : memref<76x32xf32, #tpu.memory_space<vmem>>, vector<76x32xf32>
    %cst = arith.constant 0.000000e+00 : f32
    %1 = vector.broadcast %cst : f32 to vector<76x32xf32>
    %2 = arith.maximumf %0, %1 : vector<76x32xf32>
    %3 = arith.truncf %2 : vector<76x32xf32> to vector<76x32xbf16>
    %cst_1 = arith.constant 0.000000e+00 : f32
    %4 = vector.broadcast %cst_1 : f32 to vector<48x32xf32>
    %5 = vector.extract_strided_slice %3 {offsets = [0, 0], sizes = [48, 32], strides = [1, 1]} : vector<76x32xbf16> to vector<48x32xbf16>
    %c0_2 = arith.constant 0 : index
    %c0_3 = arith.constant 0 : index
    %c0_4 = arith.constant 0 : index
    %6 = vector.load %arg1[%c0_2, %c0_3, %c0_4] : memref<16x32x32xbf16, #tpu.memory_space<vmem>>, vector<1x32x32xbf16>
    %7 = vector.shape_cast %6 : vector<1x32x32xbf16> to vector<32x32xbf16>
    %cst_5 = arith.constant dense<0.000000e+00> : vector<48x32xf32>
    %8 = tpu.matmul %5, %7, %cst_5 {dimension_numbers = #tpu.dot_dimension_numbers<[1], [0], [0], [1], [0, 0, 1, 1], [], []>} : vector<48x32xbf16>, vector<32x32xbf16>, vector<48x32xf32> -> vector<48x32xf32>
    %9 = arith.addf %4, %8 : vector<48x32xf32>
    %10 = vector.extract_strided_slice %3 {offsets = [2, 0], sizes = [48, 32], strides = [1, 1]} : vector<76x32xbf16> to vector<48x32xbf16>
    %c1 = arith.constant 1 : index
    %c0_6 = arith.constant 0 : index
    %c0_7 = arith.constant 0 : index
    %11 = vector.load %arg1[%c1, %c0_6, %c0_7] : memref<16x32x32xbf16, #tpu.memory_space<vmem>>, vector<1x32x32xbf16>
    %12 = vector.shape_cast %11 : vector<1x32x32xbf16> to vector<32x32xbf16>
    %cst_8 = arith.constant dense<0.000000e+00> : vector<48x32xf32>
    %13 = tpu.matmul %10, %12, %cst_8 {dimension_numbers = #tpu.dot_dimension_numbers<[1], [0], [0], [1], [0, 0, 1, 1], [], []>} : vector<48x32xbf16>, vector<32x32xbf16>, vector<48x32xf32> -> vector<48x32xf32>
    %14 = arith.addf %9, %13 : vector<48x32xf32>
    %15 = vector.extract_strided_slice %3 {offsets = [12, 0], sizes = [48, 32], strides = [1, 1]} : vector<76x32xbf16> to vector<48x32xbf16>
    %c2 = arith.constant 2 : index
    %c0_9 = arith.constant 0 : index
    %c0_10 = arith.constant 0 : index
    %16 = vector.load %arg1[%c2, %c0_9, %c0_10] : memref<16x32x32xbf16, #tpu.memory_space<vmem>>, vector<1x32x32xbf16>
    %17 = vector.shape_cast %16 : vector<1x32x32xbf16> to vector<32x32xbf16>
    %cst_11 = arith.constant dense<0.000000e+00> : vector<48x32xf32>
    %18 = tpu.matmul %15, %17, %cst_11 {dimension_numbers = #tpu.dot_dimension_numbers<[1], [0], [0], [1], [0, 0, 1, 1], [], []>} : vector<48x32xbf16>, vector<32x32xbf16>, vector<48x32xf32> -> vector<48x32xf32>
    %19 = arith.addf %14, %18 : vector<48x32xf32>
    %20 = vector.extract_strided_slice %3 {offsets = [14, 0], sizes = [48, 32], strides = [1, 1]} : vector<76x32xbf16> to vector<48x32xbf16>
    %c3 = arith.constant 3 : index
    %c0_12 = arith.constant 0 : index
    %c0_13 = arith.constant 0 : index
    %21 = vector.load %arg1[%c3, %c0_12, %c0_13] : memref<16x32x32xbf16, #tpu.memory_space<vmem>>, vector<1x32x32xbf16>
    %22 = vector.shape_cast %21 : vector<1x32x32xbf16> to vector<32x32xbf16>
    %cst_14 = arith.constant dense<0.000000e+00> : vector<48x32xf32>
    %23 = tpu.matmul %20, %22, %cst_14 {dimension_numbers = #tpu.dot_dimension_numbers<[1], [0], [0], [1], [0, 0, 1, 1], [], []>} : vector<48x32xbf16>, vector<32x32xbf16>, vector<48x32xf32> -> vector<48x32xf32>
    %24 = arith.addf %19, %23 : vector<48x32xf32>
    %25 = arith.truncf %2 : vector<76x32xf32> to vector<76x32xbf16>
    %cst_15 = arith.constant 0.000000e+00 : f32
    %26 = vector.broadcast %cst_15 : f32 to vector<48x32xf32>
    %27 = vector.extract_strided_slice %25 {offsets = [2, 0], sizes = [48, 32], strides = [1, 1]} : vector<76x32xbf16> to vector<48x32xbf16>
    %c4 = arith.constant 4 : index
    %c0_16 = arith.constant 0 : index
    %c0_17 = arith.constant 0 : index
    %28 = vector.load %arg1[%c4, %c0_16, %c0_17] : memref<16x32x32xbf16, #tpu.memory_space<vmem>>, vector<1x32x32xbf16>
    %29 = vector.shape_cast %28 : vector<1x32x32xbf16> to vector<32x32xbf16>
    %cst_18 = arith.constant dense<0.000000e+00> : vector<48x32xf32>
    %30 = tpu.matmul %27, %29, %cst_18 {dimension_numbers = #tpu.dot_dimension_numbers<[1], [0], [0], [1], [0, 0, 1, 1], [], []>} : vector<48x32xbf16>, vector<32x32xbf16>, vector<48x32xf32> -> vector<48x32xf32>
    %31 = arith.addf %26, %30 : vector<48x32xf32>
    %32 = vector.extract_strided_slice %25 {offsets = [4, 0], sizes = [48, 32], strides = [1, 1]} : vector<76x32xbf16> to vector<48x32xbf16>
    %c5 = arith.constant 5 : index
    %c0_19 = arith.constant 0 : index
    %c0_20 = arith.constant 0 : index
    %33 = vector.load %arg1[%c5, %c0_19, %c0_20] : memref<16x32x32xbf16, #tpu.memory_space<vmem>>, vector<1x32x32xbf16>
    %34 = vector.shape_cast %33 : vector<1x32x32xbf16> to vector<32x32xbf16>
    %cst_21 = arith.constant dense<0.000000e+00> : vector<48x32xf32>
    %35 = tpu.matmul %32, %34, %cst_21 {dimension_numbers = #tpu.dot_dimension_numbers<[1], [0], [0], [1], [0, 0, 1, 1], [], []>} : vector<48x32xbf16>, vector<32x32xbf16>, vector<48x32xf32> -> vector<48x32xf32>
    %36 = arith.addf %31, %35 : vector<48x32xf32>
    %37 = vector.extract_strided_slice %25 {offsets = [14, 0], sizes = [48, 32], strides = [1, 1]} : vector<76x32xbf16> to vector<48x32xbf16>
    %c6 = arith.constant 6 : index
    %c0_22 = arith.constant 0 : index
    %c0_23 = arith.constant 0 : index
    %38 = vector.load %arg1[%c6, %c0_22, %c0_23] : memref<16x32x32xbf16, #tpu.memory_space<vmem>>, vector<1x32x32xbf16>
    %39 = vector.shape_cast %38 : vector<1x32x32xbf16> to vector<32x32xbf16>
    %cst_24 = arith.constant dense<0.000000e+00> : vector<48x32xf32>
    %40 = tpu.matmul %37, %39, %cst_24 {dimension_numbers = #tpu.dot_dimension_numbers<[1], [0], [0], [1], [0, 0, 1, 1], [], []>} : vector<48x32xbf16>, vector<32x32xbf16>, vector<48x32xf32> -> vector<48x32xf32>
    %41 = arith.addf %36, %40 : vector<48x32xf32>
    %42 = vector.extract_strided_slice %25 {offsets = [16, 0], sizes = [48, 32], strides = [1, 1]} : vector<76x32xbf16> to vector<48x32xbf16>
    %c7 = arith.constant 7 : index
    %c0_25 = arith.constant 0 : index
    %c0_26 = arith.constant 0 : index
    %43 = vector.load %arg1[%c7, %c0_25, %c0_26] : memref<16x32x32xbf16, #tpu.memory_space<vmem>>, vector<1x32x32xbf16>
    %44 = vector.shape_cast %43 : vector<1x32x32xbf16> to vector<32x32xbf16>
    %cst_27 = arith.constant dense<0.000000e+00> : vector<48x32xf32>
    %45 = tpu.matmul %42, %44, %cst_27 {dimension_numbers = #tpu.dot_dimension_numbers<[1], [0], [0], [1], [0, 0, 1, 1], [], []>} : vector<48x32xbf16>, vector<32x32xbf16>, vector<48x32xf32> -> vector<48x32xf32>
    %46 = arith.addf %41, %45 : vector<48x32xf32>
    %47 = arith.truncf %2 : vector<76x32xf32> to vector<76x32xbf16>
    %cst_28 = arith.constant 0.000000e+00 : f32
    %48 = vector.broadcast %cst_28 : f32 to vector<48x32xf32>
    %49 = vector.extract_strided_slice %47 {offsets = [12, 0], sizes = [48, 32], strides = [1, 1]} : vector<76x32xbf16> to vector<48x32xbf16>
    %c8 = arith.constant 8 : index
    %c0_29 = arith.constant 0 : index
    %c0_30 = arith.constant 0 : index
    %50 = vector.load %arg1[%c8, %c0_29, %c0_30] : memref<16x32x32xbf16, #tpu.memory_space<vmem>>, vector<1x32x32xbf16>
    %51 = vector.shape_cast %50 : vector<1x32x32xbf16> to vector<32x32xbf16>
    %cst_31 = arith.constant dense<0.000000e+00> : vector<48x32xf32>
    %52 = tpu.matmul %49, %51, %cst_31 {dimension_numbers = #tpu.dot_dimension_numbers<[1], [0], [0], [1], [0, 0, 1, 1], [], []>} : vector<48x32xbf16>, vector<32x32xbf16>, vector<48x32xf32> -> vector<48x32xf32>
    %53 = arith.addf %48, %52 : vector<48x32xf32>
    %54 = vector.extract_strided_slice %47 {offsets = [14, 0], sizes = [48, 32], strides = [1, 1]} : vector<76x32xbf16> to vector<48x32xbf16>
    %c9 = arith.constant 9 : index
    %c0_32 = arith.constant 0 : index
    %c0_33 = arith.constant 0 : index
    %55 = vector.load %arg1[%c9, %c0_32, %c0_33] : memref<16x32x32xbf16, #tpu.memory_space<vmem>>, vector<1x32x32xbf16>
    %56 = vector.shape_cast %55 : vector<1x32x32xbf16> to vector<32x32xbf16>
    %cst_34 = arith.constant dense<0.000000e+00> : vector<48x32xf32>
    %57 = tpu.matmul %54, %56, %cst_34 {dimension_numbers = #tpu.dot_dimension_numbers<[1], [0], [0], [1], [0, 0, 1, 1], [], []>} : vector<48x32xbf16>, vector<32x32xbf16>, vector<48x32xf32> -> vector<48x32xf32>
    %58 = arith.addf %53, %57 : vector<48x32xf32>
    %59 = vector.extract_strided_slice %47 {offsets = [24, 0], sizes = [48, 32], strides = [1, 1]} : vector<76x32xbf16> to vector<48x32xbf16>
    %c10 = arith.constant 10 : index
    %c0_35 = arith.constant 0 : index
    %c0_36 = arith.constant 0 : index
    %60 = vector.load %arg1[%c10, %c0_35, %c0_36] : memref<16x32x32xbf16, #tpu.memory_space<vmem>>, vector<1x32x32xbf16>
    %61 = vector.shape_cast %60 : vector<1x32x32xbf16> to vector<32x32xbf16>
    %cst_37 = arith.constant dense<0.000000e+00> : vector<48x32xf32>
    %62 = tpu.matmul %59, %61, %cst_37 {dimension_numbers = #tpu.dot_dimension_numbers<[1], [0], [0], [1], [0, 0, 1, 1], [], []>} : vector<48x32xbf16>, vector<32x32xbf16>, vector<48x32xf32> -> vector<48x32xf32>
    %63 = arith.addf %58, %62 : vector<48x32xf32>
    %64 = vector.extract_strided_slice %47 {offsets = [26, 0], sizes = [48, 32], strides = [1, 1]} : vector<76x32xbf16> to vector<48x32xbf16>
    %c11 = arith.constant 11 : index
    %c0_38 = arith.constant 0 : index
    %c0_39 = arith.constant 0 : index
    %65 = vector.load %arg1[%c11, %c0_38, %c0_39] : memref<16x32x32xbf16, #tpu.memory_space<vmem>>, vector<1x32x32xbf16>
    %66 = vector.shape_cast %65 : vector<1x32x32xbf16> to vector<32x32xbf16>
    %cst_40 = arith.constant dense<0.000000e+00> : vector<48x32xf32>
    %67 = tpu.matmul %64, %66, %cst_40 {dimension_numbers = #tpu.dot_dimension_numbers<[1], [0], [0], [1], [0, 0, 1, 1], [], []>} : vector<48x32xbf16>, vector<32x32xbf16>, vector<48x32xf32> -> vector<48x32xf32>
    %68 = arith.addf %63, %67 : vector<48x32xf32>
    %69 = arith.truncf %2 : vector<76x32xf32> to vector<76x32xbf16>
    %cst_41 = arith.constant 0.000000e+00 : f32
    %70 = vector.broadcast %cst_41 : f32 to vector<48x32xf32>
    %71 = vector.extract_strided_slice %69 {offsets = [14, 0], sizes = [48, 32], strides = [1, 1]} : vector<76x32xbf16> to vector<48x32xbf16>
    %c12 = arith.constant 12 : index
    %c0_42 = arith.constant 0 : index
    %c0_43 = arith.constant 0 : index
    %72 = vector.load %arg1[%c12, %c0_42, %c0_43] : memref<16x32x32xbf16, #tpu.memory_space<vmem>>, vector<1x32x32xbf16>
    %73 = vector.shape_cast %72 : vector<1x32x32xbf16> to vector<32x32xbf16>
    %cst_44 = arith.constant dense<0.000000e+00> : vector<48x32xf32>
    %74 = tpu.matmul %71, %73, %cst_44 {dimension_numbers = #tpu.dot_dimension_numbers<[1], [0], [0], [1], [0, 0, 1, 1], [], []>} : vector<48x32xbf16>, vector<32x32xbf16>, vector<48x32xf32> -> vector<48x32xf32>
    %75 = arith.addf %70, %74 : vector<48x32xf32>
    %76 = vector.extract_strided_slice %69 {offsets = [16, 0], sizes = [48, 32], strides = [1, 1]} : vector<76x32xbf16> to vector<48x32xbf16>
    %c13 = arith.constant 13 : index
    %c0_45 = arith.constant 0 : index
    %c0_46 = arith.constant 0 : index
    %77 = vector.load %arg1[%c13, %c0_45, %c0_46] : memref<16x32x32xbf16, #tpu.memory_space<vmem>>, vector<1x32x32xbf16>
    %78 = vector.shape_cast %77 : vector<1x32x32xbf16> to vector<32x32xbf16>
    %cst_47 = arith.constant dense<0.000000e+00> : vector<48x32xf32>
    %79 = tpu.matmul %76, %78, %cst_47 {dimension_numbers = #tpu.dot_dimension_numbers<[1], [0], [0], [1], [0, 0, 1, 1], [], []>} : vector<48x32xbf16>, vector<32x32xbf16>, vector<48x32xf32> -> vector<48x32xf32>
    %80 = arith.addf %75, %79 : vector<48x32xf32>
    %81 = vector.extract_strided_slice %69 {offsets = [26, 0], sizes = [48, 32], strides = [1, 1]} : vector<76x32xbf16> to vector<48x32xbf16>
    %c14 = arith.constant 14 : index
    %c0_48 = arith.constant 0 : index
    %c0_49 = arith.constant 0 : index
    %82 = vector.load %arg1[%c14, %c0_48, %c0_49] : memref<16x32x32xbf16, #tpu.memory_space<vmem>>, vector<1x32x32xbf16>
    %83 = vector.shape_cast %82 : vector<1x32x32xbf16> to vector<32x32xbf16>
    %cst_50 = arith.constant dense<0.000000e+00> : vector<48x32xf32>
    %84 = tpu.matmul %81, %83, %cst_50 {dimension_numbers = #tpu.dot_dimension_numbers<[1], [0], [0], [1], [0, 0, 1, 1], [], []>} : vector<48x32xbf16>, vector<32x32xbf16>, vector<48x32xf32> -> vector<48x32xf32>
    %85 = arith.addf %80, %84 : vector<48x32xf32>
    %86 = vector.extract_strided_slice %69 {offsets = [28, 0], sizes = [48, 32], strides = [1, 1]} : vector<76x32xbf16> to vector<48x32xbf16>
    %c15 = arith.constant 15 : index
    %c0_51 = arith.constant 0 : index
    %c0_52 = arith.constant 0 : index
    %87 = vector.load %arg1[%c15, %c0_51, %c0_52] : memref<16x32x32xbf16, #tpu.memory_space<vmem>>, vector<1x32x32xbf16>
    %88 = vector.shape_cast %87 : vector<1x32x32xbf16> to vector<32x32xbf16>
    %cst_53 = arith.constant dense<0.000000e+00> : vector<48x32xf32>
    %89 = tpu.matmul %86, %88, %cst_53 {dimension_numbers = #tpu.dot_dimension_numbers<[1], [0], [0], [1], [0, 0, 1, 1], [], []>} : vector<48x32xbf16>, vector<32x32xbf16>, vector<48x32xf32> -> vector<48x32xf32>
    %90 = arith.addf %85, %89 : vector<48x32xf32>
    %91 = tpu.concatenate %24, %46, %68, %90 in 0 : vector<48x32xf32>, vector<48x32xf32>, vector<48x32xf32>, vector<48x32xf32> -> vector<192x32xf32>
    %c0_54 = arith.constant 0 : index
    %c0_55 = arith.constant 0 : index
    %92 = vector.load %arg2[%c0_54, %c0_55] : memref<1x32xf32, #tpu.memory_space<vmem>>, vector<1x32xf32>
    %93 = vector.broadcast %92 : vector<1x32xf32> to vector<192x32xf32>
    %94 = arith.addf %91, %93 : vector<192x32xf32>
    %c0_56 = arith.constant 0 : index
    %c0_57 = arith.constant 0 : index
    %95 = vector.load %arg5[%c0_56, %c0_57] : memref<192x1xf32, #tpu.memory_space<vmem>>, vector<192x1xf32>
    %c0_58 = arith.constant 0 : index
    %c0_59 = arith.constant 0 : index
    %96 = vector.load %arg3[%c0_58, %c0_59] : memref<1x32xf32, #tpu.memory_space<vmem>>, vector<1x32xf32>
    %c0_60 = arith.constant 0 : index
    %c0_61 = arith.constant 0 : index
    %97 = vector.load %arg4[%c0_60, %c0_61] : memref<1x32xf32, #tpu.memory_space<vmem>>, vector<1x32xf32>
    %98 = vector.broadcast %95 : vector<192x1xf32> to vector<192x32xf32>
    %99 = arith.mulf %94, %98 : vector<192x32xf32>
    %cst_62 = arith.constant dense<0.000000e+00> : vector<32xf32>
    %100 = vector.multi_reduction <add>, %99, %cst_62 [0] : vector<192x32xf32> to vector<32xf32>
    %101 = vector.shape_cast %100 : vector<32xf32> to vector<1x32xf32>
    %cst_63 = arith.constant 7.812500e-03 : f32
    %102 = vector.broadcast %cst_63 : f32 to vector<1x32xf32>
    %103 = arith.mulf %101, %102 : vector<1x32xf32>
    %104 = arith.mulf %99, %94 : vector<192x32xf32>
    %cst_64 = arith.constant dense<0.000000e+00> : vector<32xf32>
    %105 = vector.multi_reduction <add>, %104, %cst_64 [0] : vector<192x32xf32> to vector<32xf32>
    %106 = vector.shape_cast %105 : vector<32xf32> to vector<1x32xf32>
    %cst_65 = arith.constant 7.812500e-03 : f32
    %107 = vector.broadcast %cst_65 : f32 to vector<1x32xf32>
    %108 = arith.mulf %106, %107 : vector<1x32xf32>
    %109 = arith.mulf %103, %103 : vector<1x32xf32>
    %110 = arith.subf %108, %109 : vector<1x32xf32>
    %111 = vector.broadcast %103 : vector<1x32xf32> to vector<192x32xf32>
    %112 = arith.subf %94, %111 : vector<192x32xf32>
    %cst_66 = arith.constant 9.99999974E-6 : f32
    %113 = vector.broadcast %cst_66 : f32 to vector<1x32xf32>
    %114 = arith.addf %110, %113 : vector<1x32xf32>
    %115 = math.rsqrt %114 : vector<1x32xf32>
    %116 = vector.broadcast %115 : vector<1x32xf32> to vector<192x32xf32>
    %117 = arith.mulf %112, %116 : vector<192x32xf32>
    %118 = vector.broadcast %96 : vector<1x32xf32> to vector<192x32xf32>
    %119 = arith.mulf %117, %118 : vector<192x32xf32>
    %120 = vector.broadcast %97 : vector<1x32xf32> to vector<192x32xf32>
    %121 = arith.addf %119, %120 : vector<192x32xf32>
    %cst_67 = arith.constant 0.000000e+00 : f32
    %122 = vector.broadcast %cst_67 : f32 to vector<192x32xf32>
    %123 = arith.maximumf %121, %122 : vector<192x32xf32>
    %c0_68 = arith.constant 0 : index
    %c0_69 = arith.constant 0 : index
    %124 = vector.load %arg6[%c0_68, %c0_69] : memref<192x32xf32, #tpu.memory_space<vmem>>, vector<192x32xf32>
    tpu.vector_store %arg6[%c0_68, %c0_69], %123 {strides = array<i32>} : memref<192x32xf32, #tpu.memory_space<vmem>>, vector<192x32xf32>,
    return
  }
}

module attributes {stable_mosaic.version = 11 : i64} {
  func.func @_convt_sigmoid_kernel(%arg0: memref<204x32xf32, #tpu.memory_space<vmem>>, %arg1: memref<16x32x1xf32, #tpu.memory_space<vmem>>, %arg2: memref<1x1xf32, #tpu.memory_space<vmem>>, %arg3: memref<640x1xf32, #tpu.memory_space<vmem>>) attributes {dimension_semantics = [], scalar_prefetch = 0 : i64, scratch_operands = 0 : i64, tpu.core_type = #tpu.core_type<tc>} {
    %c0 = arith.constant 0 : index
    %c0_0 = arith.constant 0 : index
    %0 = vector.load %arg0[%c0, %c0_0] : memref<204x32xf32, #tpu.memory_space<vmem>>, vector<204x32xf32>
    %cst = arith.constant 0.000000e+00 : f32
    %1 = vector.broadcast %cst : f32 to vector<160x1xf32>
    %2 = vector.extract_strided_slice %0 {offsets = [0, 0], sizes = [160, 32], strides = [1, 1]} : vector<204x32xf32> to vector<160x32xf32>
    %c0_1 = arith.constant 0 : index
    %c0_2 = arith.constant 0 : index
    %c0_3 = arith.constant 0 : index
    %3 = vector.load %arg1[%c0_1, %c0_2, %c0_3] : memref<16x32x1xf32, #tpu.memory_space<vmem>>, vector<1x32x1xf32>
    %4 = vector.shape_cast %3 : vector<1x32x1xf32> to vector<32x1xf32>
    %cst_4 = arith.constant dense<0.000000e+00> : vector<160x1xf32>
    %5 = tpu.matmul %2, %4, %cst_4 {dimension_numbers = #tpu.dot_dimension_numbers<[1], [0], [0], [1], [0, 0, 1, 1], [], []>} : vector<160x32xf32>, vector<32x1xf32>, vector<160x1xf32> -> vector<160x1xf32>
    %6 = arith.addf %1, %5 : vector<160x1xf32>
    %7 = vector.extract_strided_slice %0 {offsets = [2, 0], sizes = [160, 32], strides = [1, 1]} : vector<204x32xf32> to vector<160x32xf32>
    %c1 = arith.constant 1 : index
    %c0_5 = arith.constant 0 : index
    %c0_6 = arith.constant 0 : index
    %8 = vector.load %arg1[%c1, %c0_5, %c0_6] : memref<16x32x1xf32, #tpu.memory_space<vmem>>, vector<1x32x1xf32>
    %9 = vector.shape_cast %8 : vector<1x32x1xf32> to vector<32x1xf32>
    %cst_7 = arith.constant dense<0.000000e+00> : vector<160x1xf32>
    %10 = tpu.matmul %7, %9, %cst_7 {dimension_numbers = #tpu.dot_dimension_numbers<[1], [0], [0], [1], [0, 0, 1, 1], [], []>} : vector<160x32xf32>, vector<32x1xf32>, vector<160x1xf32> -> vector<160x1xf32>
    %11 = arith.addf %6, %10 : vector<160x1xf32>
    %12 = vector.extract_strided_slice %0 {offsets = [20, 0], sizes = [160, 32], strides = [1, 1]} : vector<204x32xf32> to vector<160x32xf32>
    %c2 = arith.constant 2 : index
    %c0_8 = arith.constant 0 : index
    %c0_9 = arith.constant 0 : index
    %13 = vector.load %arg1[%c2, %c0_8, %c0_9] : memref<16x32x1xf32, #tpu.memory_space<vmem>>, vector<1x32x1xf32>
    %14 = vector.shape_cast %13 : vector<1x32x1xf32> to vector<32x1xf32>
    %cst_10 = arith.constant dense<0.000000e+00> : vector<160x1xf32>
    %15 = tpu.matmul %12, %14, %cst_10 {dimension_numbers = #tpu.dot_dimension_numbers<[1], [0], [0], [1], [0, 0, 1, 1], [], []>} : vector<160x32xf32>, vector<32x1xf32>, vector<160x1xf32> -> vector<160x1xf32>
    %16 = arith.addf %11, %15 : vector<160x1xf32>
    %17 = vector.extract_strided_slice %0 {offsets = [22, 0], sizes = [160, 32], strides = [1, 1]} : vector<204x32xf32> to vector<160x32xf32>
    %c3 = arith.constant 3 : index
    %c0_11 = arith.constant 0 : index
    %c0_12 = arith.constant 0 : index
    %18 = vector.load %arg1[%c3, %c0_11, %c0_12] : memref<16x32x1xf32, #tpu.memory_space<vmem>>, vector<1x32x1xf32>
    %19 = vector.shape_cast %18 : vector<1x32x1xf32> to vector<32x1xf32>
    %cst_13 = arith.constant dense<0.000000e+00> : vector<160x1xf32>
    %20 = tpu.matmul %17, %19, %cst_13 {dimension_numbers = #tpu.dot_dimension_numbers<[1], [0], [0], [1], [0, 0, 1, 1], [], []>} : vector<160x32xf32>, vector<32x1xf32>, vector<160x1xf32> -> vector<160x1xf32>
    %21 = arith.addf %16, %20 : vector<160x1xf32>
    %cst_14 = arith.constant 0.000000e+00 : f32
    %22 = vector.broadcast %cst_14 : f32 to vector<160x1xf32>
    %23 = vector.extract_strided_slice %0 {offsets = [2, 0], sizes = [160, 32], strides = [1, 1]} : vector<204x32xf32> to vector<160x32xf32>
    %c4 = arith.constant 4 : index
    %c0_15 = arith.constant 0 : index
    %c0_16 = arith.constant 0 : index
    %24 = vector.load %arg1[%c4, %c0_15, %c0_16] : memref<16x32x1xf32, #tpu.memory_space<vmem>>, vector<1x32x1xf32>
    %25 = vector.shape_cast %24 : vector<1x32x1xf32> to vector<32x1xf32>
    %cst_17 = arith.constant dense<0.000000e+00> : vector<160x1xf32>
    %26 = tpu.matmul %23, %25, %cst_17 {dimension_numbers = #tpu.dot_dimension_numbers<[1], [0], [0], [1], [0, 0, 1, 1], [], []>} : vector<160x32xf32>, vector<32x1xf32>, vector<160x1xf32> -> vector<160x1xf32>
    %27 = arith.addf %22, %26 : vector<160x1xf32>
    %28 = vector.extract_strided_slice %0 {offsets = [4, 0], sizes = [160, 32], strides = [1, 1]} : vector<204x32xf32> to vector<160x32xf32>
    %c5 = arith.constant 5 : index
    %c0_18 = arith.constant 0 : index
    %c0_19 = arith.constant 0 : index
    %29 = vector.load %arg1[%c5, %c0_18, %c0_19] : memref<16x32x1xf32, #tpu.memory_space<vmem>>, vector<1x32x1xf32>
    %30 = vector.shape_cast %29 : vector<1x32x1xf32> to vector<32x1xf32>
    %cst_20 = arith.constant dense<0.000000e+00> : vector<160x1xf32>
    %31 = tpu.matmul %28, %30, %cst_20 {dimension_numbers = #tpu.dot_dimension_numbers<[1], [0], [0], [1], [0, 0, 1, 1], [], []>} : vector<160x32xf32>, vector<32x1xf32>, vector<160x1xf32> -> vector<160x1xf32>
    %32 = arith.addf %27, %31 : vector<160x1xf32>
    %33 = vector.extract_strided_slice %0 {offsets = [22, 0], sizes = [160, 32], strides = [1, 1]} : vector<204x32xf32> to vector<160x32xf32>
    %c6 = arith.constant 6 : index
    %c0_21 = arith.constant 0 : index
    %c0_22 = arith.constant 0 : index
    %34 = vector.load %arg1[%c6, %c0_21, %c0_22] : memref<16x32x1xf32, #tpu.memory_space<vmem>>, vector<1x32x1xf32>
    %35 = vector.shape_cast %34 : vector<1x32x1xf32> to vector<32x1xf32>
    %cst_23 = arith.constant dense<0.000000e+00> : vector<160x1xf32>
    %36 = tpu.matmul %33, %35, %cst_23 {dimension_numbers = #tpu.dot_dimension_numbers<[1], [0], [0], [1], [0, 0, 1, 1], [], []>} : vector<160x32xf32>, vector<32x1xf32>, vector<160x1xf32> -> vector<160x1xf32>
    %37 = arith.addf %32, %36 : vector<160x1xf32>
    %38 = vector.extract_strided_slice %0 {offsets = [24, 0], sizes = [160, 32], strides = [1, 1]} : vector<204x32xf32> to vector<160x32xf32>
    %c7 = arith.constant 7 : index
    %c0_24 = arith.constant 0 : index
    %c0_25 = arith.constant 0 : index
    %39 = vector.load %arg1[%c7, %c0_24, %c0_25] : memref<16x32x1xf32, #tpu.memory_space<vmem>>, vector<1x32x1xf32>
    %40 = vector.shape_cast %39 : vector<1x32x1xf32> to vector<32x1xf32>
    %cst_26 = arith.constant dense<0.000000e+00> : vector<160x1xf32>
    %41 = tpu.matmul %38, %40, %cst_26 {dimension_numbers = #tpu.dot_dimension_numbers<[1], [0], [0], [1], [0, 0, 1, 1], [], []>} : vector<160x32xf32>, vector<32x1xf32>, vector<160x1xf32> -> vector<160x1xf32>
    %42 = arith.addf %37, %41 : vector<160x1xf32>
    %cst_27 = arith.constant 0.000000e+00 : f32
    %43 = vector.broadcast %cst_27 : f32 to vector<160x1xf32>
    %44 = vector.extract_strided_slice %0 {offsets = [20, 0], sizes = [160, 32], strides = [1, 1]} : vector<204x32xf32> to vector<160x32xf32>
    %c8 = arith.constant 8 : index
    %c0_28 = arith.constant 0 : index
    %c0_29 = arith.constant 0 : index
    %45 = vector.load %arg1[%c8, %c0_28, %c0_29] : memref<16x32x1xf32, #tpu.memory_space<vmem>>, vector<1x32x1xf32>
    %46 = vector.shape_cast %45 : vector<1x32x1xf32> to vector<32x1xf32>
    %cst_30 = arith.constant dense<0.000000e+00> : vector<160x1xf32>
    %47 = tpu.matmul %44, %46, %cst_30 {dimension_numbers = #tpu.dot_dimension_numbers<[1], [0], [0], [1], [0, 0, 1, 1], [], []>} : vector<160x32xf32>, vector<32x1xf32>, vector<160x1xf32> -> vector<160x1xf32>
    %48 = arith.addf %43, %47 : vector<160x1xf32>
    %49 = vector.extract_strided_slice %0 {offsets = [22, 0], sizes = [160, 32], strides = [1, 1]} : vector<204x32xf32> to vector<160x32xf32>
    %c9 = arith.constant 9 : index
    %c0_31 = arith.constant 0 : index
    %c0_32 = arith.constant 0 : index
    %50 = vector.load %arg1[%c9, %c0_31, %c0_32] : memref<16x32x1xf32, #tpu.memory_space<vmem>>, vector<1x32x1xf32>
    %51 = vector.shape_cast %50 : vector<1x32x1xf32> to vector<32x1xf32>
    %cst_33 = arith.constant dense<0.000000e+00> : vector<160x1xf32>
    %52 = tpu.matmul %49, %51, %cst_33 {dimension_numbers = #tpu.dot_dimension_numbers<[1], [0], [0], [1], [0, 0, 1, 1], [], []>} : vector<160x32xf32>, vector<32x1xf32>, vector<160x1xf32> -> vector<160x1xf32>
    %53 = arith.addf %48, %52 : vector<160x1xf32>
    %54 = vector.extract_strided_slice %0 {offsets = [40, 0], sizes = [160, 32], strides = [1, 1]} : vector<204x32xf32> to vector<160x32xf32>
    %c10 = arith.constant 10 : index
    %c0_34 = arith.constant 0 : index
    %c0_35 = arith.constant 0 : index
    %55 = vector.load %arg1[%c10, %c0_34, %c0_35] : memref<16x32x1xf32, #tpu.memory_space<vmem>>, vector<1x32x1xf32>
    %56 = vector.shape_cast %55 : vector<1x32x1xf32> to vector<32x1xf32>
    %cst_36 = arith.constant dense<0.000000e+00> : vector<160x1xf32>
    %57 = tpu.matmul %54, %56, %cst_36 {dimension_numbers = #tpu.dot_dimension_numbers<[1], [0], [0], [1], [0, 0, 1, 1], [], []>} : vector<160x32xf32>, vector<32x1xf32>, vector<160x1xf32> -> vector<160x1xf32>
    %58 = arith.addf %53, %57 : vector<160x1xf32>
    %59 = vector.extract_strided_slice %0 {offsets = [42, 0], sizes = [160, 32], strides = [1, 1]} : vector<204x32xf32> to vector<160x32xf32>
    %c11 = arith.constant 11 : index
    %c0_37 = arith.constant 0 : index
    %c0_38 = arith.constant 0 : index
    %60 = vector.load %arg1[%c11, %c0_37, %c0_38] : memref<16x32x1xf32, #tpu.memory_space<vmem>>, vector<1x32x1xf32>
    %61 = vector.shape_cast %60 : vector<1x32x1xf32> to vector<32x1xf32>
    %cst_39 = arith.constant dense<0.000000e+00> : vector<160x1xf32>
    %62 = tpu.matmul %59, %61, %cst_39 {dimension_numbers = #tpu.dot_dimension_numbers<[1], [0], [0], [1], [0, 0, 1, 1], [], []>} : vector<160x32xf32>, vector<32x1xf32>, vector<160x1xf32> -> vector<160x1xf32>
    %63 = arith.addf %58, %62 : vector<160x1xf32>
    %cst_40 = arith.constant 0.000000e+00 : f32
    %64 = vector.broadcast %cst_40 : f32 to vector<160x1xf32>
    %65 = vector.extract_strided_slice %0 {offsets = [22, 0], sizes = [160, 32], strides = [1, 1]} : vector<204x32xf32> to vector<160x32xf32>
    %c12 = arith.constant 12 : index
    %c0_41 = arith.constant 0 : index
    %c0_42 = arith.constant 0 : index
    %66 = vector.load %arg1[%c12, %c0_41, %c0_42] : memref<16x32x1xf32, #tpu.memory_space<vmem>>, vector<1x32x1xf32>
    %67 = vector.shape_cast %66 : vector<1x32x1xf32> to vector<32x1xf32>
    %cst_43 = arith.constant dense<0.000000e+00> : vector<160x1xf32>
    %68 = tpu.matmul %65, %67, %cst_43 {dimension_numbers = #tpu.dot_dimension_numbers<[1], [0], [0], [1], [0, 0, 1, 1], [], []>} : vector<160x32xf32>, vector<32x1xf32>, vector<160x1xf32> -> vector<160x1xf32>
    %69 = arith.addf %64, %68 : vector<160x1xf32>
    %70 = vector.extract_strided_slice %0 {offsets = [24, 0], sizes = [160, 32], strides = [1, 1]} : vector<204x32xf32> to vector<160x32xf32>
    %c13 = arith.constant 13 : index
    %c0_44 = arith.constant 0 : index
    %c0_45 = arith.constant 0 : index
    %71 = vector.load %arg1[%c13, %c0_44, %c0_45] : memref<16x32x1xf32, #tpu.memory_space<vmem>>, vector<1x32x1xf32>
    %72 = vector.shape_cast %71 : vector<1x32x1xf32> to vector<32x1xf32>
    %cst_46 = arith.constant dense<0.000000e+00> : vector<160x1xf32>
    %73 = tpu.matmul %70, %72, %cst_46 {dimension_numbers = #tpu.dot_dimension_numbers<[1], [0], [0], [1], [0, 0, 1, 1], [], []>} : vector<160x32xf32>, vector<32x1xf32>, vector<160x1xf32> -> vector<160x1xf32>
    %74 = arith.addf %69, %73 : vector<160x1xf32>
    %75 = vector.extract_strided_slice %0 {offsets = [42, 0], sizes = [160, 32], strides = [1, 1]} : vector<204x32xf32> to vector<160x32xf32>
    %c14 = arith.constant 14 : index
    %c0_47 = arith.constant 0 : index
    %c0_48 = arith.constant 0 : index
    %76 = vector.load %arg1[%c14, %c0_47, %c0_48] : memref<16x32x1xf32, #tpu.memory_space<vmem>>, vector<1x32x1xf32>
    %77 = vector.shape_cast %76 : vector<1x32x1xf32> to vector<32x1xf32>
    %cst_49 = arith.constant dense<0.000000e+00> : vector<160x1xf32>
    %78 = tpu.matmul %75, %77, %cst_49 {dimension_numbers = #tpu.dot_dimension_numbers<[1], [0], [0], [1], [0, 0, 1, 1], [], []>} : vector<160x32xf32>, vector<32x1xf32>, vector<160x1xf32> -> vector<160x1xf32>
    %79 = arith.addf %74, %78 : vector<160x1xf32>
    %80 = vector.extract_strided_slice %0 {offsets = [44, 0], sizes = [160, 32], strides = [1, 1]} : vector<204x32xf32> to vector<160x32xf32>
    %c15 = arith.constant 15 : index
    %c0_50 = arith.constant 0 : index
    %c0_51 = arith.constant 0 : index
    %81 = vector.load %arg1[%c15, %c0_50, %c0_51] : memref<16x32x1xf32, #tpu.memory_space<vmem>>, vector<1x32x1xf32>
    %82 = vector.shape_cast %81 : vector<1x32x1xf32> to vector<32x1xf32>
    %cst_52 = arith.constant dense<0.000000e+00> : vector<160x1xf32>
    %83 = tpu.matmul %80, %82, %cst_52 {dimension_numbers = #tpu.dot_dimension_numbers<[1], [0], [0], [1], [0, 0, 1, 1], [], []>} : vector<160x32xf32>, vector<32x1xf32>, vector<160x1xf32> -> vector<160x1xf32>
    %84 = arith.addf %79, %83 : vector<160x1xf32>
    %85 = tpu.concatenate %21, %42, %63, %84 in 0 : vector<160x1xf32>, vector<160x1xf32>, vector<160x1xf32>, vector<160x1xf32> -> vector<640x1xf32>
    %c0_53 = arith.constant 0 : index
    %c0_54 = arith.constant 0 : index
    %86 = vector.load %arg2[%c0_53, %c0_54] : memref<1x1xf32, #tpu.memory_space<vmem>>, vector<1x1xf32>
    %87 = vector.broadcast %86 : vector<1x1xf32> to vector<640x1xf32>
    %88 = arith.addf %85, %87 : vector<640x1xf32>
    %89 = arith.negf %88 : vector<640x1xf32>
    %90 = math.exp %89 : vector<640x1xf32>
    %cst_55 = arith.constant 1.000000e+00 : f32
    %91 = vector.broadcast %cst_55 : f32 to vector<640x1xf32>
    %92 = arith.addf %91, %90 : vector<640x1xf32>
    %93 = arith.divf %91, %92 : vector<640x1xf32>
    %c0_56 = arith.constant 0 : index
    %c0_57 = arith.constant 0 : index
    %94 = vector.load %arg3[%c0_56, %c0_57] : memref<640x1xf32, #tpu.memory_space<vmem>>, vector<640x1xf32>
    tpu.vector_store %arg3[%c0_56, %c0_57], %93 {strides = array<i32>} : memref<640x1xf32, #tpu.memory_space<vmem>>, vector<640x1xf32>,
    return
  }
}

</mosaic_0001>

<llo_original>
// kernel: vqvae_forward.9
$region0: #{vqvae_forward.9}
  #allocation0 [shape = 'u32[]', space=smem, size = 0x4, offset = 0x4, fixed_abs, tag = 'smem constant byte address 0x4 - core index']
  #allocation1 [shape = 'u32[144,128]{1,0:T(1,128)}', space=vmem, size = 0x12000, scoped, tag = 'internal scratch']
  %s0 = inlined_call_operand.vmem [shape: f32[164,4], index: 0, kind: input, shape index: {}]
  %s1 = inlined_call_operand.vmem [shape: f32[4,4,32], index: 1, kind: input, shape index: {}]
  %s2 = inlined_call_operand.vmem [shape: f32[1,32], index: 2, kind: input, shape index: {}]
  %s3 = inlined_call_operand.vmem [shape: f32[1,32], index: 3, kind: input, shape index: {}]
  %s4 = inlined_call_operand.vmem [shape: f32[1,32], index: 4, kind: input, shape index: {}]
  %s5 = inlined_call_operand.vmem [shape: f32[144,1], index: 5, kind: input, shape index: {}]
  %s6 = inlined_call_operand.vmem [shape: f32[144,32], index: 6, kind: output, shape index: {}]
  %s7 = sld [smem:[#allocation0]]
  $region34: #{vqvae_forward.9} parent=0
    _
  %s9 = ssub.s32 1, %s7
  %s10 = scalar_select 0, %s9, %s7
  // Predicated region
  $region2: #{vqvae_forward.9} parent=0 // pred_check
    _
  $region3: #{vqvae_forward.9} parent=0 // pred_check_branch
    %12 = sbr.rel (0) target = $region5
  $region4: #{vqvae_forward.9} parent=0 // pred_region
    _
  $region5: #{vqvae_forward.9} parent=0 // pred_fallthru
    _
  // Predicated region
  $region6: #{vqvae_forward.9} parent=0 // pred_check
    _
  $region7: #{vqvae_forward.9} parent=0 // pred_check_branch
    %14 = sbr.rel (0) target = $region9
  $region8: #{vqvae_forward.9} parent=0 // pred_region
    _
  $region9: #{vqvae_forward.9} parent=0 // pred_fallthru
    _
  // Predicated region
  $region10: #{vqvae_forward.9} parent=0 // pred_check
    _
  $region11: #{vqvae_forward.9} parent=0 // pred_check_branch
    %16 = sbr.rel (0) target = $region13
  $region12: #{vqvae_forward.9} parent=0 // pred_region
    _
  $region13: #{vqvae_forward.9} parent=0 // pred_fallthru
    _
  // Predicated region
  $region14: #{vqvae_forward.9} parent=0 // pred_check
    _
  $region15: #{vqvae_forward.9} parent=0 // pred_check_branch
    %18 = sbr.rel (0) target = $region17
  $region16: #{vqvae_forward.9} parent=0 // pred_region
    _
  $region17: #{vqvae_forward.9} parent=0 // pred_fallthru
    _
  // Predicated region
  $region18: #{vqvae_forward.9} parent=0 // pred_check
    _
  $region19: #{vqvae_forward.9} parent=0 // pred_check_branch
    %20 = sbr.rel (0) target = $region21
  $region20: #{vqvae_forward.9} parent=0 // pred_region
    _
  $region21: #{vqvae_forward.9} parent=0 // pred_fallthru
    _
  // Predicated region
  $region22: #{vqvae_forward.9} parent=0 // pred_check
    _
  $region23: #{vqvae_forward.9} parent=0 // pred_check_branch
    %22 = sbr.rel (0) target = $region25
  $region24: #{vqvae_forward.9} parent=0 // pred_region
    _
  $region25: #{vqvae_forward.9} parent=0 // pred_fallthru
    _
  %v23 = vld [vmem:[%s0] sm:$0xff]
  %v24 = vld [vmem:[%s0 + $0x8] sm:$0xff]
  %v25 = vld [vmem:[%s0 + $0x10] sm:$0xff]
  %v26 = vld [vmem:[%s0 + $0x18] sm:$0xff]
  %v27 = vld [vmem:[%s0 + $0x20] sm:$0xff]
  %v28 = vld [vmem:[%s0 + $0x28] sm:$0xff]
  %v29 = vld [vmem:[%s0 + $0x30] sm:$0xff]
  %v30 = vld [vmem:[%s0 + $0x38] sm:$0xff]
  %v31 = vld [vmem:[%s0 + $0x40] sm:$0xff]
  %v32 = vld [vmem:[%s0 + $0x48] sm:$0xff]
  %v33 = vld [vmem:[%s0 + $0x50] sm:$0xff]
  %v34 = vld [vmem:[%s0 + $0x58] sm:$0xff]
  %v35 = vld [vmem:[%s0 + $0x60] sm:$0xff]
  %v36 = vld [vmem:[%s0 + $0x68] sm:$0xff]
  %v37 = vld [vmem:[%s0 + $0x70] sm:$0xff]
  %v38 = vld [vmem:[%s0 + $0x78] sm:$0xff]
  %v39 = vld [vmem:[%s0 + $0x80] sm:$0xff]
  %v40 = vld [vmem:[%s0 + $0x88] sm:$0xff]
  %v41 = vld [vmem:[%s0 + $0x90] sm:$0xff]
  %v42 = vld [vmem:[%s0 + $0x98] sm:$0xff]
  %v43 = vld [vmem:[%s0 + $0xa0] sm:$0xf]
  %v44 = vld [vmem:[%s1] sm:$0xf]
  %s45 = scalar_lea.vmem %s1, 4
  %v46 = vld [vmem:[%s45] sm:$0xf]
  %vm66 = vcmask 1045504
  %v67 = vrot.slane %v23, 2
  %v68 = vrot.slane %v24, 2
  %v69 = vsel %vm66, %v67, %v68
  %v70 = vrot.slane %v25, 2
  %v71 = vsel %vm66, %v68, %v70
  %v72 = vrot.slane %v26, 2
  %v73 = vsel %vm66, %v70, %v72
  %v74 = vrot.slane %v27, 2
  %v75 = vsel %vm66, %v72, %v74
  %v76 = vrot.slane %v28, 2
  %v77 = vsel %vm66, %v74, %v76
  %v78 = vrot.slane %v29, 2
  %v79 = vsel %vm66, %v76, %v78
  %v80 = vrot.slane %v30, 2
  %v81 = vsel %vm66, %v78, %v80
  %v82 = vrot.slane %v31, 2
  %v83 = vsel %vm66, %v80, %v82
  %v84 = vrot.slane %v32, 2
  %v85 = vsel %vm66, %v82, %v84
  %v86 = vrot.slane %v33, 2
  %v87 = vsel %vm66, %v84, %v86
  %v88 = vrot.slane %v34, 2
  %v89 = vsel %vm66, %v86, %v88
  %v90 = vrot.slane %v35, 2
  %v91 = vsel %vm66, %v88, %v90
  %v92 = vrot.slane %v36, 2
  %v93 = vsel %vm66, %v90, %v92
  %v94 = vrot.slane %v37, 2
  %v95 = vsel %vm66, %v92, %v94
  %v96 = vrot.slane %v38, 2
  %v97 = vsel %vm66, %v94, %v96
  %v98 = vrot.slane %v39, 2
  %v99 = vsel %vm66, %v96, %v98
  %v100 = vrot.slane %v40, 2
  %v101 = vsel %vm66, %v98, %v100
  %v102 = vrot.slane %v41, 2
  %v103 = vsel %vm66, %v100, %v102
  %vm104 = vcmask 31744
  %v105 = vsel %vm104, %v69, 0
  %v107 = vsel %vm104, %v71, 0
  %v109 = vsel %vm104, %v73, 0
  %v111 = vsel %vm104, %v75, 0
  %v113 = vsel %vm104, %v77, 0
  %v115 = vsel %vm104, %v79, 0
  %v117 = vsel %vm104, %v81, 0
  %v119 = vsel %vm104, %v83, 0
  %v121 = vsel %vm104, %v85, 0
  %v123 = vsel %vm104, %v87, 0
  %v125 = vsel %vm104, %v89, 0
  %v127 = vsel %vm104, %v91, 0
  %v129 = vsel %vm104, %v93, 0
  %v131 = vsel %vm104, %v95, 0
  %v133 = vsel %vm104, %v97, 0
  %v135 = vsel %vm104, %v99, 0
  %v137 = vsel %vm104, %v101, 0
  %v139 = vsel %vm104, %v103, 0
  %vm141 = vcmask 1043456
  %v143 = vsel %vm141, %v46, 0
  %145 = vmatprep.subr.mxu0 0.0
  %146 = vmatpush1.msra.mxu0 0.0
  %147 = vmatprep.subr.mxu0 0.0
  %148 = vmatpush1.msra.mxu0 0.0
  %149 = vmatprep.subr.mxu0 0.0
  %150 = vmatpush1.msra.mxu0 0.0
  %151 = vmatprep.subr.mxu0 0.0
  %152 = vmatpush1.msra.mxu0 0.0
  %153 = vmatprep.subr.mxu0 0.0
  %154 = vmatpush1.msra.mxu0 0.0
  %155 = vmatprep.subr.mxu0 0.0
  %156 = vmatpush1.msra.mxu0 0.0
  %157 = vmatprep.subr.mxu0 0.0
  %158 = vmatpush1.msra.mxu0 0.0
  %159 = vmatprep.subr.mxu0 0.0
  %160 = vmatpush1.msra.mxu0 0.0
  %161 = vmatprep.subr.mxu0 0.0
  %162 = vmatpush1.msra.mxu0 0.0
  %163 = vmatprep.subr.mxu0 0.0
  %164 = vmatpush1.msra.mxu0 0.0
  %165 = vmatprep.subr.mxu0 0.0
  %166 = vmatpush1.msra.mxu0 0.0
  %167 = vmatprep.subr.mxu0 0.0
  %168 = vmatpush1.msra.mxu0 0.0
  %169 = vmatprep.subr.mxu0 0.0
  %170 = vmatpush1.msra.mxu0 0.0
  %171 = vmatprep.subr.mxu0 0.0
  %172 = vmatpush1.msra.mxu0 0.0
  %173 = vmatprep.subr.mxu0 0.0
  %174 = vmatpush1.msra.mxu0 0.0
  %175 = vmatprep.subr.mxu0 0.0
  %176 = vmatpush1.msra.mxu0 %v143
  %177 = vmatprep.subr.mxu0 0.0
  %178 = vmatpush2.msra.mxu0 0.0
  %179 = vmatprep.subr.mxu0 0.0
  %180 = vmatpush2.msra.mxu0 0.0
  %181 = vmatprep.subr.mxu0 0.0
  %182 = vmatpush2.msra.mxu0 0.0
  %183 = vmatprep.subr.mxu0 0.0
  %184 = vmatpush2.msra.mxu0 0.0
  %185 = vmatprep.subr.mxu0 0.0
  %186 = vmatpush2.msra.mxu0 0.0
  %187 = vmatprep.subr.mxu0 0.0
  %188 = vmatpush2.msra.mxu0 0.0
  %189 = vmatprep.subr.mxu0 0.0
  %190 = vmatpush2.msra.mxu0 0.0
  %191 = vmatprep.subr.mxu0 0.0
  %192 = vmatpush2.msra.mxu0 0.0
  %193 = vmatprep.subr.mxu0 0.0
  %194 = vmatpush2.msra.mxu0 0.0
  %195 = vmatprep.subr.mxu0 0.0
  %196 = vmatpush2.msra.mxu0 0.0
  %197 = vmatprep.subr.mxu0 0.0
  %198 = vmatpush2.msra.mxu0 0.0
  %199 = vmatprep.subr.mxu0 0.0
  %200 = vmatpush2.msra.mxu0 0.0
  %201 = vmatprep.subr.mxu0 0.0
  %202 = vmatpush2.msra.mxu0 0.0
  %203 = vmatprep.subr.mxu0 0.0
  %204 = vmatpush2.msra.mxu0 0.0
  %205 = vmatprep.subr.mxu0 0.0
  %206 = vmatpush2.msra.mxu0 0.0
  %207 = vmatprep.subr.mxu0 0.0
  %208 = vmatpush2.msra.mxu0 0.0
  %209 = vmatprep.mubr.f32.mxu0 0.0
  %210 = vmatmul.mubr.f32.gmra.mxu0 %v105
  %v211 = vpop.f32.mrf.mxu0
  %v212 = vadd.f32 0.0, %v211
  %v213 = vpop.f32.mrf.mxu0
  %214 = vmatprep.mubr.f32.mxu0 0.0
  %215 = vmatmul.mubr.f32.gmra.mxu0 %v107
  %v216 = vpop.f32.mrf.mxu0
  %v217 = vadd.f32 0.0, %v216
  %v218 = vpop.f32.mrf.mxu0
  %219 = vmatprep.mubr.f32.mxu0 0.0
  %220 = vmatmul.mubr.f32.gmra.mxu0 %v109
  %v221 = vpop.f32.mrf.mxu0
  %v222 = vadd.f32 0.0, %v221
  %v223 = vpop.f32.mrf.mxu0
  %224 = vmatprep.mubr.f32.mxu0 0.0
  %225 = vmatmul.mubr.f32.gmra.mxu0 %v111
  %v226 = vpop.f32.mrf.mxu0
  %v227 = vadd.f32 0.0, %v226
  %v228 = vpop.f32.mrf.mxu0
  %229 = vmatprep.mubr.f32.mxu0 0.0
  %230 = vmatmul.mubr.f32.gmra.mxu0 %v113
  %v231 = vpop.f32.mrf.mxu0
  %v232 = vadd.f32 0.0, %v231
  %v233 = vpop.f32.mrf.mxu0
  %234 = vmatprep.mubr.f32.mxu0 0.0
  %235 = vmatmul.mubr.f32.gmra.mxu0 %v115
  %v236 = vpop.f32.mrf.mxu0
  %v237 = vadd.f32 0.0, %v236
  %v238 = vpop.f32.mrf.mxu0
  %239 = vmatprep.mubr.f32.mxu0 0.0
  %240 = vmatmul.mubr.f32.gmra.mxu0 %v117
  %v241 = vpop.f32.mrf.mxu0
  %v242 = vadd.f32 0.0, %v241
  %v243 = vpop.f32.mrf.mxu0
  %244 = vmatprep.mubr.f32.mxu0 0.0
  %245 = vmatmul.mubr.f32.gmra.mxu0 %v119
  %v246 = vpop.f32.mrf.mxu0
  %v247 = vadd.f32 0.0, %v246
  %v248 = vpop.f32.mrf.mxu0
  %249 = vmatprep.mubr.f32.mxu0 0.0
  %250 = vmatmul.mubr.f32.gmra.mxu0 %v121
  %v251 = vpop.f32.mrf.mxu0
  %v252 = vadd.f32 0.0, %v251
  %v253 = vpop.f32.mrf.mxu0
  %254 = vmatprep.mubr.f32.mxu0 0.0
  %255 = vmatmul.mubr.f32.gmra.mxu0 %v123
  %v256 = vpop.f32.mrf.mxu0
  %v257 = vadd.f32 0.0, %v256
  %v258 = vpop.f32.mrf.mxu0
  %259 = vmatprep.mubr.f32.mxu0 0.0
  %260 = vmatmul.mubr.f32.gmra.mxu0 %v125
  %v261 = vpop.f32.mrf.mxu0
  %v262 = vadd.f32 0.0, %v261
  %v263 = vpop.f32.mrf.mxu0
  %264 = vmatprep.mubr.f32.mxu0 0.0
  %265 = vmatmul.mubr.f32.gmra.mxu0 %v127
  %v266 = vpop.f32.mrf.mxu0
  %v267 = vadd.f32 0.0, %v266
  %v268 = vpop.f32.mrf.mxu0
  %269 = vmatprep.mubr.f32.mxu0 0.0
  %270 = vmatmul.mubr.f32.gmra.mxu0 %v129
  %v271 = vpop.f32.mrf.mxu0
  %v272 = vadd.f32 0.0, %v271
  %v273 = vpop.f32.mrf.mxu0
  %274 = vmatprep.mubr.f32.mxu0 0.0
  %275 = vmatmul.mubr.f32.gmra.mxu0 %v131
  %v276 = vpop.f32.mrf.mxu0
  %v277 = vadd.f32 0.0, %v276
  %v278 = vpop.f32.mrf.mxu0
  %279 = vmatprep.mubr.f32.mxu0 0.0
  %280 = vmatmul.mubr.f32.gmra.mxu0 %v133
  %v281 = vpop.f32.mrf.mxu0
  %v282 = vadd.f32 0.0, %v281
  %v283 = vpop.f32.mrf.mxu0
  %284 = vmatprep.mubr.f32.mxu0 0.0
  %285 = vmatmul.mubr.f32.gmra.mxu0 %v135
  %v286 = vpop.f32.mrf.mxu0
  %v287 = vadd.f32 0.0, %v286
  %v288 = vpop.f32.mrf.mxu0
  %289 = vmatprep.mubr.f32.mxu0 0.0
  %290 = vmatmul.mubr.f32.gmra.mxu0 %v137
  %v291 = vpop.f32.mrf.mxu0
  %v292 = vadd.f32 0.0, %v291
  %v293 = vpop.f32.mrf.mxu0
  %294 = vmatprep.mubr.f32.mxu0 0.0
  %295 = vmatmul.mubr.f32.gmra.mxu0 %v139
  %v296 = vpop.f32.mrf.mxu0
  %v297 = vadd.f32 0.0, %v296
  %v298 = vpop.f32.mrf.mxu0
  %299 = vdwg.mxu0
  %v300 = vsel %vm104, %v23, 0
  %v302 = vsel %vm104, %v24, 0
  %v304 = vsel %vm104, %v25, 0
  %v306 = vsel %vm104, %v26, 0
  %v308 = vsel %vm104, %v27, 0
  %v310 = vsel %vm104, %v28, 0
  %v312 = vsel %vm104, %v29, 0
  %v314 = vsel %vm104, %v30, 0
  %v316 = vsel %vm104, %v31, 0
  %v318 = vsel %vm104, %v32, 0
  %v320 = vsel %vm104, %v33, 0
  %v322 = vsel %vm104, %v34, 0
  %v324 = vsel %vm104, %v35, 0
  %v326 = vsel %vm104, %v36, 0
  %v328 = vsel %vm104, %v37, 0
  %v330 = vsel %vm104, %v38, 0
  %v332 = vsel %vm104, %v39, 0
  %v334 = vsel %vm104, %v40, 0
  %v337 = vsel %vm141, %v44, 0
  %339 = vmatprep.subr.mxu0 0.0
  %340 = vmatpush1.msra.mxu0 0.0
  %341 = vmatprep.subr.mxu0 0.0
  %342 = vmatpush1.msra.mxu0 0.0
  %343 = vmatprep.subr.mxu0 0.0
  %344 = vmatpush1.msra.mxu0 0.0
  %345 = vmatprep.subr.mxu0 0.0
  %346 = vmatpush1.msra.mxu0 0.0
  %347 = vmatprep.subr.mxu0 0.0
  %348 = vmatpush1.msra.mxu0 0.0
  %349 = vmatprep.subr.mxu0 0.0
  %350 = vmatpush1.msra.mxu0 0.0
  %351 = vmatprep.subr.mxu0 0.0
  %352 = vmatpush1.msra.mxu0 0.0
  %353 = vmatprep.subr.mxu0 0.0
  %354 = vmatpush1.msra.mxu0 0.0
  %355 = vmatprep.subr.mxu0 0.0
  %356 = vmatpush1.msra.mxu0 0.0
  %357 = vmatprep.subr.mxu0 0.0
  %358 = vmatpush1.msra.mxu0 0.0
  %359 = vmatprep.subr.mxu0 0.0
  %360 = vmatpush1.msra.mxu0 0.0
  %361 = vmatprep.subr.mxu0 0.0
  %362 = vmatpush1.msra.mxu0 0.0
  %363 = vmatprep.subr.mxu0 0.0
  %364 = vmatpush1.msra.mxu0 0.0
  %365 = vmatprep.subr.mxu0 0.0
  %366 = vmatpush1.msra.mxu0 0.0
  %367 = vmatprep.subr.mxu0 0.0
  %368 = vmatpush1.msra.mxu0 0.0
  %369 = vmatprep.subr.mxu0 0.0
  %370 = vmatpush1.msra.mxu0 %v337
  %371 = vmatprep.subr.mxu0 0.0
  %372 = vmatpush2.msra.mxu0 0.0
  %373 = vmatprep.subr.mxu0 0.0
  %374 = vmatpush2.msra.mxu0 0.0
  %375 = vmatprep.subr.mxu0 0.0
  %376 = vmatpush2.msra.mxu0 0.0
  %377 = vmatprep.subr.mxu0 0.0
  %378 = vmatpush2.msra.mxu0 0.0
  %379 = vmatprep.subr.mxu0 0.0
  %380 = vmatpush2.msra.mxu0 0.0
  %381 = vmatprep.subr.mxu0 0.0
  %382 = vmatpush2.msra.mxu0 0.0
  %383 = vmatprep.subr.mxu0 0.0
  %384 = vmatpush2.msra.mxu0 0.0
  %385 = vmatprep.subr.mxu0 0.0
  %386 = vmatpush2.msra.mxu0 0.0
  %387 = vmatprep.subr.mxu0 0.0
  %388 = vmatpush2.msra.mxu0 0.0
  %389 = vmatprep.subr.mxu0 0.0
  %390 = vmatpush2.msra.mxu0 0.0
  %391 = vmatprep.subr.mxu0 0.0
  %392 = vmatpush2.msra.mxu0 0.0
  %393 = vmatprep.subr.mxu0 0.0
  %394 = vmatpush2.msra.mxu0 0.0
  %395 = vmatprep.subr.mxu0 0.0
  %396 = vmatpush2.msra.mxu0 0.0
  %397 = vmatprep.subr.mxu0 0.0
  %398 = vmatpush2.msra.mxu0 0.0
  %399 = vmatprep.subr.mxu0 0.0
  %400 = vmatpush2.msra.mxu0 0.0
  %401 = vmatprep.subr.mxu0 0.0
  %402 = vmatpush2.msra.mxu0 0.0
  %403 = vmatprep.mubr.f32.mxu0 0.0
  %404 = vmatmul.mubr.f32.gmra.mxu0 %v300
  %v405 = vpop.f32.mrf.mxu0
  %v406 = vadd.f32 %v212, %v405
  %v407 = vpop.f32.mrf.mxu0
  %408 = vmatprep.mubr.f32.mxu0 0.0
  %409 = vmatmul.mubr.f32.gmra.mxu0 %v302
  %v410 = vpop.f32.mrf.mxu0
  %v411 = vadd.f32 %v217, %v410
  %v412 = vpop.f32.mrf.mxu0
  %413 = vmatprep.mubr.f32.mxu0 0.0
  %414 = vmatmul.mubr.f32.gmra.mxu0 %v304
  %v415 = vpop.f32.mrf.mxu0
  %v416 = vadd.f32 %v222, %v415
  %v417 = vpop.f32.mrf.mxu0
  %418 = vmatprep.mubr.f32.mxu0 0.0
  %419 = vmatmul.mubr.f32.gmra.mxu0 %v306
  %v420 = vpop.f32.mrf.mxu0
  %v421 = vadd.f32 %v227, %v420
  %v422 = vpop.f32.mrf.mxu0
  %423 = vmatprep.mubr.f32.mxu0 0.0
  %424 = vmatmul.mubr.f32.gmra.mxu0 %v308
  %v425 = vpop.f32.mrf.mxu0
  %v426 = vadd.f32 %v232, %v425
  %v427 = vpop.f32.mrf.mxu0
  %428 = vmatprep.mubr.f32.mxu0 0.0
  %429 = vmatmul.mubr.f32.gmra.mxu0 %v310
  %v430 = vpop.f32.mrf.mxu0
  %v431 = vadd.f32 %v237, %v430
  %v432 = vpop.f32.mrf.mxu0
  %433 = vmatprep.mubr.f32.mxu0 0.0
  %434 = vmatmul.mubr.f32.gmra.mxu0 %v312
  %v435 = vpop.f32.mrf.mxu0
  %v436 = vadd.f32 %v242, %v435
  %v437 = vpop.f32.mrf.mxu0
  %438 = vmatprep.mubr.f32.mxu0 0.0
  %439 = vmatmul.mubr.f32.gmra.mxu0 %v314
  %v440 = vpop.f32.mrf.mxu0
  %v441 = vadd.f32 %v247, %v440
  %v442 = vpop.f32.mrf.mxu0
  %443 = vmatprep.mubr.f32.mxu0 0.0
  %444 = vmatmul.mubr.f32.gmra.mxu0 %v316
  %v445 = vpop.f32.mrf.mxu0
  %v446 = vadd.f32 %v252, %v445
  %v447 = vpop.f32.mrf.mxu0
  %448 = vmatprep.mubr.f32.mxu0 0.0
  %449 = vmatmul.mubr.f32.gmra.mxu0 %v318
  %v450 = vpop.f32.mrf.mxu0
  %v451 = vadd.f32 %v257, %v450
  %v452 = vpop.f32.mrf.mxu0
  %453 = vmatprep.mubr.f32.mxu0 0.0
  %454 = vmatmul.mubr.f32.gmra.mxu0 %v320
  %v455 = vpop.f32.mrf.mxu0
  %v456 = vadd.f32 %v262, %v455
  %v457 = vpop.f32.mrf.mxu0
  %458 = vmatprep.mubr.f32.mxu0 0.0
  %459 = vmatmul.mubr.f32.gmra.mxu0 %v322
  %v460 = vpop.f32.mrf.mxu0
  %v461 = vadd.f32 %v267, %v460
  %v462 = vpop.f32.mrf.mxu0
  %463 = vmatprep.mubr.f32.mxu0 0.0
  %464 = vmatmul.mubr.f32.gmra.mxu0 %v324
  %v465 = vpop.f32.mrf.mxu0
  %v466 = vadd.f32 %v272, %v465
  %v467 = vpop.f32.mrf.mxu0
  %468 = vmatprep.mubr.f32.mxu0 0.0
  %469 = vmatmul.mubr.f32.gmra.mxu0 %v326
  %v470 = vpop.f32.mrf.mxu0
  %v471 = vadd.f32 %v277, %v470
  %v472 = vpop.f32.mrf.mxu0
  %473 = vmatprep.mubr.f32.mxu0 0.0
  %474 = vmatmul.mubr.f32.gmra.mxu0 %v328
  %v475 = vpop.f32.mrf.mxu0
  %v476 = vadd.f32 %v282, %v475
  %v477 = vpop.f32.mrf.mxu0
  %478 = vmatprep.mubr.f32.mxu0 0.0
  %479 = vmatmul.mubr.f32.gmra.mxu0 %v330
  %v480 = vpop.f32.mrf.mxu0
  %v481 = vadd.f32 %v287, %v480
  %v482 = vpop.f32.mrf.mxu0
  %483 = vmatprep.mubr.f32.mxu0 0.0
  %484 = vmatmul.mubr.f32.gmra.mxu0 %v332
  %v485 = vpop.f32.mrf.mxu0
  %v486 = vadd.f32 %v292, %v485
  %v487 = vpop.f32.mrf.mxu0
  %488 = vmatprep.mubr.f32.mxu0 0.0
  %489 = vmatmul.mubr.f32.gmra.mxu0 %v334
  %v490 = vpop.f32.mrf.mxu0
  %v491 = vadd.f32 %v297, %v490
  %v492 = vpop.f32.mrf.mxu0
  %493 = vdwg.mxu0
  %s494 = scalar_lea.vmem %s1, 8
  %v495 = vld [vmem:[%s494] sm:$0xf]
  %v498 = vrot.slane %v42, 2
  %v499 = vsel %vm66, %v102, %v498
  %v500 = vrot.slane %v43, 2
  %v501 = vsel %vm66, %v498, %v500
  %v502 = vsel %vm104, %v499, 0
  %v504 = vsel %vm104, %v501, 0
  %v507 = vsel %vm141, %v495, 0
  %509 = vmatprep.subr.mxu0 0.0
  %510 = vmatpush1.msra.mxu0 0.0
  %511 = vmatprep.subr.mxu0 0.0
  %512 = vmatpush1.msra.mxu0 0.0
  %513 = vmatprep.subr.mxu0 0.0
  %514 = vmatpush1.msra.mxu0 0.0
  %515 = vmatprep.subr.mxu0 0.0
  %516 = vmatpush1.msra.mxu0 0.0
  %517 = vmatprep.subr.mxu0 0.0
  %518 = vmatpush1.msra.mxu0 0.0
  %519 = vmatprep.subr.mxu0 0.0
  %520 = vmatpush1.msra.mxu0 0.0
  %521 = vmatprep.subr.mxu0 0.0
  %522 = vmatpush1.msra.mxu0 0.0
  %523 = vmatprep.subr.mxu0 0.0
  %524 = vmatpush1.msra.mxu0 0.0
  %525 = vmatprep.subr.mxu0 0.0
  %526 = vmatpush1.msra.mxu0 0.0
  %527 = vmatprep.subr.mxu0 0.0
  %528 = vmatpush1.msra.mxu0 0.0
  %529 = vmatprep.subr.mxu0 0.0
  %530 = vmatpush1.msra.mxu0 0.0
  %531 = vmatprep.subr.mxu0 0.0
  %532 = vmatpush1.msra.mxu0 0.0
  %533 = vmatprep.subr.mxu0 0.0
  %534 = vmatpush1.msra.mxu0 0.0
  %535 = vmatprep.subr.mxu0 0.0
  %536 = vmatpush1.msra.mxu0 0.0
  %537 = vmatprep.subr.mxu0 0.0
  %538 = vmatpush1.msra.mxu0 0.0
  %539 = vmatprep.subr.mxu0 0.0
  %540 = vmatpush1.msra.mxu0 %v507
  %541 = vmatprep.subr.mxu0 0.0
  %542 = vmatpush2.msra.mxu0 0.0
  %543 = vmatprep.subr.mxu0 0.0
  %544 = vmatpush2.msra.mxu0 0.0
  %545 = vmatprep.subr.mxu0 0.0
  %546 = vmatpush2.msra.mxu0 0.0
  %547 = vmatprep.subr.mxu0 0.0
  %548 = vmatpush2.msra.mxu0 0.0
  %549 = vmatprep.subr.mxu0 0.0
  %550 = vmatpush2.msra.mxu0 0.0
  %551 = vmatprep.subr.mxu0 0.0
  %552 = vmatpush2.msra.mxu0 0.0
  %553 = vmatprep.subr.mxu0 0.0
  %554 = vmatpush2.msra.mxu0 0.0
  %555 = vmatprep.subr.mxu0 0.0
  %556 = vmatpush2.msra.mxu0 0.0
  %557 = vmatprep.subr.mxu0 0.0
  %558 = vmatpush2.msra.mxu0 0.0
  %559 = vmatprep.subr.mxu0 0.0
  %560 = vmatpush2.msra.mxu0 0.0
  %561 = vmatprep.subr.mxu0 0.0
  %562 = vmatpush2.msra.mxu0 0.0
  %563 = vmatprep.subr.mxu0 0.0
  %564 = vmatpush2.msra.mxu0 0.0
  %565 = vmatprep.subr.mxu0 0.0
  %566 = vmatpush2.msra.mxu0 0.0
  %567 = vmatprep.subr.mxu0 0.0
  %568 = vmatpush2.msra.mxu0 0.0
  %569 = vmatprep.subr.mxu0 0.0
  %570 = vmatpush2.msra.mxu0 0.0
  %571 = vmatprep.subr.mxu0 0.0
  %572 = vmatpush2.msra.mxu0 0.0
  %573 = vmatprep.mubr.f32.mxu0 0.0
  %574 = vmatmul.mubr.f32.gmra.mxu0 %v109
  %v575 = vpop.f32.mrf.mxu0
  %v576 = vadd.f32 0.0, %v575
  %v577 = vpop.f32.mrf.mxu0
  %578 = vmatprep.mubr.f32.mxu0 0.0
  %579 = vmatmul.mubr.f32.gmra.mxu0 %v111
  %v580 = vpop.f32.mrf.mxu0
  %v581 = vadd.f32 0.0, %v580
  %v582 = vpop.f32.mrf.mxu0
  %583 = vmatprep.mubr.f32.mxu0 0.0
  %584 = vmatmul.mubr.f32.gmra.mxu0 %v113
  %v585 = vpop.f32.mrf.mxu0
  %v586 = vadd.f32 0.0, %v585
  %v587 = vpop.f32.mrf.mxu0
  %588 = vmatprep.mubr.f32.mxu0 0.0
  %589 = vmatmul.mubr.f32.gmra.mxu0 %v115
  %v590 = vpop.f32.mrf.mxu0
  %v591 = vadd.f32 0.0, %v590
  %v592 = vpop.f32.mrf.mxu0
  %593 = vmatprep.mubr.f32.mxu0 0.0
  %594 = vmatmul.mubr.f32.gmra.mxu0 %v117
  %v595 = vpop.f32.mrf.mxu0
  %v596 = vadd.f32 0.0, %v595
  %v597 = vpop.f32.mrf.mxu0
  %598 = vmatprep.mubr.f32.mxu0 0.0
  %599 = vmatmul.mubr.f32.gmra.mxu0 %v119
  %v600 = vpop.f32.mrf.mxu0
  %v601 = vadd.f32 0.0, %v600
  %v602 = vpop.f32.mrf.mxu0
  %603 = vmatprep.mubr.f32.mxu0 0.0
  %604 = vmatmul.mubr.f32.gmra.mxu0 %v121
  %v605 = vpop.f32.mrf.mxu0
  %v606 = vadd.f32 0.0, %v605
  %v607 = vpop.f32.mrf.mxu0
  %608 = vmatprep.mubr.f32.mxu0 0.0
  %609 = vmatmul.mubr.f32.gmra.mxu0 %v123
  %v610 = vpop.f32.mrf.mxu0
  %v611 = vadd.f32 0.0, %v610
  %v612 = vpop.f32.mrf.mxu0
  %613 = vmatprep.mubr.f32.mxu0 0.0
  %614 = vmatmul.mubr.f32.gmra.mxu0 %v125
  %v615 = vpop.f32.mrf.mxu0
  %v616 = vadd.f32 0.0, %v615
  %v617 = vpop.f32.mrf.mxu0
  %618 = vmatprep.mubr.f32.mxu0 0.0
  %619 = vmatmul.mubr.f32.gmra.mxu0 %v127
  %v620 = vpop.f32.mrf.mxu0
  %v621 = vadd.f32 0.0, %v620
  %v622 = vpop.f32.mrf.mxu0
  %623 = vmatprep.mubr.f32.mxu0 0.0
  %624 = vmatmul.mubr.f32.gmra.mxu0 %v129
  %v625 = vpop.f32.mrf.mxu0
  %v626 = vadd.f32 0.0, %v625
  %v627 = vpop.f32.mrf.mxu0
  %628 = vmatprep.mubr.f32.mxu0 0.0
  %629 = vmatmul.mubr.f32.gmra.mxu0 %v131
  %v630 = vpop.f32.mrf.mxu0
  %v631 = vadd.f32 0.0, %v630
  %v632 = vpop.f32.mrf.mxu0
  %633 = vmatprep.mubr.f32.mxu0 0.0
  %634 = vmatmul.mubr.f32.gmra.mxu0 %v133
  %v635 = vpop.f32.mrf.mxu0
  %v636 = vadd.f32 0.0, %v635
  %v637 = vpop.f32.mrf.mxu0
  %638 = vmatprep.mubr.f32.mxu0 0.0
  %639 = vmatmul.mubr.f32.gmra.mxu0 %v135
  %v640 = vpop.f32.mrf.mxu0
  %v641 = vadd.f32 0.0, %v640
  %v642 = vpop.f32.mrf.mxu0
  %643 = vmatprep.mubr.f32.mxu0 0.0
  %644 = vmatmul.mubr.f32.gmra.mxu0 %v137
  %v645 = vpop.f32.mrf.mxu0
  %v646 = vadd.f32 0.0, %v645
  %v647 = vpop.f32.mrf.mxu0
  %648 = vmatprep.mubr.f32.mxu0 0.0
  %649 = vmatmul.mubr.f32.gmra.mxu0 %v139
  %v650 = vpop.f32.mrf.mxu0
  %v651 = vadd.f32 0.0, %v650
  %v652 = vpop.f32.mrf.mxu0
  %653 = vmatprep.mubr.f32.mxu0 0.0
  %654 = vmatmul.mubr.f32.gmra.mxu0 %v502
  %v655 = vpop.f32.mrf.mxu0
  %v656 = vadd.f32 0.0, %v655
  %v657 = vpop.f32.mrf.mxu0
  %658 = vmatprep.mubr.f32.mxu0 0.0
  %659 = vmatmul.mubr.f32.gmra.mxu0 %v504
  %v660 = vpop.f32.mrf.mxu0
  %v661 = vadd.f32 0.0, %v660
  %v662 = vpop.f32.mrf.mxu0
  %663 = vdwg.mxu0
  %v664 = vadd.f32 %v406, %v576
  %v665 = vadd.f32 %v411, %v581
  %v666 = vadd.f32 %v416, %v586
  %v667 = vadd.f32 %v421, %v591
  %v668 = vadd.f32 %v426, %v596
  %v669 = vadd.f32 %v431, %v601
  %v670 = vadd.f32 %v436, %v606
  %v671 = vadd.f32 %v441, %v611
  %v672 = vadd.f32 %v446, %v616
  %v673 = vadd.f32 %v451, %v621
  %v674 = vadd.f32 %v456, %v626
  %v675 = vadd.f32 %v461, %v631
  %v676 = vadd.f32 %v466, %v636
  %v677 = vadd.f32 %v471, %v641
  %v678 = vadd.f32 %v476, %v646
  %v679 = vadd.f32 %v481, %v651
  %v680 = vadd.f32 %v486, %v656
  %v681 = vadd.f32 %v491, %v661
  %s682 = scalar_lea.vmem %s1, 12
  %v683 = vld [vmem:[%s682] sm:$0xf]
  %v684 = vrot.slane %v25, 4
  %v685 = vrot.slane %v26, 4
  %v686 = vsel %vm141, %v684, %v685
  %v687 = vrot.slane %v27, 4
  %v688 = vsel %vm141, %v685, %v687
  %v689 = vrot.slane %v28, 4
  %v690 = vsel %vm141, %v687, %v689
  %v691 = vrot.slane %v29, 4
  %v692 = vsel %vm141, %v689, %v691
  %v693 = vrot.slane %v30, 4
  %v694 = vsel %vm141, %v691, %v693
  %v695 = vrot.slane %v31, 4
  %v696 = vsel %vm141, %v693, %v695
  %v697 = vrot.slane %v32, 4
  %v698 = vsel %vm141, %v695, %v697
  %v699 = vrot.slane %v33, 4
  %v700 = vsel %vm141, %v697, %v699
  %v701 = vrot.slane %v34, 4
  %v702 = vsel %vm141, %v699, %v701
  %v703 = vrot.slane %v35, 4
  %v704 = vsel %vm141, %v701, %v703
  %v705 = vrot.slane %v36, 4
  %v706 = vsel %vm141, %v703, %v705
  %v707 = vrot.slane %v37, 4
  %v708 = vsel %vm141, %v705, %v707
  %v709 = vrot.slane %v38, 4
  %v710 = vsel %vm141, %v707, %v709
  %v711 = vrot.slane %v39, 4
  %v712 = vsel %vm141, %v709, %v711
  %v713 = vrot.slane %v40, 4
  %v714 = vsel %vm141, %v711, %v713
  %v715 = vrot.slane %v41, 4
  %v716 = vsel %vm141, %v713, %v715
  %v717 = vrot.slane %v42, 4
  %v718 = vsel %vm141, %v715, %v717
  %v719 = vrot.slane %v43, 4
  %v720 = vsel %vm141, %v717, %v719
  %v721 = vsel %vm104, %v686, 0
  %v723 = vsel %vm104, %v688, 0
  %v725 = vsel %vm104, %v690, 0
  %v727 = vsel %vm104, %v692, 0
  %v729 = vsel %vm104, %v694, 0
  %v731 = vsel %vm104, %v696, 0
  %v733 = vsel %vm104, %v698, 0
  %v735 = vsel %vm104, %v700, 0
  %v737 = vsel %vm104, %v702, 0
  %v739 = vsel %vm104, %v704, 0
  %v741 = vsel %vm104, %v706, 0
  %v743 = vsel %vm104, %v708, 0
  %v745 = vsel %vm104, %v710, 0
  %v747 = vsel %vm104, %v712, 0
  %v749 = vsel %vm104, %v714, 0
  %v751 = vsel %vm104, %v716, 0
  %v753 = vsel %vm104, %v718, 0
  %v755 = vsel %vm104, %v720, 0
  %v758 = vsel %vm141, %v683, 0
  %760 = vmatprep.subr.mxu0 0.0
  %761 = vmatpush1.msra.mxu0 0.0
  %762 = vmatprep.subr.mxu0 0.0
  %763 = vmatpush1.msra.mxu0 0.0
  %764 = vmatprep.subr.mxu0 0.0
  %765 = vmatpush1.msra.mxu0 0.0
  %766 = vmatprep.subr.mxu0 0.0
  %767 = vmatpush1.msra.mxu0 0.0
  %768 = vmatprep.subr.mxu0 0.0
  %769 = vmatpush1.msra.mxu0 0.0
  %770 = vmatprep.subr.mxu0 0.0
  %771 = vmatpush1.msra.mxu0 0.0
  %772 = vmatprep.subr.mxu0 0.0
  %773 = vmatpush1.msra.mxu0 0.0
  %774 = vmatprep.subr.mxu0 0.0
  %775 = vmatpush1.msra.mxu0 0.0
  %776 = vmatprep.subr.mxu0 0.0
  %777 = vmatpush1.msra.mxu0 0.0
  %778 = vmatprep.subr.mxu0 0.0
  %779 = vmatpush1.msra.mxu0 0.0
  %780 = vmatprep.subr.mxu0 0.0
  %781 = vmatpush1.msra.mxu0 0.0
  %782 = vmatprep.subr.mxu0 0.0
  %783 = vmatpush1.msra.mxu0 0.0
  %784 = vmatprep.subr.mxu0 0.0
  %785 = vmatpush1.msra.mxu0 0.0
  %786 = vmatprep.subr.mxu0 0.0
  %787 = vmatpush1.msra.mxu0 0.0
  %788 = vmatprep.subr.mxu0 0.0
  %789 = vmatpush1.msra.mxu0 0.0
  %790 = vmatprep.subr.mxu0 0.0
  %791 = vmatpush1.msra.mxu0 %v758
  %792 = vmatprep.subr.mxu0 0.0
  %793 = vmatpush2.msra.mxu0 0.0
  %794 = vmatprep.subr.mxu0 0.0
  %795 = vmatpush2.msra.mxu0 0.0
  %796 = vmatprep.subr.mxu0 0.0
  %797 = vmatpush2.msra.mxu0 0.0
  %798 = vmatprep.subr.mxu0 0.0
  %799 = vmatpush2.msra.mxu0 0.0
  %800 = vmatprep.subr.mxu0 0.0
  %801 = vmatpush2.msra.mxu0 0.0
  %802 = vmatprep.subr.mxu0 0.0
  %803 = vmatpush2.msra.mxu0 0.0
  %804 = vmatprep.subr.mxu0 0.0
  %805 = vmatpush2.msra.mxu0 0.0
  %806 = vmatprep.subr.mxu0 0.0
  %807 = vmatpush2.msra.mxu0 0.0
  %808 = vmatprep.subr.mxu0 0.0
  %809 = vmatpush2.msra.mxu0 0.0
  %810 = vmatprep.subr.mxu0 0.0
  %811 = vmatpush2.msra.mxu0 0.0
  %812 = vmatprep.subr.mxu0 0.0
  %813 = vmatpush2.msra.mxu0 0.0
  %814 = vmatprep.subr.mxu0 0.0
  %815 = vmatpush2.msra.mxu0 0.0
  %816 = vmatprep.subr.mxu0 0.0
  %817 = vmatpush2.msra.mxu0 0.0
  %818 = vmatprep.subr.mxu0 0.0
  %819 = vmatpush2.msra.mxu0 0.0
  %820 = vmatprep.subr.mxu0 0.0
  %821 = vmatpush2.msra.mxu0 0.0
  %822 = vmatprep.subr.mxu0 0.0
  %823 = vmatpush2.msra.mxu0 0.0
  %824 = vmatprep.mubr.f32.mxu0 0.0
  %825 = vmatmul.mubr.f32.gmra.mxu0 %v721
  %v826 = vpop.f32.mrf.mxu0
  %v827 = vadd.f32 0.0, %v826
  %v828 = vpop.f32.mrf.mxu0
  %829 = vmatprep.mubr.f32.mxu0 0.0
  %830 = vmatmul.mubr.f32.gmra.mxu0 %v723
  %v831 = vpop.f32.mrf.mxu0
  %v832 = vadd.f32 0.0, %v831
  %v833 = vpop.f32.mrf.mxu0
  %834 = vmatprep.mubr.f32.mxu0 0.0
  %835 = vmatmul.mubr.f32.gmra.mxu0 %v725
  %v836 = vpop.f32.mrf.mxu0
  %v837 = vadd.f32 0.0, %v836
  %v838 = vpop.f32.mrf.mxu0
  %839 = vmatprep.mubr.f32.mxu0 0.0
  %840 = vmatmul.mubr.f32.gmra.mxu0 %v727
  %v841 = vpop.f32.mrf.mxu0
  %v842 = vadd.f32 0.0, %v841
  %v843 = vpop.f32.mrf.mxu0
  %844 = vmatprep.mubr.f32.mxu0 0.0
  %845 = vmatmul.mubr.f32.gmra.mxu0 %v729
  %v846 = vpop.f32.mrf.mxu0
  %v847 = vadd.f32 0.0, %v846
  %v848 = vpop.f32.mrf.mxu0
  %849 = vmatprep.mubr.f32.mxu0 0.0
  %850 = vmatmul.mubr.f32.gmra.mxu0 %v731
  %v851 = vpop.f32.mrf.mxu0
  %v852 = vadd.f32 0.0, %v851
  %v853 = vpop.f32.mrf.mxu0
  %854 = vmatprep.mubr.f32.mxu0 0.0
  %855 = vmatmul.mubr.f32.gmra.mxu0 %v733
  %v856 = vpop.f32.mrf.mxu0
  %v857 = vadd.f32 0.0, %v856
  %v858 = vpop.f32.mrf.mxu0
  %859 = vmatprep.mubr.f32.mxu0 0.0
  %860 = vmatmul.mubr.f32.gmra.mxu0 %v735
  %v861 = vpop.f32.mrf.mxu0
  %v862 = vadd.f32 0.0, %v861
  %v863 = vpop.f32.mrf.mxu0
  %864 = vmatprep.mubr.f32.mxu0 0.0
  %865 = vmatmul.mubr.f32.gmra.mxu0 %v737
  %v866 = vpop.f32.mrf.mxu0
  %v867 = vadd.f32 0.0, %v866
  %v868 = vpop.f32.mrf.mxu0
  %869 = vmatprep.mubr.f32.mxu0 0.0
  %870 = vmatmul.mubr.f32.gmra.mxu0 %v739
  %v871 = vpop.f32.mrf.mxu0
  %v872 = vadd.f32 0.0, %v871
  %v873 = vpop.f32.mrf.mxu0
  %874 = vmatprep.mubr.f32.mxu0 0.0
  %875 = vmatmul.mubr.f32.gmra.mxu0 %v741
  %v876 = vpop.f32.mrf.mxu0
  %v877 = vadd.f32 0.0, %v876
  %v878 = vpop.f32.mrf.mxu0
  %879 = vmatprep.mubr.f32.mxu0 0.0
  %880 = vmatmul.mubr.f32.gmra.mxu0 %v743
  %v881 = vpop.f32.mrf.mxu0
  %v882 = vadd.f32 0.0, %v881
  %v883 = vpop.f32.mrf.mxu0
  %884 = vmatprep.mubr.f32.mxu0 0.0
  %885 = vmatmul.mubr.f32.gmra.mxu0 %v745
  %v886 = vpop.f32.mrf.mxu0
  %v887 = vadd.f32 0.0, %v886
  %v888 = vpop.f32.mrf.mxu0
  %889 = vmatprep.mubr.f32.mxu0 0.0
  %890 = vmatmul.mubr.f32.gmra.mxu0 %v747
  %v891 = vpop.f32.mrf.mxu0
  %v892 = vadd.f32 0.0, %v891
  %v893 = vpop.f32.mrf.mxu0
  %894 = vmatprep.mubr.f32.mxu0 0.0
  %895 = vmatmul.mubr.f32.gmra.mxu0 %v749
  %v896 = vpop.f32.mrf.mxu0
  %v897 = vadd.f32 0.0, %v896
  %v898 = vpop.f32.mrf.mxu0
  %899 = vmatprep.mubr.f32.mxu0 0.0
  %900 = vmatmul.mubr.f32.gmra.mxu0 %v751
  %v901 = vpop.f32.mrf.mxu0
  %v902 = vadd.f32 0.0, %v901
  %v903 = vpop.f32.mrf.mxu0
  %904 = vmatprep.mubr.f32.mxu0 0.0
  %905 = vmatmul.mubr.f32.gmra.mxu0 %v753
  %v906 = vpop.f32.mrf.mxu0
  %v907 = vadd.f32 0.0, %v906
  %v908 = vpop.f32.mrf.mxu0
  %909 = vmatprep.mubr.f32.mxu0 0.0
  %910 = vmatmul.mubr.f32.gmra.mxu0 %v755
  %v911 = vpop.f32.mrf.mxu0
  %v912 = vadd.f32 0.0, %v911
  %v913 = vpop.f32.mrf.mxu0
  %914 = vdwg.mxu0
  %v915 = vadd.f32 %v664, %v827
  %v916 = vadd.f32 %v665, %v832
  %v917 = vadd.f32 %v666, %v837
  %v918 = vadd.f32 %v667, %v842
  %v919 = vadd.f32 %v668, %v847
  %v920 = vadd.f32 %v669, %v852
  %v921 = vadd.f32 %v670, %v857
  %v922 = vadd.f32 %v671, %v862
  %v923 = vadd.f32 %v672, %v867
  %v924 = vadd.f32 %v673, %v872
  %v925 = vadd.f32 %v674, %v877
  %v926 = vadd.f32 %v675, %v882
  %v927 = vadd.f32 %v676, %v887
  %v928 = vadd.f32 %v677, %v892
  %v929 = vadd.f32 %v678, %v897
  %v930 = vadd.f32 %v679, %v902
  %v931 = vadd.f32 %v680, %v907
  %v932 = vadd.f32 %v681, %v912
  %v933 = vld [vmem:[%s2] sm:$0x1]
  %v935 = vlaneseq
  %v936 = vshrl.u32 %v935, 7
  %v937 = vsub.s32 0, %v936
  %v938 = vrot.slane %v933, %v937
  %v940 = vadd.f32 %v915, %v938
  %v941 = vadd.f32 %v916, %v938
  %v942 = vadd.f32 %v917, %v938
  %v943 = vadd.f32 %v918, %v938
  %v944 = vadd.f32 %v919, %v938
  %v945 = vadd.f32 %v920, %v938
  %v946 = vadd.f32 %v921, %v938
  %v947 = vadd.f32 %v922, %v938
  %v948 = vadd.f32 %v923, %v938
  %v949 = vadd.f32 %v924, %v938
  %v950 = vadd.f32 %v925, %v938
  %v951 = vadd.f32 %v926, %v938
  %v952 = vadd.f32 %v927, %v938
  %v953 = vadd.f32 %v928, %v938
  %v954 = vadd.f32 %v929, %v938
  %v955 = vadd.f32 %v930, %v938
  %v956 = vadd.f32 %v931, %v938
  %v957 = vadd.f32 %v932, %v938
  %v958 = vld [vmem:[%s5] sm:$0xff]
  %v959 = vld [vmem:[%s5 + $0x8] sm:$0xff]
  %v960 = vld [vmem:[%s5 + $0x10] sm:$0xff]
  %v961 = vld [vmem:[%s5 + $0x18] sm:$0xff]
  %v962 = vld [vmem:[%s5 + $0x20] sm:$0xff]
  %v963 = vld [vmem:[%s5 + $0x28] sm:$0xff]
  %v964 = vld [vmem:[%s5 + $0x30] sm:$0xff]
  %v965 = vld [vmem:[%s5 + $0x38] sm:$0xff]
  %v966 = vld [vmem:[%s5 + $0x40] sm:$0xff]
  %v967 = vld [vmem:[%s5 + $0x48] sm:$0xff]
  %v968 = vld [vmem:[%s5 + $0x50] sm:$0xff]
  %v969 = vld [vmem:[%s5 + $0x58] sm:$0xff]
  %v970 = vld [vmem:[%s5 + $0x60] sm:$0xff]
  %v971 = vld [vmem:[%s5 + $0x68] sm:$0xff]
  %v972 = vld [vmem:[%s5 + $0x70] sm:$0xff]
  %v973 = vld [vmem:[%s5 + $0x78] sm:$0xff]
  %v974 = vld [vmem:[%s5 + $0x80] sm:$0xff]
  %v975 = vld [vmem:[%s5 + $0x88] sm:$0xff]
  %v976 = vld [vmem:[%s3] sm:$0x1]
  %v977 = vld [vmem:[%s4] sm:$0x1]
  %979 = vset.pattern.permute.xlu0 0
  %980 = vperm.xlu0 %979, %v958
  %v981 = vpop.permute.xlu0 %980
  %984 = vset.pattern.permute.xlu0 0
  %985 = vperm.xlu0 %984, %v959
  %v986 = vpop.permute.xlu0 %985
  %989 = vset.pattern.permute.xlu0 0
  %990 = vperm.xlu0 %989, %v960
  %v991 = vpop.permute.xlu0 %990
  %994 = vset.pattern.permute.xlu0 0
  %995 = vperm.xlu0 %994, %v961
  %v996 = vpop.permute.xlu0 %995
  %999 = vset.pattern.permute.xlu0 0
  %1000 = vperm.xlu0 %999, %v962
  %v1001 = vpop.permute.xlu0 %1000
  %1004 = vset.pattern.permute.xlu0 0
  %1005 = vperm.xlu0 %1004, %v963
  %v1006 = vpop.permute.xlu0 %1005
  %1009 = vset.pattern.permute.xlu0 0
  %1010 = vperm.xlu0 %1009, %v964
  %v1011 = vpop.permute.xlu0 %1010
  %1014 = vset.pattern.permute.xlu0 0
  %1015 = vperm.xlu0 %1014, %v965
  %v1016 = vpop.permute.xlu0 %1015
  %1019 = vset.pattern.permute.xlu0 0
  %1020 = vperm.xlu0 %1019, %v966
  %v1021 = vpop.permute.xlu0 %1020
  %1024 = vset.pattern.permute.xlu0 0
  %1025 = vperm.xlu0 %1024, %v967
  %v1026 = vpop.permute.xlu0 %1025
  %1029 = vset.pattern.permute.xlu0 0
  %1030 = vperm.xlu0 %1029, %v968
  %v1031 = vpop.permute.xlu0 %1030
  %1034 = vset.pattern.permute.xlu0 0
  %1035 = vperm.xlu0 %1034, %v969
  %v1036 = vpop.permute.xlu0 %1035
  %1039 = vset.pattern.permute.xlu0 0
  %1040 = vperm.xlu0 %1039, %v970
  %v1041 = vpop.permute.xlu0 %1040
  %1044 = vset.pattern.permute.xlu0 0
  %1045 = vperm.xlu0 %1044, %v971
  %v1046 = vpop.permute.xlu0 %1045
  %1049 = vset.pattern.permute.xlu0 0
  %1050 = vperm.xlu0 %1049, %v972
  %v1051 = vpop.permute.xlu0 %1050
  %1054 = vset.pattern.permute.xlu0 0
  %1055 = vperm.xlu0 %1054, %v973
  %v1056 = vpop.permute.xlu0 %1055
  %1059 = vset.pattern.permute.xlu0 0
  %1060 = vperm.xlu0 %1059, %v974
  %v1061 = vpop.permute.xlu0 %1060
  %1064 = vset.pattern.permute.xlu0 0
  %1065 = vperm.xlu0 %1064, %v975
  %v1066 = vpop.permute.xlu0 %1065
  %v1068 = vmul.f32 %v940, %v981
  %v1069 = vmul.f32 %v941, %v986
  %v1070 = vmul.f32 %v942, %v991
  %v1071 = vmul.f32 %v943, %v996
  %v1072 = vmul.f32 %v944, %v1001
  %v1073 = vmul.f32 %v945, %v1006
  %v1074 = vmul.f32 %v946, %v1011
  %v1075 = vmul.f32 %v947, %v1016
  %v1076 = vmul.f32 %v948, %v1021
  %v1077 = vmul.f32 %v949, %v1026
  %v1078 = vmul.f32 %v950, %v1031
  %v1079 = vmul.f32 %v951, %v1036
  %v1080 = vmul.f32 %v952, %v1041
  %v1081 = vmul.f32 %v953, %v1046
  %v1082 = vmul.f32 %v954, %v1051
  %v1083 = vmul.f32 %v955, %v1056
  %v1084 = vmul.f32 %v956, %v1061
  %v1085 = vmul.f32 %v957, %v1066
  %vm1086 = vcmask 261120
  %v1087 = vsel %vm1086, %v1068, 0.0
  %v1088 = vsel %vm1086, %v1069, 0.0
  %v1089 = vadd.f32 %v1087, %v1088
  %v1090 = vsel %vm1086, %v1070, 0.0
  %v1091 = vadd.f32 %v1089, %v1090
  %v1092 = vsel %vm1086, %v1071, 0.0
  %v1093 = vadd.f32 %v1091, %v1092
  %v1094 = vsel %vm1086, %v1072, 0.0
  %v1095 = vadd.f32 %v1093, %v1094
  %v1096 = vsel %vm1086, %v1073, 0.0
  %v1097 = vadd.f32 %v1095, %v1096
  %v1098 = vsel %vm1086, %v1074, 0.0
  %v1099 = vadd.f32 %v1097, %v1098
  %v1100 = vsel %vm1086, %v1075, 0.0
  %v1101 = vadd.f32 %v1099, %v1100
  %v1102 = vsel %vm1086, %v1076, 0.0
  %v1103 = vadd.f32 %v1101, %v1102
  %v1104 = vsel %vm1086, %v1077, 0.0
  %v1105 = vadd.f32 %v1103, %v1104
  %v1106 = vsel %vm1086, %v1078, 0.0
  %v1107 = vadd.f32 %v1105, %v1106
  %v1108 = vsel %vm1086, %v1079, 0.0
  %v1109 = vadd.f32 %v1107, %v1108
  %v1110 = vsel %vm1086, %v1080, 0.0
  %v1111 = vadd.f32 %v1109, %v1110
  %v1112 = vsel %vm1086, %v1081, 0.0
  %v1113 = vadd.f32 %v1111, %v1112
  %v1114 = vsel %vm1086, %v1082, 0.0
  %v1115 = vadd.f32 %v1113, %v1114
  %v1116 = vsel %vm1086, %v1083, 0.0
  %v1117 = vadd.f32 %v1115, %v1116
  %v1118 = vsel %vm1086, %v1084, 0.0
  %v1119 = vadd.f32 %v1117, %v1118
  %v1120 = vsel %vm1086, %v1085, 0.0
  %v1121 = vadd.f32 %v1119, %v1120
  %v1122 = vrot.slane %v1121, 4
  %v1123 = vadd.f32 %v1121, %v1122
  %v1124 = vrot.slane %v1123, 2
  %v1125 = vadd.f32 %v1123, %v1124
  %v1126 = vrot.slane %v1125, 1
  %v1127 = vadd.f32 %v1125, %v1126
  %v1128 = vmul.f32 %v1127, 0.0078125
  %v1129 = vmul.f32 %v1068, %v940
  %v1130 = vmul.f32 %v1069, %v941
  %v1131 = vmul.f32 %v1070, %v942
  %v1132 = vmul.f32 %v1071, %v943
  %v1133 = vmul.f32 %v1072, %v944
  %v1134 = vmul.f32 %v1073, %v945
  %v1135 = vmul.f32 %v1074, %v946
  %v1136 = vmul.f32 %v1075, %v947
  %v1137 = vmul.f32 %v1076, %v948
  %v1138 = vmul.f32 %v1077, %v949
  %v1139 = vmul.f32 %v1078, %v950
  %v1140 = vmul.f32 %v1079, %v951
  %v1141 = vmul.f32 %v1080, %v952
  %v1142 = vmul.f32 %v1081, %v953
  %v1143 = vmul.f32 %v1082, %v954
  %v1144 = vmul.f32 %v1083, %v955
  %v1145 = vmul.f32 %v1084, %v956
  %v1146 = vmul.f32 %v1085, %v957
  %v1147 = vsel %vm1086, %v1129, 0.0
  %v1148 = vsel %vm1086, %v1130, 0.0
  %v1149 = vadd.f32 %v1147, %v1148
  %v1150 = vsel %vm1086, %v1131, 0.0
  %v1151 = vadd.f32 %v1149, %v1150
  %v1152 = vsel %vm1086, %v1132, 0.0
  %v1153 = vadd.f32 %v1151, %v1152
  %v1154 = vsel %vm1086, %v1133, 0.0
  %v1155 = vadd.f32 %v1153, %v1154
  %v1156 = vsel %vm1086, %v1134, 0.0
  %v1157 = vadd.f32 %v1155, %v1156
  %v1158 = vsel %vm1086, %v1135, 0.0
  %v1159 = vadd.f32 %v1157, %v1158
  %v1160 = vsel %vm1086, %v1136, 0.0
  %v1161 = vadd.f32 %v1159, %v1160
  %v1162 = vsel %vm1086, %v1137, 0.0
  %v1163 = vadd.f32 %v1161, %v1162
  %v1164 = vsel %vm1086, %v1138, 0.0
  %v1165 = vadd.f32 %v1163, %v1164
  %v1166 = vsel %vm1086, %v1139, 0.0
  %v1167 = vadd.f32 %v1165, %v1166
  %v1168 = vsel %vm1086, %v1140, 0.0
  %v1169 = vadd.f32 %v1167, %v1168
  %v1170 = vsel %vm1086, %v1141, 0.0
  %v1171 = vadd.f32 %v1169, %v1170
  %v1172 = vsel %vm1086, %v1142, 0.0
  %v1173 = vadd.f32 %v1171, %v1172
  %v1174 = vsel %vm1086, %v1143, 0.0
  %v1175 = vadd.f32 %v1173, %v1174
  %v1176 = vsel %vm1086, %v1144, 0.0
  %v1177 = vadd.f32 %v1175, %v1176
  %v1178 = vsel %vm1086, %v1145, 0.0
  %v1179 = vadd.f32 %v1177, %v1178
  %v1180 = vsel %vm1086, %v1146, 0.0
  %v1181 = vadd.f32 %v1179, %v1180
  %v1182 = vrot.slane %v1181, 4
  %v1183 = vadd.f32 %v1181, %v1182
  %v1184 = vrot.slane %v1183, 2
  %v1185 = vadd.f32 %v1183, %v1184
  %v1186 = vrot.slane %v1185, 1
  %v1187 = vadd.f32 %v1185, %v1186
  %v1188 = vmul.f32 %v1187, 0.0078125
  %v1189 = vmul.f32 %v1128, %v1128
  %v1190 = vsub.f32 %v1188, %v1189
  %v1191 = vsub.f32 %v940, %v1128
  %v1192 = vsub.f32 %v941, %v1128
  %v1193 = vsub.f32 %v942, %v1128
  %v1194 = vsub.f32 %v943, %v1128
  %v1195 = vsub.f32 %v944, %v1128
  %v1196 = vsub.f32 %v945, %v1128
  %v1197 = vsub.f32 %v946, %v1128
  %v1198 = vsub.f32 %v947, %v1128
  %v1199 = vsub.f32 %v948, %v1128
  %v1200 = vsub.f32 %v949, %v1128
  %v1201 = vsub.f32 %v950, %v1128
  %v1202 = vsub.f32 %v951, %v1128
  %v1203 = vsub.f32 %v952, %v1128
  %v1204 = vsub.f32 %v953, %v1128
  %v1205 = vsub.f32 %v954, %v1128
  %v1206 = vsub.f32 %v955, %v1128
  %v1207 = vsub.f32 %v956, %v1128
  %v1208 = vsub.f32 %v957, %v1128
  %v1209 = vadd.f32 %v1190, 1e-05
  %v1210 = vrsqrt.pop %v1209
  %v1211 = vmul.f32 %v1191, %v1210
  %v1212 = vmul.f32 %v1192, %v1210
  %v1213 = vmul.f32 %v1193, %v1210
  %v1214 = vmul.f32 %v1194, %v1210
  %v1215 = vmul.f32 %v1195, %v1210
  %v1216 = vmul.f32 %v1196, %v1210
  %v1217 = vmul.f32 %v1197, %v1210
  %v1218 = vmul.f32 %v1198, %v1210
  %v1219 = vmul.f32 %v1199, %v1210
  %v1220 = vmul.f32 %v1200, %v1210
  %v1221 = vmul.f32 %v1201, %v1210
  %v1222 = vmul.f32 %v1202, %v1210
  %v1223 = vmul.f32 %v1203, %v1210
  %v1224 = vmul.f32 %v1204, %v1210
  %v1225 = vmul.f32 %v1205, %v1210
  %v1226 = vmul.f32 %v1206, %v1210
  %v1227 = vmul.f32 %v1207, %v1210
  %v1228 = vmul.f32 %v1208, %v1210
  %v1230 = vlaneseq
  %v1231 = vshrl.u32 %v1230, 7
  %v1232 = vsub.s32 0, %v1231
  %v1233 = vrot.slane %v976, %v1232
  %v1235 = vmul.f32 %v1211, %v1233
  %v1236 = vmul.f32 %v1212, %v1233
  %v1237 = vmul.f32 %v1213, %v1233
  %v1238 = vmul.f32 %v1214, %v1233
  %v1239 = vmul.f32 %v1215, %v1233
  %v1240 = vmul.f32 %v1216, %v1233
  %v1241 = vmul.f32 %v1217, %v1233
  %v1242 = vmul.f32 %v1218, %v1233
  %v1243 = vmul.f32 %v1219, %v1233
  %v1244 = vmul.f32 %v1220, %v1233
  %v1245 = vmul.f32 %v1221, %v1233
  %v1246 = vmul.f32 %v1222, %v1233
  %v1247 = vmul.f32 %v1223, %v1233
  %v1248 = vmul.f32 %v1224, %v1233
  %v1249 = vmul.f32 %v1225, %v1233
  %v1250 = vmul.f32 %v1226, %v1233
  %v1251 = vmul.f32 %v1227, %v1233
  %v1252 = vmul.f32 %v1228, %v1233
  %v1254 = vlaneseq
  %v1255 = vshrl.u32 %v1254, 7
  %v1256 = vsub.s32 0, %v1255
  %v1257 = vrot.slane %v977, %v1256
  %v1259 = vadd.f32 %v1235, %v1257
  %v1260 = vadd.f32 %v1236, %v1257
  %v1261 = vadd.f32 %v1237, %v1257
  %v1262 = vadd.f32 %v1238, %v1257
  %v1263 = vadd.f32 %v1239, %v1257
  %v1264 = vadd.f32 %v1240, %v1257
  %v1265 = vadd.f32 %v1241, %v1257
  %v1266 = vadd.f32 %v1242, %v1257
  %v1267 = vadd.f32 %v1243, %v1257
  %v1268 = vadd.f32 %v1244, %v1257
  %v1269 = vadd.f32 %v1245, %v1257
  %v1270 = vadd.f32 %v1246, %v1257
  %v1271 = vadd.f32 %v1247, %v1257
  %v1272 = vadd.f32 %v1248, %v1257
  %v1273 = vadd.f32 %v1249, %v1257
  %v1274 = vadd.f32 %v1250, %v1257
  %v1275 = vadd.f32 %v1251, %v1257
  %v1276 = vadd.f32 %v1252, %v1257
  %v1277 = vmax.f32 %v1259, 0.0
  %v1278 = vmax.f32 %v1260, 0.0
  %v1279 = vmax.f32 %v1261, 0.0
  %v1280 = vmax.f32 %v1262, 0.0
  %v1281 = vmax.f32 %v1263, 0.0
  %v1282 = vmax.f32 %v1264, 0.0
  %v1283 = vmax.f32 %v1265, 0.0
  %v1284 = vmax.f32 %v1266, 0.0
  %v1285 = vmax.f32 %v1267, 0.0
  %v1286 = vmax.f32 %v1268, 0.0
  %v1287 = vmax.f32 %v1269, 0.0
  %v1288 = vmax.f32 %v1270, 0.0
  %v1289 = vmax.f32 %v1271, 0.0
  %v1290 = vmax.f32 %v1272, 0.0
  %v1291 = vmax.f32 %v1273, 0.0
  %v1292 = vmax.f32 %v1274, 0.0
  %v1293 = vmax.f32 %v1275, 0.0
  %v1294 = vmax.f32 %v1276, 0.0
  %1295 = vst.msk [vmem:[%s6] sm:$0xff] %vm1086, %v1277
  %1296 = vst.msk [vmem:[%s6 + $0x8] sm:$0xff] %vm1086, %v1278
  %1297 = vst.msk [vmem:[%s6 + $0x10] sm:$0xff] %vm1086, %v1279
  %1298 = vst.msk [vmem:[%s6 + $0x18] sm:$0xff] %vm1086, %v1280
  %1299 = vst.msk [vmem:[%s6 + $0x20] sm:$0xff] %vm1086, %v1281
  %1300 = vst.msk [vmem:[%s6 + $0x28] sm:$0xff] %vm1086, %v1282
  %1301 = vst.msk [vmem:[%s6 + $0x30] sm:$0xff] %vm1086, %v1283
  %1302 = vst.msk [vmem:[%s6 + $0x38] sm:$0xff] %vm1086, %v1284
  %1303 = vst.msk [vmem:[%s6 + $0x40] sm:$0xff] %vm1086, %v1285
  %1304 = vst.msk [vmem:[%s6 + $0x48] sm:$0xff] %vm1086, %v1286
  %1305 = vst.msk [vmem:[%s6 + $0x50] sm:$0xff] %vm1086, %v1287
  %1306 = vst.msk [vmem:[%s6 + $0x58] sm:$0xff] %vm1086, %v1288
  %1307 = vst.msk [vmem:[%s6 + $0x60] sm:$0xff] %vm1086, %v1289
  %1308 = vst.msk [vmem:[%s6 + $0x68] sm:$0xff] %vm1086, %v1290
  %1309 = vst.msk [vmem:[%s6 + $0x70] sm:$0xff] %vm1086, %v1291
  %1310 = vst.msk [vmem:[%s6 + $0x78] sm:$0xff] %vm1086, %v1292
  %1311 = vst.msk [vmem:[%s6 + $0x80] sm:$0xff] %vm1086, %v1293
  %1312 = vst.msk [vmem:[%s6 + $0x88] sm:$0xff] %vm1086, %v1294
  // Predicated region
  $region26: #{vqvae_forward.9} parent=0 // pred_check
    _
  $region27: #{vqvae_forward.9} parent=0 // pred_check_branch
    %1314 = sbr.rel (0) target = $region29
  $region28: #{vqvae_forward.9} parent=0 // pred_region
    _
  $region29: #{vqvae_forward.9} parent=0 // pred_fallthru
    _
  // Predicated region
  $region30: #{vqvae_forward.9} parent=0 // pred_check
    _
  $region31: #{vqvae_forward.9} parent=0 // pred_check_branch
    %1316 = sbr.rel (0) target = $region33
  $region32: #{vqvae_forward.9} parent=0 // pred_region
    _
  $region33: #{vqvae_forward.9} parent=0 // pred_fallthru
    _

// kernel: vqvae_forward.10
$region0: #{vqvae_forward.10}
  #allocation0 [shape = 'u32[]', space=smem, size = 0x4, offset = 0x4, fixed_abs, tag = 'smem constant byte address 0x4 - core index']
  #allocation1 [shape = 'u32[144,128]{1,0:T(1,128)}', space=vmem, size = 0x12000, scoped, tag = 'internal scratch']
  %s0 = inlined_call_operand.vmem [shape: f32[52,128], index: 0, kind: input, shape index: {}]
  %s1 = inlined_call_operand.vmem [shape: bf16[4,128,32], index: 1, kind: input, shape index: {}]
  %s2 = inlined_call_operand.vmem [shape: f32[1,32], index: 2, kind: input, shape index: {}]
  %s3 = inlined_call_operand.vmem [shape: f32[40,32], index: 3, kind: output, shape index: {}]
  %s4 = sld [smem:[#allocation0]]
  $region22: #{vqvae_forward.10} parent=0
    _
  %s6 = ssub.s32 1, %s4
  %s7 = scalar_select 0, %s6, %s4
  // Predicated region
  $region2: #{vqvae_forward.10} parent=0 // pred_check
    _
  $region3: #{vqvae_forward.10} parent=0 // pred_check_branch
    %9 = sbr.rel (0) target = $region5
  $region4: #{vqvae_forward.10} parent=0 // pred_region
    _
  $region5: #{vqvae_forward.10} parent=0 // pred_fallthru
    _
  // Predicated region
  $region6: #{vqvae_forward.10} parent=0 // pred_check
    _
  $region7: #{vqvae_forward.10} parent=0 // pred_check_branch
    %11 = sbr.rel (0) target = $region9
  $region8: #{vqvae_forward.10} parent=0 // pred_region
    _
  $region9: #{vqvae_forward.10} parent=0 // pred_fallthru
    _
  // Predicated region
  $region10: #{vqvae_forward.10} parent=0 // pred_check
    _
  $region11: #{vqvae_forward.10} parent=0 // pred_check_branch
    %13 = sbr.rel (0) target = $region13
  $region12: #{vqvae_forward.10} parent=0 // pred_region
    _
  $region13: #{vqvae_forward.10} parent=0 // pred_fallthru
    _
  %v15 = vld [vmem:[%s0] sm:$0xff]
  %v16 = vld [vmem:[%s0 + $0x8] sm:$0xff]
  %v17 = vld [vmem:[%s0 + $0x10] sm:$0xff]
  %v18 = vld [vmem:[%s0 + $0x18] sm:$0xff]
  %v19 = vld [vmem:[%s0 + $0x20] sm:$0xff]
  %v20 = vld [vmem:[%s0 + $0x28] sm:$0xff]
  %v21 = vld [vmem:[%s0 + $0x30] sm:$0xf]
  %v22 = vpack.c.bf16 %v16, %v15
  %v23 = vpack.c.bf16 %v18, %v17
  %v24 = vpack.c.bf16 %v20, %v19
  %v25 = vpack.c.bf16 %v21, %v21
  %v26 = vld [vmem:[%s1] sm:$0xf]
  %v27 = vld [vmem:[%s1 + $0x4] sm:$0xf]
  %v28 = vld [vmem:[%s1 + $0x8] sm:$0xf]
  %v29 = vld [vmem:[%s1 + $0xc] sm:$0xf]
  %v30 = vld [vmem:[%s1 + $0x10] sm:$0xf]
  %v31 = vld [vmem:[%s1 + $0x14] sm:$0xf]
  %v32 = vld [vmem:[%s1 + $0x18] sm:$0xf]
  %v33 = vld [vmem:[%s1 + $0x1c] sm:$0xf]
  %v34 = vld [vmem:[%s1 + $0x20] sm:$0xf]
  %v35 = vld [vmem:[%s1 + $0x24] sm:$0xf]
  %v36 = vld [vmem:[%s1 + $0x28] sm:$0xf]
  %v37 = vld [vmem:[%s1 + $0x2c] sm:$0xf]
  %v38 = vld [vmem:[%s1 + $0x30] sm:$0xf]
  %v39 = vld [vmem:[%s1 + $0x34] sm:$0xf]
  %v40 = vld [vmem:[%s1 + $0x38] sm:$0xf]
  %v41 = vld [vmem:[%s1 + $0x3c] sm:$0xf]
  %s42 = scalar_lea.vmem %s1, 64
  %v43 = vld [vmem:[%s42] sm:$0xf]
  %v44 = vld [vmem:[%s42 + $0x4] sm:$0xf]
  %v45 = vld [vmem:[%s42 + $0x8] sm:$0xf]
  %v46 = vld [vmem:[%s42 + $0xc] sm:$0xf]
  %v47 = vld [vmem:[%s42 + $0x10] sm:$0xf]
  %v48 = vld [vmem:[%s42 + $0x14] sm:$0xf]
  %v49 = vld [vmem:[%s42 + $0x18] sm:$0xf]
  %v50 = vld [vmem:[%s42 + $0x1c] sm:$0xf]
  %v51 = vld [vmem:[%s42 + $0x20] sm:$0xf]
  %v52 = vld [vmem:[%s42 + $0x24] sm:$0xf]
  %v53 = vld [vmem:[%s42 + $0x28] sm:$0xf]
  %v54 = vld [vmem:[%s42 + $0x2c] sm:$0xf]
  %v55 = vld [vmem:[%s42 + $0x30] sm:$0xf]
  %v56 = vld [vmem:[%s42 + $0x34] sm:$0xf]
  %v57 = vld [vmem:[%s42 + $0x38] sm:$0xf]
  %v58 = vld [vmem:[%s42 + $0x3c] sm:$0xf]
  %vm62 = vcmask 1046528
  %v63 = vrot.slane %v22, 1
  %v64 = vrot.slane %v23, 1
  %v65 = vsel %vm62, %v63, %v64
  %v66 = vrot.slane %v24, 1
  %v67 = vsel %vm62, %v64, %v66
  %v87 = vunpack.c.l.b16 %v43
  %v88 = vunpack.c.l.b16 %v44
  %v89 = vunpack.c.l.b16 %v45
  %v90 = vunpack.c.l.b16 %v46
  %v91 = vunpack.c.l.b16 %v47
  %v92 = vunpack.c.l.b16 %v48
  %v93 = vunpack.c.l.b16 %v49
  %v94 = vunpack.c.l.b16 %v50
  %v95 = vunpack.c.l.b16 %v51
  %v96 = vunpack.c.l.b16 %v52
  %v97 = vunpack.c.l.b16 %v53
  %v98 = vunpack.c.l.b16 %v54
  %v99 = vunpack.c.l.b16 %v55
  %v100 = vunpack.c.l.b16 %v56
  %v101 = vunpack.c.l.b16 %v57
  %v102 = vunpack.c.l.b16 %v58
  %v103 = vpack.c.b16 %v88, %v87
  %v104 = vpack.c.b16 %v90, %v89
  %v105 = vpack.c.b16 %v92, %v91
  %v106 = vpack.c.b16 %v94, %v93
  %v107 = vpack.c.b16 %v96, %v95
  %v108 = vpack.c.b16 %v98, %v97
  %v109 = vpack.c.b16 %v100, %v99
  %v110 = vpack.c.b16 %v102, %v101
  %119 = vmatprep.subr.bf16.mxu0 0
  %120 = vmatpush1.bf16.msra.mxu0 %v110
  %121 = vmatprep.subr.bf16.mxu0 0
  %122 = vmatpush1.bf16.msra.mxu0 %v109
  %123 = vmatprep.subr.bf16.mxu0 0
  %124 = vmatpush1.bf16.msra.mxu0 %v108
  %125 = vmatprep.subr.bf16.mxu0 0
  %126 = vmatpush1.bf16.msra.mxu0 %v107
  %127 = vmatprep.subr.bf16.mxu0 0
  %128 = vmatpush1.bf16.msra.mxu0 %v106
  %129 = vmatprep.subr.bf16.mxu0 0
  %130 = vmatpush1.bf16.msra.mxu0 %v105
  %131 = vmatprep.subr.bf16.mxu0 0
  %132 = vmatpush1.bf16.msra.mxu0 %v104
  %133 = vmatprep.subr.bf16.mxu0 0
  %134 = vmatpush1.bf16.msra.mxu0 %v103
  %135 = vmatprep.subr.bf16.mxu0 0
  %136 = vmatpush2.bf16.msra.mxu0 0
  %137 = vmatprep.subr.bf16.mxu0 0
  %138 = vmatpush2.bf16.msra.mxu0 0
  %139 = vmatprep.subr.bf16.mxu0 0
  %140 = vmatpush2.bf16.msra.mxu0 0
  %141 = vmatprep.subr.bf16.mxu0 0
  %142 = vmatpush2.bf16.msra.mxu0 0
  %143 = vmatprep.subr.bf16.mxu0 0
  %144 = vmatpush2.bf16.msra.mxu0 0
  %145 = vmatprep.subr.bf16.mxu0 0
  %146 = vmatpush2.bf16.msra.mxu0 0
  %147 = vmatprep.subr.bf16.mxu0 0
  %148 = vmatpush2.bf16.msra.mxu0 0
  %149 = vmatprep.subr.bf16.mxu0 0
  %150 = vmatpush2.bf16.msra.mxu0 0
  %151 = vmatprep.mubr.bf16.mxu0 0
  %152 = vmatmul.mubr.bf16.gmra.mxu0 %v65
  %v153 = vpop.f32.mrf.mxu0
  %v154 = vadd.f32 0.0, %v153
  %v155 = vpop.f32.mrf.mxu0
  %v156 = vpop.f32.mrf.mxu0
  %v157 = vadd.f32 0.0, %v156
  %v158 = vpop.f32.mrf.mxu0
  %159 = vmatprep.mubr.bf16.mxu0 0
  %160 = vmatmul.mubr.bf16.gmra.mxu0 %v67
  %v161 = vpop.f32.mrf.mxu0
  %v162 = vadd.f32 0.0, %v161
  %v163 = vpop.f32.mrf.mxu0
  %v164 = vpop.f32.mrf.mxu0
  %v165 = vadd.f32 0.0, %v164
  %v166 = vpop.f32.mrf.mxu0
  %167 = vmatprep.mubr.bf16.mxu0 0
  %168 = vmatmul.mubr.bf16.gmra.mxu0 %v66
  %v169 = vpop.f32.mrf.mxu0
  %v170 = vadd.f32 0.0, %v169
  %v171 = vpop.f32.mrf.mxu0
  %v172 = vpop.f32.mrf.mxu0
  %v173 = vpop.f32.mrf.mxu0
  %174 = vdwg.mxu0
  %v191 = vunpack.c.l.b16 %v26
  %v192 = vunpack.c.l.b16 %v27
  %v193 = vunpack.c.l.b16 %v28
  %v194 = vunpack.c.l.b16 %v29
  %v195 = vunpack.c.l.b16 %v30
  %v196 = vunpack.c.l.b16 %v31
  %v197 = vunpack.c.l.b16 %v32
  %v198 = vunpack.c.l.b16 %v33
  %v199 = vunpack.c.l.b16 %v34
  %v200 = vunpack.c.l.b16 %v35
  %v201 = vunpack.c.l.b16 %v36
  %v202 = vunpack.c.l.b16 %v37
  %v203 = vunpack.c.l.b16 %v38
  %v204 = vunpack.c.l.b16 %v39
  %v205 = vunpack.c.l.b16 %v40
  %v206 = vunpack.c.l.b16 %v41
  %v207 = vpack.c.b16 %v192, %v191
  %v208 = vpack.c.b16 %v194, %v193
  %v209 = vpack.c.b16 %v196, %v195
  %v210 = vpack.c.b16 %v198, %v197
  %v211 = vpack.c.b16 %v200, %v199
  %v212 = vpack.c.b16 %v202, %v201
  %v213 = vpack.c.b16 %v204, %v203
  %v214 = vpack.c.b16 %v206, %v205
  %223 = vmatprep.subr.bf16.mxu0 0
  %224 = vmatpush1.bf16.msra.mxu0 %v214
  %225 = vmatprep.subr.bf16.mxu0 0
  %226 = vmatpush1.bf16.msra.mxu0 %v213
  %227 = vmatprep.subr.bf16.mxu0 0
  %228 = vmatpush1.bf16.msra.mxu0 %v212
  %229 = vmatprep.subr.bf16.mxu0 0
  %230 = vmatpush1.bf16.msra.mxu0 %v211
  %231 = vmatprep.subr.bf16.mxu0 0
  %232 = vmatpush1.bf16.msra.mxu0 %v210
  %233 = vmatprep.subr.bf16.mxu0 0
  %234 = vmatpush1.bf16.msra.mxu0 %v209
  %235 = vmatprep.subr.bf16.mxu0 0
  %236 = vmatpush1.bf16.msra.mxu0 %v208
  %237 = vmatprep.subr.bf16.mxu0 0
  %238 = vmatpush1.bf16.msra.mxu0 %v207
  %239 = vmatprep.subr.bf16.mxu0 0
  %240 = vmatpush2.bf16.msra.mxu0 0
  %241 = vmatprep.subr.bf16.mxu0 0
  %242 = vmatpush2.bf16.msra.mxu0 0
  %243 = vmatprep.subr.bf16.mxu0 0
  %244 = vmatpush2.bf16.msra.mxu0 0
  %245 = vmatprep.subr.bf16.mxu0 0
  %246 = vmatpush2.bf16.msra.mxu0 0
  %247 = vmatprep.subr.bf16.mxu0 0
  %248 = vmatpush2.bf16.msra.mxu0 0
  %249 = vmatprep.subr.bf16.mxu0 0
  %250 = vmatpush2.bf16.msra.mxu0 0
  %251 = vmatprep.subr.bf16.mxu0 0
  %252 = vmatpush2.bf16.msra.mxu0 0
  %253 = vmatprep.subr.bf16.mxu0 0
  %254 = vmatpush2.bf16.msra.mxu0 0
  %255 = vmatprep.mubr.bf16.mxu0 0
  %256 = vmatmul.mubr.bf16.gmra.mxu0 %v22
  %v257 = vpop.f32.mrf.mxu0
  %v258 = vadd.f32 %v154, %v257
  %v259 = vpop.f32.mrf.mxu0
  %v260 = vpop.f32.mrf.mxu0
  %v261 = vadd.f32 %v157, %v260
  %v262 = vpop.f32.mrf.mxu0
  %263 = vmatprep.mubr.bf16.mxu0 0
  %264 = vmatmul.mubr.bf16.gmra.mxu0 %v23
  %v265 = vpop.f32.mrf.mxu0
  %v266 = vadd.f32 %v162, %v265
  %v267 = vpop.f32.mrf.mxu0
  %v268 = vpop.f32.mrf.mxu0
  %v269 = vadd.f32 %v165, %v268
  %v270 = vpop.f32.mrf.mxu0
  %271 = vmatprep.mubr.bf16.mxu0 0
  %272 = vmatmul.mubr.bf16.gmra.mxu0 %v24
  %v273 = vpop.f32.mrf.mxu0
  %v274 = vadd.f32 %v170, %v273
  %v275 = vpop.f32.mrf.mxu0
  %v276 = vpop.f32.mrf.mxu0
  %v277 = vpop.f32.mrf.mxu0
  %278 = vdwg.mxu0
  %s279 = scalar_lea.vmem %s1, 128
  %v280 = vld [vmem:[%s279] sm:$0xf]
  %v281 = vld [vmem:[%s279 + $0x4] sm:$0xf]
  %v282 = vld [vmem:[%s279 + $0x8] sm:$0xf]
  %v283 = vld [vmem:[%s279 + $0xc] sm:$0xf]
  %v284 = vld [vmem:[%s279 + $0x10] sm:$0xf]
  %v285 = vld [vmem:[%s279 + $0x14] sm:$0xf]
  %v286 = vld [vmem:[%s279 + $0x18] sm:$0xf]
  %v287 = vld [vmem:[%s279 + $0x1c] sm:$0xf]
  %v288 = vld [vmem:[%s279 + $0x20] sm:$0xf]
  %v289 = vld [vmem:[%s279 + $0x24] sm:$0xf]
  %v290 = vld [vmem:[%s279 + $0x28] sm:$0xf]
  %v291 = vld [vmem:[%s279 + $0x2c] sm:$0xf]
  %v292 = vld [vmem:[%s279 + $0x30] sm:$0xf]
  %v293 = vld [vmem:[%s279 + $0x34] sm:$0xf]
  %v294 = vld [vmem:[%s279 + $0x38] sm:$0xf]
  %v295 = vld [vmem:[%s279 + $0x3c] sm:$0xf]
  %vm297 = vcmask 1042432
  %v298 = vrot.slane %v22, 5
  %v299 = vrot.slane %v23, 5
  %v300 = vsel %vm297, %v298, %v299
  %v301 = vrot.slane %v24, 5
  %v302 = vsel %vm297, %v299, %v301
  %v303 = vrot.slane %v25, 5
  %v304 = vsel %vm297, %v301, %v303
  %v324 = vunpack.c.l.b16 %v280
  %v325 = vunpack.c.l.b16 %v281
  %v326 = vunpack.c.l.b16 %v282
  %v327 = vunpack.c.l.b16 %v283
  %v328 = vunpack.c.l.b16 %v284
  %v329 = vunpack.c.l.b16 %v285
  %v330 = vunpack.c.l.b16 %v286
  %v331 = vunpack.c.l.b16 %v287
  %v332 = vunpack.c.l.b16 %v288
  %v333 = vunpack.c.l.b16 %v289
  %v334 = vunpack.c.l.b16 %v290
  %v335 = vunpack.c.l.b16 %v291
  %v336 = vunpack.c.l.b16 %v292
  %v337 = vunpack.c.l.b16 %v293
  %v338 = vunpack.c.l.b16 %v294
  %v339 = vunpack.c.l.b16 %v295
  %v340 = vpack.c.b16 %v325, %v324
  %v341 = vpack.c.b16 %v327, %v326
  %v342 = vpack.c.b16 %v329, %v328
  %v343 = vpack.c.b16 %v331, %v330
  %v344 = vpack.c.b16 %v333, %v332
  %v345 = vpack.c.b16 %v335, %v334
  %v346 = vpack.c.b16 %v337, %v336
  %v347 = vpack.c.b16 %v339, %v338
  %356 = vmatprep.subr.bf16.mxu0 0
  %357 = vmatpush1.bf16.msra.mxu0 %v347
  %358 = vmatprep.subr.bf16.mxu0 0
  %359 = vmatpush1.bf16.msra.mxu0 %v346
  %360 = vmatprep.subr.bf16.mxu0 0
  %361 = vmatpush1.bf16.msra.mxu0 %v345
  %362 = vmatprep.subr.bf16.mxu0 0
  %363 = vmatpush1.bf16.msra.mxu0 %v344
  %364 = vmatprep.subr.bf16.mxu0 0
  %365 = vmatpush1.bf16.msra.mxu0 %v343
  %366 = vmatprep.subr.bf16.mxu0 0
  %367 = vmatpush1.bf16.msra.mxu0 %v342
  %368 = vmatprep.subr.bf16.mxu0 0
  %369 = vmatpush1.bf16.msra.mxu0 %v341
  %370 = vmatprep.subr.bf16.mxu0 0
  %371 = vmatpush1.bf16.msra.mxu0 %v340
  %372 = vmatprep.subr.bf16.mxu0 0
  %373 = vmatpush2.bf16.msra.mxu0 0
  %374 = vmatprep.subr.bf16.mxu0 0
  %375 = vmatpush2.bf16.msra.mxu0 0
  %376 = vmatprep.subr.bf16.mxu0 0
  %377 = vmatpush2.bf16.msra.mxu0 0
  %378 = vmatprep.subr.bf16.mxu0 0
  %379 = vmatpush2.bf16.msra.mxu0 0
  %380 = vmatprep.subr.bf16.mxu0 0
  %381 = vmatpush2.bf16.msra.mxu0 0
  %382 = vmatprep.subr.bf16.mxu0 0
  %383 = vmatpush2.bf16.msra.mxu0 0
  %384 = vmatprep.subr.bf16.mxu0 0
  %385 = vmatpush2.bf16.msra.mxu0 0
  %386 = vmatprep.subr.bf16.mxu0 0
  %387 = vmatpush2.bf16.msra.mxu0 0
  %388 = vmatprep.mubr.bf16.mxu0 0
  %389 = vmatmul.mubr.bf16.gmra.mxu0 %v300
  %v390 = vpop.f32.mrf.mxu0
  %v391 = vadd.f32 0.0, %v390
  %v392 = vpop.f32.mrf.mxu0
  %v393 = vpop.f32.mrf.mxu0
  %v394 = vadd.f32 0.0, %v393
  %v395 = vpop.f32.mrf.mxu0
  %396 = vmatprep.mubr.bf16.mxu0 0
  %397 = vmatmul.mubr.bf16.gmra.mxu0 %v302
  %v398 = vpop.f32.mrf.mxu0
  %v399 = vadd.f32 0.0, %v398
  %v400 = vpop.f32.mrf.mxu0
  %v401 = vpop.f32.mrf.mxu0
  %v402 = vadd.f32 0.0, %v401
  %v403 = vpop.f32.mrf.mxu0
  %404 = vmatprep.mubr.bf16.mxu0 0
  %405 = vmatmul.mubr.bf16.gmra.mxu0 %v304
  %v406 = vpop.f32.mrf.mxu0
  %v407 = vadd.f32 0.0, %v406
  %v408 = vpop.f32.mrf.mxu0
  %v409 = vpop.f32.mrf.mxu0
  %v410 = vpop.f32.mrf.mxu0
  %411 = vdwg.mxu0
  %v412 = vadd.f32 %v258, %v391
  %v413 = vadd.f32 %v261, %v394
  %v414 = vadd.f32 %v266, %v399
  %v415 = vadd.f32 %v269, %v402
  %v416 = vadd.f32 %v274, %v407
  %s417 = scalar_lea.vmem %s1, 192
  %v418 = vld [vmem:[%s417] sm:$0xf]
  %v419 = vld [vmem:[%s417 + $0x4] sm:$0xf]
  %v420 = vld [vmem:[%s417 + $0x8] sm:$0xf]
  %v421 = vld [vmem:[%s417 + $0xc] sm:$0xf]
  %v422 = vld [vmem:[%s417 + $0x10] sm:$0xf]
  %v423 = vld [vmem:[%s417 + $0x14] sm:$0xf]
  %v424 = vld [vmem:[%s417 + $0x18] sm:$0xf]
  %v425 = vld [vmem:[%s417 + $0x1c] sm:$0xf]
  %v426 = vld [vmem:[%s417 + $0x20] sm:$0xf]
  %v427 = vld [vmem:[%s417 + $0x24] sm:$0xf]
  %v428 = vld [vmem:[%s417 + $0x28] sm:$0xf]
  %v429 = vld [vmem:[%s417 + $0x2c] sm:$0xf]
  %v430 = vld [vmem:[%s417 + $0x30] sm:$0xf]
  %v431 = vld [vmem:[%s417 + $0x34] sm:$0xf]
  %v432 = vld [vmem:[%s417 + $0x38] sm:$0xf]
  %v433 = vld [vmem:[%s417 + $0x3c] sm:$0xf]
  %vm434 = vcmask 1041408
  %v435 = vrot.slane %v22, 6
  %v436 = vrot.slane %v23, 6
  %v437 = vsel %vm434, %v435, %v436
  %v438 = vrot.slane %v24, 6
  %v439 = vsel %vm434, %v436, %v438
  %v440 = vrot.slane %v25, 6
  %v441 = vsel %vm434, %v438, %v440
  %v461 = vunpack.c.l.b16 %v418
  %v462 = vunpack.c.l.b16 %v419
  %v463 = vunpack.c.l.b16 %v420
  %v464 = vunpack.c.l.b16 %v421
  %v465 = vunpack.c.l.b16 %v422
  %v466 = vunpack.c.l.b16 %v423
  %v467 = vunpack.c.l.b16 %v424
  %v468 = vunpack.c.l.b16 %v425
  %v469 = vunpack.c.l.b16 %v426
  %v470 = vunpack.c.l.b16 %v427
  %v471 = vunpack.c.l.b16 %v428
  %v472 = vunpack.c.l.b16 %v429
  %v473 = vunpack.c.l.b16 %v430
  %v474 = vunpack.c.l.b16 %v431
  %v475 = vunpack.c.l.b16 %v432
  %v476 = vunpack.c.l.b16 %v433
  %v477 = vpack.c.b16 %v462, %v461
  %v478 = vpack.c.b16 %v464, %v463
  %v479 = vpack.c.b16 %v466, %v465
  %v480 = vpack.c.b16 %v468, %v467
  %v481 = vpack.c.b16 %v470, %v469
  %v482 = vpack.c.b16 %v472, %v471
  %v483 = vpack.c.b16 %v474, %v473
  %v484 = vpack.c.b16 %v476, %v475
  %493 = vmatprep.subr.bf16.mxu0 0
  %494 = vmatpush1.bf16.msra.mxu0 %v484
  %495 = vmatprep.subr.bf16.mxu0 0
  %496 = vmatpush1.bf16.msra.mxu0 %v483
  %497 = vmatprep.subr.bf16.mxu0 0
  %498 = vmatpush1.bf16.msra.mxu0 %v482
  %499 = vmatprep.subr.bf16.mxu0 0
  %500 = vmatpush1.bf16.msra.mxu0 %v481
  %501 = vmatprep.subr.bf16.mxu0 0
  %502 = vmatpush1.bf16.msra.mxu0 %v480
  %503 = vmatprep.subr.bf16.mxu0 0
  %504 = vmatpush1.bf16.msra.mxu0 %v479
  %505 = vmatprep.subr.bf16.mxu0 0
  %506 = vmatpush1.bf16.msra.mxu0 %v478
  %507 = vmatprep.subr.bf16.mxu0 0
  %508 = vmatpush1.bf16.msra.mxu0 %v477
  %509 = vmatprep.subr.bf16.mxu0 0
  %510 = vmatpush2.bf16.msra.mxu0 0
  %511 = vmatprep.subr.bf16.mxu0 0
  %512 = vmatpush2.bf16.msra.mxu0 0
  %513 = vmatprep.subr.bf16.mxu0 0
  %514 = vmatpush2.bf16.msra.mxu0 0
  %515 = vmatprep.subr.bf16.mxu0 0
  %516 = vmatpush2.bf16.msra.mxu0 0
  %517 = vmatprep.subr.bf16.mxu0 0
  %518 = vmatpush2.bf16.msra.mxu0 0
  %519 = vmatprep.subr.bf16.mxu0 0
  %520 = vmatpush2.bf16.msra.mxu0 0
  %521 = vmatprep.subr.bf16.mxu0 0
  %522 = vmatpush2.bf16.msra.mxu0 0
  %523 = vmatprep.subr.bf16.mxu0 0
  %524 = vmatpush2.bf16.msra.mxu0 0
  %525 = vmatprep.mubr.bf16.mxu0 0
  %526 = vmatmul.mubr.bf16.gmra.mxu0 %v437
  %v527 = vpop.f32.mrf.mxu0
  %v528 = vadd.f32 0.0, %v527
  %v529 = vpop.f32.mrf.mxu0
  %v530 = vpop.f32.mrf.mxu0
  %v531 = vadd.f32 0.0, %v530
  %v532 = vpop.f32.mrf.mxu0
  %533 = vmatprep.mubr.bf16.mxu0 0
  %534 = vmatmul.mubr.bf16.gmra.mxu0 %v439
  %v535 = vpop.f32.mrf.mxu0
  %v536 = vadd.f32 0.0, %v535
  %v537 = vpop.f32.mrf.mxu0
  %v538 = vpop.f32.mrf.mxu0
  %v539 = vadd.f32 0.0, %v538
  %v540 = vpop.f32.mrf.mxu0
  %541 = vmatprep.mubr.bf16.mxu0 0
  %542 = vmatmul.mubr.bf16.gmra.mxu0 %v441
  %v543 = vpop.f32.mrf.mxu0
  %v544 = vadd.f32 0.0, %v543
  %v545 = vpop.f32.mrf.mxu0
  %v546 = vpop.f32.mrf.mxu0
  %v547 = vpop.f32.mrf.mxu0
  %548 = vdwg.mxu0
  %v549 = vadd.f32 %v412, %v528
  %v550 = vadd.f32 %v413, %v531
  %v551 = vadd.f32 %v414, %v536
  %v552 = vadd.f32 %v415, %v539
  %v553 = vadd.f32 %v416, %v544
  %v554 = vld [vmem:[%s2] sm:$0x1]
  %v556 = vlaneseq
  %v557 = vshrl.u32 %v556, 7
  %v558 = vsub.s32 0, %v557
  %v559 = vrot.slane %v554, %v558
  %v561 = vadd.f32 %v549, %v559
  %v562 = vadd.f32 %v550, %v559
  %v563 = vadd.f32 %v551, %v559
  %v564 = vadd.f32 %v552, %v559
  %v565 = vadd.f32 %v553, %v559
  %vm566 = vcmask 261120
  %567 = vst.msk [vmem:[%s3] sm:$0xff] %vm566, %v561
  %568 = vst.msk [vmem:[%s3 + $0x8] sm:$0xff] %vm566, %v562
  %569 = vst.msk [vmem:[%s3 + $0x10] sm:$0xff] %vm566, %v563
  %570 = vst.msk [vmem:[%s3 + $0x18] sm:$0xff] %vm566, %v564
  %571 = vst.msk [vmem:[%s3 + $0x20] sm:$0xff] %vm566, %v565
  // Predicated region
  $region14: #{vqvae_forward.10} parent=0 // pred_check
    _
  $region15: #{vqvae_forward.10} parent=0 // pred_check_branch
    %573 = sbr.rel (0) target = $region17
  $region16: #{vqvae_forward.10} parent=0 // pred_region
    _
  $region17: #{vqvae_forward.10} parent=0 // pred_fallthru
    _
  // Predicated region
  $region18: #{vqvae_forward.10} parent=0 // pred_check
    _
  $region19: #{vqvae_forward.10} parent=0 // pred_check_branch
    %575 = sbr.rel (0) target = $region21
  $region20: #{vqvae_forward.10} parent=0 // pred_region
    _
  $region21: #{vqvae_forward.10} parent=0 // pred_fallthru
    _

// kernel: vqvae_forward.13
$region0: #{vqvae_forward.13}
  #allocation0 [shape = 'u32[]', space=smem, size = 0x4, offset = 0x4, fixed_abs, tag = 'smem constant byte address 0x4 - core index']
  #allocation1 [shape = 'u32[144,128]{1,0:T(1,128)}', space=vmem, size = 0x12000, scoped, tag = 'internal scratch']
  %s0 = inlined_call_operand.vmem [shape: f32[32,32], index: 0, kind: input, shape index: {}]
  %s1 = inlined_call_operand.vmem [shape: f32[32,64], index: 1, kind: input, shape index: {}]
  %s2 = inlined_call_operand.vmem [shape: f32[64,32], index: 2, kind: input, shape index: {}]
  %s3 = inlined_call_operand.vmem [shape: f32[1,64], index: 3, kind: input, shape index: {}]
  %s4 = inlined_call_operand.vmem [shape: s32[32,1], index: 4, kind: output, shape index: {0}]
  %s5 = inlined_call_operand.vmem [shape: f32[32,32], index: 5, kind: output, shape index: {1}]
  %6 = xla_tuple %s4, %s5
  %s7 = sld [smem:[#allocation0]]
  $region34: #{vqvae_forward.13} parent=0
    _
  %s9 = ssub.s32 1, %s7
  %s10 = scalar_select 0, %s9, %s7
  // Predicated region
  $region2: #{vqvae_forward.13} parent=0 // pred_check
    _
  $region3: #{vqvae_forward.13} parent=0 // pred_check_branch
    %12 = sbr.rel (0) target = $region5
  $region4: #{vqvae_forward.13} parent=0 // pred_region
    _
  $region5: #{vqvae_forward.13} parent=0 // pred_fallthru
    _
  // Predicated region
  $region6: #{vqvae_forward.13} parent=0 // pred_check
    _
  $region7: #{vqvae_forward.13} parent=0 // pred_check_branch
    %14 = sbr.rel (0) target = $region9
  $region8: #{vqvae_forward.13} parent=0 // pred_region
    _
  $region9: #{vqvae_forward.13} parent=0 // pred_fallthru
    _
  // Predicated region
  $region10: #{vqvae_forward.13} parent=0 // pred_check
    _
  $region11: #{vqvae_forward.13} parent=0 // pred_check_branch
    %16 = sbr.rel (0) target = $region13
  $region12: #{vqvae_forward.13} parent=0 // pred_region
    _
  $region13: #{vqvae_forward.13} parent=0 // pred_fallthru
    _
  // Predicated region
  $region14: #{vqvae_forward.13} parent=0 // pred_check
    _
  $region15: #{vqvae_forward.13} parent=0 // pred_check_branch
    %18 = sbr.rel (0) target = $region17
  $region16: #{vqvae_forward.13} parent=0 // pred_region
    _
  $region17: #{vqvae_forward.13} parent=0 // pred_fallthru
    _
  %v19 = vld [vmem:[%s0] sm:$0xff]
  %v20 = vld [vmem:[%s0 + $0x8] sm:$0xff]
  %v21 = vld [vmem:[%s0 + $0x10] sm:$0xff]
  %v22 = vld [vmem:[%s0 + $0x18] sm:$0xff]
  %v23 = vld [vmem:[%s3] sm:$0x1]
  %v24 = vld [vmem:[%s1] sm:$0xff]
  %v25 = vld [vmem:[%s1 + $0x8] sm:$0xff]
  %v26 = vld [vmem:[%s1 + $0x10] sm:$0xff]
  %v27 = vld [vmem:[%s1 + $0x18] sm:$0xff]
  %vm28 = vcmask 261120
  %v30 = vsel %vm28, %v19, 0
  %v33 = vsel %vm28, %v20, 0
  %v36 = vsel %vm28, %v21, 0
  %v39 = vsel %vm28, %v22, 0
  %41 = vmatprep.subr.mxu0 0.0
  %42 = vmatpush1.msra.mxu0 0.0
  %43 = vmatprep.subr.mxu0 0.0
  %44 = vmatpush1.msra.mxu0 0.0
  %45 = vmatprep.subr.mxu0 0.0
  %46 = vmatpush1.msra.mxu0 0.0
  %47 = vmatprep.subr.mxu0 0.0
  %48 = vmatpush1.msra.mxu0 0.0
  %49 = vmatprep.subr.mxu0 0.0
  %50 = vmatpush1.msra.mxu0 0.0
  %51 = vmatprep.subr.mxu0 0.0
  %52 = vmatpush1.msra.mxu0 0.0
  %53 = vmatprep.subr.mxu0 0.0
  %54 = vmatpush1.msra.mxu0 0.0
  %55 = vmatprep.subr.mxu0 0.0
  %56 = vmatpush1.msra.mxu0 0.0
  %57 = vmatprep.subr.mxu0 0.0
  %58 = vmatpush1.msra.mxu0 0.0
  %59 = vmatprep.subr.mxu0 0.0
  %60 = vmatpush1.msra.mxu0 0.0
  %61 = vmatprep.subr.mxu0 0.0
  %62 = vmatpush1.msra.mxu0 0.0
  %63 = vmatprep.subr.mxu0 0.0
  %64 = vmatpush1.msra.mxu0 0.0
  %65 = vmatprep.subr.mxu0 0.0
  %66 = vmatpush1.msra.mxu0 %v27
  %67 = vmatprep.subr.mxu0 0.0
  %68 = vmatpush1.msra.mxu0 %v26
  %69 = vmatprep.subr.mxu0 0.0
  %70 = vmatpush1.msra.mxu0 %v25
  %71 = vmatprep.subr.mxu0 0.0
  %72 = vmatpush1.msra.mxu0 %v24
  %73 = vmatprep.subr.mxu0 0.0
  %74 = vmatpush2.msra.mxu0 0.0
  %75 = vmatprep.subr.mxu0 0.0
  %76 = vmatpush2.msra.mxu0 0.0
  %77 = vmatprep.subr.mxu0 0.0
  %78 = vmatpush2.msra.mxu0 0.0
  %79 = vmatprep.subr.mxu0 0.0
  %80 = vmatpush2.msra.mxu0 0.0
  %81 = vmatprep.subr.mxu0 0.0
  %82 = vmatpush2.msra.mxu0 0.0
  %83 = vmatprep.subr.mxu0 0.0
  %84 = vmatpush2.msra.mxu0 0.0
  %85 = vmatprep.subr.mxu0 0.0
  %86 = vmatpush2.msra.mxu0 0.0
  %87 = vmatprep.subr.mxu0 0.0
  %88 = vmatpush2.msra.mxu0 0.0
  %89 = vmatprep.subr.mxu0 0.0
  %90 = vmatpush2.msra.mxu0 0.0
  %91 = vmatprep.subr.mxu0 0.0
  %92 = vmatpush2.msra.mxu0 0.0
  %93 = vmatprep.subr.mxu0 0.0
  %94 = vmatpush2.msra.mxu0 0.0
  %95 = vmatprep.subr.mxu0 0.0
  %96 = vmatpush2.msra.mxu0 0.0
  %97 = vmatprep.subr.mxu0 0.0
  %98 = vmatpush2.msra.mxu0 0.0
  %99 = vmatprep.subr.mxu0 0.0
  %100 = vmatpush2.msra.mxu0 0.0
  %101 = vmatprep.subr.mxu0 0.0
  %102 = vmatpush2.msra.mxu0 0.0
  %103 = vmatprep.subr.mxu0 0.0
  %104 = vmatpush2.msra.mxu0 0.0
  %105 = vmatprep.mubr.f32.mxu0 0.0
  %106 = vmatmul.mubr.f32.gmra.mxu0 %v30
  %v107 = vpop.f32.mrf.mxu0
  %v108 = vadd.f32 0.0, %v107
  %v109 = vpop.f32.mrf.mxu0
  %110 = vmatprep.mubr.f32.mxu0 0.0
  %111 = vmatmul.mubr.f32.gmra.mxu0 %v33
  %v112 = vpop.f32.mrf.mxu0
  %v113 = vadd.f32 0.0, %v112
  %v114 = vpop.f32.mrf.mxu0
  %115 = vmatprep.mubr.f32.mxu0 0.0
  %116 = vmatmul.mubr.f32.gmra.mxu0 %v36
  %v117 = vpop.f32.mrf.mxu0
  %v118 = vadd.f32 0.0, %v117
  %v119 = vpop.f32.mrf.mxu0
  %120 = vmatprep.mubr.f32.mxu0 0.0
  %121 = vmatmul.mubr.f32.gmra.mxu0 %v39
  %v122 = vpop.f32.mrf.mxu0
  %v123 = vadd.f32 0.0, %v122
  %v124 = vpop.f32.mrf.mxu0
  %125 = vdwg.mxu0
  %v126 = vmul.f32 %v108, 2.0
  %v127 = vmul.f32 %v113, 2.0
  %v128 = vmul.f32 %v118, 2.0
  %v129 = vmul.f32 %v123, 2.0
  %v131 = vlaneseq
  %v132 = vshrl.u32 %v131, 7
  %v133 = vsub.s32 0, %v132
  %v134 = vrot.slane %v23, %v133
  %v136 = vsub.f32 %v134, %v126
  %v137 = vsub.f32 %v134, %v127
  %v138 = vsub.f32 %v134, %v128
  %v139 = vsub.f32 %v134, %v129
  %v140 = vlaneseq
  %v141 = vand.u32 %v140, 127
  %vm142 = vcmask 523264
  %v143 = vsel %vm142, %v136, inf
  %144 = vmin.xlane.f32.xlu0 %v143
  %v145 = vpop.xlane.xlu0 %144
  %v146 = vsel %vm142, %v137, inf
  %147 = vmin.xlane.f32.xlu0 %v146
  %v148 = vpop.xlane.xlu0 %147
  %v149 = vsel %vm142, %v138, inf
  %150 = vmin.xlane.f32.xlu0 %v149
  %v151 = vpop.xlane.xlu0 %150
  %v152 = vsel %vm142, %v139, inf
  %153 = vmin.xlane.f32.xlu0 %v152
  %v154 = vpop.xlane.xlu0 %153
  %vm155 = vcmp.le.f32.partialorder %v136, %v145
  %vm156 = vcmp.le.f32.partialorder %v137, %v148
  %vm157 = vcmp.le.f32.partialorder %v138, %v151
  %vm158 = vcmp.le.f32.partialorder %v139, %v154
  %v159 = vsel %vm155, %v141, 64
  %v160 = vsel %vm156, %v141, 64
  %v161 = vsel %vm157, %v141, 64
  %v162 = vsel %vm158, %v141, 64
  %v163 = vsel %vm142, %v159, 2147483647
  %v164 = vand.u32 %v163, 65535
  %v165 = vshra.s32 %v163, 16
  %v166 = vcvt.s32.f32 %v164
  %v167 = vcvt.s32.f32 %v165
  %168 = vmin.xlane.f32.xlu0 %v167
  %v169 = vpop.xlane.xlu0 %168
  %vm170 = vcmp.eq.f32.partialorder %v167, %v169
  %v171 = vsel %vm170, %v166, inf
  %172 = vmin.xlane.f32.xlu0 %v171
  %v173 = vpop.xlane.xlu0 %172
  %v174 = vcvt.f32.s32 %v173
  %v175 = vcvt.f32.s32 %v169
  %v176 = vshll.u32 %v175, 16
  %v177 = vadd.s32 %v176, %v174
  %v178 = vsel %vm142, %v160, 2147483647
  %v179 = vand.u32 %v178, 65535
  %v180 = vshra.s32 %v178, 16
  %v181 = vcvt.s32.f32 %v179
  %v182 = vcvt.s32.f32 %v180
  %183 = vmin.xlane.f32.xlu0 %v182
  %v184 = vpop.xlane.xlu0 %183
  %vm185 = vcmp.eq.f32.partialorder %v182, %v184
  %v186 = vsel %vm185, %v181, inf
  %187 = vmin.xlane.f32.xlu0 %v186
  %v188 = vpop.xlane.xlu0 %187
  %v189 = vcvt.f32.s32 %v188
  %v190 = vcvt.f32.s32 %v184
  %v191 = vshll.u32 %v190, 16
  %v192 = vadd.s32 %v191, %v189
  %v193 = vsel %vm142, %v161, 2147483647
  %v194 = vand.u32 %v193, 65535
  %v195 = vshra.s32 %v193, 16
  %v196 = vcvt.s32.f32 %v194
  %v197 = vcvt.s32.f32 %v195
  %198 = vmin.xlane.f32.xlu0 %v197
  %v199 = vpop.xlane.xlu0 %198
  %vm200 = vcmp.eq.f32.partialorder %v197, %v199
  %v201 = vsel %vm200, %v196, inf
  %202 = vmin.xlane.f32.xlu0 %v201
  %v203 = vpop.xlane.xlu0 %202
  %v204 = vcvt.f32.s32 %v203
  %v205 = vcvt.f32.s32 %v199
  %v206 = vshll.u32 %v205, 16
  %v207 = vadd.s32 %v206, %v204
  %v208 = vsel %vm142, %v162, 2147483647
  %v209 = vand.u32 %v208, 65535
  %v210 = vshra.s32 %v208, 16
  %v211 = vcvt.s32.f32 %v209
  %v212 = vcvt.s32.f32 %v210
  %213 = vmin.xlane.f32.xlu0 %v212
  %v214 = vpop.xlane.xlu0 %213
  %vm215 = vcmp.eq.f32.partialorder %v212, %v214
  %v216 = vsel %vm215, %v211, inf
  %217 = vmin.xlane.f32.xlu0 %v216
  %v218 = vpop.xlane.xlu0 %217
  %v219 = vcvt.f32.s32 %v218
  %v220 = vcvt.f32.s32 %v214
  %v221 = vshll.u32 %v220, 16
  %v222 = vadd.s32 %v221, %v219
  %vm223 = vcmask 7168
  %224 = vst.msk [vmem:[%s4] sm:$0xff] %vm223, %v177
  %225 = vst.msk [vmem:[%s4 + $0x8] sm:$0xff] %vm223, %v192
  %226 = vst.msk [vmem:[%s4 + $0x10] sm:$0xff] %vm223, %v207
  %227 = vst.msk [vmem:[%s4 + $0x18] sm:$0xff] %vm223, %v222
  %vm228 = vcmp.eq.s32.totalorder %v141, %v177
  %vm229 = vcmp.eq.s32.totalorder %v141, %v192
  %vm230 = vcmp.eq.s32.totalorder %v141, %v207
  %vm231 = vcmp.eq.s32.totalorder %v141, %v222
  %v232 = vsel %vm228, 1, 0
  %v233 = vsel %vm229, 1, 0
  %v234 = vsel %vm230, 1, 0
  %v235 = vsel %vm231, 1, 0
  %v236 = vcvt.s32.f32 %v232
  %v237 = vcvt.s32.f32 %v233
  %v238 = vcvt.s32.f32 %v234
  %v239 = vcvt.s32.f32 %v235
  %v240 = vld [vmem:[%s2] sm:$0xff]
  %v241 = vld [vmem:[%s2 + $0x8] sm:$0xff]
  %v242 = vld [vmem:[%s2 + $0x10] sm:$0xff]
  %v243 = vld [vmem:[%s2 + $0x18] sm:$0xff]
  %v244 = vld [vmem:[%s2 + $0x20] sm:$0xff]
  %v245 = vld [vmem:[%s2 + $0x28] sm:$0xff]
  %v246 = vld [vmem:[%s2 + $0x30] sm:$0xff]
  %v247 = vld [vmem:[%s2 + $0x38] sm:$0xff]
  %v249 = vsel %vm142, %v236, 0
  %v252 = vsel %vm142, %v237, 0
  %v255 = vsel %vm142, %v238, 0
  %v258 = vsel %vm142, %v239, 0
  %260 = vmatprep.subr.mxu0 0.0
  %261 = vmatpush1.msra.mxu0 0.0
  %262 = vmatprep.subr.mxu0 0.0
  %263 = vmatpush1.msra.mxu0 0.0
  %264 = vmatprep.subr.mxu0 0.0
  %265 = vmatpush1.msra.mxu0 0.0
  %266 = vmatprep.subr.mxu0 0.0
  %267 = vmatpush1.msra.mxu0 0.0
  %268 = vmatprep.subr.mxu0 0.0
  %269 = vmatpush1.msra.mxu0 0.0
  %270 = vmatprep.subr.mxu0 0.0
  %271 = vmatpush1.msra.mxu0 0.0
  %272 = vmatprep.subr.mxu0 0.0
  %273 = vmatpush1.msra.mxu0 0.0
  %274 = vmatprep.subr.mxu0 0.0
  %275 = vmatpush1.msra.mxu0 0.0
  %276 = vmatprep.subr.mxu0 0.0
  %277 = vmatpush1.msra.mxu0 %v247
  %278 = vmatprep.subr.mxu0 0.0
  %279 = vmatpush1.msra.mxu0 %v246
  %280 = vmatprep.subr.mxu0 0.0
  %281 = vmatpush1.msra.mxu0 %v245
  %282 = vmatprep.subr.mxu0 0.0
  %283 = vmatpush1.msra.mxu0 %v244
  %284 = vmatprep.subr.mxu0 0.0
  %285 = vmatpush1.msra.mxu0 %v243
  %286 = vmatprep.subr.mxu0 0.0
  %287 = vmatpush1.msra.mxu0 %v242
  %288 = vmatprep.subr.mxu0 0.0
  %289 = vmatpush1.msra.mxu0 %v241
  %290 = vmatprep.subr.mxu0 0.0
  %291 = vmatpush1.msra.mxu0 %v240
  %292 = vmatprep.subr.mxu0 0.0
  %293 = vmatpush2.msra.mxu0 0.0
  %294 = vmatprep.subr.mxu0 0.0
  %295 = vmatpush2.msra.mxu0 0.0
  %296 = vmatprep.subr.mxu0 0.0
  %297 = vmatpush2.msra.mxu0 0.0
  %298 = vmatprep.subr.mxu0 0.0
  %299 = vmatpush2.msra.mxu0 0.0
  %300 = vmatprep.subr.mxu0 0.0
  %301 = vmatpush2.msra.mxu0 0.0
  %302 = vmatprep.subr.mxu0 0.0
  %303 = vmatpush2.msra.mxu0 0.0
  %304 = vmatprep.subr.mxu0 0.0
  %305 = vmatpush2.msra.mxu0 0.0
  %306 = vmatprep.subr.mxu0 0.0
  %307 = vmatpush2.msra.mxu0 0.0
  %308 = vmatprep.subr.mxu0 0.0
  %309 = vmatpush2.msra.mxu0 0.0
  %310 = vmatprep.subr.mxu0 0.0
  %311 = vmatpush2.msra.mxu0 0.0
  %312 = vmatprep.subr.mxu0 0.0
  %313 = vmatpush2.msra.mxu0 0.0
  %314 = vmatprep.subr.mxu0 0.0
  %315 = vmatpush2.msra.mxu0 0.0
  %316 = vmatprep.subr.mxu0 0.0
  %317 = vmatpush2.msra.mxu0 0.0
  %318 = vmatprep.subr.mxu0 0.0
  %319 = vmatpush2.msra.mxu0 0.0
  %320 = vmatprep.subr.mxu0 0.0
  %321 = vmatpush2.msra.mxu0 0.0
  %322 = vmatprep.subr.mxu0 0.0
  %323 = vmatpush2.msra.mxu0 0.0
  %324 = vmatprep.mubr.f32.mxu0 0.0
  %325 = vmatmul.mubr.f32.gmra.mxu0 %v249
  %v326 = vpop.f32.mrf.mxu0
  %v327 = vadd.f32 0.0, %v326
  %v328 = vpop.f32.mrf.mxu0
  %329 = vmatprep.mubr.f32.mxu0 0.0
  %330 = vmatmul.mubr.f32.gmra.mxu0 %v252
  %v331 = vpop.f32.mrf.mxu0
  %v332 = vadd.f32 0.0, %v331
  %v333 = vpop.f32.mrf.mxu0
  %334 = vmatprep.mubr.f32.mxu0 0.0
  %335 = vmatmul.mubr.f32.gmra.mxu0 %v255
  %v336 = vpop.f32.mrf.mxu0
  %v337 = vadd.f32 0.0, %v336
  %v338 = vpop.f32.mrf.mxu0
  %339 = vmatprep.mubr.f32.mxu0 0.0
  %340 = vmatmul.mubr.f32.gmra.mxu0 %v258
  %v341 = vpop.f32.mrf.mxu0
  %v342 = vadd.f32 0.0, %v341
  %v343 = vpop.f32.mrf.mxu0
  %344 = vdwg.mxu0
  %345 = vst.msk [vmem:[%s5] sm:$0xff] %vm28, %v327
  %346 = vst.msk [vmem:[%s5 + $0x8] sm:$0xff] %vm28, %v332
  %347 = vst.msk [vmem:[%s5 + $0x10] sm:$0xff] %vm28, %v337
  %348 = vst.msk [vmem:[%s5 + $0x18] sm:$0xff] %vm28, %v342
  // Predicated region
  $region18: #{vqvae_forward.13} parent=0 // pred_check
    _
  $region19: #{vqvae_forward.13} parent=0 // pred_check_branch
    %350 = sbr.rel (0) target = $region21
  $region20: #{vqvae_forward.13} parent=0 // pred_region
    _
  $region21: #{vqvae_forward.13} parent=0 // pred_fallthru
    _
  // Predicated region
  $region22: #{vqvae_forward.13} parent=0 // pred_check
    _
  $region23: #{vqvae_forward.13} parent=0 // pred_check_branch
    %352 = sbr.rel (0) target = $region25
  $region24: #{vqvae_forward.13} parent=0 // pred_region
    _
  $region25: #{vqvae_forward.13} parent=0 // pred_fallthru
    _
  // Predicated region
  $region26: #{vqvae_forward.13} parent=0 // pred_check
    _
  $region27: #{vqvae_forward.13} parent=0 // pred_check_branch
    %354 = sbr.rel (0) target = $region29
  $region28: #{vqvae_forward.13} parent=0 // pred_region
    _
  $region29: #{vqvae_forward.13} parent=0 // pred_fallthru
    _
  // Predicated region
  $region30: #{vqvae_forward.13} parent=0 // pred_check
    _
  $region31: #{vqvae_forward.13} parent=0 // pred_check_branch
    %356 = sbr.rel (0) target = $region33
  $region32: #{vqvae_forward.13} parent=0 // pred_region
    _
  $region33: #{vqvae_forward.13} parent=0 // pred_fallthru
    _

// kernel: vqvae_forward.11
$region0: #{vqvae_forward.11}
  #allocation0 [shape = 'u32[]', space=smem, size = 0x4, offset = 0x4, fixed_abs, tag = 'smem constant byte address 0x4 - core index']
  #allocation1 [shape = 'u32[144,128]{1,0:T(1,128)}', space=vmem, size = 0x12000, scoped, tag = 'internal scratch']
  %s0 = inlined_call_operand.vmem [shape: f32[76,32], index: 0, kind: input, shape index: {}]
  %s1 = inlined_call_operand.vmem [shape: bf16[9,32,32], index: 1, kind: input, shape index: {}]
  %s2 = inlined_call_operand.vmem [shape: f32[1,32], index: 2, kind: input, shape index: {}]
  %s3 = inlined_call_operand.vmem [shape: f32[1,32], index: 3, kind: input, shape index: {}]
  %s4 = inlined_call_operand.vmem [shape: f32[1,32], index: 4, kind: input, shape index: {}]
  %s5 = inlined_call_operand.vmem [shape: bf16[32,32], index: 5, kind: input, shape index: {}]
  %s6 = inlined_call_operand.vmem [shape: f32[1,32], index: 6, kind: input, shape index: {}]
  %s7 = inlined_call_operand.vmem [shape: f32[1,32], index: 7, kind: input, shape index: {}]
  %s8 = inlined_call_operand.vmem [shape: f32[1,32], index: 8, kind: input, shape index: {}]
  %s9 = inlined_call_operand.vmem [shape: f32[48,1], index: 9, kind: input, shape index: {}]
  %s10 = inlined_call_operand.vmem [shape: f32[48,32], index: 10, kind: output, shape index: {}]
  %s11 = sld [smem:[#allocation0]]
  $region50: #{vqvae_forward.11} parent=0
    _
  %s13 = ssub.s32 1, %s11
  %s14 = scalar_select 0, %s13, %s11
  // Predicated region
  $region2: #{vqvae_forward.11} parent=0 // pred_check
    _
  $region3: #{vqvae_forward.11} parent=0 // pred_check_branch
    %16 = sbr.rel (0) target = $region5
  $region4: #{vqvae_forward.11} parent=0 // pred_region
    _
  $region5: #{vqvae_forward.11} parent=0 // pred_fallthru
    _
  // Predicated region
  $region6: #{vqvae_forward.11} parent=0 // pred_check
    _
  $region7: #{vqvae_forward.11} parent=0 // pred_check_branch
    %18 = sbr.rel (0) target = $region9
  $region8: #{vqvae_forward.11} parent=0 // pred_region
    _
  $region9: #{vqvae_forward.11} parent=0 // pred_fallthru
    _
  // Predicated region
  $region10: #{vqvae_forward.11} parent=0 // pred_check
    _
  $region11: #{vqvae_forward.11} parent=0 // pred_check_branch
    %20 = sbr.rel (0) target = $region13
  $region12: #{vqvae_forward.11} parent=0 // pred_region
    _
  $region13: #{vqvae_forward.11} parent=0 // pred_fallthru
    _
  // Predicated region
  $region14: #{vqvae_forward.11} parent=0 // pred_check
    _
  $region15: #{vqvae_forward.11} parent=0 // pred_check_branch
    %22 = sbr.rel (0) target = $region17
  $region16: #{vqvae_forward.11} parent=0 // pred_region
    _
  $region17: #{vqvae_forward.11} parent=0 // pred_fallthru
    _
  // Predicated region
  $region18: #{vqvae_forward.11} parent=0 // pred_check
    _
  $region19: #{vqvae_forward.11} parent=0 // pred_check_branch
    %24 = sbr.rel (0) target = $region21
  $region20: #{vqvae_forward.11} parent=0 // pred_region
    _
  $region21: #{vqvae_forward.11} parent=0 // pred_fallthru
    _
  // Predicated region
  $region22: #{vqvae_forward.11} parent=0 // pred_check
    _
  $region23: #{vqvae_forward.11} parent=0 // pred_check_branch
    %26 = sbr.rel (0) target = $region25
  $region24: #{vqvae_forward.11} parent=0 // pred_region
    _
  $region25: #{vqvae_forward.11} parent=0 // pred_fallthru
    _
  // Predicated region
  $region26: #{vqvae_forward.11} parent=0 // pred_check
    _
  $region27: #{vqvae_forward.11} parent=0 // pred_check_branch
    %28 = sbr.rel (0) target = $region29
  $region28: #{vqvae_forward.11} parent=0 // pred_region
    _
  $region29: #{vqvae_forward.11} parent=0 // pred_fallthru
    _
  // Predicated region
  $region30: #{vqvae_forward.11} parent=0 // pred_check
    _
  $region31: #{vqvae_forward.11} parent=0 // pred_check_branch
    %30 = sbr.rel (0) target = $region33
  $region32: #{vqvae_forward.11} parent=0 // pred_region
    _
  $region33: #{vqvae_forward.11} parent=0 // pred_fallthru
    _
  // Predicated region
  $region34: #{vqvae_forward.11} parent=0 // pred_check
    _
  $region35: #{vqvae_forward.11} parent=0 // pred_check_branch
    %32 = sbr.rel (0) target = $region37
  $region36: #{vqvae_forward.11} parent=0 // pred_region
    _
  $region37: #{vqvae_forward.11} parent=0 // pred_fallthru
    _
  // Predicated region
  $region38: #{vqvae_forward.11} parent=0 // pred_check
    _
  $region39: #{vqvae_forward.11} parent=0 // pred_check_branch
    %34 = sbr.rel (0) target = $region41
  $region40: #{vqvae_forward.11} parent=0 // pred_region
    _
  $region41: #{vqvae_forward.11} parent=0 // pred_fallthru
    _
  %v36 = vld [vmem:[%s0] sm:$0xff]
  %v37 = vld [vmem:[%s0 + $0x8] sm:$0xff]
  %v38 = vld [vmem:[%s0 + $0x10] sm:$0xff]
  %v39 = vld [vmem:[%s0 + $0x18] sm:$0xff]
  %v40 = vld [vmem:[%s0 + $0x20] sm:$0xff]
  %v41 = vld [vmem:[%s0 + $0x28] sm:$0xff]
  %v42 = vld [vmem:[%s0 + $0x30] sm:$0xff]
  %v43 = vld [vmem:[%s0 + $0x38] sm:$0xff]
  %v44 = vld [vmem:[%s0 + $0x40] sm:$0xff]
  %v45 = vld [vmem:[%s0 + $0x48] sm:$0xf]
  %v46 = vmax.f32 %v36, 0.0
  %v47 = vmax.f32 %v37, 0.0
  %v48 = vmax.f32 %v38, 0.0
  %v49 = vmax.f32 %v39, 0.0
  %v50 = vmax.f32 %v40, 0.0
  %v51 = vmax.f32 %v41, 0.0
  %v52 = vmax.f32 %v42, 0.0
  %v53 = vmax.f32 %v43, 0.0
  %v54 = vmax.f32 %v44, 0.0
  %v55 = vmax.f32 %v45, 0.0
  %v56 = vld [vmem:[%s9] sm:$0xff]
  %v57 = vld [vmem:[%s9 + $0x8] sm:$0xff]
  %v58 = vld [vmem:[%s9 + $0x10] sm:$0xff]
  %v59 = vld [vmem:[%s9 + $0x18] sm:$0xff]
  %v60 = vld [vmem:[%s9 + $0x20] sm:$0xff]
  %v61 = vld [vmem:[%s9 + $0x28] sm:$0xff]
  %v62 = vpack.c.bf16 %v47, %v46
  %v63 = vpack.c.bf16 %v49, %v48
  %v64 = vpack.c.bf16 %v51, %v50
  %v65 = vpack.c.bf16 %v53, %v52
  %v66 = vpack.c.bf16 %v55, %v54
  %v67 = vld [vmem:[%s1] sm:$0xf]
  %v68 = vld [vmem:[%s1 + $0x4] sm:$0xf]
  %v69 = vld [vmem:[%s1 + $0x8] sm:$0xf]
  %v70 = vld [vmem:[%s1 + $0xc] sm:$0xf]
  %s71 = scalar_lea.vmem %s1, 16
  %v72 = vld [vmem:[%s71] sm:$0xf]
  %v73 = vld [vmem:[%s71 + $0x4] sm:$0xf]
  %v74 = vld [vmem:[%s71 + $0x8] sm:$0xf]
  %v75 = vld [vmem:[%s71 + $0xc] sm:$0xf]
  %vm80 = vcmask 1046528
  %v81 = vrot.slane %v62, 1
  %v82 = vrot.slane %v63, 1
  %v83 = vsel %vm80, %v81, %v82
  %v84 = vrot.slane %v64, 1
  %v85 = vsel %vm80, %v82, %v84
  %v86 = vrot.slane %v65, 1
  %v87 = vsel %vm80, %v84, %v86
  %v92 = vunpack.c.l.b16 %v72
  %v93 = vunpack.c.l.b16 %v73
  %v94 = vunpack.c.l.b16 %v74
  %v95 = vunpack.c.l.b16 %v75
  %v96 = vpack.c.b16 %v93, %v92
  %v97 = vpack.c.b16 %v95, %v94
  %vm100 = vcmask 261120
  %v102 = vsel %vm100, %v83, 0
  %v105 = vsel %vm100, %v85, 0
  %v108 = vsel %vm100, %v87, 0
  %110 = vmatprep.subr.bf16.mxu0 0
  %111 = vmatpush1.bf16.msra.mxu0 0
  %112 = vmatprep.subr.bf16.mxu0 0
  %113 = vmatpush1.bf16.msra.mxu0 0
  %114 = vmatprep.subr.bf16.mxu0 0
  %115 = vmatpush1.bf16.msra.mxu0 0
  %116 = vmatprep.subr.bf16.mxu0 0
  %117 = vmatpush1.bf16.msra.mxu0 0
  %118 = vmatprep.subr.bf16.mxu0 0
  %119 = vmatpush1.bf16.msra.mxu0 0
  %120 = vmatprep.subr.bf16.mxu0 0
  %121 = vmatpush1.bf16.msra.mxu0 0
  %122 = vmatprep.subr.bf16.mxu0 0
  %123 = vmatpush1.bf16.msra.mxu0 %v97
  %124 = vmatprep.subr.bf16.mxu0 0
  %125 = vmatpush1.bf16.msra.mxu0 %v96
  %126 = vmatprep.subr.bf16.mxu0 0
  %127 = vmatpush2.bf16.msra.mxu0 0
  %128 = vmatprep.subr.bf16.mxu0 0
  %129 = vmatpush2.bf16.msra.mxu0 0
  %130 = vmatprep.subr.bf16.mxu0 0
  %131 = vmatpush2.bf16.msra.mxu0 0
  %132 = vmatprep.subr.bf16.mxu0 0
  %133 = vmatpush2.bf16.msra.mxu0 0
  %134 = vmatprep.subr.bf16.mxu0 0
  %135 = vmatpush2.bf16.msra.mxu0 0
  %136 = vmatprep.subr.bf16.mxu0 0
  %137 = vmatpush2.bf16.msra.mxu0 0
  %138 = vmatprep.subr.bf16.mxu0 0
  %139 = vmatpush2.bf16.msra.mxu0 0
  %140 = vmatprep.subr.bf16.mxu0 0
  %141 = vmatpush2.bf16.msra.mxu0 0
  %142 = vmatprep.mubr.bf16.mxu0 0
  %143 = vmatmul.mubr.bf16.gmra.mxu0 %v102
  %v144 = vpop.f32.mrf.mxu0
  %v145 = vadd.f32 0.0, %v144
  %v146 = vpop.f32.mrf.mxu0
  %v147 = vpop.f32.mrf.mxu0
  %v148 = vadd.f32 0.0, %v147
  %v149 = vpop.f32.mrf.mxu0
  %150 = vmatprep.mubr.bf16.mxu0 0
  %151 = vmatmul.mubr.bf16.gmra.mxu0 %v105
  %v152 = vpop.f32.mrf.mxu0
  %v153 = vadd.f32 0.0, %v152
  %v154 = vpop.f32.mrf.mxu0
  %v155 = vpop.f32.mrf.mxu0
  %v156 = vadd.f32 0.0, %v155
  %v157 = vpop.f32.mrf.mxu0
  %158 = vmatprep.mubr.bf16.mxu0 0
  %159 = vmatmul.mubr.bf16.gmra.mxu0 %v108
  %v160 = vpop.f32.mrf.mxu0
  %v161 = vadd.f32 0.0, %v160
  %v162 = vpop.f32.mrf.mxu0
  %v163 = vpop.f32.mrf.mxu0
  %v164 = vadd.f32 0.0, %v163
  %v165 = vpop.f32.mrf.mxu0
  %166 = vdwg.mxu0
  %v171 = vunpack.c.l.b16 %v67
  %v172 = vunpack.c.l.b16 %v68
  %v173 = vunpack.c.l.b16 %v69
  %v174 = vunpack.c.l.b16 %v70
  %v175 = vpack.c.b16 %v172, %v171
  %v176 = vpack.c.b16 %v174, %v173
  %v180 = vsel %vm100, %v62, 0
  %v183 = vsel %vm100, %v63, 0
  %v186 = vsel %vm100, %v64, 0
  %188 = vmatprep.subr.bf16.mxu0 0
  %189 = vmatpush1.bf16.msra.mxu0 0
  %190 = vmatprep.subr.bf16.mxu0 0
  %191 = vmatpush1.bf16.msra.mxu0 0
  %192 = vmatprep.subr.bf16.mxu0 0
  %193 = vmatpush1.bf16.msra.mxu0 0
  %194 = vmatprep.subr.bf16.mxu0 0
  %195 = vmatpush1.bf16.msra.mxu0 0
  %196 = vmatprep.subr.bf16.mxu0 0
  %197 = vmatpush1.bf16.msra.mxu0 0
  %198 = vmatprep.subr.bf16.mxu0 0
  %199 = vmatpush1.bf16.msra.mxu0 0
  %200 = vmatprep.subr.bf16.mxu0 0
  %201 = vmatpush1.bf16.msra.mxu0 %v176
  %202 = vmatprep.subr.bf16.mxu0 0
  %203 = vmatpush1.bf16.msra.mxu0 %v175
  %204 = vmatprep.subr.bf16.mxu0 0
  %205 = vmatpush2.bf16.msra.mxu0 0
  %206 = vmatprep.subr.bf16.mxu0 0
  %207 = vmatpush2.bf16.msra.mxu0 0
  %208 = vmatprep.subr.bf16.mxu0 0
  %209 = vmatpush2.bf16.msra.mxu0 0
  %210 = vmatprep.subr.bf16.mxu0 0
  %211 = vmatpush2.bf16.msra.mxu0 0
  %212 = vmatprep.subr.bf16.mxu0 0
  %213 = vmatpush2.bf16.msra.mxu0 0
  %214 = vmatprep.subr.bf16.mxu0 0
  %215 = vmatpush2.bf16.msra.mxu0 0
  %216 = vmatprep.subr.bf16.mxu0 0
  %217 = vmatpush2.bf16.msra.mxu0 0
  %218 = vmatprep.subr.bf16.mxu0 0
  %219 = vmatpush2.bf16.msra.mxu0 0
  %220 = vmatprep.mubr.bf16.mxu0 0
  %221 = vmatmul.mubr.bf16.gmra.mxu0 %v180
  %v222 = vpop.f32.mrf.mxu0
  %v223 = vadd.f32 %v145, %v222
  %v224 = vpop.f32.mrf.mxu0
  %v225 = vpop.f32.mrf.mxu0
  %v226 = vadd.f32 %v148, %v225
  %v227 = vpop.f32.mrf.mxu0
  %228 = vmatprep.mubr.bf16.mxu0 0
  %229 = vmatmul.mubr.bf16.gmra.mxu0 %v183
  %v230 = vpop.f32.mrf.mxu0
  %v231 = vadd.f32 %v153, %v230
  %v232 = vpop.f32.mrf.mxu0
  %v233 = vpop.f32.mrf.mxu0
  %v234 = vadd.f32 %v156, %v233
  %v235 = vpop.f32.mrf.mxu0
  %236 = vmatprep.mubr.bf16.mxu0 0
  %237 = vmatmul.mubr.bf16.gmra.mxu0 %v186
  %v238 = vpop.f32.mrf.mxu0
  %v239 = vadd.f32 %v161, %v238
  %v240 = vpop.f32.mrf.mxu0
  %v241 = vpop.f32.mrf.mxu0
  %v242 = vadd.f32 %v164, %v241
  %v243 = vpop.f32.mrf.mxu0
  %244 = vdwg.mxu0
  %s245 = scalar_lea.vmem %s1, 32
  %v246 = vld [vmem:[%s245] sm:$0xf]
  %v247 = vld [vmem:[%s245 + $0x4] sm:$0xf]
  %v248 = vld [vmem:[%s245 + $0x8] sm:$0xf]
  %v249 = vld [vmem:[%s245 + $0xc] sm:$0xf]
  %vm250 = vcmask 1045504
  %v251 = vrot.slane %v62, 2
  %v252 = vrot.slane %v63, 2
  %v253 = vsel %vm250, %v251, %v252
  %v254 = vrot.slane %v64, 2
  %v255 = vsel %vm250, %v252, %v254
  %v256 = vrot.slane %v65, 2
  %v257 = vsel %vm250, %v254, %v256
  %v262 = vunpack.c.l.b16 %v246
  %v263 = vunpack.c.l.b16 %v247
  %v264 = vunpack.c.l.b16 %v248
  %v265 = vunpack.c.l.b16 %v249
  %v266 = vpack.c.b16 %v263, %v262
  %v267 = vpack.c.b16 %v265, %v264
  %v271 = vsel %vm100, %v253, 0
  %v274 = vsel %vm100, %v255, 0
  %v277 = vsel %vm100, %v257, 0
  %279 = vmatprep.subr.bf16.mxu0 0
  %280 = vmatpush1.bf16.msra.mxu0 0
  %281 = vmatprep.subr.bf16.mxu0 0
  %282 = vmatpush1.bf16.msra.mxu0 0
  %283 = vmatprep.subr.bf16.mxu0 0
  %284 = vmatpush1.bf16.msra.mxu0 0
  %285 = vmatprep.subr.bf16.mxu0 0
  %286 = vmatpush1.bf16.msra.mxu0 0
  %287 = vmatprep.subr.bf16.mxu0 0
  %288 = vmatpush1.bf16.msra.mxu0 0
  %289 = vmatprep.subr.bf16.mxu0 0
  %290 = vmatpush1.bf16.msra.mxu0 0
  %291 = vmatprep.subr.bf16.mxu0 0
  %292 = vmatpush1.bf16.msra.mxu0 %v267
  %293 = vmatprep.subr.bf16.mxu0 0
  %294 = vmatpush1.bf16.msra.mxu0 %v266
  %295 = vmatprep.subr.bf16.mxu0 0
  %296 = vmatpush2.bf16.msra.mxu0 0
  %297 = vmatprep.subr.bf16.mxu0 0
  %298 = vmatpush2.bf16.msra.mxu0 0
  %299 = vmatprep.subr.bf16.mxu0 0
  %300 = vmatpush2.bf16.msra.mxu0 0
  %301 = vmatprep.subr.bf16.mxu0 0
  %302 = vmatpush2.bf16.msra.mxu0 0
  %303 = vmatprep.subr.bf16.mxu0 0
  %304 = vmatpush2.bf16.msra.mxu0 0
  %305 = vmatprep.subr.bf16.mxu0 0
  %306 = vmatpush2.bf16.msra.mxu0 0
  %307 = vmatprep.subr.bf16.mxu0 0
  %308 = vmatpush2.bf16.msra.mxu0 0
  %309 = vmatprep.subr.bf16.mxu0 0
  %310 = vmatpush2.bf16.msra.mxu0 0
  %311 = vmatprep.mubr.bf16.mxu0 0
  %312 = vmatmul.mubr.bf16.gmra.mxu0 %v271
  %v313 = vpop.f32.mrf.mxu0
  %v314 = vadd.f32 0.0, %v313
  %v315 = vpop.f32.mrf.mxu0
  %v316 = vpop.f32.mrf.mxu0
  %v317 = vadd.f32 0.0, %v316
  %v318 = vpop.f32.mrf.mxu0
  %319 = vmatprep.mubr.bf16.mxu0 0
  %320 = vmatmul.mubr.bf16.gmra.mxu0 %v274
  %v321 = vpop.f32.mrf.mxu0
  %v322 = vadd.f32 0.0, %v321
  %v323 = vpop.f32.mrf.mxu0
  %v324 = vpop.f32.mrf.mxu0
  %v325 = vadd.f32 0.0, %v324
  %v326 = vpop.f32.mrf.mxu0
  %327 = vmatprep.mubr.bf16.mxu0 0
  %328 = vmatmul.mubr.bf16.gmra.mxu0 %v277
  %v329 = vpop.f32.mrf.mxu0
  %v330 = vadd.f32 0.0, %v329
  %v331 = vpop.f32.mrf.mxu0
  %v332 = vpop.f32.mrf.mxu0
  %v333 = vadd.f32 0.0, %v332
  %v334 = vpop.f32.mrf.mxu0
  %335 = vdwg.mxu0
  %v336 = vadd.f32 %v223, %v314
  %v337 = vadd.f32 %v226, %v317
  %v338 = vadd.f32 %v231, %v322
  %v339 = vadd.f32 %v234, %v325
  %v340 = vadd.f32 %v239, %v330
  %v341 = vadd.f32 %v242, %v333
  %s342 = scalar_lea.vmem %s1, 48
  %v343 = vld [vmem:[%s342] sm:$0xf]
  %v344 = vld [vmem:[%s342 + $0x4] sm:$0xf]
  %v345 = vld [vmem:[%s342 + $0x8] sm:$0xf]
  %v346 = vld [vmem:[%s342 + $0xc] sm:$0xf]
  %vm347 = vcmask 1041408
  %v348 = vrot.slane %v62, 6
  %v349 = vrot.slane %v63, 6
  %v350 = vsel %vm347, %v348, %v349
  %v351 = vrot.slane %v64, 6
  %v352 = vsel %vm347, %v349, %v351
  %v353 = vrot.slane %v65, 6
  %v354 = vsel %vm347, %v351, %v353
  %v359 = vunpack.c.l.b16 %v343
  %v360 = vunpack.c.l.b16 %v344
  %v361 = vunpack.c.l.b16 %v345
  %v362 = vunpack.c.l.b16 %v346
  %v363 = vpack.c.b16 %v360, %v359
  %v364 = vpack.c.b16 %v362, %v361
  %v368 = vsel %vm100, %v350, 0
  %v371 = vsel %vm100, %v352, 0
  %v374 = vsel %vm100, %v354, 0
  %376 = vmatprep.subr.bf16.mxu0 0
  %377 = vmatpush1.bf16.msra.mxu0 0
  %378 = vmatprep.subr.bf16.mxu0 0
  %379 = vmatpush1.bf16.msra.mxu0 0
  %380 = vmatprep.subr.bf16.mxu0 0
  %381 = vmatpush1.bf16.msra.mxu0 0
  %382 = vmatprep.subr.bf16.mxu0 0
  %383 = vmatpush1.bf16.msra.mxu0 0
  %384 = vmatprep.subr.bf16.mxu0 0
  %385 = vmatpush1.bf16.msra.mxu0 0
  %386 = vmatprep.subr.bf16.mxu0 0
  %387 = vmatpush1.bf16.msra.mxu0 0
  %388 = vmatprep.subr.bf16.mxu0 0
  %389 = vmatpush1.bf16.msra.mxu0 %v364
  %390 = vmatprep.subr.bf16.mxu0 0
  %391 = vmatpush1.bf16.msra.mxu0 %v363
  %392 = vmatprep.subr.bf16.mxu0 0
  %393 = vmatpush2.bf16.msra.mxu0 0
  %394 = vmatprep.subr.bf16.mxu0 0
  %395 = vmatpush2.bf16.msra.mxu0 0
  %396 = vmatprep.subr.bf16.mxu0 0
  %397 = vmatpush2.bf16.msra.mxu0 0
  %398 = vmatprep.subr.bf16.mxu0 0
  %399 = vmatpush2.bf16.msra.mxu0 0
  %400 = vmatprep.subr.bf16.mxu0 0
  %401 = vmatpush2.bf16.msra.mxu0 0
  %402 = vmatprep.subr.bf16.mxu0 0
  %403 = vmatpush2.bf16.msra.mxu0 0
  %404 = vmatprep.subr.bf16.mxu0 0
  %405 = vmatpush2.bf16.msra.mxu0 0
  %406 = vmatprep.subr.bf16.mxu0 0
  %407 = vmatpush2.bf16.msra.mxu0 0
  %408 = vmatprep.mubr.bf16.mxu0 0
  %409 = vmatmul.mubr.bf16.gmra.mxu0 %v368
  %v410 = vpop.f32.mrf.mxu0
  %v411 = vadd.f32 0.0, %v410
  %v412 = vpop.f32.mrf.mxu0
  %v413 = vpop.f32.mrf.mxu0
  %v414 = vadd.f32 0.0, %v413
  %v415 = vpop.f32.mrf.mxu0
  %416 = vmatprep.mubr.bf16.mxu0 0
  %417 = vmatmul.mubr.bf16.gmra.mxu0 %v371
  %v418 = vpop.f32.mrf.mxu0
  %v419 = vadd.f32 0.0, %v418
  %v420 = vpop.f32.mrf.mxu0
  %v421 = vpop.f32.mrf.mxu0
  %v422 = vadd.f32 0.0, %v421
  %v423 = vpop.f32.mrf.mxu0
  %424 = vmatprep.mubr.bf16.mxu0 0
  %425 = vmatmul.mubr.bf16.gmra.mxu0 %v374
  %v426 = vpop.f32.mrf.mxu0
  %v427 = vadd.f32 0.0, %v426
  %v428 = vpop.f32.mrf.mxu0
  %v429 = vpop.f32.mrf.mxu0
  %v430 = vadd.f32 0.0, %v429
  %v431 = vpop.f32.mrf.mxu0
  %432 = vdwg.mxu0
  %v433 = vadd.f32 %v336, %v411
  %v434 = vadd.f32 %v337, %v414
  %v435 = vadd.f32 %v338, %v419
  %v436 = vadd.f32 %v339, %v422
  %v437 = vadd.f32 %v340, %v427
  %v438 = vadd.f32 %v341, %v430
  %s439 = scalar_lea.vmem %s1, 64
  %v440 = vld [vmem:[%s439] sm:$0xf]
  %v441 = vld [vmem:[%s439 + $0x4] sm:$0xf]
  %v442 = vld [vmem:[%s439 + $0x8] sm:$0xf]
  %v443 = vld [vmem:[%s439 + $0xc] sm:$0xf]
  %vm444 = vcmask 1040384
  %v445 = vrot.slane %v62, 7
  %v446 = vrot.slane %v63, 7
  %v447 = vsel %vm444, %v445, %v446
  %v448 = vrot.slane %v64, 7
  %v449 = vsel %vm444, %v446, %v448
  %v450 = vrot.slane %v65, 7
  %v451 = vsel %vm444, %v448, %v450
  %v456 = vunpack.c.l.b16 %v440
  %v457 = vunpack.c.l.b16 %v441
  %v458 = vunpack.c.l.b16 %v442
  %v459 = vunpack.c.l.b16 %v443
  %v460 = vpack.c.b16 %v457, %v456
  %v461 = vpack.c.b16 %v459, %v458
  %v465 = vsel %vm100, %v447, 0
  %v468 = vsel %vm100, %v449, 0
  %v471 = vsel %vm100, %v451, 0
  %473 = vmatprep.subr.bf16.mxu0 0
  %474 = vmatpush1.bf16.msra.mxu0 0
  %475 = vmatprep.subr.bf16.mxu0 0
  %476 = vmatpush1.bf16.msra.mxu0 0
  %477 = vmatprep.subr.bf16.mxu0 0
  %478 = vmatpush1.bf16.msra.mxu0 0
  %479 = vmatprep.subr.bf16.mxu0 0
  %480 = vmatpush1.bf16.msra.mxu0 0
  %481 = vmatprep.subr.bf16.mxu0 0
  %482 = vmatpush1.bf16.msra.mxu0 0
  %483 = vmatprep.subr.bf16.mxu0 0
  %484 = vmatpush1.bf16.msra.mxu0 0
  %485 = vmatprep.subr.bf16.mxu0 0
  %486 = vmatpush1.bf16.msra.mxu0 %v461
  %487 = vmatprep.subr.bf16.mxu0 0
  %488 = vmatpush1.bf16.msra.mxu0 %v460
  %489 = vmatprep.subr.bf16.mxu0 0
  %490 = vmatpush2.bf16.msra.mxu0 0
  %491 = vmatprep.subr.bf16.mxu0 0
  %492 = vmatpush2.bf16.msra.mxu0 0
  %493 = vmatprep.subr.bf16.mxu0 0
  %494 = vmatpush2.bf16.msra.mxu0 0
  %495 = vmatprep.subr.bf16.mxu0 0
  %496 = vmatpush2.bf16.msra.mxu0 0
  %497 = vmatprep.subr.bf16.mxu0 0
  %498 = vmatpush2.bf16.msra.mxu0 0
  %499 = vmatprep.subr.bf16.mxu0 0
  %500 = vmatpush2.bf16.msra.mxu0 0
  %501 = vmatprep.subr.bf16.mxu0 0
  %502 = vmatpush2.bf16.msra.mxu0 0
  %503 = vmatprep.subr.bf16.mxu0 0
  %504 = vmatpush2.bf16.msra.mxu0 0
  %505 = vmatprep.mubr.bf16.mxu0 0
  %506 = vmatmul.mubr.bf16.gmra.mxu0 %v465
  %v507 = vpop.f32.mrf.mxu0
  %v508 = vadd.f32 0.0, %v507
  %v509 = vpop.f32.mrf.mxu0
  %v510 = vpop.f32.mrf.mxu0
  %v511 = vadd.f32 0.0, %v510
  %v512 = vpop.f32.mrf.mxu0
  %513 = vmatprep.mubr.bf16.mxu0 0
  %514 = vmatmul.mubr.bf16.gmra.mxu0 %v468
  %v515 = vpop.f32.mrf.mxu0
  %v516 = vadd.f32 0.0, %v515
  %v517 = vpop.f32.mrf.mxu0
  %v518 = vpop.f32.mrf.mxu0
  %v519 = vadd.f32 0.0, %v518
  %v520 = vpop.f32.mrf.mxu0
  %521 = vmatprep.mubr.bf16.mxu0 0
  %522 = vmatmul.mubr.bf16.gmra.mxu0 %v471
  %v523 = vpop.f32.mrf.mxu0
  %v524 = vadd.f32 0.0, %v523
  %v525 = vpop.f32.mrf.mxu0
  %v526 = vpop.f32.mrf.mxu0
  %v527 = vadd.f32 0.0, %v526
  %v528 = vpop.f32.mrf.mxu0
  %529 = vdwg.mxu0
  %v530 = vadd.f32 %v433, %v508
  %v531 = vadd.f32 %v434, %v511
  %v532 = vadd.f32 %v435, %v516
  %v533 = vadd.f32 %v436, %v519
  %v534 = vadd.f32 %v437, %v524
  %v535 = vadd.f32 %v438, %v527
  %s536 = scalar_lea.vmem %s1, 80
  %v537 = vld [vmem:[%s536] sm:$0xf]
  %v538 = vld [vmem:[%s536 + $0x4] sm:$0xf]
  %v539 = vld [vmem:[%s536 + $0x8] sm:$0xf]
  %v540 = vld [vmem:[%s536 + $0xc] sm:$0xf]
  %v545 = vunpack.c.l.b16 %v537
  %v546 = vunpack.c.l.b16 %v538
  %v547 = vunpack.c.l.b16 %v539
  %v548 = vunpack.c.l.b16 %v540
  %v549 = vpack.c.b16 %v546, %v545
  %v550 = vpack.c.b16 %v548, %v547
  %v554 = vsel %vm100, %v65, 0
  %556 = vmatprep.subr.bf16.mxu0 0
  %557 = vmatpush1.bf16.msra.mxu0 0
  %558 = vmatprep.subr.bf16.mxu0 0
  %559 = vmatpush1.bf16.msra.mxu0 0
  %560 = vmatprep.subr.bf16.mxu0 0
  %561 = vmatpush1.bf16.msra.mxu0 0
  %562 = vmatprep.subr.bf16.mxu0 0
  %563 = vmatpush1.bf16.msra.mxu0 0
  %564 = vmatprep.subr.bf16.mxu0 0
  %565 = vmatpush1.bf16.msra.mxu0 0
  %566 = vmatprep.subr.bf16.mxu0 0
  %567 = vmatpush1.bf16.msra.mxu0 0
  %568 = vmatprep.subr.bf16.mxu0 0
  %569 = vmatpush1.bf16.msra.mxu0 %v550
  %570 = vmatprep.subr.bf16.mxu0 0
  %571 = vmatpush1.bf16.msra.mxu0 %v549
  %572 = vmatprep.subr.bf16.mxu0 0
  %573 = vmatpush2.bf16.msra.mxu0 0
  %574 = vmatprep.subr.bf16.mxu0 0
  %575 = vmatpush2.bf16.msra.mxu0 0
  %576 = vmatprep.subr.bf16.mxu0 0
  %577 = vmatpush2.bf16.msra.mxu0 0
  %578 = vmatprep.subr.bf16.mxu0 0
  %579 = vmatpush2.bf16.msra.mxu0 0
  %580 = vmatprep.subr.bf16.mxu0 0
  %581 = vmatpush2.bf16.msra.mxu0 0
  %582 = vmatprep.subr.bf16.mxu0 0
  %583 = vmatpush2.bf16.msra.mxu0 0
  %584 = vmatprep.subr.bf16.mxu0 0
  %585 = vmatpush2.bf16.msra.mxu0 0
  %586 = vmatprep.subr.bf16.mxu0 0
  %587 = vmatpush2.bf16.msra.mxu0 0
  %588 = vmatprep.mubr.bf16.mxu0 0
  %589 = vmatmul.mubr.bf16.gmra.mxu0 %v183
  %v590 = vpop.f32.mrf.mxu0
  %v591 = vadd.f32 0.0, %v590
  %v592 = vpop.f32.mrf.mxu0
  %v593 = vpop.f32.mrf.mxu0
  %v594 = vadd.f32 0.0, %v593
  %v595 = vpop.f32.mrf.mxu0
  %596 = vmatprep.mubr.bf16.mxu0 0
  %597 = vmatmul.mubr.bf16.gmra.mxu0 %v186
  %v598 = vpop.f32.mrf.mxu0
  %v599 = vadd.f32 0.0, %v598
  %v600 = vpop.f32.mrf.mxu0
  %v601 = vpop.f32.mrf.mxu0
  %v602 = vadd.f32 0.0, %v601
  %v603 = vpop.f32.mrf.mxu0
  %604 = vmatprep.mubr.bf16.mxu0 0
  %605 = vmatmul.mubr.bf16.gmra.mxu0 %v554
  %v606 = vpop.f32.mrf.mxu0
  %v607 = vadd.f32 0.0, %v606
  %v608 = vpop.f32.mrf.mxu0
  %v609 = vpop.f32.mrf.mxu0
  %v610 = vadd.f32 0.0, %v609
  %v611 = vpop.f32.mrf.mxu0
  %612 = vdwg.mxu0
  %v613 = vadd.f32 %v530, %v591
  %v614 = vadd.f32 %v531, %v594
  %v615 = vadd.f32 %v532, %v599
  %v616 = vadd.f32 %v533, %v602
  %v617 = vadd.f32 %v534, %v607
  %v618 = vadd.f32 %v535, %v610
  %s619 = scalar_lea.vmem %s1, 96
  %v620 = vld [vmem:[%s619] sm:$0xf]
  %v621 = vld [vmem:[%s619 + $0x4] sm:$0xf]
  %v622 = vld [vmem:[%s619 + $0x8] sm:$0xf]
  %v623 = vld [vmem:[%s619 + $0xc] sm:$0xf]
  %vm625 = vcmask 1043456
  %v626 = vrot.slane %v63, 4
  %v627 = vrot.slane %v64, 4
  %v628 = vsel %vm625, %v626, %v627
  %v629 = vrot.slane %v65, 4
  %v630 = vsel %vm625, %v627, %v629
  %v631 = vrot.slane %v66, 4
  %v632 = vsel %vm625, %v629, %v631
  %v637 = vunpack.c.l.b16 %v620
  %v638 = vunpack.c.l.b16 %v621
  %v639 = vunpack.c.l.b16 %v622
  %v640 = vunpack.c.l.b16 %v623
  %v641 = vpack.c.b16 %v638, %v637
  %v642 = vpack.c.b16 %v640, %v639
  %v646 = vsel %vm100, %v628, 0
  %v649 = vsel %vm100, %v630, 0
  %v652 = vsel %vm100, %v632, 0
  %654 = vmatprep.subr.bf16.mxu0 0
  %655 = vmatpush1.bf16.msra.mxu0 0
  %656 = vmatprep.subr.bf16.mxu0 0
  %657 = vmatpush1.bf16.msra.mxu0 0
  %658 = vmatprep.subr.bf16.mxu0 0
  %659 = vmatpush1.bf16.msra.mxu0 0
  %660 = vmatprep.subr.bf16.mxu0 0
  %661 = vmatpush1.bf16.msra.mxu0 0
  %662 = vmatprep.subr.bf16.mxu0 0
  %663 = vmatpush1.bf16.msra.mxu0 0
  %664 = vmatprep.subr.bf16.mxu0 0
  %665 = vmatpush1.bf16.msra.mxu0 0
  %666 = vmatprep.subr.bf16.mxu0 0
  %667 = vmatpush1.bf16.msra.mxu0 %v642
  %668 = vmatprep.subr.bf16.mxu0 0
  %669 = vmatpush1.bf16.msra.mxu0 %v641
  %670 = vmatprep.subr.bf16.mxu0 0
  %671 = vmatpush2.bf16.msra.mxu0 0
  %672 = vmatprep.subr.bf16.mxu0 0
  %673 = vmatpush2.bf16.msra.mxu0 0
  %674 = vmatprep.subr.bf16.mxu0 0
  %675 = vmatpush2.bf16.msra.mxu0 0
  %676 = vmatprep.subr.bf16.mxu0 0
  %677 = vmatpush2.bf16.msra.mxu0 0
  %678 = vmatprep.subr.bf16.mxu0 0
  %679 = vmatpush2.bf16.msra.mxu0 0
  %680 = vmatprep.subr.bf16.mxu0 0
  %681 = vmatpush2.bf16.msra.mxu0 0
  %682 = vmatprep.subr.bf16.mxu0 0
  %683 = vmatpush2.bf16.msra.mxu0 0
  %684 = vmatprep.subr.bf16.mxu0 0
  %685 = vmatpush2.bf16.msra.mxu0 0
  %686 = vmatprep.mubr.bf16.mxu0 0
  %687 = vmatmul.mubr.bf16.gmra.mxu0 %v646
  %v688 = vpop.f32.mrf.mxu0
  %v689 = vadd.f32 0.0, %v688
  %v690 = vpop.f32.mrf.mxu0
  %v691 = vpop.f32.mrf.mxu0
  %v692 = vadd.f32 0.0, %v691
  %v693 = vpop.f32.mrf.mxu0
  %694 = vmatprep.mubr.bf16.mxu0 0
  %695 = vmatmul.mubr.bf16.gmra.mxu0 %v649
  %v696 = vpop.f32.mrf.mxu0
  %v697 = vadd.f32 0.0, %v696
  %v698 = vpop.f32.mrf.mxu0
  %v699 = vpop.f32.mrf.mxu0
  %v700 = vadd.f32 0.0, %v699
  %v701 = vpop.f32.mrf.mxu0
  %702 = vmatprep.mubr.bf16.mxu0 0
  %703 = vmatmul.mubr.bf16.gmra.mxu0 %v652
  %v704 = vpop.f32.mrf.mxu0
  %v705 = vadd.f32 0.0, %v704
  %v706 = vpop.f32.mrf.mxu0
  %v707 = vpop.f32.mrf.mxu0
  %v708 = vadd.f32 0.0, %v707
  %v709 = vpop.f32.mrf.mxu0
  %710 = vdwg.mxu0
  %v711 = vadd.f32 %v613, %v689
  %v712 = vadd.f32 %v614, %v692
  %v713 = vadd.f32 %v615, %v697
  %v714 = vadd.f32 %v616, %v700
  %v715 = vadd.f32 %v617, %v705
  %v716 = vadd.f32 %v618, %v708
  %s717 = scalar_lea.vmem %s1, 112
  %v718 = vld [vmem:[%s717] sm:$0xf]
  %v719 = vld [vmem:[%s717 + $0x4] sm:$0xf]
  %v720 = vld [vmem:[%s717 + $0x8] sm:$0xf]
  %v721 = vld [vmem:[%s717 + $0xc] sm:$0xf]
  %vm722 = vcmask 1042432
  %v723 = vrot.slane %v63, 5
  %v724 = vrot.slane %v64, 5
  %v725 = vsel %vm722, %v723, %v724
  %v726 = vrot.slane %v65, 5
  %v727 = vsel %vm722, %v724, %v726
  %v728 = vrot.slane %v66, 5
  %v729 = vsel %vm722, %v726, %v728
  %v734 = vunpack.c.l.b16 %v718
  %v735 = vunpack.c.l.b16 %v719
  %v736 = vunpack.c.l.b16 %v720
  %v737 = vunpack.c.l.b16 %v721
  %v738 = vpack.c.b16 %v735, %v734
  %v739 = vpack.c.b16 %v737, %v736
  %v743 = vsel %vm100, %v725, 0
  %v746 = vsel %vm100, %v727, 0
  %v749 = vsel %vm100, %v729, 0
  %751 = vmatprep.subr.bf16.mxu0 0
  %752 = vmatpush1.bf16.msra.mxu0 0
  %753 = vmatprep.subr.bf16.mxu0 0
  %754 = vmatpush1.bf16.msra.mxu0 0
  %755 = vmatprep.subr.bf16.mxu0 0
  %756 = vmatpush1.bf16.msra.mxu0 0
  %757 = vmatprep.subr.bf16.mxu0 0
  %758 = vmatpush1.bf16.msra.mxu0 0
  %759 = vmatprep.subr.bf16.mxu0 0
  %760 = vmatpush1.bf16.msra.mxu0 0
  %761 = vmatprep.subr.bf16.mxu0 0
  %762 = vmatpush1.bf16.msra.mxu0 0
  %763 = vmatprep.subr.bf16.mxu0 0
  %764 = vmatpush1.bf16.msra.mxu0 %v739
  %765 = vmatprep.subr.bf16.mxu0 0
  %766 = vmatpush1.bf16.msra.mxu0 %v738
  %767 = vmatprep.subr.bf16.mxu0 0
  %768 = vmatpush2.bf16.msra.mxu0 0
  %769 = vmatprep.subr.bf16.mxu0 0
  %770 = vmatpush2.bf16.msra.mxu0 0
  %771 = vmatprep.subr.bf16.mxu0 0
  %772 = vmatpush2.bf16.msra.mxu0 0
  %773 = vmatprep.subr.bf16.mxu0 0
  %774 = vmatpush2.bf16.msra.mxu0 0
  %775 = vmatprep.subr.bf16.mxu0 0
  %776 = vmatpush2.bf16.msra.mxu0 0
  %777 = vmatprep.subr.bf16.mxu0 0
  %778 = vmatpush2.bf16.msra.mxu0 0
  %779 = vmatprep.subr.bf16.mxu0 0
  %780 = vmatpush2.bf16.msra.mxu0 0
  %781 = vmatprep.subr.bf16.mxu0 0
  %782 = vmatpush2.bf16.msra.mxu0 0
  %783 = vmatprep.mubr.bf16.mxu0 0
  %784 = vmatmul.mubr.bf16.gmra.mxu0 %v743
  %v785 = vpop.f32.mrf.mxu0
  %v786 = vadd.f32 0.0, %v785
  %v787 = vpop.f32.mrf.mxu0
  %v788 = vpop.f32.mrf.mxu0
  %v789 = vadd.f32 0.0, %v788
  %v790 = vpop.f32.mrf.mxu0
  %791 = vmatprep.mubr.bf16.mxu0 0
  %792 = vmatmul.mubr.bf16.gmra.mxu0 %v746
  %v793 = vpop.f32.mrf.mxu0
  %v794 = vadd.f32 0.0, %v793
  %v795 = vpop.f32.mrf.mxu0
  %v796 = vpop.f32.mrf.mxu0
  %v797 = vadd.f32 0.0, %v796
  %v798 = vpop.f32.mrf.mxu0
  %799 = vmatprep.mubr.bf16.mxu0 0
  %800 = vmatmul.mubr.bf16.gmra.mxu0 %v749
  %v801 = vpop.f32.mrf.mxu0
  %v802 = vadd.f32 0.0, %v801
  %v803 = vpop.f32.mrf.mxu0
  %v804 = vpop.f32.mrf.mxu0
  %v805 = vadd.f32 0.0, %v804
  %v806 = vpop.f32.mrf.mxu0
  %807 = vdwg.mxu0
  %v808 = vadd.f32 %v711, %v786
  %v809 = vadd.f32 %v712, %v789
  %v810 = vadd.f32 %v713, %v794
  %v811 = vadd.f32 %v714, %v797
  %v812 = vadd.f32 %v715, %v802
  %v813 = vadd.f32 %v716, %v805
  %s814 = scalar_lea.vmem %s1, 128
  %v815 = vld [vmem:[%s814] sm:$0xf]
  %v816 = vld [vmem:[%s814 + $0x4] sm:$0xf]
  %v817 = vld [vmem:[%s814 + $0x8] sm:$0xf]
  %v818 = vld [vmem:[%s814 + $0xc] sm:$0xf]
  %v819 = vrot.slane %v66, 6
  %v820 = vsel %vm347, %v353, %v819
  %v825 = vunpack.c.l.b16 %v815
  %v826 = vunpack.c.l.b16 %v816
  %v827 = vunpack.c.l.b16 %v817
  %v828 = vunpack.c.l.b16 %v818
  %v829 = vpack.c.b16 %v826, %v825
  %v830 = vpack.c.b16 %v828, %v827
  %v834 = vsel %vm100, %v820, 0
  %836 = vmatprep.subr.bf16.mxu0 0
  %837 = vmatpush1.bf16.msra.mxu0 0
  %838 = vmatprep.subr.bf16.mxu0 0
  %839 = vmatpush1.bf16.msra.mxu0 0
  %840 = vmatprep.subr.bf16.mxu0 0
  %841 = vmatpush1.bf16.msra.mxu0 0
  %842 = vmatprep.subr.bf16.mxu0 0
  %843 = vmatpush1.bf16.msra.mxu0 0
  %844 = vmatprep.subr.bf16.mxu0 0
  %845 = vmatpush1.bf16.msra.mxu0 0
  %846 = vmatprep.subr.bf16.mxu0 0
  %847 = vmatpush1.bf16.msra.mxu0 0
  %848 = vmatprep.subr.bf16.mxu0 0
  %849 = vmatpush1.bf16.msra.mxu0 %v830
  %850 = vmatprep.subr.bf16.mxu0 0
  %851 = vmatpush1.bf16.msra.mxu0 %v829
  %852 = vmatprep.subr.bf16.mxu0 0
  %853 = vmatpush2.bf16.msra.mxu0 0
  %854 = vmatprep.subr.bf16.mxu0 0
  %855 = vmatpush2.bf16.msra.mxu0 0
  %856 = vmatprep.subr.bf16.mxu0 0
  %857 = vmatpush2.bf16.msra.mxu0 0
  %858 = vmatprep.subr.bf16.mxu0 0
  %859 = vmatpush2.bf16.msra.mxu0 0
  %860 = vmatprep.subr.bf16.mxu0 0
  %861 = vmatpush2.bf16.msra.mxu0 0
  %862 = vmatprep.subr.bf16.mxu0 0
  %863 = vmatpush2.bf16.msra.mxu0 0
  %864 = vmatprep.subr.bf16.mxu0 0
  %865 = vmatpush2.bf16.msra.mxu0 0
  %866 = vmatprep.subr.bf16.mxu0 0
  %867 = vmatpush2.bf16.msra.mxu0 0
  %868 = vmatprep.mubr.bf16.mxu0 0
  %869 = vmatmul.mubr.bf16.gmra.mxu0 %v371
  %v870 = vpop.f32.mrf.mxu0
  %v871 = vadd.f32 0.0, %v870
  %v872 = vpop.f32.mrf.mxu0
  %v873 = vpop.f32.mrf.mxu0
  %v874 = vadd.f32 0.0, %v873
  %v875 = vpop.f32.mrf.mxu0
  %876 = vmatprep.mubr.bf16.mxu0 0
  %877 = vmatmul.mubr.bf16.gmra.mxu0 %v374
  %v878 = vpop.f32.mrf.mxu0
  %v879 = vadd.f32 0.0, %v878
  %v880 = vpop.f32.mrf.mxu0
  %v881 = vpop.f32.mrf.mxu0
  %v882 = vadd.f32 0.0, %v881
  %v883 = vpop.f32.mrf.mxu0
  %884 = vmatprep.mubr.bf16.mxu0 0
  %885 = vmatmul.mubr.bf16.gmra.mxu0 %v834
  %v886 = vpop.f32.mrf.mxu0
  %v887 = vadd.f32 0.0, %v886
  %v888 = vpop.f32.mrf.mxu0
  %v889 = vpop.f32.mrf.mxu0
  %v890 = vadd.f32 0.0, %v889
  %v891 = vpop.f32.mrf.mxu0
  %892 = vdwg.mxu0
  %v893 = vadd.f32 %v808, %v871
  %v894 = vadd.f32 %v809, %v874
  %v895 = vadd.f32 %v810, %v879
  %v896 = vadd.f32 %v811, %v882
  %v897 = vadd.f32 %v812, %v887
  %v898 = vadd.f32 %v813, %v890
  %v899 = vld [vmem:[%s2] sm:$0x1]
  %v901 = vlaneseq
  %v902 = vshrl.u32 %v901, 7
  %v903 = vsub.s32 0, %v902
  %v904 = vrot.slane %v899, %v903
  %v906 = vadd.f32 %v893, %v904
  %v907 = vadd.f32 %v894, %v904
  %v908 = vadd.f32 %v895, %v904
  %v909 = vadd.f32 %v896, %v904
  %v910 = vadd.f32 %v897, %v904
  %v911 = vadd.f32 %v898, %v904
  %v912 = vld [vmem:[%s3] sm:$0x1]
  %v913 = vld [vmem:[%s4] sm:$0x1]
  %915 = vset.pattern.permute.xlu0 0
  %916 = vperm.xlu0 %915, %v56
  %v917 = vpop.permute.xlu0 %916
  %920 = vset.pattern.permute.xlu0 0
  %921 = vperm.xlu0 %920, %v57
  %v922 = vpop.permute.xlu0 %921
  %925 = vset.pattern.permute.xlu0 0
  %926 = vperm.xlu0 %925, %v58
  %v927 = vpop.permute.xlu0 %926
  %930 = vset.pattern.permute.xlu0 0
  %931 = vperm.xlu0 %930, %v59
  %v932 = vpop.permute.xlu0 %931
  %935 = vset.pattern.permute.xlu0 0
  %936 = vperm.xlu0 %935, %v60
  %v937 = vpop.permute.xlu0 %936
  %940 = vset.pattern.permute.xlu0 0
  %941 = vperm.xlu0 %940, %v61
  %v942 = vpop.permute.xlu0 %941
  %v944 = vmul.f32 %v906, %v917
  %v945 = vmul.f32 %v907, %v922
  %v946 = vmul.f32 %v908, %v927
  %v947 = vmul.f32 %v909, %v932
  %v948 = vmul.f32 %v910, %v937
  %v949 = vmul.f32 %v911, %v942
  %v950 = vsel %vm100, %v944, 0.0
  %v951 = vsel %vm100, %v945, 0.0
  %v952 = vadd.f32 %v950, %v951
  %v953 = vsel %vm100, %v946, 0.0
  %v954 = vadd.f32 %v952, %v953
  %v955 = vsel %vm100, %v947, 0.0
  %v956 = vadd.f32 %v954, %v955
  %v957 = vsel %vm100, %v948, 0.0
  %v958 = vadd.f32 %v956, %v957
  %v959 = vsel %vm100, %v949, 0.0
  %v960 = vadd.f32 %v958, %v959
  %v961 = vrot.slane %v960, 4
  %v962 = vadd.f32 %v960, %v961
  %v963 = vrot.slane %v962, 2
  %v964 = vadd.f32 %v962, %v963
  %v965 = vrot.slane %v964, 1
  %v966 = vadd.f32 %v964, %v965
  %v967 = vmul.f32 %v966, 0.03125
  %v968 = vmul.f32 %v944, %v906
  %v969 = vmul.f32 %v945, %v907
  %v970 = vmul.f32 %v946, %v908
  %v971 = vmul.f32 %v947, %v909
  %v972 = vmul.f32 %v948, %v910
  %v973 = vmul.f32 %v949, %v911
  %v974 = vsel %vm100, %v968, 0.0
  %v975 = vsel %vm100, %v969, 0.0
  %v976 = vadd.f32 %v974, %v975
  %v977 = vsel %vm100, %v970, 0.0
  %v978 = vadd.f32 %v976, %v977
  %v979 = vsel %vm100, %v971, 0.0
  %v980 = vadd.f32 %v978, %v979
  %v981 = vsel %vm100, %v972, 0.0
  %v982 = vadd.f32 %v980, %v981
  %v983 = vsel %vm100, %v973, 0.0
  %v984 = vadd.f32 %v982, %v983
  %v985 = vrot.slane %v984, 4
  %v986 = vadd.f32 %v984, %v985
  %v987 = vrot.slane %v986, 2
  %v988 = vadd.f32 %v986, %v987
  %v989 = vrot.slane %v988, 1
  %v990 = vadd.f32 %v988, %v989
  %v991 = vmul.f32 %v990, 0.03125
  %v992 = vmul.f32 %v967, %v967
  %v993 = vsub.f32 %v991, %v992
  %v994 = vsub.f32 %v906, %v967
  %v995 = vsub.f32 %v907, %v967
  %v996 = vsub.f32 %v908, %v967
  %v997 = vsub.f32 %v909, %v967
  %v998 = vsub.f32 %v910, %v967
  %v999 = vsub.f32 %v911, %v967
  %v1000 = vadd.f32 %v993, 1e-05
  %v1001 = vrsqrt.pop %v1000
  %v1002 = vmul.f32 %v994, %v1001
  %v1003 = vmul.f32 %v995, %v1001
  %v1004 = vmul.f32 %v996, %v1001
  %v1005 = vmul.f32 %v997, %v1001
  %v1006 = vmul.f32 %v998, %v1001
  %v1007 = vmul.f32 %v999, %v1001
  %v1009 = vlaneseq
  %v1010 = vshrl.u32 %v1009, 7
  %v1011 = vsub.s32 0, %v1010
  %v1012 = vrot.slane %v912, %v1011
  %v1014 = vmul.f32 %v1002, %v1012
  %v1015 = vmul.f32 %v1003, %v1012
  %v1016 = vmul.f32 %v1004, %v1012
  %v1017 = vmul.f32 %v1005, %v1012
  %v1018 = vmul.f32 %v1006, %v1012
  %v1019 = vmul.f32 %v1007, %v1012
  %v1021 = vlaneseq
  %v1022 = vshrl.u32 %v1021, 7
  %v1023 = vsub.s32 0, %v1022
  %v1024 = vrot.slane %v913, %v1023
  %v1026 = vadd.f32 %v1014, %v1024
  %v1027 = vadd.f32 %v1015, %v1024
  %v1028 = vadd.f32 %v1016, %v1024
  %v1029 = vadd.f32 %v1017, %v1024
  %v1030 = vadd.f32 %v1018, %v1024
  %v1031 = vadd.f32 %v1019, %v1024
  %v1032 = vmax.f32 %v1026, 0.0
  %v1033 = vmax.f32 %v1027, 0.0
  %v1034 = vmax.f32 %v1028, 0.0
  %v1035 = vmax.f32 %v1029, 0.0
  %v1036 = vmax.f32 %v1030, 0.0
  %v1037 = vmax.f32 %v1031, 0.0
  %v1038 = vpack.c.bf16 %v1033, %v1032
  %v1039 = vpack.c.bf16 %v1035, %v1034
  %v1040 = vpack.c.bf16 %v1037, %v1036
  %v1041 = vld [vmem:[%s5] sm:$0xf]
  %v1042 = vld [vmem:[%s5 + $0x4] sm:$0xf]
  %v1043 = vld [vmem:[%s5 + $0x8] sm:$0xf]
  %v1044 = vld [vmem:[%s5 + $0xc] sm:$0xf]
  %v1045 = vld [vmem:[%s6] sm:$0x1]
  %v1047 = vlaneseq
  %v1048 = vshrl.u32 %v1047, 7
  %v1049 = vsub.s32 0, %v1048
  %v1050 = vrot.slane %v1045, %v1049
  %v1056 = vunpack.c.l.b16 %v1041
  %v1057 = vunpack.c.l.b16 %v1042
  %v1058 = vunpack.c.l.b16 %v1043
  %v1059 = vunpack.c.l.b16 %v1044
  %v1060 = vpack.c.b16 %v1057, %v1056
  %v1061 = vpack.c.b16 %v1059, %v1058
  %v1065 = vsel %vm100, %v1038, 0
  %v1068 = vsel %vm100, %v1039, 0
  %v1071 = vsel %vm100, %v1040, 0
  %1073 = vmatprep.subr.bf16.mxu0 0
  %1074 = vmatpush1.bf16.msra.mxu0 0
  %1075 = vmatprep.subr.bf16.mxu0 0
  %1076 = vmatpush1.bf16.msra.mxu0 0
  %1077 = vmatprep.subr.bf16.mxu0 0
  %1078 = vmatpush1.bf16.msra.mxu0 0
  %1079 = vmatprep.subr.bf16.mxu0 0
  %1080 = vmatpush1.bf16.msra.mxu0 0
  %1081 = vmatprep.subr.bf16.mxu0 0
  %1082 = vmatpush1.bf16.msra.mxu0 0
  %1083 = vmatprep.subr.bf16.mxu0 0
  %1084 = vmatpush1.bf16.msra.mxu0 0
  %1085 = vmatprep.subr.bf16.mxu0 0
  %1086 = vmatpush1.bf16.msra.mxu0 %v1061
  %1087 = vmatprep.subr.bf16.mxu0 0
  %1088 = vmatpush1.bf16.msra.mxu0 %v1060
  %1089 = vmatprep.subr.bf16.mxu0 0
  %1090 = vmatpush2.bf16.msra.mxu0 0
  %1091 = vmatprep.subr.bf16.mxu0 0
  %1092 = vmatpush2.bf16.msra.mxu0 0
  %1093 = vmatprep.subr.bf16.mxu0 0
  %1094 = vmatpush2.bf16.msra.mxu0 0
  %1095 = vmatprep.subr.bf16.mxu0 0
  %1096 = vmatpush2.bf16.msra.mxu0 0
  %1097 = vmatprep.subr.bf16.mxu0 0
  %1098 = vmatpush2.bf16.msra.mxu0 0
  %1099 = vmatprep.subr.bf16.mxu0 0
  %1100 = vmatpush2.bf16.msra.mxu0 0
  %1101 = vmatprep.subr.bf16.mxu0 0
  %1102 = vmatpush2.bf16.msra.mxu0 0
  %1103 = vmatprep.subr.bf16.mxu0 0
  %1104 = vmatpush2.bf16.msra.mxu0 0
  %1105 = vmatprep.mubr.bf16.mxu0 0
  %1106 = vmatmul.mubr.bf16.gmra.mxu0 %v1065
  %v1107 = vpop.f32.mrf.mxu0
  %v1108 = vadd.f32 %v1050, %v1107
  %v1109 = vpop.f32.mrf.mxu0
  %v1110 = vpop.f32.mrf.mxu0
  %v1111 = vadd.f32 %v1050, %v1110
  %v1112 = vpop.f32.mrf.mxu0
  %1113 = vmatprep.mubr.bf16.mxu0 0
  %1114 = vmatmul.mubr.bf16.gmra.mxu0 %v1068
  %v1115 = vpop.f32.mrf.mxu0
  %v1116 = vadd.f32 %v1050, %v1115
  %v1117 = vpop.f32.mrf.mxu0
  %v1118 = vpop.f32.mrf.mxu0
  %v1119 = vadd.f32 %v1050, %v1118
  %v1120 = vpop.f32.mrf.mxu0
  %1121 = vmatprep.mubr.bf16.mxu0 0
  %1122 = vmatmul.mubr.bf16.gmra.mxu0 %v1071
  %v1123 = vpop.f32.mrf.mxu0
  %v1124 = vadd.f32 %v1050, %v1123
  %v1125 = vpop.f32.mrf.mxu0
  %v1126 = vpop.f32.mrf.mxu0
  %v1127 = vadd.f32 %v1050, %v1126
  %v1128 = vpop.f32.mrf.mxu0
  %1129 = vdwg.mxu0
  %v1130 = vld [vmem:[%s7] sm:$0x1]
  %v1131 = vld [vmem:[%s8] sm:$0x1]
  %v1132 = vmul.f32 %v1108, %v917
  %v1133 = vmul.f32 %v1111, %v922
  %v1134 = vmul.f32 %v1116, %v927
  %v1135 = vmul.f32 %v1119, %v932
  %v1136 = vmul.f32 %v1124, %v937
  %v1137 = vmul.f32 %v1127, %v942
  %v1138 = vsel %vm100, %v1132, 0.0
  %v1139 = vsel %vm100, %v1133, 0.0
  %v1140 = vadd.f32 %v1138, %v1139
  %v1141 = vsel %vm100, %v1134, 0.0
  %v1142 = vadd.f32 %v1140, %v1141
  %v1143 = vsel %vm100, %v1135, 0.0
  %v1144 = vadd.f32 %v1142, %v1143
  %v1145 = vsel %vm100, %v1136, 0.0
  %v1146 = vadd.f32 %v1144, %v1145
  %v1147 = vsel %vm100, %v1137, 0.0
  %v1148 = vadd.f32 %v1146, %v1147
  %v1149 = vrot.slane %v1148, 4
  %v1150 = vadd.f32 %v1148, %v1149
  %v1151 = vrot.slane %v1150, 2
  %v1152 = vadd.f32 %v1150, %v1151
  %v1153 = vrot.slane %v1152, 1
  %v1154 = vadd.f32 %v1152, %v1153
  %v1155 = vmul.f32 %v1154, 0.03125
  %v1156 = vmul.f32 %v1132, %v1108
  %v1157 = vmul.f32 %v1133, %v1111
  %v1158 = vmul.f32 %v1134, %v1116
  %v1159 = vmul.f32 %v1135, %v1119
  %v1160 = vmul.f32 %v1136, %v1124
  %v1161 = vmul.f32 %v1137, %v1127
  %v1162 = vsel %vm100, %v1156, 0.0
  %v1163 = vsel %vm100, %v1157, 0.0
  %v1164 = vadd.f32 %v1162, %v1163
  %v1165 = vsel %vm100, %v1158, 0.0
  %v1166 = vadd.f32 %v1164, %v1165
  %v1167 = vsel %vm100, %v1159, 0.0
  %v1168 = vadd.f32 %v1166, %v1167
  %v1169 = vsel %vm100, %v1160, 0.0
  %v1170 = vadd.f32 %v1168, %v1169
  %v1171 = vsel %vm100, %v1161, 0.0
  %v1172 = vadd.f32 %v1170, %v1171
  %v1173 = vrot.slane %v1172, 4
  %v1174 = vadd.f32 %v1172, %v1173
  %v1175 = vrot.slane %v1174, 2
  %v1176 = vadd.f32 %v1174, %v1175
  %v1177 = vrot.slane %v1176, 1
  %v1178 = vadd.f32 %v1176, %v1177
  %v1179 = vmul.f32 %v1178, 0.03125
  %v1180 = vmul.f32 %v1155, %v1155
  %v1181 = vsub.f32 %v1179, %v1180
  %v1182 = vsub.f32 %v1108, %v1155
  %v1183 = vsub.f32 %v1111, %v1155
  %v1184 = vsub.f32 %v1116, %v1155
  %v1185 = vsub.f32 %v1119, %v1155
  %v1186 = vsub.f32 %v1124, %v1155
  %v1187 = vsub.f32 %v1127, %v1155
  %v1188 = vadd.f32 %v1181, 1e-05
  %v1189 = vrsqrt.pop %v1188
  %v1190 = vmul.f32 %v1182, %v1189
  %v1191 = vmul.f32 %v1183, %v1189
  %v1192 = vmul.f32 %v1184, %v1189
  %v1193 = vmul.f32 %v1185, %v1189
  %v1194 = vmul.f32 %v1186, %v1189
  %v1195 = vmul.f32 %v1187, %v1189
  %v1197 = vlaneseq
  %v1198 = vshrl.u32 %v1197, 7
  %v1199 = vsub.s32 0, %v1198
  %v1200 = vrot.slane %v1130, %v1199
  %v1202 = vmul.f32 %v1190, %v1200
  %v1203 = vmul.f32 %v1191, %v1200
  %v1204 = vmul.f32 %v1192, %v1200
  %v1205 = vmul.f32 %v1193, %v1200
  %v1206 = vmul.f32 %v1194, %v1200
  %v1207 = vmul.f32 %v1195, %v1200
  %v1209 = vlaneseq
  %v1210 = vshrl.u32 %v1209, 7
  %v1211 = vsub.s32 0, %v1210
  %v1212 = vrot.slane %v1131, %v1211
  %v1214 = vadd.f32 %v1202, %v1212
  %v1215 = vadd.f32 %v1203, %v1212
  %v1216 = vadd.f32 %v1204, %v1212
  %v1217 = vadd.f32 %v1205, %v1212
  %v1218 = vadd.f32 %v1206, %v1212
  %v1219 = vadd.f32 %v1207, %v1212
  %vm1227 = vcmask 1041408
  %v1228 = vrot.slane %v37, 6
  %v1229 = vrot.slane %v38, 6
  %v1230 = vsel %vm1227, %v1228, %v1229
  %v1231 = vrot.slane %v39, 6
  %v1232 = vsel %vm1227, %v1229, %v1231
  %v1233 = vrot.slane %v40, 6
  %v1234 = vsel %vm1227, %v1231, %v1233
  %v1235 = vrot.slane %v41, 6
  %v1236 = vsel %vm1227, %v1233, %v1235
  %v1237 = vrot.slane %v42, 6
  %v1238 = vsel %vm1227, %v1235, %v1237
  %v1239 = vrot.slane %v43, 6
  %v1240 = vsel %vm1227, %v1237, %v1239
  %v1247 = vadd.f32 %v1214, %v1230
  %v1248 = vadd.f32 %v1215, %v1232
  %v1249 = vadd.f32 %v1216, %v1234
  %v1250 = vadd.f32 %v1217, %v1236
  %v1251 = vadd.f32 %v1218, %v1238
  %v1252 = vadd.f32 %v1219, %v1240
  %1253 = vst.msk [vmem:[%s10] sm:$0xff] %vm100, %v1247
  %1254 = vst.msk [vmem:[%s10 + $0x8] sm:$0xff] %vm100, %v1248
  %1255 = vst.msk [vmem:[%s10 + $0x10] sm:$0xff] %vm100, %v1249
  %1256 = vst.msk [vmem:[%s10 + $0x18] sm:$0xff] %vm100, %v1250
  %1257 = vst.msk [vmem:[%s10 + $0x20] sm:$0xff] %vm100, %v1251
  %1258 = vst.msk [vmem:[%s10 + $0x28] sm:$0xff] %vm100, %v1252
  // Predicated region
  $region42: #{vqvae_forward.11} parent=0 // pred_check
    _
  $region43: #{vqvae_forward.11} parent=0 // pred_check_branch
    %1260 = sbr.rel (0) target = $region45
  $region44: #{vqvae_forward.11} parent=0 // pred_region
    _
  $region45: #{vqvae_forward.11} parent=0 // pred_fallthru
    _
  // Predicated region
  $region46: #{vqvae_forward.11} parent=0 // pred_check
    _
  $region47: #{vqvae_forward.11} parent=0 // pred_check_branch
    %1262 = sbr.rel (0) target = $region49
  $region48: #{vqvae_forward.11} parent=0 // pred_region
    _
  $region49: #{vqvae_forward.11} parent=0 // pred_fallthru
    _

// kernel: vqvae_forward.16
$region0: #{vqvae_forward.16}
  #allocation0 [shape = 'u32[]', space=smem, size = 0x4, offset = 0x4, fixed_abs, tag = 'smem constant byte address 0x4 - core index']
  #allocation1 [shape = 'u32[144,128]{1,0:T(1,128)}', space=vmem, size = 0x12000, scoped, tag = 'internal scratch']
  %s0 = inlined_call_operand.vmem [shape: f32[76,32], index: 0, kind: input, shape index: {}]
  %s1 = inlined_call_operand.vmem [shape: bf16[16,32,32], index: 1, kind: input, shape index: {}]
  %s2 = inlined_call_operand.vmem [shape: f32[1,32], index: 2, kind: input, shape index: {}]
  %s3 = inlined_call_operand.vmem [shape: f32[1,32], index: 3, kind: input, shape index: {}]
  %s4 = inlined_call_operand.vmem [shape: f32[1,32], index: 4, kind: input, shape index: {}]
  %s5 = inlined_call_operand.vmem [shape: f32[192,1], index: 5, kind: input, shape index: {}]
  %s6 = inlined_call_operand.vmem [shape: f32[192,32], index: 6, kind: output, shape index: {}]
  %s7 = sld [smem:[#allocation0]]
  $region34: #{vqvae_forward.16} parent=0
    _
  %s9 = ssub.s32 1, %s7
  %s10 = scalar_select 0, %s9, %s7
  // Predicated region
  $region2: #{vqvae_forward.16} parent=0 // pred_check
    _
  $region3: #{vqvae_forward.16} parent=0 // pred_check_branch
    %12 = sbr.rel (0) target = $region5
  $region4: #{vqvae_forward.16} parent=0 // pred_region
    _
  $region5: #{vqvae_forward.16} parent=0 // pred_fallthru
    _
  // Predicated region
  $region6: #{vqvae_forward.16} parent=0 // pred_check
    _
  $region7: #{vqvae_forward.16} parent=0 // pred_check_branch
    %14 = sbr.rel (0) target = $region9
  $region8: #{vqvae_forward.16} parent=0 // pred_region
    _
  $region9: #{vqvae_forward.16} parent=0 // pred_fallthru
    _
  // Predicated region
  $region10: #{vqvae_forward.16} parent=0 // pred_check
    _
  $region11: #{vqvae_forward.16} parent=0 // pred_check_branch
    %16 = sbr.rel (0) target = $region13
  $region12: #{vqvae_forward.16} parent=0 // pred_region
    _
  $region13: #{vqvae_forward.16} parent=0 // pred_fallthru
    _
  // Predicated region
  $region14: #{vqvae_forward.16} parent=0 // pred_check
    _
  $region15: #{vqvae_forward.16} parent=0 // pred_check_branch
    %18 = sbr.rel (0) target = $region17
  $region16: #{vqvae_forward.16} parent=0 // pred_region
    _
  $region17: #{vqvae_forward.16} parent=0 // pred_fallthru
    _
  // Predicated region
  $region18: #{vqvae_forward.16} parent=0 // pred_check
    _
  $region19: #{vqvae_forward.16} parent=0 // pred_check_branch
    %20 = sbr.rel (0) target = $region21
  $region20: #{vqvae_forward.16} parent=0 // pred_region
    _
  $region21: #{vqvae_forward.16} parent=0 // pred_fallthru
    _
  // Predicated region
  $region22: #{vqvae_forward.16} parent=0 // pred_check
    _
  $region23: #{vqvae_forward.16} parent=0 // pred_check_branch
    %22 = sbr.rel (0) target = $region25
  $region24: #{vqvae_forward.16} parent=0 // pred_region
    _
  $region25: #{vqvae_forward.16} parent=0 // pred_fallthru
    _
  %v24 = vld [vmem:[%s0] sm:$0xff]
  %v25 = vld [vmem:[%s0 + $0x8] sm:$0xff]
  %v26 = vld [vmem:[%s0 + $0x10] sm:$0xff]
  %v27 = vld [vmem:[%s0 + $0x18] sm:$0xff]
  %v28 = vld [vmem:[%s0 + $0x20] sm:$0xff]
  %v29 = vld [vmem:[%s0 + $0x28] sm:$0xff]
  %v30 = vld [vmem:[%s0 + $0x30] sm:$0xff]
  %v31 = vld [vmem:[%s0 + $0x38] sm:$0xff]
  %v32 = vld [vmem:[%s0 + $0x40] sm:$0xff]
  %v33 = vld [vmem:[%s0 + $0x48] sm:$0xf]
  %v34 = vmax.f32 %v24, 0.0
  %v35 = vmax.f32 %v25, 0.0
  %v36 = vmax.f32 %v26, 0.0
  %v37 = vmax.f32 %v27, 0.0
  %v38 = vmax.f32 %v28, 0.0
  %v39 = vmax.f32 %v29, 0.0
  %v40 = vmax.f32 %v30, 0.0
  %v41 = vmax.f32 %v31, 0.0
  %v42 = vmax.f32 %v32, 0.0
  %v43 = vmax.f32 %v33, 0.0
  %v44 = vpack.c.bf16 %v35, %v34
  %v45 = vpack.c.bf16 %v37, %v36
  %v46 = vpack.c.bf16 %v39, %v38
  %v47 = vpack.c.bf16 %v41, %v40
  %v48 = vpack.c.bf16 %v43, %v42
  %v49 = vld [vmem:[%s1] sm:$0xf]
  %v50 = vld [vmem:[%s1 + $0x4] sm:$0xf]
  %v51 = vld [vmem:[%s1 + $0x8] sm:$0xf]
  %v52 = vld [vmem:[%s1 + $0xc] sm:$0xf]
  %s53 = scalar_lea.vmem %s1, 16
  %v54 = vld [vmem:[%s53] sm:$0xf]
  %v55 = vld [vmem:[%s53 + $0x4] sm:$0xf]
  %v56 = vld [vmem:[%s53 + $0x8] sm:$0xf]
  %v57 = vld [vmem:[%s53 + $0xc] sm:$0xf]
  %vm62 = vcmask 1046528
  %v63 = vrot.slane %v44, 1
  %v64 = vrot.slane %v45, 1
  %v65 = vsel %vm62, %v63, %v64
  %v66 = vrot.slane %v46, 1
  %v67 = vsel %vm62, %v64, %v66
  %v68 = vrot.slane %v47, 1
  %v69 = vsel %vm62, %v66, %v68
  %v74 = vunpack.c.l.b16 %v54
  %v75 = vunpack.c.l.b16 %v55
  %v76 = vunpack.c.l.b16 %v56
  %v77 = vunpack.c.l.b16 %v57
  %v78 = vpack.c.b16 %v75, %v74
  %v79 = vpack.c.b16 %v77, %v76
  %vm82 = vcmask 261120
  %v84 = vsel %vm82, %v65, 0
  %v87 = vsel %vm82, %v67, 0
  %v90 = vsel %vm82, %v69, 0
  %92 = vmatprep.subr.bf16.mxu0 0
  %93 = vmatpush1.bf16.msra.mxu0 0
  %94 = vmatprep.subr.bf16.mxu0 0
  %95 = vmatpush1.bf16.msra.mxu0 0
  %96 = vmatprep.subr.bf16.mxu0 0
  %97 = vmatpush1.bf16.msra.mxu0 0
  %98 = vmatprep.subr.bf16.mxu0 0
  %99 = vmatpush1.bf16.msra.mxu0 0
  %100 = vmatprep.subr.bf16.mxu0 0
  %101 = vmatpush1.bf16.msra.mxu0 0
  %102 = vmatprep.subr.bf16.mxu0 0
  %103 = vmatpush1.bf16.msra.mxu0 0
  %104 = vmatprep.subr.bf16.mxu0 0
  %105 = vmatpush1.bf16.msra.mxu0 %v79
  %106 = vmatprep.subr.bf16.mxu0 0
  %107 = vmatpush1.bf16.msra.mxu0 %v78
  %108 = vmatprep.subr.bf16.mxu0 0
  %109 = vmatpush2.bf16.msra.mxu0 0
  %110 = vmatprep.subr.bf16.mxu0 0
  %111 = vmatpush2.bf16.msra.mxu0 0
  %112 = vmatprep.subr.bf16.mxu0 0
  %113 = vmatpush2.bf16.msra.mxu0 0
  %114 = vmatprep.subr.bf16.mxu0 0
  %115 = vmatpush2.bf16.msra.mxu0 0
  %116 = vmatprep.subr.bf16.mxu0 0
  %117 = vmatpush2.bf16.msra.mxu0 0
  %118 = vmatprep.subr.bf16.mxu0 0
  %119 = vmatpush2.bf16.msra.mxu0 0
  %120 = vmatprep.subr.bf16.mxu0 0
  %121 = vmatpush2.bf16.msra.mxu0 0
  %122 = vmatprep.subr.bf16.mxu0 0
  %123 = vmatpush2.bf16.msra.mxu0 0
  %124 = vmatprep.mubr.bf16.mxu0 0
  %125 = vmatmul.mubr.bf16.gmra.mxu0 %v84
  %v126 = vpop.f32.mrf.mxu0
  %v127 = vadd.f32 0.0, %v126
  %v128 = vpop.f32.mrf.mxu0
  %v129 = vpop.f32.mrf.mxu0
  %v130 = vadd.f32 0.0, %v129
  %v131 = vpop.f32.mrf.mxu0
  %132 = vmatprep.mubr.bf16.mxu0 0
  %133 = vmatmul.mubr.bf16.gmra.mxu0 %v87
  %v134 = vpop.f32.mrf.mxu0
  %v135 = vadd.f32 0.0, %v134
  %v136 = vpop.f32.mrf.mxu0
  %v137 = vpop.f32.mrf.mxu0
  %v138 = vadd.f32 0.0, %v137
  %v139 = vpop.f32.mrf.mxu0
  %140 = vmatprep.mubr.bf16.mxu0 0
  %141 = vmatmul.mubr.bf16.gmra.mxu0 %v90
  %v142 = vpop.f32.mrf.mxu0
  %v143 = vadd.f32 0.0, %v142
  %v144 = vpop.f32.mrf.mxu0
  %v145 = vpop.f32.mrf.mxu0
  %v146 = vadd.f32 0.0, %v145
  %v147 = vpop.f32.mrf.mxu0
  %148 = vdwg.mxu0
  %v153 = vunpack.c.l.b16 %v49
  %v154 = vunpack.c.l.b16 %v50
  %v155 = vunpack.c.l.b16 %v51
  %v156 = vunpack.c.l.b16 %v52
  %v157 = vpack.c.b16 %v154, %v153
  %v158 = vpack.c.b16 %v156, %v155
  %v162 = vsel %vm82, %v44, 0
  %v165 = vsel %vm82, %v45, 0
  %v168 = vsel %vm82, %v46, 0
  %170 = vmatprep.subr.bf16.mxu0 0
  %171 = vmatpush1.bf16.msra.mxu0 0
  %172 = vmatprep.subr.bf16.mxu0 0
  %173 = vmatpush1.bf16.msra.mxu0 0
  %174 = vmatprep.subr.bf16.mxu0 0
  %175 = vmatpush1.bf16.msra.mxu0 0
  %176 = vmatprep.subr.bf16.mxu0 0
  %177 = vmatpush1.bf16.msra.mxu0 0
  %178 = vmatprep.subr.bf16.mxu0 0
  %179 = vmatpush1.bf16.msra.mxu0 0
  %180 = vmatprep.subr.bf16.mxu0 0
  %181 = vmatpush1.bf16.msra.mxu0 0
  %182 = vmatprep.subr.bf16.mxu0 0
  %183 = vmatpush1.bf16.msra.mxu0 %v158
  %184 = vmatprep.subr.bf16.mxu0 0
  %185 = vmatpush1.bf16.msra.mxu0 %v157
  %186 = vmatprep.subr.bf16.mxu0 0
  %187 = vmatpush2.bf16.msra.mxu0 0
  %188 = vmatprep.subr.bf16.mxu0 0
  %189 = vmatpush2.bf16.msra.mxu0 0
  %190 = vmatprep.subr.bf16.mxu0 0
  %191 = vmatpush2.bf16.msra.mxu0 0
  %192 = vmatprep.subr.bf16.mxu0 0
  %193 = vmatpush2.bf16.msra.mxu0 0
  %194 = vmatprep.subr.bf16.mxu0 0
  %195 = vmatpush2.bf16.msra.mxu0 0
  %196 = vmatprep.subr.bf16.mxu0 0
  %197 = vmatpush2.bf16.msra.mxu0 0
  %198 = vmatprep.subr.bf16.mxu0 0
  %199 = vmatpush2.bf16.msra.mxu0 0
  %200 = vmatprep.subr.bf16.mxu0 0
  %201 = vmatpush2.bf16.msra.mxu0 0
  %202 = vmatprep.mubr.bf16.mxu0 0
  %203 = vmatmul.mubr.bf16.gmra.mxu0 %v162
  %v204 = vpop.f32.mrf.mxu0
  %v205 = vadd.f32 %v127, %v204
  %v206 = vpop.f32.mrf.mxu0
  %v207 = vpop.f32.mrf.mxu0
  %v208 = vadd.f32 %v130, %v207
  %v209 = vpop.f32.mrf.mxu0
  %210 = vmatprep.mubr.bf16.mxu0 0
  %211 = vmatmul.mubr.bf16.gmra.mxu0 %v165
  %v212 = vpop.f32.mrf.mxu0
  %v213 = vadd.f32 %v135, %v212
  %v214 = vpop.f32.mrf.mxu0
  %v215 = vpop.f32.mrf.mxu0
  %v216 = vadd.f32 %v138, %v215
  %v217 = vpop.f32.mrf.mxu0
  %218 = vmatprep.mubr.bf16.mxu0 0
  %219 = vmatmul.mubr.bf16.gmra.mxu0 %v168
  %v220 = vpop.f32.mrf.mxu0
  %v221 = vadd.f32 %v143, %v220
  %v222 = vpop.f32.mrf.mxu0
  %v223 = vpop.f32.mrf.mxu0
  %v224 = vadd.f32 %v146, %v223
  %v225 = vpop.f32.mrf.mxu0
  %226 = vdwg.mxu0
  %s227 = scalar_lea.vmem %s1, 32
  %v228 = vld [vmem:[%s227] sm:$0xf]
  %v229 = vld [vmem:[%s227 + $0x4] sm:$0xf]
  %v230 = vld [vmem:[%s227 + $0x8] sm:$0xf]
  %v231 = vld [vmem:[%s227 + $0xc] sm:$0xf]
  %vm232 = vcmask 1041408
  %v233 = vrot.slane %v44, 6
  %v234 = vrot.slane %v45, 6
  %v235 = vsel %vm232, %v233, %v234
  %v236 = vrot.slane %v46, 6
  %v237 = vsel %vm232, %v234, %v236
  %v238 = vrot.slane %v47, 6
  %v239 = vsel %vm232, %v236, %v238
  %v244 = vunpack.c.l.b16 %v228
  %v245 = vunpack.c.l.b16 %v229
  %v246 = vunpack.c.l.b16 %v230
  %v247 = vunpack.c.l.b16 %v231
  %v248 = vpack.c.b16 %v245, %v244
  %v249 = vpack.c.b16 %v247, %v246
  %v253 = vsel %vm82, %v235, 0
  %v256 = vsel %vm82, %v237, 0
  %v259 = vsel %vm82, %v239, 0
  %261 = vmatprep.subr.bf16.mxu0 0
  %262 = vmatpush1.bf16.msra.mxu0 0
  %263 = vmatprep.subr.bf16.mxu0 0
  %264 = vmatpush1.bf16.msra.mxu0 0
  %265 = vmatprep.subr.bf16.mxu0 0
  %266 = vmatpush1.bf16.msra.mxu0 0
  %267 = vmatprep.subr.bf16.mxu0 0
  %268 = vmatpush1.bf16.msra.mxu0 0
  %269 = vmatprep.subr.bf16.mxu0 0
  %270 = vmatpush1.bf16.msra.mxu0 0
  %271 = vmatprep.subr.bf16.mxu0 0
  %272 = vmatpush1.bf16.msra.mxu0 0
  %273 = vmatprep.subr.bf16.mxu0 0
  %274 = vmatpush1.bf16.msra.mxu0 %v249
  %275 = vmatprep.subr.bf16.mxu0 0
  %276 = vmatpush1.bf16.msra.mxu0 %v248
  %277 = vmatprep.subr.bf16.mxu0 0
  %278 = vmatpush2.bf16.msra.mxu0 0
  %279 = vmatprep.subr.bf16.mxu0 0
  %280 = vmatpush2.bf16.msra.mxu0 0
  %281 = vmatprep.subr.bf16.mxu0 0
  %282 = vmatpush2.bf16.msra.mxu0 0
  %283 = vmatprep.subr.bf16.mxu0 0
  %284 = vmatpush2.bf16.msra.mxu0 0
  %285 = vmatprep.subr.bf16.mxu0 0
  %286 = vmatpush2.bf16.msra.mxu0 0
  %287 = vmatprep.subr.bf16.mxu0 0
  %288 = vmatpush2.bf16.msra.mxu0 0
  %289 = vmatprep.subr.bf16.mxu0 0
  %290 = vmatpush2.bf16.msra.mxu0 0
  %291 = vmatprep.subr.bf16.mxu0 0
  %292 = vmatpush2.bf16.msra.mxu0 0
  %293 = vmatprep.mubr.bf16.mxu0 0
  %294 = vmatmul.mubr.bf16.gmra.mxu0 %v253
  %v295 = vpop.f32.mrf.mxu0
  %v296 = vadd.f32 0.0, %v295
  %v297 = vpop.f32.mrf.mxu0
  %v298 = vpop.f32.mrf.mxu0
  %v299 = vadd.f32 0.0, %v298
  %v300 = vpop.f32.mrf.mxu0
  %301 = vmatprep.mubr.bf16.mxu0 0
  %302 = vmatmul.mubr.bf16.gmra.mxu0 %v256
  %v303 = vpop.f32.mrf.mxu0
  %v304 = vadd.f32 0.0, %v303
  %v305 = vpop.f32.mrf.mxu0
  %v306 = vpop.f32.mrf.mxu0
  %v307 = vadd.f32 0.0, %v306
  %v308 = vpop.f32.mrf.mxu0
  %309 = vmatprep.mubr.bf16.mxu0 0
  %310 = vmatmul.mubr.bf16.gmra.mxu0 %v259
  %v311 = vpop.f32.mrf.mxu0
  %v312 = vadd.f32 0.0, %v311
  %v313 = vpop.f32.mrf.mxu0
  %v314 = vpop.f32.mrf.mxu0
  %v315 = vadd.f32 0.0, %v314
  %v316 = vpop.f32.mrf.mxu0
  %317 = vdwg.mxu0
  %v318 = vadd.f32 %v205, %v296
  %v319 = vadd.f32 %v208, %v299
  %v320 = vadd.f32 %v213, %v304
  %v321 = vadd.f32 %v216, %v307
  %v322 = vadd.f32 %v221, %v312
  %v323 = vadd.f32 %v224, %v315
  %s324 = scalar_lea.vmem %s1, 48
  %v325 = vld [vmem:[%s324] sm:$0xf]
  %v326 = vld [vmem:[%s324 + $0x4] sm:$0xf]
  %v327 = vld [vmem:[%s324 + $0x8] sm:$0xf]
  %v328 = vld [vmem:[%s324 + $0xc] sm:$0xf]
  %vm329 = vcmask 1040384
  %v330 = vrot.slane %v44, 7
  %v331 = vrot.slane %v45, 7
  %v332 = vsel %vm329, %v330, %v331
  %v333 = vrot.slane %v46, 7
  %v334 = vsel %vm329, %v331, %v333
  %v335 = vrot.slane %v47, 7
  %v336 = vsel %vm329, %v333, %v335
  %v341 = vunpack.c.l.b16 %v325
  %v342 = vunpack.c.l.b16 %v326
  %v343 = vunpack.c.l.b16 %v327
  %v344 = vunpack.c.l.b16 %v328
  %v345 = vpack.c.b16 %v342, %v341
  %v346 = vpack.c.b16 %v344, %v343
  %v350 = vsel %vm82, %v332, 0
  %v353 = vsel %vm82, %v334, 0
  %v356 = vsel %vm82, %v336, 0
  %358 = vmatprep.subr.bf16.mxu0 0
  %359 = vmatpush1.bf16.msra.mxu0 0
  %360 = vmatprep.subr.bf16.mxu0 0
  %361 = vmatpush1.bf16.msra.mxu0 0
  %362 = vmatprep.subr.bf16.mxu0 0
  %363 = vmatpush1.bf16.msra.mxu0 0
  %364 = vmatprep.subr.bf16.mxu0 0
  %365 = vmatpush1.bf16.msra.mxu0 0
  %366 = vmatprep.subr.bf16.mxu0 0
  %367 = vmatpush1.bf16.msra.mxu0 0
  %368 = vmatprep.subr.bf16.mxu0 0
  %369 = vmatpush1.bf16.msra.mxu0 0
  %370 = vmatprep.subr.bf16.mxu0 0
  %371 = vmatpush1.bf16.msra.mxu0 %v346
  %372 = vmatprep.subr.bf16.mxu0 0
  %373 = vmatpush1.bf16.msra.mxu0 %v345
  %374 = vmatprep.subr.bf16.mxu0 0
  %375 = vmatpush2.bf16.msra.mxu0 0
  %376 = vmatprep.subr.bf16.mxu0 0
  %377 = vmatpush2.bf16.msra.mxu0 0
  %378 = vmatprep.subr.bf16.mxu0 0
  %379 = vmatpush2.bf16.msra.mxu0 0
  %380 = vmatprep.subr.bf16.mxu0 0
  %381 = vmatpush2.bf16.msra.mxu0 0
  %382 = vmatprep.subr.bf16.mxu0 0
  %383 = vmatpush2.bf16.msra.mxu0 0
  %384 = vmatprep.subr.bf16.mxu0 0
  %385 = vmatpush2.bf16.msra.mxu0 0
  %386 = vmatprep.subr.bf16.mxu0 0
  %387 = vmatpush2.bf16.msra.mxu0 0
  %388 = vmatprep.subr.bf16.mxu0 0
  %389 = vmatpush2.bf16.msra.mxu0 0
  %390 = vmatprep.mubr.bf16.mxu0 0
  %391 = vmatmul.mubr.bf16.gmra.mxu0 %v350
  %v392 = vpop.f32.mrf.mxu0
  %v393 = vadd.f32 0.0, %v392
  %v394 = vpop.f32.mrf.mxu0
  %v395 = vpop.f32.mrf.mxu0
  %v396 = vadd.f32 0.0, %v395
  %v397 = vpop.f32.mrf.mxu0
  %398 = vmatprep.mubr.bf16.mxu0 0
  %399 = vmatmul.mubr.bf16.gmra.mxu0 %v353
  %v400 = vpop.f32.mrf.mxu0
  %v401 = vadd.f32 0.0, %v400
  %v402 = vpop.f32.mrf.mxu0
  %v403 = vpop.f32.mrf.mxu0
  %v404 = vadd.f32 0.0, %v403
  %v405 = vpop.f32.mrf.mxu0
  %406 = vmatprep.mubr.bf16.mxu0 0
  %407 = vmatmul.mubr.bf16.gmra.mxu0 %v356
  %v408 = vpop.f32.mrf.mxu0
  %v409 = vadd.f32 0.0, %v408
  %v410 = vpop.f32.mrf.mxu0
  %v411 = vpop.f32.mrf.mxu0
  %v412 = vadd.f32 0.0, %v411
  %v413 = vpop.f32.mrf.mxu0
  %414 = vdwg.mxu0
  %v415 = vadd.f32 %v318, %v393
  %v416 = vadd.f32 %v319, %v396
  %v417 = vadd.f32 %v320, %v401
  %v418 = vadd.f32 %v321, %v404
  %v419 = vadd.f32 %v322, %v409
  %v420 = vadd.f32 %v323, %v412
  %s421 = scalar_lea.vmem %s1, 64
  %v422 = vld [vmem:[%s421] sm:$0xf]
  %v423 = vld [vmem:[%s421 + $0x4] sm:$0xf]
  %v424 = vld [vmem:[%s421 + $0x8] sm:$0xf]
  %v425 = vld [vmem:[%s421 + $0xc] sm:$0xf]
  %s426 = scalar_lea.vmem %s1, 80
  %v427 = vld [vmem:[%s426] sm:$0xf]
  %v428 = vld [vmem:[%s426 + $0x4] sm:$0xf]
  %v429 = vld [vmem:[%s426 + $0x8] sm:$0xf]
  %v430 = vld [vmem:[%s426 + $0xc] sm:$0xf]
  %vm431 = vcmask 1045504
  %v432 = vrot.slane %v44, 2
  %v433 = vrot.slane %v45, 2
  %v434 = vsel %vm431, %v432, %v433
  %v435 = vrot.slane %v46, 2
  %v436 = vsel %vm431, %v433, %v435
  %v437 = vrot.slane %v47, 2
  %v438 = vsel %vm431, %v435, %v437
  %v443 = vunpack.c.l.b16 %v427
  %v444 = vunpack.c.l.b16 %v428
  %v445 = vunpack.c.l.b16 %v429
  %v446 = vunpack.c.l.b16 %v430
  %v447 = vpack.c.b16 %v444, %v443
  %v448 = vpack.c.b16 %v446, %v445
  %v452 = vsel %vm82, %v434, 0
  %v455 = vsel %vm82, %v436, 0
  %v458 = vsel %vm82, %v438, 0
  %460 = vmatprep.subr.bf16.mxu0 0
  %461 = vmatpush1.bf16.msra.mxu0 0
  %462 = vmatprep.subr.bf16.mxu0 0
  %463 = vmatpush1.bf16.msra.mxu0 0
  %464 = vmatprep.subr.bf16.mxu0 0
  %465 = vmatpush1.bf16.msra.mxu0 0
  %466 = vmatprep.subr.bf16.mxu0 0
  %467 = vmatpush1.bf16.msra.mxu0 0
  %468 = vmatprep.subr.bf16.mxu0 0
  %469 = vmatpush1.bf16.msra.mxu0 0
  %470 = vmatprep.subr.bf16.mxu0 0
  %471 = vmatpush1.bf16.msra.mxu0 0
  %472 = vmatprep.subr.bf16.mxu0 0
  %473 = vmatpush1.bf16.msra.mxu0 %v448
  %474 = vmatprep.subr.bf16.mxu0 0
  %475 = vmatpush1.bf16.msra.mxu0 %v447
  %476 = vmatprep.subr.bf16.mxu0 0
  %477 = vmatpush2.bf16.msra.mxu0 0
  %478 = vmatprep.subr.bf16.mxu0 0
  %479 = vmatpush2.bf16.msra.mxu0 0
  %480 = vmatprep.subr.bf16.mxu0 0
  %481 = vmatpush2.bf16.msra.mxu0 0
  %482 = vmatprep.subr.bf16.mxu0 0
  %483 = vmatpush2.bf16.msra.mxu0 0
  %484 = vmatprep.subr.bf16.mxu0 0
  %485 = vmatpush2.bf16.msra.mxu0 0
  %486 = vmatprep.subr.bf16.mxu0 0
  %487 = vmatpush2.bf16.msra.mxu0 0
  %488 = vmatprep.subr.bf16.mxu0 0
  %489 = vmatpush2.bf16.msra.mxu0 0
  %490 = vmatprep.subr.bf16.mxu0 0
  %491 = vmatpush2.bf16.msra.mxu0 0
  %492 = vmatprep.mubr.bf16.mxu0 0
  %493 = vmatmul.mubr.bf16.gmra.mxu0 %v452
  %v494 = vpop.f32.mrf.mxu0
  %v495 = vadd.f32 0.0, %v494
  %v496 = vpop.f32.mrf.mxu0
  %v497 = vpop.f32.mrf.mxu0
  %v498 = vadd.f32 0.0, %v497
  %v499 = vpop.f32.mrf.mxu0
  %500 = vmatprep.mubr.bf16.mxu0 0
  %501 = vmatmul.mubr.bf16.gmra.mxu0 %v455
  %v502 = vpop.f32.mrf.mxu0
  %v503 = vadd.f32 0.0, %v502
  %v504 = vpop.f32.mrf.mxu0
  %v505 = vpop.f32.mrf.mxu0
  %v506 = vadd.f32 0.0, %v505
  %v507 = vpop.f32.mrf.mxu0
  %508 = vmatprep.mubr.bf16.mxu0 0
  %509 = vmatmul.mubr.bf16.gmra.mxu0 %v458
  %v510 = vpop.f32.mrf.mxu0
  %v511 = vadd.f32 0.0, %v510
  %v512 = vpop.f32.mrf.mxu0
  %v513 = vpop.f32.mrf.mxu0
  %v514 = vadd.f32 0.0, %v513
  %v515 = vpop.f32.mrf.mxu0
  %516 = vdwg.mxu0
  %v521 = vunpack.c.l.b16 %v422
  %v522 = vunpack.c.l.b16 %v423
  %v523 = vunpack.c.l.b16 %v424
  %v524 = vunpack.c.l.b16 %v425
  %v525 = vpack.c.b16 %v522, %v521
  %v526 = vpack.c.b16 %v524, %v523
  %529 = vmatprep.subr.bf16.mxu0 0
  %530 = vmatpush1.bf16.msra.mxu0 0
  %531 = vmatprep.subr.bf16.mxu0 0
  %532 = vmatpush1.bf16.msra.mxu0 0
  %533 = vmatprep.subr.bf16.mxu0 0
  %534 = vmatpush1.bf16.msra.mxu0 0
  %535 = vmatprep.subr.bf16.mxu0 0
  %536 = vmatpush1.bf16.msra.mxu0 0
  %537 = vmatprep.subr.bf16.mxu0 0
  %538 = vmatpush1.bf16.msra.mxu0 0
  %539 = vmatprep.subr.bf16.mxu0 0
  %540 = vmatpush1.bf16.msra.mxu0 0
  %541 = vmatprep.subr.bf16.mxu0 0
  %542 = vmatpush1.bf16.msra.mxu0 %v526
  %543 = vmatprep.subr.bf16.mxu0 0
  %544 = vmatpush1.bf16.msra.mxu0 %v525
  %545 = vmatprep.subr.bf16.mxu0 0
  %546 = vmatpush2.bf16.msra.mxu0 0
  %547 = vmatprep.subr.bf16.mxu0 0
  %548 = vmatpush2.bf16.msra.mxu0 0
  %549 = vmatprep.subr.bf16.mxu0 0
  %550 = vmatpush2.bf16.msra.mxu0 0
  %551 = vmatprep.subr.bf16.mxu0 0
  %552 = vmatpush2.bf16.msra.mxu0 0
  %553 = vmatprep.subr.bf16.mxu0 0
  %554 = vmatpush2.bf16.msra.mxu0 0
  %555 = vmatprep.subr.bf16.mxu0 0
  %556 = vmatpush2.bf16.msra.mxu0 0
  %557 = vmatprep.subr.bf16.mxu0 0
  %558 = vmatpush2.bf16.msra.mxu0 0
  %559 = vmatprep.subr.bf16.mxu0 0
  %560 = vmatpush2.bf16.msra.mxu0 0
  %561 = vmatprep.mubr.bf16.mxu0 0
  %562 = vmatmul.mubr.bf16.gmra.mxu0 %v84
  %v563 = vpop.f32.mrf.mxu0
  %v564 = vadd.f32 %v495, %v563
  %v565 = vpop.f32.mrf.mxu0
  %v566 = vpop.f32.mrf.mxu0
  %v567 = vadd.f32 %v498, %v566
  %v568 = vpop.f32.mrf.mxu0
  %569 = vmatprep.mubr.bf16.mxu0 0
  %570 = vmatmul.mubr.bf16.gmra.mxu0 %v87
  %v571 = vpop.f32.mrf.mxu0
  %v572 = vadd.f32 %v503, %v571
  %v573 = vpop.f32.mrf.mxu0
  %v574 = vpop.f32.mrf.mxu0
  %v575 = vadd.f32 %v506, %v574
  %v576 = vpop.f32.mrf.mxu0
  %577 = vmatprep.mubr.bf16.mxu0 0
  %578 = vmatmul.mubr.bf16.gmra.mxu0 %v90
  %v579 = vpop.f32.mrf.mxu0
  %v580 = vadd.f32 %v511, %v579
  %v581 = vpop.f32.mrf.mxu0
  %v582 = vpop.f32.mrf.mxu0
  %v583 = vadd.f32 %v514, %v582
  %v584 = vpop.f32.mrf.mxu0
  %585 = vdwg.mxu0
  %s586 = scalar_lea.vmem %s1, 96
  %v587 = vld [vmem:[%s586] sm:$0xf]
  %v588 = vld [vmem:[%s586 + $0x4] sm:$0xf]
  %v589 = vld [vmem:[%s586 + $0x8] sm:$0xf]
  %v590 = vld [vmem:[%s586 + $0xc] sm:$0xf]
  %v595 = vunpack.c.l.b16 %v587
  %v596 = vunpack.c.l.b16 %v588
  %v597 = vunpack.c.l.b16 %v589
  %v598 = vunpack.c.l.b16 %v590
  %v599 = vpack.c.b16 %v596, %v595
  %v600 = vpack.c.b16 %v598, %v597
  %603 = vmatprep.subr.bf16.mxu0 0
  %604 = vmatpush1.bf16.msra.mxu0 0
  %605 = vmatprep.subr.bf16.mxu0 0
  %606 = vmatpush1.bf16.msra.mxu0 0
  %607 = vmatprep.subr.bf16.mxu0 0
  %608 = vmatpush1.bf16.msra.mxu0 0
  %609 = vmatprep.subr.bf16.mxu0 0
  %610 = vmatpush1.bf16.msra.mxu0 0
  %611 = vmatprep.subr.bf16.mxu0 0
  %612 = vmatpush1.bf16.msra.mxu0 0
  %613 = vmatprep.subr.bf16.mxu0 0
  %614 = vmatpush1.bf16.msra.mxu0 0
  %615 = vmatprep.subr.bf16.mxu0 0
  %616 = vmatpush1.bf16.msra.mxu0 %v600
  %617 = vmatprep.subr.bf16.mxu0 0
  %618 = vmatpush1.bf16.msra.mxu0 %v599
  %619 = vmatprep.subr.bf16.mxu0 0
  %620 = vmatpush2.bf16.msra.mxu0 0
  %621 = vmatprep.subr.bf16.mxu0 0
  %622 = vmatpush2.bf16.msra.mxu0 0
  %623 = vmatprep.subr.bf16.mxu0 0
  %624 = vmatpush2.bf16.msra.mxu0 0
  %625 = vmatprep.subr.bf16.mxu0 0
  %626 = vmatpush2.bf16.msra.mxu0 0
  %627 = vmatprep.subr.bf16.mxu0 0
  %628 = vmatpush2.bf16.msra.mxu0 0
  %629 = vmatprep.subr.bf16.mxu0 0
  %630 = vmatpush2.bf16.msra.mxu0 0
  %631 = vmatprep.subr.bf16.mxu0 0
  %632 = vmatpush2.bf16.msra.mxu0 0
  %633 = vmatprep.subr.bf16.mxu0 0
  %634 = vmatpush2.bf16.msra.mxu0 0
  %635 = vmatprep.mubr.bf16.mxu0 0
  %636 = vmatmul.mubr.bf16.gmra.mxu0 %v350
  %v637 = vpop.f32.mrf.mxu0
  %v638 = vadd.f32 0.0, %v637
  %v639 = vpop.f32.mrf.mxu0
  %v640 = vpop.f32.mrf.mxu0
  %v641 = vadd.f32 0.0, %v640
  %v642 = vpop.f32.mrf.mxu0
  %643 = vmatprep.mubr.bf16.mxu0 0
  %644 = vmatmul.mubr.bf16.gmra.mxu0 %v353
  %v645 = vpop.f32.mrf.mxu0
  %v646 = vadd.f32 0.0, %v645
  %v647 = vpop.f32.mrf.mxu0
  %v648 = vpop.f32.mrf.mxu0
  %v649 = vadd.f32 0.0, %v648
  %v650 = vpop.f32.mrf.mxu0
  %651 = vmatprep.mubr.bf16.mxu0 0
  %652 = vmatmul.mubr.bf16.gmra.mxu0 %v356
  %v653 = vpop.f32.mrf.mxu0
  %v654 = vadd.f32 0.0, %v653
  %v655 = vpop.f32.mrf.mxu0
  %v656 = vpop.f32.mrf.mxu0
  %v657 = vadd.f32 0.0, %v656
  %v658 = vpop.f32.mrf.mxu0
  %659 = vdwg.mxu0
  %v660 = vadd.f32 %v564, %v638
  %v661 = vadd.f32 %v567, %v641
  %v662 = vadd.f32 %v572, %v646
  %v663 = vadd.f32 %v575, %v649
  %v664 = vadd.f32 %v580, %v654
  %v665 = vadd.f32 %v583, %v657
  %s666 = scalar_lea.vmem %s1, 112
  %v667 = vld [vmem:[%s666] sm:$0xf]
  %v668 = vld [vmem:[%s666 + $0x4] sm:$0xf]
  %v669 = vld [vmem:[%s666 + $0x8] sm:$0xf]
  %v670 = vld [vmem:[%s666 + $0xc] sm:$0xf]
  %v675 = vunpack.c.l.b16 %v667
  %v676 = vunpack.c.l.b16 %v668
  %v677 = vunpack.c.l.b16 %v669
  %v678 = vunpack.c.l.b16 %v670
  %v679 = vpack.c.b16 %v676, %v675
  %v680 = vpack.c.b16 %v678, %v677
  %v684 = vsel %vm82, %v47, 0
  %686 = vmatprep.subr.bf16.mxu0 0
  %687 = vmatpush1.bf16.msra.mxu0 0
  %688 = vmatprep.subr.bf16.mxu0 0
  %689 = vmatpush1.bf16.msra.mxu0 0
  %690 = vmatprep.subr.bf16.mxu0 0
  %691 = vmatpush1.bf16.msra.mxu0 0
  %692 = vmatprep.subr.bf16.mxu0 0
  %693 = vmatpush1.bf16.msra.mxu0 0
  %694 = vmatprep.subr.bf16.mxu0 0
  %695 = vmatpush1.bf16.msra.mxu0 0
  %696 = vmatprep.subr.bf16.mxu0 0
  %697 = vmatpush1.bf16.msra.mxu0 0
  %698 = vmatprep.subr.bf16.mxu0 0
  %699 = vmatpush1.bf16.msra.mxu0 %v680
  %700 = vmatprep.subr.bf16.mxu0 0
  %701 = vmatpush1.bf16.msra.mxu0 %v679
  %702 = vmatprep.subr.bf16.mxu0 0
  %703 = vmatpush2.bf16.msra.mxu0 0
  %704 = vmatprep.subr.bf16.mxu0 0
  %705 = vmatpush2.bf16.msra.mxu0 0
  %706 = vmatprep.subr.bf16.mxu0 0
  %707 = vmatpush2.bf16.msra.mxu0 0
  %708 = vmatprep.subr.bf16.mxu0 0
  %709 = vmatpush2.bf16.msra.mxu0 0
  %710 = vmatprep.subr.bf16.mxu0 0
  %711 = vmatpush2.bf16.msra.mxu0 0
  %712 = vmatprep.subr.bf16.mxu0 0
  %713 = vmatpush2.bf16.msra.mxu0 0
  %714 = vmatprep.subr.bf16.mxu0 0
  %715 = vmatpush2.bf16.msra.mxu0 0
  %716 = vmatprep.subr.bf16.mxu0 0
  %717 = vmatpush2.bf16.msra.mxu0 0
  %718 = vmatprep.mubr.bf16.mxu0 0
  %719 = vmatmul.mubr.bf16.gmra.mxu0 %v165
  %v720 = vpop.f32.mrf.mxu0
  %v721 = vadd.f32 0.0, %v720
  %v722 = vpop.f32.mrf.mxu0
  %v723 = vpop.f32.mrf.mxu0
  %v724 = vadd.f32 0.0, %v723
  %v725 = vpop.f32.mrf.mxu0
  %726 = vmatprep.mubr.bf16.mxu0 0
  %727 = vmatmul.mubr.bf16.gmra.mxu0 %v168
  %v728 = vpop.f32.mrf.mxu0
  %v729 = vadd.f32 0.0, %v728
  %v730 = vpop.f32.mrf.mxu0
  %v731 = vpop.f32.mrf.mxu0
  %v732 = vadd.f32 0.0, %v731
  %v733 = vpop.f32.mrf.mxu0
  %734 = vmatprep.mubr.bf16.mxu0 0
  %735 = vmatmul.mubr.bf16.gmra.mxu0 %v684
  %v736 = vpop.f32.mrf.mxu0
  %v737 = vadd.f32 0.0, %v736
  %v738 = vpop.f32.mrf.mxu0
  %v739 = vpop.f32.mrf.mxu0
  %v740 = vadd.f32 0.0, %v739
  %v741 = vpop.f32.mrf.mxu0
  %742 = vdwg.mxu0
  %v743 = vadd.f32 %v660, %v721
  %v744 = vadd.f32 %v661, %v724
  %v745 = vadd.f32 %v662, %v729
  %v746 = vadd.f32 %v663, %v732
  %v747 = vadd.f32 %v664, %v737
  %v748 = vadd.f32 %v665, %v740
  %s749 = scalar_lea.vmem %s1, 128
  %v750 = vld [vmem:[%s749] sm:$0xf]
  %v751 = vld [vmem:[%s749 + $0x4] sm:$0xf]
  %v752 = vld [vmem:[%s749 + $0x8] sm:$0xf]
  %v753 = vld [vmem:[%s749 + $0xc] sm:$0xf]
  %s754 = scalar_lea.vmem %s1, 144
  %v755 = vld [vmem:[%s754] sm:$0xf]
  %v756 = vld [vmem:[%s754 + $0x4] sm:$0xf]
  %v757 = vld [vmem:[%s754 + $0x8] sm:$0xf]
  %v758 = vld [vmem:[%s754 + $0xc] sm:$0xf]
  %v763 = vunpack.c.l.b16 %v755
  %v764 = vunpack.c.l.b16 %v756
  %v765 = vunpack.c.l.b16 %v757
  %v766 = vunpack.c.l.b16 %v758
  %v767 = vpack.c.b16 %v764, %v763
  %v768 = vpack.c.b16 %v766, %v765
  %771 = vmatprep.subr.bf16.mxu0 0
  %772 = vmatpush1.bf16.msra.mxu0 0
  %773 = vmatprep.subr.bf16.mxu0 0
  %774 = vmatpush1.bf16.msra.mxu0 0
  %775 = vmatprep.subr.bf16.mxu0 0
  %776 = vmatpush1.bf16.msra.mxu0 0
  %777 = vmatprep.subr.bf16.mxu0 0
  %778 = vmatpush1.bf16.msra.mxu0 0
  %779 = vmatprep.subr.bf16.mxu0 0
  %780 = vmatpush1.bf16.msra.mxu0 0
  %781 = vmatprep.subr.bf16.mxu0 0
  %782 = vmatpush1.bf16.msra.mxu0 0
  %783 = vmatprep.subr.bf16.mxu0 0
  %784 = vmatpush1.bf16.msra.mxu0 %v768
  %785 = vmatprep.subr.bf16.mxu0 0
  %786 = vmatpush1.bf16.msra.mxu0 %v767
  %787 = vmatprep.subr.bf16.mxu0 0
  %788 = vmatpush2.bf16.msra.mxu0 0
  %789 = vmatprep.subr.bf16.mxu0 0
  %790 = vmatpush2.bf16.msra.mxu0 0
  %791 = vmatprep.subr.bf16.mxu0 0
  %792 = vmatpush2.bf16.msra.mxu0 0
  %793 = vmatprep.subr.bf16.mxu0 0
  %794 = vmatpush2.bf16.msra.mxu0 0
  %795 = vmatprep.subr.bf16.mxu0 0
  %796 = vmatpush2.bf16.msra.mxu0 0
  %797 = vmatprep.subr.bf16.mxu0 0
  %798 = vmatpush2.bf16.msra.mxu0 0
  %799 = vmatprep.subr.bf16.mxu0 0
  %800 = vmatpush2.bf16.msra.mxu0 0
  %801 = vmatprep.subr.bf16.mxu0 0
  %802 = vmatpush2.bf16.msra.mxu0 0
  %803 = vmatprep.mubr.bf16.mxu0 0
  %804 = vmatmul.mubr.bf16.gmra.mxu0 %v350
  %v805 = vpop.f32.mrf.mxu0
  %v806 = vadd.f32 0.0, %v805
  %v807 = vpop.f32.mrf.mxu0
  %v808 = vpop.f32.mrf.mxu0
  %v809 = vadd.f32 0.0, %v808
  %v810 = vpop.f32.mrf.mxu0
  %811 = vmatprep.mubr.bf16.mxu0 0
  %812 = vmatmul.mubr.bf16.gmra.mxu0 %v353
  %v813 = vpop.f32.mrf.mxu0
  %v814 = vadd.f32 0.0, %v813
  %v815 = vpop.f32.mrf.mxu0
  %v816 = vpop.f32.mrf.mxu0
  %v817 = vadd.f32 0.0, %v816
  %v818 = vpop.f32.mrf.mxu0
  %819 = vmatprep.mubr.bf16.mxu0 0
  %820 = vmatmul.mubr.bf16.gmra.mxu0 %v356
  %v821 = vpop.f32.mrf.mxu0
  %v822 = vadd.f32 0.0, %v821
  %v823 = vpop.f32.mrf.mxu0
  %v824 = vpop.f32.mrf.mxu0
  %v825 = vadd.f32 0.0, %v824
  %v826 = vpop.f32.mrf.mxu0
  %827 = vdwg.mxu0
  %v832 = vunpack.c.l.b16 %v750
  %v833 = vunpack.c.l.b16 %v751
  %v834 = vunpack.c.l.b16 %v752
  %v835 = vunpack.c.l.b16 %v753
  %v836 = vpack.c.b16 %v833, %v832
  %v837 = vpack.c.b16 %v835, %v834
  %840 = vmatprep.subr.bf16.mxu0 0
  %841 = vmatpush1.bf16.msra.mxu0 0
  %842 = vmatprep.subr.bf16.mxu0 0
  %843 = vmatpush1.bf16.msra.mxu0 0
  %844 = vmatprep.subr.bf16.mxu0 0
  %845 = vmatpush1.bf16.msra.mxu0 0
  %846 = vmatprep.subr.bf16.mxu0 0
  %847 = vmatpush1.bf16.msra.mxu0 0
  %848 = vmatprep.subr.bf16.mxu0 0
  %849 = vmatpush1.bf16.msra.mxu0 0
  %850 = vmatprep.subr.bf16.mxu0 0
  %851 = vmatpush1.bf16.msra.mxu0 0
  %852 = vmatprep.subr.bf16.mxu0 0
  %853 = vmatpush1.bf16.msra.mxu0 %v837
  %854 = vmatprep.subr.bf16.mxu0 0
  %855 = vmatpush1.bf16.msra.mxu0 %v836
  %856 = vmatprep.subr.bf16.mxu0 0
  %857 = vmatpush2.bf16.msra.mxu0 0
  %858 = vmatprep.subr.bf16.mxu0 0
  %859 = vmatpush2.bf16.msra.mxu0 0
  %860 = vmatprep.subr.bf16.mxu0 0
  %861 = vmatpush2.bf16.msra.mxu0 0
  %862 = vmatprep.subr.bf16.mxu0 0
  %863 = vmatpush2.bf16.msra.mxu0 0
  %864 = vmatprep.subr.bf16.mxu0 0
  %865 = vmatpush2.bf16.msra.mxu0 0
  %866 = vmatprep.subr.bf16.mxu0 0
  %867 = vmatpush2.bf16.msra.mxu0 0
  %868 = vmatprep.subr.bf16.mxu0 0
  %869 = vmatpush2.bf16.msra.mxu0 0
  %870 = vmatprep.subr.bf16.mxu0 0
  %871 = vmatpush2.bf16.msra.mxu0 0
  %872 = vmatprep.mubr.bf16.mxu0 0
  %873 = vmatmul.mubr.bf16.gmra.mxu0 %v253
  %v874 = vpop.f32.mrf.mxu0
  %v875 = vadd.f32 %v806, %v874
  %v876 = vpop.f32.mrf.mxu0
  %v877 = vpop.f32.mrf.mxu0
  %v878 = vadd.f32 %v809, %v877
  %v879 = vpop.f32.mrf.mxu0
  %880 = vmatprep.mubr.bf16.mxu0 0
  %881 = vmatmul.mubr.bf16.gmra.mxu0 %v256
  %v882 = vpop.f32.mrf.mxu0
  %v883 = vadd.f32 %v814, %v882
  %v884 = vpop.f32.mrf.mxu0
  %v885 = vpop.f32.mrf.mxu0
  %v886 = vadd.f32 %v817, %v885
  %v887 = vpop.f32.mrf.mxu0
  %888 = vmatprep.mubr.bf16.mxu0 0
  %889 = vmatmul.mubr.bf16.gmra.mxu0 %v259
  %v890 = vpop.f32.mrf.mxu0
  %v891 = vadd.f32 %v822, %v890
  %v892 = vpop.f32.mrf.mxu0
  %v893 = vpop.f32.mrf.mxu0
  %v894 = vadd.f32 %v825, %v893
  %v895 = vpop.f32.mrf.mxu0
  %896 = vdwg.mxu0
  %s897 = scalar_lea.vmem %s1, 160
  %v898 = vld [vmem:[%s897] sm:$0xf]
  %v899 = vld [vmem:[%s897 + $0x4] sm:$0xf]
  %v900 = vld [vmem:[%s897 + $0x8] sm:$0xf]
  %v901 = vld [vmem:[%s897 + $0xc] sm:$0xf]
  %vm903 = vcmask 1043456
  %v904 = vrot.slane %v45, 4
  %v905 = vrot.slane %v46, 4
  %v906 = vsel %vm903, %v904, %v905
  %v907 = vrot.slane %v47, 4
  %v908 = vsel %vm903, %v905, %v907
  %v909 = vrot.slane %v48, 4
  %v910 = vsel %vm903, %v907, %v909
  %v915 = vunpack.c.l.b16 %v898
  %v916 = vunpack.c.l.b16 %v899
  %v917 = vunpack.c.l.b16 %v900
  %v918 = vunpack.c.l.b16 %v901
  %v919 = vpack.c.b16 %v916, %v915
  %v920 = vpack.c.b16 %v918, %v917
  %v924 = vsel %vm82, %v906, 0
  %v927 = vsel %vm82, %v908, 0
  %v930 = vsel %vm82, %v910, 0
  %932 = vmatprep.subr.bf16.mxu0 0
  %933 = vmatpush1.bf16.msra.mxu0 0
  %934 = vmatprep.subr.bf16.mxu0 0
  %935 = vmatpush1.bf16.msra.mxu0 0
  %936 = vmatprep.subr.bf16.mxu0 0
  %937 = vmatpush1.bf16.msra.mxu0 0
  %938 = vmatprep.subr.bf16.mxu0 0
  %939 = vmatpush1.bf16.msra.mxu0 0
  %940 = vmatprep.subr.bf16.mxu0 0
  %941 = vmatpush1.bf16.msra.mxu0 0
  %942 = vmatprep.subr.bf16.mxu0 0
  %943 = vmatpush1.bf16.msra.mxu0 0
  %944 = vmatprep.subr.bf16.mxu0 0
  %945 = vmatpush1.bf16.msra.mxu0 %v920
  %946 = vmatprep.subr.bf16.mxu0 0
  %947 = vmatpush1.bf16.msra.mxu0 %v919
  %948 = vmatprep.subr.bf16.mxu0 0
  %949 = vmatpush2.bf16.msra.mxu0 0
  %950 = vmatprep.subr.bf16.mxu0 0
  %951 = vmatpush2.bf16.msra.mxu0 0
  %952 = vmatprep.subr.bf16.mxu0 0
  %953 = vmatpush2.bf16.msra.mxu0 0
  %954 = vmatprep.subr.bf16.mxu0 0
  %955 = vmatpush2.bf16.msra.mxu0 0
  %956 = vmatprep.subr.bf16.mxu0 0
  %957 = vmatpush2.bf16.msra.mxu0 0
  %958 = vmatprep.subr.bf16.mxu0 0
  %959 = vmatpush2.bf16.msra.mxu0 0
  %960 = vmatprep.subr.bf16.mxu0 0
  %961 = vmatpush2.bf16.msra.mxu0 0
  %962 = vmatprep.subr.bf16.mxu0 0
  %963 = vmatpush2.bf16.msra.mxu0 0
  %964 = vmatprep.mubr.bf16.mxu0 0
  %965 = vmatmul.mubr.bf16.gmra.mxu0 %v924
  %v966 = vpop.f32.mrf.mxu0
  %v967 = vadd.f32 0.0, %v966
  %v968 = vpop.f32.mrf.mxu0
  %v969 = vpop.f32.mrf.mxu0
  %v970 = vadd.f32 0.0, %v969
  %v971 = vpop.f32.mrf.mxu0
  %972 = vmatprep.mubr.bf16.mxu0 0
  %973 = vmatmul.mubr.bf16.gmra.mxu0 %v927
  %v974 = vpop.f32.mrf.mxu0
  %v975 = vadd.f32 0.0, %v974
  %v976 = vpop.f32.mrf.mxu0
  %v977 = vpop.f32.mrf.mxu0
  %v978 = vadd.f32 0.0, %v977
  %v979 = vpop.f32.mrf.mxu0
  %980 = vmatprep.mubr.bf16.mxu0 0
  %981 = vmatmul.mubr.bf16.gmra.mxu0 %v930
  %v982 = vpop.f32.mrf.mxu0
  %v983 = vadd.f32 0.0, %v982
  %v984 = vpop.f32.mrf.mxu0
  %v985 = vpop.f32.mrf.mxu0
  %v986 = vadd.f32 0.0, %v985
  %v987 = vpop.f32.mrf.mxu0
  %988 = vdwg.mxu0
  %v989 = vadd.f32 %v875, %v967
  %v990 = vadd.f32 %v878, %v970
  %v991 = vadd.f32 %v883, %v975
  %v992 = vadd.f32 %v886, %v978
  %v993 = vadd.f32 %v891, %v983
  %v994 = vadd.f32 %v894, %v986
  %s995 = scalar_lea.vmem %s1, 176
  %v996 = vld [vmem:[%s995] sm:$0xf]
  %v997 = vld [vmem:[%s995 + $0x4] sm:$0xf]
  %v998 = vld [vmem:[%s995 + $0x8] sm:$0xf]
  %v999 = vld [vmem:[%s995 + $0xc] sm:$0xf]
  %vm1000 = vcmask 1042432
  %v1001 = vrot.slane %v45, 5
  %v1002 = vrot.slane %v46, 5
  %v1003 = vsel %vm1000, %v1001, %v1002
  %v1004 = vrot.slane %v47, 5
  %v1005 = vsel %vm1000, %v1002, %v1004
  %v1006 = vrot.slane %v48, 5
  %v1007 = vsel %vm1000, %v1004, %v1006
  %v1012 = vunpack.c.l.b16 %v996
  %v1013 = vunpack.c.l.b16 %v997
  %v1014 = vunpack.c.l.b16 %v998
  %v1015 = vunpack.c.l.b16 %v999
  %v1016 = vpack.c.b16 %v1013, %v1012
  %v1017 = vpack.c.b16 %v1015, %v1014
  %v1021 = vsel %vm82, %v1003, 0
  %v1024 = vsel %vm82, %v1005, 0
  %v1027 = vsel %vm82, %v1007, 0
  %1029 = vmatprep.subr.bf16.mxu0 0
  %1030 = vmatpush1.bf16.msra.mxu0 0
  %1031 = vmatprep.subr.bf16.mxu0 0
  %1032 = vmatpush1.bf16.msra.mxu0 0
  %1033 = vmatprep.subr.bf16.mxu0 0
  %1034 = vmatpush1.bf16.msra.mxu0 0
  %1035 = vmatprep.subr.bf16.mxu0 0
  %1036 = vmatpush1.bf16.msra.mxu0 0
  %1037 = vmatprep.subr.bf16.mxu0 0
  %1038 = vmatpush1.bf16.msra.mxu0 0
  %1039 = vmatprep.subr.bf16.mxu0 0
  %1040 = vmatpush1.bf16.msra.mxu0 0
  %1041 = vmatprep.subr.bf16.mxu0 0
  %1042 = vmatpush1.bf16.msra.mxu0 %v1017
  %1043 = vmatprep.subr.bf16.mxu0 0
  %1044 = vmatpush1.bf16.msra.mxu0 %v1016
  %1045 = vmatprep.subr.bf16.mxu0 0
  %1046 = vmatpush2.bf16.msra.mxu0 0
  %1047 = vmatprep.subr.bf16.mxu0 0
  %1048 = vmatpush2.bf16.msra.mxu0 0
  %1049 = vmatprep.subr.bf16.mxu0 0
  %1050 = vmatpush2.bf16.msra.mxu0 0
  %1051 = vmatprep.subr.bf16.mxu0 0
  %1052 = vmatpush2.bf16.msra.mxu0 0
  %1053 = vmatprep.subr.bf16.mxu0 0
  %1054 = vmatpush2.bf16.msra.mxu0 0
  %1055 = vmatprep.subr.bf16.mxu0 0
  %1056 = vmatpush2.bf16.msra.mxu0 0
  %1057 = vmatprep.subr.bf16.mxu0 0
  %1058 = vmatpush2.bf16.msra.mxu0 0
  %1059 = vmatprep.subr.bf16.mxu0 0
  %1060 = vmatpush2.bf16.msra.mxu0 0
  %1061 = vmatprep.mubr.bf16.mxu0 0
  %1062 = vmatmul.mubr.bf16.gmra.mxu0 %v1021
  %v1063 = vpop.f32.mrf.mxu0
  %v1064 = vadd.f32 0.0, %v1063
  %v1065 = vpop.f32.mrf.mxu0
  %v1066 = vpop.f32.mrf.mxu0
  %v1067 = vadd.f32 0.0, %v1066
  %v1068 = vpop.f32.mrf.mxu0
  %1069 = vmatprep.mubr.bf16.mxu0 0
  %1070 = vmatmul.mubr.bf16.gmra.mxu0 %v1024
  %v1071 = vpop.f32.mrf.mxu0
  %v1072 = vadd.f32 0.0, %v1071
  %v1073 = vpop.f32.mrf.mxu0
  %v1074 = vpop.f32.mrf.mxu0
  %v1075 = vadd.f32 0.0, %v1074
  %v1076 = vpop.f32.mrf.mxu0
  %1077 = vmatprep.mubr.bf16.mxu0 0
  %1078 = vmatmul.mubr.bf16.gmra.mxu0 %v1027
  %v1079 = vpop.f32.mrf.mxu0
  %v1080 = vadd.f32 0.0, %v1079
  %v1081 = vpop.f32.mrf.mxu0
  %v1082 = vpop.f32.mrf.mxu0
  %v1083 = vadd.f32 0.0, %v1082
  %v1084 = vpop.f32.mrf.mxu0
  %1085 = vdwg.mxu0
  %v1086 = vadd.f32 %v989, %v1064
  %v1087 = vadd.f32 %v990, %v1067
  %v1088 = vadd.f32 %v991, %v1072
  %v1089 = vadd.f32 %v992, %v1075
  %v1090 = vadd.f32 %v993, %v1080
  %v1091 = vadd.f32 %v994, %v1083
  %s1092 = scalar_lea.vmem %s1, 192
  %v1093 = vld [vmem:[%s1092] sm:$0xf]
  %v1094 = vld [vmem:[%s1092 + $0x4] sm:$0xf]
  %v1095 = vld [vmem:[%s1092 + $0x8] sm:$0xf]
  %v1096 = vld [vmem:[%s1092 + $0xc] sm:$0xf]
  %s1097 = scalar_lea.vmem %s1, 208
  %v1098 = vld [vmem:[%s1097] sm:$0xf]
  %v1099 = vld [vmem:[%s1097 + $0x4] sm:$0xf]
  %v1100 = vld [vmem:[%s1097 + $0x8] sm:$0xf]
  %v1101 = vld [vmem:[%s1097 + $0xc] sm:$0xf]
  %v1106 = vunpack.c.l.b16 %v1098
  %v1107 = vunpack.c.l.b16 %v1099
  %v1108 = vunpack.c.l.b16 %v1100
  %v1109 = vunpack.c.l.b16 %v1101
  %v1110 = vpack.c.b16 %v1107, %v1106
  %v1111 = vpack.c.b16 %v1109, %v1108
  %1114 = vmatprep.subr.bf16.mxu0 0
  %1115 = vmatpush1.bf16.msra.mxu0 0
  %1116 = vmatprep.subr.bf16.mxu0 0
  %1117 = vmatpush1.bf16.msra.mxu0 0
  %1118 = vmatprep.subr.bf16.mxu0 0
  %1119 = vmatpush1.bf16.msra.mxu0 0
  %1120 = vmatprep.subr.bf16.mxu0 0
  %1121 = vmatpush1.bf16.msra.mxu0 0
  %1122 = vmatprep.subr.bf16.mxu0 0
  %1123 = vmatpush1.bf16.msra.mxu0 0
  %1124 = vmatprep.subr.bf16.mxu0 0
  %1125 = vmatpush1.bf16.msra.mxu0 0
  %1126 = vmatprep.subr.bf16.mxu0 0
  %1127 = vmatpush1.bf16.msra.mxu0 %v1111
  %1128 = vmatprep.subr.bf16.mxu0 0
  %1129 = vmatpush1.bf16.msra.mxu0 %v1110
  %1130 = vmatprep.subr.bf16.mxu0 0
  %1131 = vmatpush2.bf16.msra.mxu0 0
  %1132 = vmatprep.subr.bf16.mxu0 0
  %1133 = vmatpush2.bf16.msra.mxu0 0
  %1134 = vmatprep.subr.bf16.mxu0 0
  %1135 = vmatpush2.bf16.msra.mxu0 0
  %1136 = vmatprep.subr.bf16.mxu0 0
  %1137 = vmatpush2.bf16.msra.mxu0 0
  %1138 = vmatprep.subr.bf16.mxu0 0
  %1139 = vmatpush2.bf16.msra.mxu0 0
  %1140 = vmatprep.subr.bf16.mxu0 0
  %1141 = vmatpush2.bf16.msra.mxu0 0
  %1142 = vmatprep.subr.bf16.mxu0 0
  %1143 = vmatpush2.bf16.msra.mxu0 0
  %1144 = vmatprep.subr.bf16.mxu0 0
  %1145 = vmatpush2.bf16.msra.mxu0 0
  %1146 = vmatprep.mubr.bf16.mxu0 0
  %1147 = vmatmul.mubr.bf16.gmra.mxu0 %v165
  %v1148 = vpop.f32.mrf.mxu0
  %v1149 = vadd.f32 0.0, %v1148
  %v1150 = vpop.f32.mrf.mxu0
  %v1151 = vpop.f32.mrf.mxu0
  %v1152 = vadd.f32 0.0, %v1151
  %v1153 = vpop.f32.mrf.mxu0
  %1154 = vmatprep.mubr.bf16.mxu0 0
  %1155 = vmatmul.mubr.bf16.gmra.mxu0 %v168
  %v1156 = vpop.f32.mrf.mxu0
  %v1157 = vadd.f32 0.0, %v1156
  %v1158 = vpop.f32.mrf.mxu0
  %v1159 = vpop.f32.mrf.mxu0
  %v1160 = vadd.f32 0.0, %v1159
  %v1161 = vpop.f32.mrf.mxu0
  %1162 = vmatprep.mubr.bf16.mxu0 0
  %1163 = vmatmul.mubr.bf16.gmra.mxu0 %v684
  %v1164 = vpop.f32.mrf.mxu0
  %v1165 = vadd.f32 0.0, %v1164
  %v1166 = vpop.f32.mrf.mxu0
  %v1167 = vpop.f32.mrf.mxu0
  %v1168 = vadd.f32 0.0, %v1167
  %v1169 = vpop.f32.mrf.mxu0
  %1170 = vdwg.mxu0
  %v1175 = vunpack.c.l.b16 %v1093
  %v1176 = vunpack.c.l.b16 %v1094
  %v1177 = vunpack.c.l.b16 %v1095
  %v1178 = vunpack.c.l.b16 %v1096
  %v1179 = vpack.c.b16 %v1176, %v1175
  %v1180 = vpack.c.b16 %v1178, %v1177
  %1183 = vmatprep.subr.bf16.mxu0 0
  %1184 = vmatpush1.bf16.msra.mxu0 0
  %1185 = vmatprep.subr.bf16.mxu0 0
  %1186 = vmatpush1.bf16.msra.mxu0 0
  %1187 = vmatprep.subr.bf16.mxu0 0
  %1188 = vmatpush1.bf16.msra.mxu0 0
  %1189 = vmatprep.subr.bf16.mxu0 0
  %1190 = vmatpush1.bf16.msra.mxu0 0
  %1191 = vmatprep.subr.bf16.mxu0 0
  %1192 = vmatpush1.bf16.msra.mxu0 0
  %1193 = vmatprep.subr.bf16.mxu0 0
  %1194 = vmatpush1.bf16.msra.mxu0 0
  %1195 = vmatprep.subr.bf16.mxu0 0
  %1196 = vmatpush1.bf16.msra.mxu0 %v1180
  %1197 = vmatprep.subr.bf16.mxu0 0
  %1198 = vmatpush1.bf16.msra.mxu0 %v1179
  %1199 = vmatprep.subr.bf16.mxu0 0
  %1200 = vmatpush2.bf16.msra.mxu0 0
  %1201 = vmatprep.subr.bf16.mxu0 0
  %1202 = vmatpush2.bf16.msra.mxu0 0
  %1203 = vmatprep.subr.bf16.mxu0 0
  %1204 = vmatpush2.bf16.msra.mxu0 0
  %1205 = vmatprep.subr.bf16.mxu0 0
  %1206 = vmatpush2.bf16.msra.mxu0 0
  %1207 = vmatprep.subr.bf16.mxu0 0
  %1208 = vmatpush2.bf16.msra.mxu0 0
  %1209 = vmatprep.subr.bf16.mxu0 0
  %1210 = vmatpush2.bf16.msra.mxu0 0
  %1211 = vmatprep.subr.bf16.mxu0 0
  %1212 = vmatpush2.bf16.msra.mxu0 0
  %1213 = vmatprep.subr.bf16.mxu0 0
  %1214 = vmatpush2.bf16.msra.mxu0 0
  %1215 = vmatprep.mubr.bf16.mxu0 0
  %1216 = vmatmul.mubr.bf16.gmra.mxu0 %v350
  %v1217 = vpop.f32.mrf.mxu0
  %v1218 = vadd.f32 %v1149, %v1217
  %v1219 = vpop.f32.mrf.mxu0
  %v1220 = vpop.f32.mrf.mxu0
  %v1221 = vadd.f32 %v1152, %v1220
  %v1222 = vpop.f32.mrf.mxu0
  %1223 = vmatprep.mubr.bf16.mxu0 0
  %1224 = vmatmul.mubr.bf16.gmra.mxu0 %v353
  %v1225 = vpop.f32.mrf.mxu0
  %v1226 = vadd.f32 %v1157, %v1225
  %v1227 = vpop.f32.mrf.mxu0
  %v1228 = vpop.f32.mrf.mxu0
  %v1229 = vadd.f32 %v1160, %v1228
  %v1230 = vpop.f32.mrf.mxu0
  %1231 = vmatprep.mubr.bf16.mxu0 0
  %1232 = vmatmul.mubr.bf16.gmra.mxu0 %v356
  %v1233 = vpop.f32.mrf.mxu0
  %v1234 = vadd.f32 %v1165, %v1233
  %v1235 = vpop.f32.mrf.mxu0
  %v1236 = vpop.f32.mrf.mxu0
  %v1237 = vadd.f32 %v1168, %v1236
  %v1238 = vpop.f32.mrf.mxu0
  %1239 = vdwg.mxu0
  %s1240 = scalar_lea.vmem %s1, 224
  %v1241 = vld [vmem:[%s1240] sm:$0xf]
  %v1242 = vld [vmem:[%s1240 + $0x4] sm:$0xf]
  %v1243 = vld [vmem:[%s1240 + $0x8] sm:$0xf]
  %v1244 = vld [vmem:[%s1240 + $0xc] sm:$0xf]
  %v1249 = vunpack.c.l.b16 %v1241
  %v1250 = vunpack.c.l.b16 %v1242
  %v1251 = vunpack.c.l.b16 %v1243
  %v1252 = vunpack.c.l.b16 %v1244
  %v1253 = vpack.c.b16 %v1250, %v1249
  %v1254 = vpack.c.b16 %v1252, %v1251
  %1257 = vmatprep.subr.bf16.mxu0 0
  %1258 = vmatpush1.bf16.msra.mxu0 0
  %1259 = vmatprep.subr.bf16.mxu0 0
  %1260 = vmatpush1.bf16.msra.mxu0 0
  %1261 = vmatprep.subr.bf16.mxu0 0
  %1262 = vmatpush1.bf16.msra.mxu0 0
  %1263 = vmatprep.subr.bf16.mxu0 0
  %1264 = vmatpush1.bf16.msra.mxu0 0
  %1265 = vmatprep.subr.bf16.mxu0 0
  %1266 = vmatpush1.bf16.msra.mxu0 0
  %1267 = vmatprep.subr.bf16.mxu0 0
  %1268 = vmatpush1.bf16.msra.mxu0 0
  %1269 = vmatprep.subr.bf16.mxu0 0
  %1270 = vmatpush1.bf16.msra.mxu0 %v1254
  %1271 = vmatprep.subr.bf16.mxu0 0
  %1272 = vmatpush1.bf16.msra.mxu0 %v1253
  %1273 = vmatprep.subr.bf16.mxu0 0
  %1274 = vmatpush2.bf16.msra.mxu0 0
  %1275 = vmatprep.subr.bf16.mxu0 0
  %1276 = vmatpush2.bf16.msra.mxu0 0
  %1277 = vmatprep.subr.bf16.mxu0 0
  %1278 = vmatpush2.bf16.msra.mxu0 0
  %1279 = vmatprep.subr.bf16.mxu0 0
  %1280 = vmatpush2.bf16.msra.mxu0 0
  %1281 = vmatprep.subr.bf16.mxu0 0
  %1282 = vmatpush2.bf16.msra.mxu0 0
  %1283 = vmatprep.subr.bf16.mxu0 0
  %1284 = vmatpush2.bf16.msra.mxu0 0
  %1285 = vmatprep.subr.bf16.mxu0 0
  %1286 = vmatpush2.bf16.msra.mxu0 0
  %1287 = vmatprep.subr.bf16.mxu0 0
  %1288 = vmatpush2.bf16.msra.mxu0 0
  %1289 = vmatprep.mubr.bf16.mxu0 0
  %1290 = vmatmul.mubr.bf16.gmra.mxu0 %v1021
  %v1291 = vpop.f32.mrf.mxu0
  %v1292 = vadd.f32 0.0, %v1291
  %v1293 = vpop.f32.mrf.mxu0
  %v1294 = vpop.f32.mrf.mxu0
  %v1295 = vadd.f32 0.0, %v1294
  %v1296 = vpop.f32.mrf.mxu0
  %1297 = vmatprep.mubr.bf16.mxu0 0
  %1298 = vmatmul.mubr.bf16.gmra.mxu0 %v1024
  %v1299 = vpop.f32.mrf.mxu0
  %v1300 = vadd.f32 0.0, %v1299
  %v1301 = vpop.f32.mrf.mxu0
  %v1302 = vpop.f32.mrf.mxu0
  %v1303 = vadd.f32 0.0, %v1302
  %v1304 = vpop.f32.mrf.mxu0
  %1305 = vmatprep.mubr.bf16.mxu0 0
  %1306 = vmatmul.mubr.bf16.gmra.mxu0 %v1027
  %v1307 = vpop.f32.mrf.mxu0
  %v1308 = vadd.f32 0.0, %v1307
  %v1309 = vpop.f32.mrf.mxu0
  %v1310 = vpop.f32.mrf.mxu0
  %v1311 = vadd.f32 0.0, %v1310
  %v1312 = vpop.f32.mrf.mxu0
  %1313 = vdwg.mxu0
  %v1314 = vadd.f32 %v1218, %v1292
  %v1315 = vadd.f32 %v1221, %v1295
  %v1316 = vadd.f32 %v1226, %v1300
  %v1317 = vadd.f32 %v1229, %v1303
  %v1318 = vadd.f32 %v1234, %v1308
  %v1319 = vadd.f32 %v1237, %v1311
  %s1320 = scalar_lea.vmem %s1, 240
  %v1321 = vld [vmem:[%s1320] sm:$0xf]
  %v1322 = vld [vmem:[%s1320 + $0x4] sm:$0xf]
  %v1323 = vld [vmem:[%s1320 + $0x8] sm:$0xf]
  %v1324 = vld [vmem:[%s1320 + $0xc] sm:$0xf]
  %v1325 = vrot.slane %v48, 6
  %v1326 = vsel %vm232, %v238, %v1325
  %v1331 = vunpack.c.l.b16 %v1321
  %v1332 = vunpack.c.l.b16 %v1322
  %v1333 = vunpack.c.l.b16 %v1323
  %v1334 = vunpack.c.l.b16 %v1324
  %v1335 = vpack.c.b16 %v1332, %v1331
  %v1336 = vpack.c.b16 %v1334, %v1333
  %v1340 = vsel %vm82, %v1326, 0
  %1342 = vmatprep.subr.bf16.mxu0 0
  %1343 = vmatpush1.bf16.msra.mxu0 0
  %1344 = vmatprep.subr.bf16.mxu0 0
  %1345 = vmatpush1.bf16.msra.mxu0 0
  %1346 = vmatprep.subr.bf16.mxu0 0
  %1347 = vmatpush1.bf16.msra.mxu0 0
  %1348 = vmatprep.subr.bf16.mxu0 0
  %1349 = vmatpush1.bf16.msra.mxu0 0
  %1350 = vmatprep.subr.bf16.mxu0 0
  %1351 = vmatpush1.bf16.msra.mxu0 0
  %1352 = vmatprep.subr.bf16.mxu0 0
  %1353 = vmatpush1.bf16.msra.mxu0 0
  %1354 = vmatprep.subr.bf16.mxu0 0
  %1355 = vmatpush1.bf16.msra.mxu0 %v1336
  %1356 = vmatprep.subr.bf16.mxu0 0
  %1357 = vmatpush1.bf16.msra.mxu0 %v1335
  %1358 = vmatprep.subr.bf16.mxu0 0
  %1359 = vmatpush2.bf16.msra.mxu0 0
  %1360 = vmatprep.subr.bf16.mxu0 0
  %1361 = vmatpush2.bf16.msra.mxu0 0
  %1362 = vmatprep.subr.bf16.mxu0 0
  %1363 = vmatpush2.bf16.msra.mxu0 0
  %1364 = vmatprep.subr.bf16.mxu0 0
  %1365 = vmatpush2.bf16.msra.mxu0 0
  %1366 = vmatprep.subr.bf16.mxu0 0
  %1367 = vmatpush2.bf16.msra.mxu0 0
  %1368 = vmatprep.subr.bf16.mxu0 0
  %1369 = vmatpush2.bf16.msra.mxu0 0
  %1370 = vmatprep.subr.bf16.mxu0 0
  %1371 = vmatpush2.bf16.msra.mxu0 0
  %1372 = vmatprep.subr.bf16.mxu0 0
  %1373 = vmatpush2.bf16.msra.mxu0 0
  %1374 = vmatprep.mubr.bf16.mxu0 0
  %1375 = vmatmul.mubr.bf16.gmra.mxu0 %v256
  %v1376 = vpop.f32.mrf.mxu0
  %v1377 = vadd.f32 0.0, %v1376
  %v1378 = vpop.f32.mrf.mxu0
  %v1379 = vpop.f32.mrf.mxu0
  %v1380 = vadd.f32 0.0, %v1379
  %v1381 = vpop.f32.mrf.mxu0
  %1382 = vmatprep.mubr.bf16.mxu0 0
  %1383 = vmatmul.mubr.bf16.gmra.mxu0 %v259
  %v1384 = vpop.f32.mrf.mxu0
  %v1385 = vadd.f32 0.0, %v1384
  %v1386 = vpop.f32.mrf.mxu0
  %v1387 = vpop.f32.mrf.mxu0
  %v1388 = vadd.f32 0.0, %v1387
  %v1389 = vpop.f32.mrf.mxu0
  %1390 = vmatprep.mubr.bf16.mxu0 0
  %1391 = vmatmul.mubr.bf16.gmra.mxu0 %v1340
  %v1392 = vpop.f32.mrf.mxu0
  %v1393 = vadd.f32 0.0, %v1392
  %v1394 = vpop.f32.mrf.mxu0
  %v1395 = vpop.f32.mrf.mxu0
  %v1396 = vadd.f32 0.0, %v1395
  %v1397 = vpop.f32.mrf.mxu0
  %1398 = vdwg.mxu0
  %v1399 = vadd.f32 %v1314, %v1377
  %v1400 = vadd.f32 %v1315, %v1380
  %v1401 = vadd.f32 %v1316, %v1385
  %v1402 = vadd.f32 %v1317, %v1388
  %v1403 = vadd.f32 %v1318, %v1393
  %v1404 = vadd.f32 %v1319, %v1396
  %v1405 = vld [vmem:[%s2] sm:$0x1]
  %v1407 = vlaneseq
  %v1408 = vshrl.u32 %v1407, 7
  %v1409 = vsub.s32 0, %v1408
  %v1410 = vrot.slane %v1405, %v1409
  %v1412 = vadd.f32 %v415, %v1410
  %v1413 = vadd.f32 %v416, %v1410
  %v1414 = vadd.f32 %v417, %v1410
  %v1415 = vadd.f32 %v418, %v1410
  %v1416 = vadd.f32 %v419, %v1410
  %v1417 = vadd.f32 %v420, %v1410
  %v1418 = vadd.f32 %v743, %v1410
  %v1419 = vadd.f32 %v744, %v1410
  %v1420 = vadd.f32 %v745, %v1410
  %v1421 = vadd.f32 %v746, %v1410
  %v1422 = vadd.f32 %v747, %v1410
  %v1423 = vadd.f32 %v748, %v1410
  %v1424 = vadd.f32 %v1086, %v1410
  %v1425 = vadd.f32 %v1087, %v1410
  %v1426 = vadd.f32 %v1088, %v1410
  %v1427 = vadd.f32 %v1089, %v1410
  %v1428 = vadd.f32 %v1090, %v1410
  %v1429 = vadd.f32 %v1091, %v1410
  %v1430 = vadd.f32 %v1399, %v1410
  %v1431 = vadd.f32 %v1400, %v1410
  %v1432 = vadd.f32 %v1401, %v1410
  %v1433 = vadd.f32 %v1402, %v1410
  %v1434 = vadd.f32 %v1403, %v1410
  %v1435 = vadd.f32 %v1404, %v1410
  %v1436 = vld [vmem:[%s5] sm:$0xff]
  %v1437 = vld [vmem:[%s5 + $0x8] sm:$0xff]
  %v1438 = vld [vmem:[%s5 + $0x10] sm:$0xff]
  %v1439 = vld [vmem:[%s5 + $0x18] sm:$0xff]
  %v1440 = vld [vmem:[%s5 + $0x20] sm:$0xff]
  %v1441 = vld [vmem:[%s5 + $0x28] sm:$0xff]
  %v1442 = vld [vmem:[%s5 + $0x30] sm:$0xff]
  %v1443 = vld [vmem:[%s5 + $0x38] sm:$0xff]
  %v1444 = vld [vmem:[%s5 + $0x40] sm:$0xff]
  %v1445 = vld [vmem:[%s5 + $0x48] sm:$0xff]
  %v1446 = vld [vmem:[%s5 + $0x50] sm:$0xff]
  %v1447 = vld [vmem:[%s5 + $0x58] sm:$0xff]
  %v1448 = vld [vmem:[%s5 + $0x60] sm:$0xff]
  %v1449 = vld [vmem:[%s5 + $0x68] sm:$0xff]
  %v1450 = vld [vmem:[%s5 + $0x70] sm:$0xff]
  %v1451 = vld [vmem:[%s5 + $0x78] sm:$0xff]
  %v1452 = vld [vmem:[%s5 + $0x80] sm:$0xff]
  %v1453 = vld [vmem:[%s5 + $0x88] sm:$0xff]
  %v1454 = vld [vmem:[%s5 + $0x90] sm:$0xff]
  %v1455 = vld [vmem:[%s5 + $0x98] sm:$0xff]
  %v1456 = vld [vmem:[%s5 + $0xa0] sm:$0xff]
  %v1457 = vld [vmem:[%s5 + $0xa8] sm:$0xff]
  %v1458 = vld [vmem:[%s5 + $0xb0] sm:$0xff]
  %v1459 = vld [vmem:[%s5 + $0xb8] sm:$0xff]
  %v1460 = vld [vmem:[%s3] sm:$0x1]
  %v1461 = vld [vmem:[%s4] sm:$0x1]
  %1463 = vset.pattern.permute.xlu0 0
  %1464 = vperm.xlu0 %1463, %v1436
  %v1465 = vpop.permute.xlu0 %1464
  %1468 = vset.pattern.permute.xlu0 0
  %1469 = vperm.xlu0 %1468, %v1437
  %v1470 = vpop.permute.xlu0 %1469
  %1473 = vset.pattern.permute.xlu0 0
  %1474 = vperm.xlu0 %1473, %v1438
  %v1475 = vpop.permute.xlu0 %1474
  %1478 = vset.pattern.permute.xlu0 0
  %1479 = vperm.xlu0 %1478, %v1439
  %v1480 = vpop.permute.xlu0 %1479
  %1483 = vset.pattern.permute.xlu0 0
  %1484 = vperm.xlu0 %1483, %v1440
  %v1485 = vpop.permute.xlu0 %1484
  %1488 = vset.pattern.permute.xlu0 0
  %1489 = vperm.xlu0 %1488, %v1441
  %v1490 = vpop.permute.xlu0 %1489
  %1493 = vset.pattern.permute.xlu0 0
  %1494 = vperm.xlu0 %1493, %v1442
  %v1495 = vpop.permute.xlu0 %1494
  %1498 = vset.pattern.permute.xlu0 0
  %1499 = vperm.xlu0 %1498, %v1443
  %v1500 = vpop.permute.xlu0 %1499
  %1503 = vset.pattern.permute.xlu0 0
  %1504 = vperm.xlu0 %1503, %v1444
  %v1505 = vpop.permute.xlu0 %1504
  %1508 = vset.pattern.permute.xlu0 0
  %1509 = vperm.xlu0 %1508, %v1445
  %v1510 = vpop.permute.xlu0 %1509
  %1513 = vset.pattern.permute.xlu0 0
  %1514 = vperm.xlu0 %1513, %v1446
  %v1515 = vpop.permute.xlu0 %1514
  %1518 = vset.pattern.permute.xlu0 0
  %1519 = vperm.xlu0 %1518, %v1447
  %v1520 = vpop.permute.xlu0 %1519
  %1523 = vset.pattern.permute.xlu0 0
  %1524 = vperm.xlu0 %1523, %v1448
  %v1525 = vpop.permute.xlu0 %1524
  %1528 = vset.pattern.permute.xlu0 0
  %1529 = vperm.xlu0 %1528, %v1449
  %v1530 = vpop.permute.xlu0 %1529
  %1533 = vset.pattern.permute.xlu0 0
  %1534 = vperm.xlu0 %1533, %v1450
  %v1535 = vpop.permute.xlu0 %1534
  %1538 = vset.pattern.permute.xlu0 0
  %1539 = vperm.xlu0 %1538, %v1451
  %v1540 = vpop.permute.xlu0 %1539
  %1543 = vset.pattern.permute.xlu0 0
  %1544 = vperm.xlu0 %1543, %v1452
  %v1545 = vpop.permute.xlu0 %1544
  %1548 = vset.pattern.permute.xlu0 0
  %1549 = vperm.xlu0 %1548, %v1453
  %v1550 = vpop.permute.xlu0 %1549
  %1553 = vset.pattern.permute.xlu0 0
  %1554 = vperm.xlu0 %1553, %v1454
  %v1555 = vpop.permute.xlu0 %1554
  %1558 = vset.pattern.permute.xlu0 0
  %1559 = vperm.xlu0 %1558, %v1455
  %v1560 = vpop.permute.xlu0 %1559
  %1563 = vset.pattern.permute.xlu0 0
  %1564 = vperm.xlu0 %1563, %v1456
  %v1565 = vpop.permute.xlu0 %1564
  %1568 = vset.pattern.permute.xlu0 0
  %1569 = vperm.xlu0 %1568, %v1457
  %v1570 = vpop.permute.xlu0 %1569
  %1573 = vset.pattern.permute.xlu0 0
  %1574 = vperm.xlu0 %1573, %v1458
  %v1575 = vpop.permute.xlu0 %1574
  %1578 = vset.pattern.permute.xlu0 0
  %1579 = vperm.xlu0 %1578, %v1459
  %v1580 = vpop.permute.xlu0 %1579
  %v1582 = vmul.f32 %v1412, %v1465
  %v1583 = vmul.f32 %v1413, %v1470
  %v1584 = vmul.f32 %v1414, %v1475
  %v1585 = vmul.f32 %v1415, %v1480
  %v1586 = vmul.f32 %v1416, %v1485
  %v1587 = vmul.f32 %v1417, %v1490
  %v1588 = vmul.f32 %v1418, %v1495
  %v1589 = vmul.f32 %v1419, %v1500
  %v1590 = vmul.f32 %v1420, %v1505
  %v1591 = vmul.f32 %v1421, %v1510
  %v1592 = vmul.f32 %v1422, %v1515
  %v1593 = vmul.f32 %v1423, %v1520
  %v1594 = vmul.f32 %v1424, %v1525
  %v1595 = vmul.f32 %v1425, %v1530
  %v1596 = vmul.f32 %v1426, %v1535
  %v1597 = vmul.f32 %v1427, %v1540
  %v1598 = vmul.f32 %v1428, %v1545
  %v1599 = vmul.f32 %v1429, %v1550
  %v1600 = vmul.f32 %v1430, %v1555
  %v1601 = vmul.f32 %v1431, %v1560
  %v1602 = vmul.f32 %v1432, %v1565
  %v1603 = vmul.f32 %v1433, %v1570
  %v1604 = vmul.f32 %v1434, %v1575
  %v1605 = vmul.f32 %v1435, %v1580
  %v1606 = vsel %vm82, %v1582, 0.0
  %v1607 = vsel %vm82, %v1583, 0.0
  %v1608 = vadd.f32 %v1606, %v1607
  %v1609 = vsel %vm82, %v1584, 0.0
  %v1610 = vadd.f32 %v1608, %v1609
  %v1611 = vsel %vm82, %v1585, 0.0
  %v1612 = vadd.f32 %v1610, %v1611
  %v1613 = vsel %vm82, %v1586, 0.0
  %v1614 = vadd.f32 %v1612, %v1613
  %v1615 = vsel %vm82, %v1587, 0.0
  %v1616 = vadd.f32 %v1614, %v1615
  %v1617 = vsel %vm82, %v1588, 0.0
  %v1618 = vadd.f32 %v1616, %v1617
  %v1619 = vsel %vm82, %v1589, 0.0
  %v1620 = vadd.f32 %v1618, %v1619
  %v1621 = vsel %vm82, %v1590, 0.0
  %v1622 = vadd.f32 %v1620, %v1621
  %v1623 = vsel %vm82, %v1591, 0.0
  %v1624 = vadd.f32 %v1622, %v1623
  %v1625 = vsel %vm82, %v1592, 0.0
  %v1626 = vadd.f32 %v1624, %v1625
  %v1627 = vsel %vm82, %v1593, 0.0
  %v1628 = vadd.f32 %v1626, %v1627
  %v1629 = vsel %vm82, %v1594, 0.0
  %v1630 = vadd.f32 %v1628, %v1629
  %v1631 = vsel %vm82, %v1595, 0.0
  %v1632 = vadd.f32 %v1630, %v1631
  %v1633 = vsel %vm82, %v1596, 0.0
  %v1634 = vadd.f32 %v1632, %v1633
  %v1635 = vsel %vm82, %v1597, 0.0
  %v1636 = vadd.f32 %v1634, %v1635
  %v1637 = vsel %vm82, %v1598, 0.0
  %v1638 = vadd.f32 %v1636, %v1637
  %v1639 = vsel %vm82, %v1599, 0.0
  %v1640 = vadd.f32 %v1638, %v1639
  %v1641 = vsel %vm82, %v1600, 0.0
  %v1642 = vadd.f32 %v1640, %v1641
  %v1643 = vsel %vm82, %v1601, 0.0
  %v1644 = vadd.f32 %v1642, %v1643
  %v1645 = vsel %vm82, %v1602, 0.0
  %v1646 = vadd.f32 %v1644, %v1645
  %v1647 = vsel %vm82, %v1603, 0.0
  %v1648 = vadd.f32 %v1646, %v1647
  %v1649 = vsel %vm82, %v1604, 0.0
  %v1650 = vadd.f32 %v1648, %v1649
  %v1651 = vsel %vm82, %v1605, 0.0
  %v1652 = vadd.f32 %v1650, %v1651
  %v1653 = vrot.slane %v1652, 4
  %v1654 = vadd.f32 %v1652, %v1653
  %v1655 = vrot.slane %v1654, 2
  %v1656 = vadd.f32 %v1654, %v1655
  %v1657 = vrot.slane %v1656, 1
  %v1658 = vadd.f32 %v1656, %v1657
  %v1659 = vmul.f32 %v1658, 0.0078125
  %v1660 = vmul.f32 %v1582, %v1412
  %v1661 = vmul.f32 %v1583, %v1413
  %v1662 = vmul.f32 %v1584, %v1414
  %v1663 = vmul.f32 %v1585, %v1415
  %v1664 = vmul.f32 %v1586, %v1416
  %v1665 = vmul.f32 %v1587, %v1417
  %v1666 = vmul.f32 %v1588, %v1418
  %v1667 = vmul.f32 %v1589, %v1419
  %v1668 = vmul.f32 %v1590, %v1420
  %v1669 = vmul.f32 %v1591, %v1421
  %v1670 = vmul.f32 %v1592, %v1422
  %v1671 = vmul.f32 %v1593, %v1423
  %v1672 = vmul.f32 %v1594, %v1424
  %v1673 = vmul.f32 %v1595, %v1425
  %v1674 = vmul.f32 %v1596, %v1426
  %v1675 = vmul.f32 %v1597, %v1427
  %v1676 = vmul.f32 %v1598, %v1428
  %v1677 = vmul.f32 %v1599, %v1429
  %v1678 = vmul.f32 %v1600, %v1430
  %v1679 = vmul.f32 %v1601, %v1431
  %v1680 = vmul.f32 %v1602, %v1432
  %v1681 = vmul.f32 %v1603, %v1433
  %v1682 = vmul.f32 %v1604, %v1434
  %v1683 = vmul.f32 %v1605, %v1435
  %v1684 = vsel %vm82, %v1660, 0.0
  %v1685 = vsel %vm82, %v1661, 0.0
  %v1686 = vadd.f32 %v1684, %v1685
  %v1687 = vsel %vm82, %v1662, 0.0
  %v1688 = vadd.f32 %v1686, %v1687
  %v1689 = vsel %vm82, %v1663, 0.0
  %v1690 = vadd.f32 %v1688, %v1689
  %v1691 = vsel %vm82, %v1664, 0.0
  %v1692 = vadd.f32 %v1690, %v1691
  %v1693 = vsel %vm82, %v1665, 0.0
  %v1694 = vadd.f32 %v1692, %v1693
  %v1695 = vsel %vm82, %v1666, 0.0
  %v1696 = vadd.f32 %v1694, %v1695
  %v1697 = vsel %vm82, %v1667, 0.0
  %v1698 = vadd.f32 %v1696, %v1697
  %v1699 = vsel %vm82, %v1668, 0.0
  %v1700 = vadd.f32 %v1698, %v1699
  %v1701 = vsel %vm82, %v1669, 0.0
  %v1702 = vadd.f32 %v1700, %v1701
  %v1703 = vsel %vm82, %v1670, 0.0
  %v1704 = vadd.f32 %v1702, %v1703
  %v1705 = vsel %vm82, %v1671, 0.0
  %v1706 = vadd.f32 %v1704, %v1705
  %v1707 = vsel %vm82, %v1672, 0.0
  %v1708 = vadd.f32 %v1706, %v1707
  %v1709 = vsel %vm82, %v1673, 0.0
  %v1710 = vadd.f32 %v1708, %v1709
  %v1711 = vsel %vm82, %v1674, 0.0
  %v1712 = vadd.f32 %v1710, %v1711
  %v1713 = vsel %vm82, %v1675, 0.0
  %v1714 = vadd.f32 %v1712, %v1713
  %v1715 = vsel %vm82, %v1676, 0.0
  %v1716 = vadd.f32 %v1714, %v1715
  %v1717 = vsel %vm82, %v1677, 0.0
  %v1718 = vadd.f32 %v1716, %v1717
  %v1719 = vsel %vm82, %v1678, 0.0
  %v1720 = vadd.f32 %v1718, %v1719
  %v1721 = vsel %vm82, %v1679, 0.0
  %v1722 = vadd.f32 %v1720, %v1721
  %v1723 = vsel %vm82, %v1680, 0.0
  %v1724 = vadd.f32 %v1722, %v1723
  %v1725 = vsel %vm82, %v1681, 0.0
  %v1726 = vadd.f32 %v1724, %v1725
  %v1727 = vsel %vm82, %v1682, 0.0
  %v1728 = vadd.f32 %v1726, %v1727
  %v1729 = vsel %vm82, %v1683, 0.0
  %v1730 = vadd.f32 %v1728, %v1729
  %v1731 = vrot.slane %v1730, 4
  %v1732 = vadd.f32 %v1730, %v1731
  %v1733 = vrot.slane %v1732, 2
  %v1734 = vadd.f32 %v1732, %v1733
  %v1735 = vrot.slane %v1734, 1
  %v1736 = vadd.f32 %v1734, %v1735
  %v1737 = vmul.f32 %v1736, 0.0078125
  %v1738 = vmul.f32 %v1659, %v1659
  %v1739 = vsub.f32 %v1737, %v1738
  %v1740 = vsub.f32 %v1412, %v1659
  %v1741 = vsub.f32 %v1413, %v1659
  %v1742 = vsub.f32 %v1414, %v1659
  %v1743 = vsub.f32 %v1415, %v1659
  %v1744 = vsub.f32 %v1416, %v1659
  %v1745 = vsub.f32 %v1417, %v1659
  %v1746 = vsub.f32 %v1418, %v1659
  %v1747 = vsub.f32 %v1419, %v1659
  %v1748 = vsub.f32 %v1420, %v1659
  %v1749 = vsub.f32 %v1421, %v1659
  %v1750 = vsub.f32 %v1422, %v1659
  %v1751 = vsub.f32 %v1423, %v1659
  %v1752 = vsub.f32 %v1424, %v1659
  %v1753 = vsub.f32 %v1425, %v1659
  %v1754 = vsub.f32 %v1426, %v1659
  %v1755 = vsub.f32 %v1427, %v1659
  %v1756 = vsub.f32 %v1428, %v1659
  %v1757 = vsub.f32 %v1429, %v1659
  %v1758 = vsub.f32 %v1430, %v1659
  %v1759 = vsub.f32 %v1431, %v1659
  %v1760 = vsub.f32 %v1432, %v1659
  %v1761 = vsub.f32 %v1433, %v1659
  %v1762 = vsub.f32 %v1434, %v1659
  %v1763 = vsub.f32 %v1435, %v1659
  %v1764 = vadd.f32 %v1739, 1e-05
  %v1765 = vrsqrt.pop %v1764
  %v1766 = vmul.f32 %v1740, %v1765
  %v1767 = vmul.f32 %v1741, %v1765
  %v1768 = vmul.f32 %v1742, %v1765
  %v1769 = vmul.f32 %v1743, %v1765
  %v1770 = vmul.f32 %v1744, %v1765
  %v1771 = vmul.f32 %v1745, %v1765
  %v1772 = vmul.f32 %v1746, %v1765
  %v1773 = vmul.f32 %v1747, %v1765
  %v1774 = vmul.f32 %v1748, %v1765
  %v1775 = vmul.f32 %v1749, %v1765
  %v1776 = vmul.f32 %v1750, %v1765
  %v1777 = vmul.f32 %v1751, %v1765
  %v1778 = vmul.f32 %v1752, %v1765
  %v1779 = vmul.f32 %v1753, %v1765
  %v1780 = vmul.f32 %v1754, %v1765
  %v1781 = vmul.f32 %v1755, %v1765
  %v1782 = vmul.f32 %v1756, %v1765
  %v1783 = vmul.f32 %v1757, %v1765
  %v1784 = vmul.f32 %v1758, %v1765
  %v1785 = vmul.f32 %v1759, %v1765
  %v1786 = vmul.f32 %v1760, %v1765
  %v1787 = vmul.f32 %v1761, %v1765
  %v1788 = vmul.f32 %v1762, %v1765
  %v1789 = vmul.f32 %v1763, %v1765
  %v1791 = vlaneseq
  %v1792 = vshrl.u32 %v1791, 7
  %v1793 = vsub.s32 0, %v1792
  %v1794 = vrot.slane %v1460, %v1793
  %v1796 = vmul.f32 %v1766, %v1794
  %v1797 = vmul.f32 %v1767, %v1794
  %v1798 = vmul.f32 %v1768, %v1794
  %v1799 = vmul.f32 %v1769, %v1794
  %v1800 = vmul.f32 %v1770, %v1794
  %v1801 = vmul.f32 %v1771, %v1794
  %v1802 = vmul.f32 %v1772, %v1794
  %v1803 = vmul.f32 %v1773, %v1794
  %v1804 = vmul.f32 %v1774, %v1794
  %v1805 = vmul.f32 %v1775, %v1794
  %v1806 = vmul.f32 %v1776, %v1794
  %v1807 = vmul.f32 %v1777, %v1794
  %v1808 = vmul.f32 %v1778, %v1794
  %v1809 = vmul.f32 %v1779, %v1794
  %v1810 = vmul.f32 %v1780, %v1794
  %v1811 = vmul.f32 %v1781, %v1794
  %v1812 = vmul.f32 %v1782, %v1794
  %v1813 = vmul.f32 %v1783, %v1794
  %v1814 = vmul.f32 %v1784, %v1794
  %v1815 = vmul.f32 %v1785, %v1794
  %v1816 = vmul.f32 %v1786, %v1794
  %v1817 = vmul.f32 %v1787, %v1794
  %v1818 = vmul.f32 %v1788, %v1794
  %v1819 = vmul.f32 %v1789, %v1794
  %v1821 = vlaneseq
  %v1822 = vshrl.u32 %v1821, 7
  %v1823 = vsub.s32 0, %v1822
  %v1824 = vrot.slane %v1461, %v1823
  %v1826 = vadd.f32 %v1796, %v1824
  %v1827 = vadd.f32 %v1797, %v1824
  %v1828 = vadd.f32 %v1798, %v1824
  %v1829 = vadd.f32 %v1799, %v1824
  %v1830 = vadd.f32 %v1800, %v1824
  %v1831 = vadd.f32 %v1801, %v1824
  %v1832 = vadd.f32 %v1802, %v1824
  %v1833 = vadd.f32 %v1803, %v1824
  %v1834 = vadd.f32 %v1804, %v1824
  %v1835 = vadd.f32 %v1805, %v1824
  %v1836 = vadd.f32 %v1806, %v1824
  %v1837 = vadd.f32 %v1807, %v1824
  %v1838 = vadd.f32 %v1808, %v1824
  %v1839 = vadd.f32 %v1809, %v1824
  %v1840 = vadd.f32 %v1810, %v1824
  %v1841 = vadd.f32 %v1811, %v1824
  %v1842 = vadd.f32 %v1812, %v1824
  %v1843 = vadd.f32 %v1813, %v1824
  %v1844 = vadd.f32 %v1814, %v1824
  %v1845 = vadd.f32 %v1815, %v1824
  %v1846 = vadd.f32 %v1816, %v1824
  %v1847 = vadd.f32 %v1817, %v1824
  %v1848 = vadd.f32 %v1818, %v1824
  %v1849 = vadd.f32 %v1819, %v1824
  %v1850 = vmax.f32 %v1826, 0.0
  %v1851 = vmax.f32 %v1827, 0.0
  %v1852 = vmax.f32 %v1828, 0.0
  %v1853 = vmax.f32 %v1829, 0.0
  %v1854 = vmax.f32 %v1830, 0.0
  %v1855 = vmax.f32 %v1831, 0.0
  %v1856 = vmax.f32 %v1832, 0.0
  %v1857 = vmax.f32 %v1833, 0.0
  %v1858 = vmax.f32 %v1834, 0.0
  %v1859 = vmax.f32 %v1835, 0.0
  %v1860 = vmax.f32 %v1836, 0.0
  %v1861 = vmax.f32 %v1837, 0.0
  %v1862 = vmax.f32 %v1838, 0.0
  %v1863 = vmax.f32 %v1839, 0.0
  %v1864 = vmax.f32 %v1840, 0.0
  %v1865 = vmax.f32 %v1841, 0.0
  %v1866 = vmax.f32 %v1842, 0.0
  %v1867 = vmax.f32 %v1843, 0.0
  %v1868 = vmax.f32 %v1844, 0.0
  %v1869 = vmax.f32 %v1845, 0.0
  %v1870 = vmax.f32 %v1846, 0.0
  %v1871 = vmax.f32 %v1847, 0.0
  %v1872 = vmax.f32 %v1848, 0.0
  %v1873 = vmax.f32 %v1849, 0.0
  %1874 = vst.msk [vmem:[%s6] sm:$0xff] %vm82, %v1850
  %1875 = vst.msk [vmem:[%s6 + $0x8] sm:$0xff] %vm82, %v1851
  %1876 = vst.msk [vmem:[%s6 + $0x10] sm:$0xff] %vm82, %v1852
  %1877 = vst.msk [vmem:[%s6 + $0x18] sm:$0xff] %vm82, %v1853
  %1878 = vst.msk [vmem:[%s6 + $0x20] sm:$0xff] %vm82, %v1854
  %1879 = vst.msk [vmem:[%s6 + $0x28] sm:$0xff] %vm82, %v1855
  %1880 = vst.msk [vmem:[%s6 + $0x30] sm:$0xff] %vm82, %v1856
  %1881 = vst.msk [vmem:[%s6 + $0x38] sm:$0xff] %vm82, %v1857
  %1882 = vst.msk [vmem:[%s6 + $0x40] sm:$0xff] %vm82, %v1858
  %1883 = vst.msk [vmem:[%s6 + $0x48] sm:$0xff] %vm82, %v1859
  %1884 = vst.msk [vmem:[%s6 + $0x50] sm:$0xff] %vm82, %v1860
  %1885 = vst.msk [vmem:[%s6 + $0x58] sm:$0xff] %vm82, %v1861
  %1886 = vst.msk [vmem:[%s6 + $0x60] sm:$0xff] %vm82, %v1862
  %1887 = vst.msk [vmem:[%s6 + $0x68] sm:$0xff] %vm82, %v1863
  %1888 = vst.msk [vmem:[%s6 + $0x70] sm:$0xff] %vm82, %v1864
  %1889 = vst.msk [vmem:[%s6 + $0x78] sm:$0xff] %vm82, %v1865
  %1890 = vst.msk [vmem:[%s6 + $0x80] sm:$0xff] %vm82, %v1866
  %1891 = vst.msk [vmem:[%s6 + $0x88] sm:$0xff] %vm82, %v1867
  %1892 = vst.msk [vmem:[%s6 + $0x90] sm:$0xff] %vm82, %v1868
  %1893 = vst.msk [vmem:[%s6 + $0x98] sm:$0xff] %vm82, %v1869
  %1894 = vst.msk [vmem:[%s6 + $0xa0] sm:$0xff] %vm82, %v1870
  %1895 = vst.msk [vmem:[%s6 + $0xa8] sm:$0xff] %vm82, %v1871
  %1896 = vst.msk [vmem:[%s6 + $0xb0] sm:$0xff] %vm82, %v1872
  %1897 = vst.msk [vmem:[%s6 + $0xb8] sm:$0xff] %vm82, %v1873
  // Predicated region
  $region26: #{vqvae_forward.16} parent=0 // pred_check
    _
  $region27: #{vqvae_forward.16} parent=0 // pred_check_branch
    %1899 = sbr.rel (0) target = $region29
  $region28: #{vqvae_forward.16} parent=0 // pred_region
    _
  $region29: #{vqvae_forward.16} parent=0 // pred_fallthru
    _
  // Predicated region
  $region30: #{vqvae_forward.16} parent=0 // pred_check
    _
  $region31: #{vqvae_forward.16} parent=0 // pred_check_branch
    %1901 = sbr.rel (0) target = $region33
  $region32: #{vqvae_forward.16} parent=0 // pred_region
    _
  $region33: #{vqvae_forward.16} parent=0 // pred_fallthru
    _

// kernel: vqvae_forward.17
$region0: #{vqvae_forward.17}
  #allocation0 [shape = 'u32[]', space=smem, size = 0x4, offset = 0x4, fixed_abs, tag = 'smem constant byte address 0x4 - core index']
  #allocation1 [shape = 'u32[144,128]{1,0:T(1,128)}', space=vmem, size = 0x12000, scoped, tag = 'internal scratch']
  #allocation2 [shape = 'f32[1,1]{1,0:T(1,128)S(1)}', space=vmem, size = 0x200, scoped, tag = 'scoped memory for vqvae_forward.17']
  %s0 = inlined_call_operand.vmem [shape: f32[204,32], index: 0, kind: input, shape index: {}]
  %s1 = inlined_call_operand.vmem [shape: f32[16,32,1], index: 1, kind: input, shape index: {}]
  %s2 = inlined_call_operand.<no memory space> [shape: f32[1,1], index: 2, kind: input, shape index: {}]
  %s3 = inlined_call_operand.vmem [shape: f32[640,1], index: 3, kind: output, shape index: {}]
  %s4 = sld [smem:[#allocation0]]
  $region22: #{vqvae_forward.17} parent=0
    _
  %s6 = ssub.s32 1, %s4
  %s7 = scalar_select 0, %s6, %s4
  %v8 = vstv %s2
  %9 = vst [vmem:[#allocation2] sm:$0x1] %v8
  // Predicated region
  $region2: #{vqvae_forward.17} parent=0 // pred_check
    _
  $region3: #{vqvae_forward.17} parent=0 // pred_check_branch
    %11 = sbr.rel (0) target = $region5
  $region4: #{vqvae_forward.17} parent=0 // pred_region
    _
  $region5: #{vqvae_forward.17} parent=0 // pred_fallthru
    _
  // Predicated region
  $region6: #{vqvae_forward.17} parent=0 // pred_check
    _
  $region7: #{vqvae_forward.17} parent=0 // pred_check_branch
    %13 = sbr.rel (0) target = $region9
  $region8: #{vqvae_forward.17} parent=0 // pred_region
    _
  $region9: #{vqvae_forward.17} parent=0 // pred_fallthru
    _
  // Predicated region
  $region10: #{vqvae_forward.17} parent=0 // pred_check
    _
  $region11: #{vqvae_forward.17} parent=0 // pred_check_branch
    %15 = sbr.rel (0) target = $region13
  $region12: #{vqvae_forward.17} parent=0 // pred_region
    _
  $region13: #{vqvae_forward.17} parent=0 // pred_fallthru
    _
  %v16 = vld [vmem:[%s0] sm:$0xff]
  %v17 = vld [vmem:[%s0 + $0x8] sm:$0xff]
  %v18 = vld [vmem:[%s0 + $0x10] sm:$0xff]
  %v19 = vld [vmem:[%s0 + $0x18] sm:$0xff]
  %v20 = vld [vmem:[%s0 + $0x20] sm:$0xff]
  %v21 = vld [vmem:[%s0 + $0x28] sm:$0xff]
  %v22 = vld [vmem:[%s0 + $0x30] sm:$0xff]
  %v23 = vld [vmem:[%s0 + $0x38] sm:$0xff]
  %v24 = vld [vmem:[%s0 + $0x40] sm:$0xff]
  %v25 = vld [vmem:[%s0 + $0x48] sm:$0xff]
  %v26 = vld [vmem:[%s0 + $0x50] sm:$0xff]
  %v27 = vld [vmem:[%s0 + $0x58] sm:$0xff]
  %v28 = vld [vmem:[%s0 + $0x60] sm:$0xff]
  %v29 = vld [vmem:[%s0 + $0x68] sm:$0xff]
  %v30 = vld [vmem:[%s0 + $0x70] sm:$0xff]
  %v31 = vld [vmem:[%s0 + $0x78] sm:$0xff]
  %v32 = vld [vmem:[%s0 + $0x80] sm:$0xff]
  %v33 = vld [vmem:[%s0 + $0x88] sm:$0xff]
  %v34 = vld [vmem:[%s0 + $0x90] sm:$0xff]
  %v35 = vld [vmem:[%s0 + $0x98] sm:$0xff]
  %v36 = vld [vmem:[%s0 + $0xa0] sm:$0xff]
  %v37 = vld [vmem:[%s0 + $0xa8] sm:$0xff]
  %v38 = vld [vmem:[%s0 + $0xb0] sm:$0xff]
  %v39 = vld [vmem:[%s0 + $0xb8] sm:$0xff]
  %v40 = vld [vmem:[%s0 + $0xc0] sm:$0xff]
  %v41 = vld [vmem:[%s0 + $0xc8] sm:$0xf]
  %v42 = vld [vmem:[%s1] sm:$0xff]
  %v43 = vld [vmem:[%s1 + $0x8] sm:$0xff]
  %v44 = vld [vmem:[%s1 + $0x10] sm:$0xff]
  %v45 = vld [vmem:[%s1 + $0x18] sm:$0xff]
  %s46 = scalar_lea.vmem %s1, 32
  %v47 = vld [vmem:[%s46] sm:$0xff]
  %v48 = vld [vmem:[%s46 + $0x8] sm:$0xff]
  %v49 = vld [vmem:[%s46 + $0x10] sm:$0xff]
  %v50 = vld [vmem:[%s46 + $0x18] sm:$0xff]
  %vm72 = vcmask 1045504
  %v73 = vrot.slane %v16, 2
  %v74 = vrot.slane %v17, 2
  %v75 = vsel %vm72, %v73, %v74
  %v76 = vrot.slane %v18, 2
  %v77 = vsel %vm72, %v74, %v76
  %v78 = vrot.slane %v19, 2
  %v79 = vsel %vm72, %v76, %v78
  %v80 = vrot.slane %v20, 2
  %v81 = vsel %vm72, %v78, %v80
  %v82 = vrot.slane %v21, 2
  %v83 = vsel %vm72, %v80, %v82
  %v84 = vrot.slane %v22, 2
  %v85 = vsel %vm72, %v82, %v84
  %v86 = vrot.slane %v23, 2
  %v87 = vsel %vm72, %v84, %v86
  %v88 = vrot.slane %v24, 2
  %v89 = vsel %vm72, %v86, %v88
  %v90 = vrot.slane %v25, 2
  %v91 = vsel %vm72, %v88, %v90
  %v92 = vrot.slane %v26, 2
  %v93 = vsel %vm72, %v90, %v92
  %v94 = vrot.slane %v27, 2
  %v95 = vsel %vm72, %v92, %v94
  %v96 = vrot.slane %v28, 2
  %v97 = vsel %vm72, %v94, %v96
  %v98 = vrot.slane %v29, 2
  %v99 = vsel %vm72, %v96, %v98
  %v100 = vrot.slane %v30, 2
  %v101 = vsel %vm72, %v98, %v100
  %v102 = vrot.slane %v31, 2
  %v103 = vsel %vm72, %v100, %v102
  %v104 = vrot.slane %v32, 2
  %v105 = vsel %vm72, %v102, %v104
  %v106 = vrot.slane %v33, 2
  %v107 = vsel %vm72, %v104, %v106
  %v108 = vrot.slane %v34, 2
  %v109 = vsel %vm72, %v106, %v108
  %v110 = vrot.slane %v35, 2
  %v111 = vsel %vm72, %v108, %v110
  %v112 = vrot.slane %v36, 2
  %v113 = vsel %vm72, %v110, %v112
  %vm114 = vcmask 261120
  %v115 = vsel %vm114, %v75, 0
  %v117 = vsel %vm114, %v77, 0
  %v119 = vsel %vm114, %v79, 0
  %v121 = vsel %vm114, %v81, 0
  %v123 = vsel %vm114, %v83, 0
  %v125 = vsel %vm114, %v85, 0
  %v127 = vsel %vm114, %v87, 0
  %v129 = vsel %vm114, %v89, 0
  %v131 = vsel %vm114, %v91, 0
  %v133 = vsel %vm114, %v93, 0
  %v135 = vsel %vm114, %v95, 0
  %v137 = vsel %vm114, %v97, 0
  %v139 = vsel %vm114, %v99, 0
  %v141 = vsel %vm114, %v101, 0
  %v143 = vsel %vm114, %v103, 0
  %v145 = vsel %vm114, %v105, 0
  %v147 = vsel %vm114, %v107, 0
  %v149 = vsel %vm114, %v109, 0
  %v151 = vsel %vm114, %v111, 0
  %v153 = vsel %vm114, %v113, 0
  %155 = vmatprep.subr.mxu0 0.0
  %156 = vmatpush1.msra.mxu0 0.0
  %157 = vmatprep.subr.mxu0 0.0
  %158 = vmatpush1.msra.mxu0 0.0
  %159 = vmatprep.subr.mxu0 0.0
  %160 = vmatpush1.msra.mxu0 0.0
  %161 = vmatprep.subr.mxu0 0.0
  %162 = vmatpush1.msra.mxu0 0.0
  %163 = vmatprep.subr.mxu0 0.0
  %164 = vmatpush1.msra.mxu0 0.0
  %165 = vmatprep.subr.mxu0 0.0
  %166 = vmatpush1.msra.mxu0 0.0
  %167 = vmatprep.subr.mxu0 0.0
  %168 = vmatpush1.msra.mxu0 0.0
  %169 = vmatprep.subr.mxu0 0.0
  %170 = vmatpush1.msra.mxu0 0.0
  %171 = vmatprep.subr.mxu0 0.0
  %172 = vmatpush1.msra.mxu0 0.0
  %173 = vmatprep.subr.mxu0 0.0
  %174 = vmatpush1.msra.mxu0 0.0
  %175 = vmatprep.subr.mxu0 0.0
  %176 = vmatpush1.msra.mxu0 0.0
  %177 = vmatprep.subr.mxu0 0.0
  %178 = vmatpush1.msra.mxu0 0.0
  %179 = vmatprep.subr.mxu0 0.0
  %180 = vmatpush1.msra.mxu0 %v50
  %181 = vmatprep.subr.mxu0 0.0
  %182 = vmatpush1.msra.mxu0 %v49
  %183 = vmatprep.subr.mxu0 0.0
  %184 = vmatpush1.msra.mxu0 %v48
  %185 = vmatprep.subr.mxu0 0.0
  %186 = vmatpush1.msra.mxu0 %v47
  %187 = vmatprep.subr.mxu0 0.0
  %188 = vmatpush2.msra.mxu0 0.0
  %189 = vmatprep.subr.mxu0 0.0
  %190 = vmatpush2.msra.mxu0 0.0
  %191 = vmatprep.subr.mxu0 0.0
  %192 = vmatpush2.msra.mxu0 0.0
  %193 = vmatprep.subr.mxu0 0.0
  %194 = vmatpush2.msra.mxu0 0.0
  %195 = vmatprep.subr.mxu0 0.0
  %196 = vmatpush2.msra.mxu0 0.0
  %197 = vmatprep.subr.mxu0 0.0
  %198 = vmatpush2.msra.mxu0 0.0
  %199 = vmatprep.subr.mxu0 0.0
  %200 = vmatpush2.msra.mxu0 0.0
  %201 = vmatprep.subr.mxu0 0.0
  %202 = vmatpush2.msra.mxu0 0.0
  %203 = vmatprep.subr.mxu0 0.0
  %204 = vmatpush2.msra.mxu0 0.0
  %205 = vmatprep.subr.mxu0 0.0
  %206 = vmatpush2.msra.mxu0 0.0
  %207 = vmatprep.subr.mxu0 0.0
  %208 = vmatpush2.msra.mxu0 0.0
  %209 = vmatprep.subr.mxu0 0.0
  %210 = vmatpush2.msra.mxu0 0.0
  %211 = vmatprep.subr.mxu0 0.0
  %212 = vmatpush2.msra.mxu0 0.0
  %213 = vmatprep.subr.mxu0 0.0
  %214 = vmatpush2.msra.mxu0 0.0
  %215 = vmatprep.subr.mxu0 0.0
  %216 = vmatpush2.msra.mxu0 0.0
  %217 = vmatprep.subr.mxu0 0.0
  %218 = vmatpush2.msra.mxu0 0.0
  %219 = vmatprep.mubr.f32.mxu0 0.0
  %220 = vmatmul.mubr.f32.gmra.mxu0 %v115
  %v221 = vpop.f32.mrf.mxu0
  %v222 = vadd.f32 0.0, %v221
  %v223 = vpop.f32.mrf.mxu0
  %224 = vmatprep.mubr.f32.mxu0 0.0
  %225 = vmatmul.mubr.f32.gmra.mxu0 %v117
  %v226 = vpop.f32.mrf.mxu0
  %v227 = vadd.f32 0.0, %v226
  %v228 = vpop.f32.mrf.mxu0
  %229 = vmatprep.mubr.f32.mxu0 0.0
  %230 = vmatmul.mubr.f32.gmra.mxu0 %v119
  %v231 = vpop.f32.mrf.mxu0
  %v232 = vadd.f32 0.0, %v231
  %v233 = vpop.f32.mrf.mxu0
  %234 = vmatprep.mubr.f32.mxu0 0.0
  %235 = vmatmul.mubr.f32.gmra.mxu0 %v121
  %v236 = vpop.f32.mrf.mxu0
  %v237 = vadd.f32 0.0, %v236
  %v238 = vpop.f32.mrf.mxu0
  %239 = vmatprep.mubr.f32.mxu0 0.0
  %240 = vmatmul.mubr.f32.gmra.mxu0 %v123
  %v241 = vpop.f32.mrf.mxu0
  %v242 = vadd.f32 0.0, %v241
  %v243 = vpop.f32.mrf.mxu0
  %244 = vmatprep.mubr.f32.mxu0 0.0
  %245 = vmatmul.mubr.f32.gmra.mxu0 %v125
  %v246 = vpop.f32.mrf.mxu0
  %v247 = vadd.f32 0.0, %v246
  %v248 = vpop.f32.mrf.mxu0
  %249 = vmatprep.mubr.f32.mxu0 0.0
  %250 = vmatmul.mubr.f32.gmra.mxu0 %v127
  %v251 = vpop.f32.mrf.mxu0
  %v252 = vadd.f32 0.0, %v251
  %v253 = vpop.f32.mrf.mxu0
  %254 = vmatprep.mubr.f32.mxu0 0.0
  %255 = vmatmul.mubr.f32.gmra.mxu0 %v129
  %v256 = vpop.f32.mrf.mxu0
  %v257 = vadd.f32 0.0, %v256
  %v258 = vpop.f32.mrf.mxu0
  %259 = vmatprep.mubr.f32.mxu0 0.0
  %260 = vmatmul.mubr.f32.gmra.mxu0 %v131
  %v261 = vpop.f32.mrf.mxu0
  %v262 = vadd.f32 0.0, %v261
  %v263 = vpop.f32.mrf.mxu0
  %264 = vmatprep.mubr.f32.mxu0 0.0
  %265 = vmatmul.mubr.f32.gmra.mxu0 %v133
  %v266 = vpop.f32.mrf.mxu0
  %v267 = vadd.f32 0.0, %v266
  %v268 = vpop.f32.mrf.mxu0
  %269 = vmatprep.mubr.f32.mxu0 0.0
  %270 = vmatmul.mubr.f32.gmra.mxu0 %v135
  %v271 = vpop.f32.mrf.mxu0
  %v272 = vadd.f32 0.0, %v271
  %v273 = vpop.f32.mrf.mxu0
  %274 = vmatprep.mubr.f32.mxu0 0.0
  %275 = vmatmul.mubr.f32.gmra.mxu0 %v137
  %v276 = vpop.f32.mrf.mxu0
  %v277 = vadd.f32 0.0, %v276
  %v278 = vpop.f32.mrf.mxu0
  %279 = vmatprep.mubr.f32.mxu0 0.0
  %280 = vmatmul.mubr.f32.gmra.mxu0 %v139
  %v281 = vpop.f32.mrf.mxu0
  %v282 = vadd.f32 0.0, %v281
  %v283 = vpop.f32.mrf.mxu0
  %284 = vmatprep.mubr.f32.mxu0 0.0
  %285 = vmatmul.mubr.f32.gmra.mxu0 %v141
  %v286 = vpop.f32.mrf.mxu0
  %v287 = vadd.f32 0.0, %v286
  %v288 = vpop.f32.mrf.mxu0
  %289 = vmatprep.mubr.f32.mxu0 0.0
  %290 = vmatmul.mubr.f32.gmra.mxu0 %v143
  %v291 = vpop.f32.mrf.mxu0
  %v292 = vadd.f32 0.0, %v291
  %v293 = vpop.f32.mrf.mxu0
  %294 = vmatprep.mubr.f32.mxu0 0.0
  %295 = vmatmul.mubr.f32.gmra.mxu0 %v145
  %v296 = vpop.f32.mrf.mxu0
  %v297 = vadd.f32 0.0, %v296
  %v298 = vpop.f32.mrf.mxu0
  %299 = vmatprep.mubr.f32.mxu0 0.0
  %300 = vmatmul.mubr.f32.gmra.mxu0 %v147
  %v301 = vpop.f32.mrf.mxu0
  %v302 = vadd.f32 0.0, %v301
  %v303 = vpop.f32.mrf.mxu0
  %304 = vmatprep.mubr.f32.mxu0 0.0
  %305 = vmatmul.mubr.f32.gmra.mxu0 %v149
  %v306 = vpop.f32.mrf.mxu0
  %v307 = vadd.f32 0.0, %v306
  %v308 = vpop.f32.mrf.mxu0
  %309 = vmatprep.mubr.f32.mxu0 0.0
  %310 = vmatmul.mubr.f32.gmra.mxu0 %v151
  %v311 = vpop.f32.mrf.mxu0
  %v312 = vadd.f32 0.0, %v311
  %v313 = vpop.f32.mrf.mxu0
  %314 = vmatprep.mubr.f32.mxu0 0.0
  %315 = vmatmul.mubr.f32.gmra.mxu0 %v153
  %v316 = vpop.f32.mrf.mxu0
  %v317 = vadd.f32 0.0, %v316
  %v318 = vpop.f32.mrf.mxu0
  %319 = vdwg.mxu0
  %v320 = vsel %vm114, %v16, 0
  %v322 = vsel %vm114, %v17, 0
  %v324 = vsel %vm114, %v18, 0
  %v326 = vsel %vm114, %v19, 0
  %v328 = vsel %vm114, %v20, 0
  %v330 = vsel %vm114, %v21, 0
  %v332 = vsel %vm114, %v22, 0
  %v334 = vsel %vm114, %v23, 0
  %v336 = vsel %vm114, %v24, 0
  %v338 = vsel %vm114, %v25, 0
  %v340 = vsel %vm114, %v26, 0
  %v342 = vsel %vm114, %v27, 0
  %v344 = vsel %vm114, %v28, 0
  %v346 = vsel %vm114, %v29, 0
  %v348 = vsel %vm114, %v30, 0
  %v350 = vsel %vm114, %v31, 0
  %v352 = vsel %vm114, %v32, 0
  %v354 = vsel %vm114, %v33, 0
  %v356 = vsel %vm114, %v34, 0
  %v358 = vsel %vm114, %v35, 0
  %360 = vmatprep.subr.mxu0 0.0
  %361 = vmatpush1.msra.mxu0 0.0
  %362 = vmatprep.subr.mxu0 0.0
  %363 = vmatpush1.msra.mxu0 0.0
  %364 = vmatprep.subr.mxu0 0.0
  %365 = vmatpush1.msra.mxu0 0.0
  %366 = vmatprep.subr.mxu0 0.0
  %367 = vmatpush1.msra.mxu0 0.0
  %368 = vmatprep.subr.mxu0 0.0
  %369 = vmatpush1.msra.mxu0 0.0
  %370 = vmatprep.subr.mxu0 0.0
  %371 = vmatpush1.msra.mxu0 0.0
  %372 = vmatprep.subr.mxu0 0.0
  %373 = vmatpush1.msra.mxu0 0.0
  %374 = vmatprep.subr.mxu0 0.0
  %375 = vmatpush1.msra.mxu0 0.0
  %376 = vmatprep.subr.mxu0 0.0
  %377 = vmatpush1.msra.mxu0 0.0
  %378 = vmatprep.subr.mxu0 0.0
  %379 = vmatpush1.msra.mxu0 0.0
  %380 = vmatprep.subr.mxu0 0.0
  %381 = vmatpush1.msra.mxu0 0.0
  %382 = vmatprep.subr.mxu0 0.0
  %383 = vmatpush1.msra.mxu0 0.0
  %384 = vmatprep.subr.mxu0 0.0
  %385 = vmatpush1.msra.mxu0 %v45
  %386 = vmatprep.subr.mxu0 0.0
  %387 = vmatpush1.msra.mxu0 %v44
  %388 = vmatprep.subr.mxu0 0.0
  %389 = vmatpush1.msra.mxu0 %v43
  %390 = vmatprep.subr.mxu0 0.0
  %391 = vmatpush1.msra.mxu0 %v42
  %392 = vmatprep.subr.mxu0 0.0
  %393 = vmatpush2.msra.mxu0 0.0
  %394 = vmatprep.subr.mxu0 0.0
  %395 = vmatpush2.msra.mxu0 0.0
  %396 = vmatprep.subr.mxu0 0.0
  %397 = vmatpush2.msra.mxu0 0.0
  %398 = vmatprep.subr.mxu0 0.0
  %399 = vmatpush2.msra.mxu0 0.0
  %400 = vmatprep.subr.mxu0 0.0
  %401 = vmatpush2.msra.mxu0 0.0
  %402 = vmatprep.subr.mxu0 0.0
  %403 = vmatpush2.msra.mxu0 0.0
  %404 = vmatprep.subr.mxu0 0.0
  %405 = vmatpush2.msra.mxu0 0.0
  %406 = vmatprep.subr.mxu0 0.0
  %407 = vmatpush2.msra.mxu0 0.0
  %408 = vmatprep.subr.mxu0 0.0
  %409 = vmatpush2.msra.mxu0 0.0
  %410 = vmatprep.subr.mxu0 0.0
  %411 = vmatpush2.msra.mxu0 0.0
  %412 = vmatprep.subr.mxu0 0.0
  %413 = vmatpush2.msra.mxu0 0.0
  %414 = vmatprep.subr.mxu0 0.0
  %415 = vmatpush2.msra.mxu0 0.0
  %416 = vmatprep.subr.mxu0 0.0
  %417 = vmatpush2.msra.mxu0 0.0
  %418 = vmatprep.subr.mxu0 0.0
  %419 = vmatpush2.msra.mxu0 0.0
  %420 = vmatprep.subr.mxu0 0.0
  %421 = vmatpush2.msra.mxu0 0.0
  %422 = vmatprep.subr.mxu0 0.0
  %423 = vmatpush2.msra.mxu0 0.0
  %424 = vmatprep.mubr.f32.mxu0 0.0
  %425 = vmatmul.mubr.f32.gmra.mxu0 %v320
  %v426 = vpop.f32.mrf.mxu0
  %v427 = vadd.f32 %v222, %v426
  %v428 = vpop.f32.mrf.mxu0
  %429 = vmatprep.mubr.f32.mxu0 0.0
  %430 = vmatmul.mubr.f32.gmra.mxu0 %v322
  %v431 = vpop.f32.mrf.mxu0
  %v432 = vadd.f32 %v227, %v431
  %v433 = vpop.f32.mrf.mxu0
  %434 = vmatprep.mubr.f32.mxu0 0.0
  %435 = vmatmul.mubr.f32.gmra.mxu0 %v324
  %v436 = vpop.f32.mrf.mxu0
  %v437 = vadd.f32 %v232, %v436
  %v438 = vpop.f32.mrf.mxu0
  %439 = vmatprep.mubr.f32.mxu0 0.0
  %440 = vmatmul.mubr.f32.gmra.mxu0 %v326
  %v441 = vpop.f32.mrf.mxu0
  %v442 = vadd.f32 %v237, %v441
  %v443 = vpop.f32.mrf.mxu0
  %444 = vmatprep.mubr.f32.mxu0 0.0
  %445 = vmatmul.mubr.f32.gmra.mxu0 %v328
  %v446 = vpop.f32.mrf.mxu0
  %v447 = vadd.f32 %v242, %v446
  %v448 = vpop.f32.mrf.mxu0
  %449 = vmatprep.mubr.f32.mxu0 0.0
  %450 = vmatmul.mubr.f32.gmra.mxu0 %v330
  %v451 = vpop.f32.mrf.mxu0
  %v452 = vadd.f32 %v247, %v451
  %v453 = vpop.f32.mrf.mxu0
  %454 = vmatprep.mubr.f32.mxu0 0.0
  %455 = vmatmul.mubr.f32.gmra.mxu0 %v332
  %v456 = vpop.f32.mrf.mxu0
  %v457 = vadd.f32 %v252, %v456
  %v458 = vpop.f32.mrf.mxu0
  %459 = vmatprep.mubr.f32.mxu0 0.0
  %460 = vmatmul.mubr.f32.gmra.mxu0 %v334
  %v461 = vpop.f32.mrf.mxu0
  %v462 = vadd.f32 %v257, %v461
  %v463 = vpop.f32.mrf.mxu0
  %464 = vmatprep.mubr.f32.mxu0 0.0
  %465 = vmatmul.mubr.f32.gmra.mxu0 %v336
  %v466 = vpop.f32.mrf.mxu0
  %v467 = vadd.f32 %v262, %v466
  %v468 = vpop.f32.mrf.mxu0
  %469 = vmatprep.mubr.f32.mxu0 0.0
  %470 = vmatmul.mubr.f32.gmra.mxu0 %v338
  %v471 = vpop.f32.mrf.mxu0
  %v472 = vadd.f32 %v267, %v471
  %v473 = vpop.f32.mrf.mxu0
  %474 = vmatprep.mubr.f32.mxu0 0.0
  %475 = vmatmul.mubr.f32.gmra.mxu0 %v340
  %v476 = vpop.f32.mrf.mxu0
  %v477 = vadd.f32 %v272, %v476
  %v478 = vpop.f32.mrf.mxu0
  %479 = vmatprep.mubr.f32.mxu0 0.0
  %480 = vmatmul.mubr.f32.gmra.mxu0 %v342
  %v481 = vpop.f32.mrf.mxu0
  %v482 = vadd.f32 %v277, %v481
  %v483 = vpop.f32.mrf.mxu0
  %484 = vmatprep.mubr.f32.mxu0 0.0
  %485 = vmatmul.mubr.f32.gmra.mxu0 %v344
  %v486 = vpop.f32.mrf.mxu0
  %v487 = vadd.f32 %v282, %v486
  %v488 = vpop.f32.mrf.mxu0
  %489 = vmatprep.mubr.f32.mxu0 0.0
  %490 = vmatmul.mubr.f32.gmra.mxu0 %v346
  %v491 = vpop.f32.mrf.mxu0
  %v492 = vadd.f32 %v287, %v491
  %v493 = vpop.f32.mrf.mxu0
  %494 = vmatprep.mubr.f32.mxu0 0.0
  %495 = vmatmul.mubr.f32.gmra.mxu0 %v348
  %v496 = vpop.f32.mrf.mxu0
  %v497 = vadd.f32 %v292, %v496
  %v498 = vpop.f32.mrf.mxu0
  %499 = vmatprep.mubr.f32.mxu0 0.0
  %500 = vmatmul.mubr.f32.gmra.mxu0 %v350
  %v501 = vpop.f32.mrf.mxu0
  %v502 = vadd.f32 %v297, %v501
  %v503 = vpop.f32.mrf.mxu0
  %504 = vmatprep.mubr.f32.mxu0 0.0
  %505 = vmatmul.mubr.f32.gmra.mxu0 %v352
  %v506 = vpop.f32.mrf.mxu0
  %v507 = vadd.f32 %v302, %v506
  %v508 = vpop.f32.mrf.mxu0
  %509 = vmatprep.mubr.f32.mxu0 0.0
  %510 = vmatmul.mubr.f32.gmra.mxu0 %v354
  %v511 = vpop.f32.mrf.mxu0
  %v512 = vadd.f32 %v307, %v511
  %v513 = vpop.f32.mrf.mxu0
  %514 = vmatprep.mubr.f32.mxu0 0.0
  %515 = vmatmul.mubr.f32.gmra.mxu0 %v356
  %v516 = vpop.f32.mrf.mxu0
  %v517 = vadd.f32 %v312, %v516
  %v518 = vpop.f32.mrf.mxu0
  %519 = vmatprep.mubr.f32.mxu0 0.0
  %520 = vmatmul.mubr.f32.gmra.mxu0 %v358
  %v521 = vpop.f32.mrf.mxu0
  %v522 = vadd.f32 %v317, %v521
  %v523 = vpop.f32.mrf.mxu0
  %524 = vdwg.mxu0
  %s525 = scalar_lea.vmem %s1, 64
  %v526 = vld [vmem:[%s525] sm:$0xff]
  %v527 = vld [vmem:[%s525 + $0x8] sm:$0xff]
  %v528 = vld [vmem:[%s525 + $0x10] sm:$0xff]
  %v529 = vld [vmem:[%s525 + $0x18] sm:$0xff]
  %vm532 = vcmask 1043456
  %v533 = vrot.slane %v18, 4
  %v534 = vrot.slane %v19, 4
  %v535 = vsel %vm532, %v533, %v534
  %v536 = vrot.slane %v20, 4
  %v537 = vsel %vm532, %v534, %v536
  %v538 = vrot.slane %v21, 4
  %v539 = vsel %vm532, %v536, %v538
  %v540 = vrot.slane %v22, 4
  %v541 = vsel %vm532, %v538, %v540
  %v542 = vrot.slane %v23, 4
  %v543 = vsel %vm532, %v540, %v542
  %v544 = vrot.slane %v24, 4
  %v545 = vsel %vm532, %v542, %v544
  %v546 = vrot.slane %v25, 4
  %v547 = vsel %vm532, %v544, %v546
  %v548 = vrot.slane %v26, 4
  %v549 = vsel %vm532, %v546, %v548
  %v550 = vrot.slane %v27, 4
  %v551 = vsel %vm532, %v548, %v550
  %v552 = vrot.slane %v28, 4
  %v553 = vsel %vm532, %v550, %v552
  %v554 = vrot.slane %v29, 4
  %v555 = vsel %vm532, %v552, %v554
  %v556 = vrot.slane %v30, 4
  %v557 = vsel %vm532, %v554, %v556
  %v558 = vrot.slane %v31, 4
  %v559 = vsel %vm532, %v556, %v558
  %v560 = vrot.slane %v32, 4
  %v561 = vsel %vm532, %v558, %v560
  %v562 = vrot.slane %v33, 4
  %v563 = vsel %vm532, %v560, %v562
  %v564 = vrot.slane %v34, 4
  %v565 = vsel %vm532, %v562, %v564
  %v566 = vrot.slane %v35, 4
  %v567 = vsel %vm532, %v564, %v566
  %v568 = vrot.slane %v36, 4
  %v569 = vsel %vm532, %v566, %v568
  %v570 = vrot.slane %v37, 4
  %v571 = vsel %vm532, %v568, %v570
  %v572 = vrot.slane %v38, 4
  %v573 = vsel %vm532, %v570, %v572
  %v574 = vsel %vm114, %v535, 0
  %v576 = vsel %vm114, %v537, 0
  %v578 = vsel %vm114, %v539, 0
  %v580 = vsel %vm114, %v541, 0
  %v582 = vsel %vm114, %v543, 0
  %v584 = vsel %vm114, %v545, 0
  %v586 = vsel %vm114, %v547, 0
  %v588 = vsel %vm114, %v549, 0
  %v590 = vsel %vm114, %v551, 0
  %v592 = vsel %vm114, %v553, 0
  %v594 = vsel %vm114, %v555, 0
  %v596 = vsel %vm114, %v557, 0
  %v598 = vsel %vm114, %v559, 0
  %v600 = vsel %vm114, %v561, 0
  %v602 = vsel %vm114, %v563, 0
  %v604 = vsel %vm114, %v565, 0
  %v606 = vsel %vm114, %v567, 0
  %v608 = vsel %vm114, %v569, 0
  %v610 = vsel %vm114, %v571, 0
  %v612 = vsel %vm114, %v573, 0
  %614 = vmatprep.subr.mxu0 0.0
  %615 = vmatpush1.msra.mxu0 0.0
  %616 = vmatprep.subr.mxu0 0.0
  %617 = vmatpush1.msra.mxu0 0.0
  %618 = vmatprep.subr.mxu0 0.0
  %619 = vmatpush1.msra.mxu0 0.0
  %620 = vmatprep.subr.mxu0 0.0
  %621 = vmatpush1.msra.mxu0 0.0
  %622 = vmatprep.subr.mxu0 0.0
  %623 = vmatpush1.msra.mxu0 0.0
  %624 = vmatprep.subr.mxu0 0.0
  %625 = vmatpush1.msra.mxu0 0.0
  %626 = vmatprep.subr.mxu0 0.0
  %627 = vmatpush1.msra.mxu0 0.0
  %628 = vmatprep.subr.mxu0 0.0
  %629 = vmatpush1.msra.mxu0 0.0
  %630 = vmatprep.subr.mxu0 0.0
  %631 = vmatpush1.msra.mxu0 0.0
  %632 = vmatprep.subr.mxu0 0.0
  %633 = vmatpush1.msra.mxu0 0.0
  %634 = vmatprep.subr.mxu0 0.0
  %635 = vmatpush1.msra.mxu0 0.0
  %636 = vmatprep.subr.mxu0 0.0
  %637 = vmatpush1.msra.mxu0 0.0
  %638 = vmatprep.subr.mxu0 0.0
  %639 = vmatpush1.msra.mxu0 %v529
  %640 = vmatprep.subr.mxu0 0.0
  %641 = vmatpush1.msra.mxu0 %v528
  %642 = vmatprep.subr.mxu0 0.0
  %643 = vmatpush1.msra.mxu0 %v527
  %644 = vmatprep.subr.mxu0 0.0
  %645 = vmatpush1.msra.mxu0 %v526
  %646 = vmatprep.subr.mxu0 0.0
  %647 = vmatpush2.msra.mxu0 0.0
  %648 = vmatprep.subr.mxu0 0.0
  %649 = vmatpush2.msra.mxu0 0.0
  %650 = vmatprep.subr.mxu0 0.0
  %651 = vmatpush2.msra.mxu0 0.0
  %652 = vmatprep.subr.mxu0 0.0
  %653 = vmatpush2.msra.mxu0 0.0
  %654 = vmatprep.subr.mxu0 0.0
  %655 = vmatpush2.msra.mxu0 0.0
  %656 = vmatprep.subr.mxu0 0.0
  %657 = vmatpush2.msra.mxu0 0.0
  %658 = vmatprep.subr.mxu0 0.0
  %659 = vmatpush2.msra.mxu0 0.0
  %660 = vmatprep.subr.mxu0 0.0
  %661 = vmatpush2.msra.mxu0 0.0
  %662 = vmatprep.subr.mxu0 0.0
  %663 = vmatpush2.msra.mxu0 0.0
  %664 = vmatprep.subr.mxu0 0.0
  %665 = vmatpush2.msra.mxu0 0.0
  %666 = vmatprep.subr.mxu0 0.0
  %667 = vmatpush2.msra.mxu0 0.0
  %668 = vmatprep.subr.mxu0 0.0
  %669 = vmatpush2.msra.mxu0 0.0
  %670 = vmatprep.subr.mxu0 0.0
  %671 = vmatpush2.msra.mxu0 0.0
  %672 = vmatprep.subr.mxu0 0.0
  %673 = vmatpush2.msra.mxu0 0.0
  %674 = vmatprep.subr.mxu0 0.0
  %675 = vmatpush2.msra.mxu0 0.0
  %676 = vmatprep.subr.mxu0 0.0
  %677 = vmatpush2.msra.mxu0 0.0
  %678 = vmatprep.mubr.f32.mxu0 0.0
  %679 = vmatmul.mubr.f32.gmra.mxu0 %v574
  %v680 = vpop.f32.mrf.mxu0
  %v681 = vadd.f32 0.0, %v680
  %v682 = vpop.f32.mrf.mxu0
  %683 = vmatprep.mubr.f32.mxu0 0.0
  %684 = vmatmul.mubr.f32.gmra.mxu0 %v576
  %v685 = vpop.f32.mrf.mxu0
  %v686 = vadd.f32 0.0, %v685
  %v687 = vpop.f32.mrf.mxu0
  %688 = vmatprep.mubr.f32.mxu0 0.0
  %689 = vmatmul.mubr.f32.gmra.mxu0 %v578
  %v690 = vpop.f32.mrf.mxu0
  %v691 = vadd.f32 0.0, %v690
  %v692 = vpop.f32.mrf.mxu0
  %693 = vmatprep.mubr.f32.mxu0 0.0
  %694 = vmatmul.mubr.f32.gmra.mxu0 %v580
  %v695 = vpop.f32.mrf.mxu0
  %v696 = vadd.f32 0.0, %v695
  %v697 = vpop.f32.mrf.mxu0
  %698 = vmatprep.mubr.f32.mxu0 0.0
  %699 = vmatmul.mubr.f32.gmra.mxu0 %v582
  %v700 = vpop.f32.mrf.mxu0
  %v701 = vadd.f32 0.0, %v700
  %v702 = vpop.f32.mrf.mxu0
  %703 = vmatprep.mubr.f32.mxu0 0.0
  %704 = vmatmul.mubr.f32.gmra.mxu0 %v584
  %v705 = vpop.f32.mrf.mxu0
  %v706 = vadd.f32 0.0, %v705
  %v707 = vpop.f32.mrf.mxu0
  %708 = vmatprep.mubr.f32.mxu0 0.0
  %709 = vmatmul.mubr.f32.gmra.mxu0 %v586
  %v710 = vpop.f32.mrf.mxu0
  %v711 = vadd.f32 0.0, %v710
  %v712 = vpop.f32.mrf.mxu0
  %713 = vmatprep.mubr.f32.mxu0 0.0
  %714 = vmatmul.mubr.f32.gmra.mxu0 %v588
  %v715 = vpop.f32.mrf.mxu0
  %v716 = vadd.f32 0.0, %v715
  %v717 = vpop.f32.mrf.mxu0
  %718 = vmatprep.mubr.f32.mxu0 0.0
  %719 = vmatmul.mubr.f32.gmra.mxu0 %v590
  %v720 = vpop.f32.mrf.mxu0
  %v721 = vadd.f32 0.0, %v720
  %v722 = vpop.f32.mrf.mxu0
  %723 = vmatprep.mubr.f32.mxu0 0.0
  %724 = vmatmul.mubr.f32.gmra.mxu0 %v592
  %v725 = vpop.f32.mrf.mxu0
  %v726 = vadd.f32 0.0, %v725
  %v727 = vpop.f32.mrf.mxu0
  %728 = vmatprep.mubr.f32.mxu0 0.0
  %729 = vmatmul.mubr.f32.gmra.mxu0 %v594
  %v730 = vpop.f32.mrf.mxu0
  %v731 = vadd.f32 0.0, %v730
  %v732 = vpop.f32.mrf.mxu0
  %733 = vmatprep.mubr.f32.mxu0 0.0
  %734 = vmatmul.mubr.f32.gmra.mxu0 %v596
  %v735 = vpop.f32.mrf.mxu0
  %v736 = vadd.f32 0.0, %v735
  %v737 = vpop.f32.mrf.mxu0
  %738 = vmatprep.mubr.f32.mxu0 0.0
  %739 = vmatmul.mubr.f32.gmra.mxu0 %v598
  %v740 = vpop.f32.mrf.mxu0
  %v741 = vadd.f32 0.0, %v740
  %v742 = vpop.f32.mrf.mxu0
  %743 = vmatprep.mubr.f32.mxu0 0.0
  %744 = vmatmul.mubr.f32.gmra.mxu0 %v600
  %v745 = vpop.f32.mrf.mxu0
  %v746 = vadd.f32 0.0, %v745
  %v747 = vpop.f32.mrf.mxu0
  %748 = vmatprep.mubr.f32.mxu0 0.0
  %749 = vmatmul.mubr.f32.gmra.mxu0 %v602
  %v750 = vpop.f32.mrf.mxu0
  %v751 = vadd.f32 0.0, %v750
  %v752 = vpop.f32.mrf.mxu0
  %753 = vmatprep.mubr.f32.mxu0 0.0
  %754 = vmatmul.mubr.f32.gmra.mxu0 %v604
  %v755 = vpop.f32.mrf.mxu0
  %v756 = vadd.f32 0.0, %v755
  %v757 = vpop.f32.mrf.mxu0
  %758 = vmatprep.mubr.f32.mxu0 0.0
  %759 = vmatmul.mubr.f32.gmra.mxu0 %v606
  %v760 = vpop.f32.mrf.mxu0
  %v761 = vadd.f32 0.0, %v760
  %v762 = vpop.f32.mrf.mxu0
  %763 = vmatprep.mubr.f32.mxu0 0.0
  %764 = vmatmul.mubr.f32.gmra.mxu0 %v608
  %v765 = vpop.f32.mrf.mxu0
  %v766 = vadd.f32 0.0, %v765
  %v767 = vpop.f32.mrf.mxu0
  %768 = vmatprep.mubr.f32.mxu0 0.0
  %769 = vmatmul.mubr.f32.gmra.mxu0 %v610
  %v770 = vpop.f32.mrf.mxu0
  %v771 = vadd.f32 0.0, %v770
  %v772 = vpop.f32.mrf.mxu0
  %773 = vmatprep.mubr.f32.mxu0 0.0
  %774 = vmatmul.mubr.f32.gmra.mxu0 %v612
  %v775 = vpop.f32.mrf.mxu0
  %v776 = vadd.f32 0.0, %v775
  %v777 = vpop.f32.mrf.mxu0
  %778 = vdwg.mxu0
  %v779 = vadd.f32 %v427, %v681
  %v780 = vadd.f32 %v432, %v686
  %v781 = vadd.f32 %v437, %v691
  %v782 = vadd.f32 %v442, %v696
  %v783 = vadd.f32 %v447, %v701
  %v784 = vadd.f32 %v452, %v706
  %v785 = vadd.f32 %v457, %v711
  %v786 = vadd.f32 %v462, %v716
  %v787 = vadd.f32 %v467, %v721
  %v788 = vadd.f32 %v472, %v726
  %v789 = vadd.f32 %v477, %v731
  %v790 = vadd.f32 %v482, %v736
  %v791 = vadd.f32 %v487, %v741
  %v792 = vadd.f32 %v492, %v746
  %v793 = vadd.f32 %v497, %v751
  %v794 = vadd.f32 %v502, %v756
  %v795 = vadd.f32 %v507, %v761
  %v796 = vadd.f32 %v512, %v766
  %v797 = vadd.f32 %v517, %v771
  %v798 = vadd.f32 %v522, %v776
  %s799 = scalar_lea.vmem %s1, 96
  %v800 = vld [vmem:[%s799] sm:$0xff]
  %v801 = vld [vmem:[%s799 + $0x8] sm:$0xff]
  %v802 = vld [vmem:[%s799 + $0x10] sm:$0xff]
  %v803 = vld [vmem:[%s799 + $0x18] sm:$0xff]
  %vm804 = vcmask 1041408
  %v805 = vrot.slane %v18, 6
  %v806 = vrot.slane %v19, 6
  %v807 = vsel %vm804, %v805, %v806
  %v808 = vrot.slane %v20, 6
  %v809 = vsel %vm804, %v806, %v808
  %v810 = vrot.slane %v21, 6
  %v811 = vsel %vm804, %v808, %v810
  %v812 = vrot.slane %v22, 6
  %v813 = vsel %vm804, %v810, %v812
  %v814 = vrot.slane %v23, 6
  %v815 = vsel %vm804, %v812, %v814
  %v816 = vrot.slane %v24, 6
  %v817 = vsel %vm804, %v814, %v816
  %v818 = vrot.slane %v25, 6
  %v819 = vsel %vm804, %v816, %v818
  %v820 = vrot.slane %v26, 6
  %v821 = vsel %vm804, %v818, %v820
  %v822 = vrot.slane %v27, 6
  %v823 = vsel %vm804, %v820, %v822
  %v824 = vrot.slane %v28, 6
  %v825 = vsel %vm804, %v822, %v824
  %v826 = vrot.slane %v29, 6
  %v827 = vsel %vm804, %v824, %v826
  %v828 = vrot.slane %v30, 6
  %v829 = vsel %vm804, %v826, %v828
  %v830 = vrot.slane %v31, 6
  %v831 = vsel %vm804, %v828, %v830
  %v832 = vrot.slane %v32, 6
  %v833 = vsel %vm804, %v830, %v832
  %v834 = vrot.slane %v33, 6
  %v835 = vsel %vm804, %v832, %v834
  %v836 = vrot.slane %v34, 6
  %v837 = vsel %vm804, %v834, %v836
  %v838 = vrot.slane %v35, 6
  %v839 = vsel %vm804, %v836, %v838
  %v840 = vrot.slane %v36, 6
  %v841 = vsel %vm804, %v838, %v840
  %v842 = vrot.slane %v37, 6
  %v843 = vsel %vm804, %v840, %v842
  %v844 = vrot.slane %v38, 6
  %v845 = vsel %vm804, %v842, %v844
  %v846 = vsel %vm114, %v807, 0
  %v848 = vsel %vm114, %v809, 0
  %v850 = vsel %vm114, %v811, 0
  %v852 = vsel %vm114, %v813, 0
  %v854 = vsel %vm114, %v815, 0
  %v856 = vsel %vm114, %v817, 0
  %v858 = vsel %vm114, %v819, 0
  %v860 = vsel %vm114, %v821, 0
  %v862 = vsel %vm114, %v823, 0
  %v864 = vsel %vm114, %v825, 0
  %v866 = vsel %vm114, %v827, 0
  %v868 = vsel %vm114, %v829, 0
  %v870 = vsel %vm114, %v831, 0
  %v872 = vsel %vm114, %v833, 0
  %v874 = vsel %vm114, %v835, 0
  %v876 = vsel %vm114, %v837, 0
  %v878 = vsel %vm114, %v839, 0
  %v880 = vsel %vm114, %v841, 0
  %v882 = vsel %vm114, %v843, 0
  %v884 = vsel %vm114, %v845, 0
  %886 = vmatprep.subr.mxu0 0.0
  %887 = vmatpush1.msra.mxu0 0.0
  %888 = vmatprep.subr.mxu0 0.0
  %889 = vmatpush1.msra.mxu0 0.0
  %890 = vmatprep.subr.mxu0 0.0
  %891 = vmatpush1.msra.mxu0 0.0
  %892 = vmatprep.subr.mxu0 0.0
  %893 = vmatpush1.msra.mxu0 0.0
  %894 = vmatprep.subr.mxu0 0.0
  %895 = vmatpush1.msra.mxu0 0.0
  %896 = vmatprep.subr.mxu0 0.0
  %897 = vmatpush1.msra.mxu0 0.0
  %898 = vmatprep.subr.mxu0 0.0
  %899 = vmatpush1.msra.mxu0 0.0
  %900 = vmatprep.subr.mxu0 0.0
  %901 = vmatpush1.msra.mxu0 0.0
  %902 = vmatprep.subr.mxu0 0.0
  %903 = vmatpush1.msra.mxu0 0.0
  %904 = vmatprep.subr.mxu0 0.0
  %905 = vmatpush1.msra.mxu0 0.0
  %906 = vmatprep.subr.mxu0 0.0
  %907 = vmatpush1.msra.mxu0 0.0
  %908 = vmatprep.subr.mxu0 0.0
  %909 = vmatpush1.msra.mxu0 0.0
  %910 = vmatprep.subr.mxu0 0.0
  %911 = vmatpush1.msra.mxu0 %v803
  %912 = vmatprep.subr.mxu0 0.0
  %913 = vmatpush1.msra.mxu0 %v802
  %914 = vmatprep.subr.mxu0 0.0
  %915 = vmatpush1.msra.mxu0 %v801
  %916 = vmatprep.subr.mxu0 0.0
  %917 = vmatpush1.msra.mxu0 %v800
  %918 = vmatprep.subr.mxu0 0.0
  %919 = vmatpush2.msra.mxu0 0.0
  %920 = vmatprep.subr.mxu0 0.0
  %921 = vmatpush2.msra.mxu0 0.0
  %922 = vmatprep.subr.mxu0 0.0
  %923 = vmatpush2.msra.mxu0 0.0
  %924 = vmatprep.subr.mxu0 0.0
  %925 = vmatpush2.msra.mxu0 0.0
  %926 = vmatprep.subr.mxu0 0.0
  %927 = vmatpush2.msra.mxu0 0.0
  %928 = vmatprep.subr.mxu0 0.0
  %929 = vmatpush2.msra.mxu0 0.0
  %930 = vmatprep.subr.mxu0 0.0
  %931 = vmatpush2.msra.mxu0 0.0
  %932 = vmatprep.subr.mxu0 0.0
  %933 = vmatpush2.msra.mxu0 0.0
  %934 = vmatprep.subr.mxu0 0.0
  %935 = vmatpush2.msra.mxu0 0.0
  %936 = vmatprep.subr.mxu0 0.0
  %937 = vmatpush2.msra.mxu0 0.0
  %938 = vmatprep.subr.mxu0 0.0
  %939 = vmatpush2.msra.mxu0 0.0
  %940 = vmatprep.subr.mxu0 0.0
  %941 = vmatpush2.msra.mxu0 0.0
  %942 = vmatprep.subr.mxu0 0.0
  %943 = vmatpush2.msra.mxu0 0.0
  %944 = vmatprep.subr.mxu0 0.0
  %945 = vmatpush2.msra.mxu0 0.0
  %946 = vmatprep.subr.mxu0 0.0
  %947 = vmatpush2.msra.mxu0 0.0
  %948 = vmatprep.subr.mxu0 0.0
  %949 = vmatpush2.msra.mxu0 0.0
  %950 = vmatprep.mubr.f32.mxu0 0.0
  %951 = vmatmul.mubr.f32.gmra.mxu0 %v846
  %v952 = vpop.f32.mrf.mxu0
  %v953 = vadd.f32 0.0, %v952
  %v954 = vpop.f32.mrf.mxu0
  %955 = vmatprep.mubr.f32.mxu0 0.0
  %956 = vmatmul.mubr.f32.gmra.mxu0 %v848
  %v957 = vpop.f32.mrf.mxu0
  %v958 = vadd.f32 0.0, %v957
  %v959 = vpop.f32.mrf.mxu0
  %960 = vmatprep.mubr.f32.mxu0 0.0
  %961 = vmatmul.mubr.f32.gmra.mxu0 %v850
  %v962 = vpop.f32.mrf.mxu0
  %v963 = vadd.f32 0.0, %v962
  %v964 = vpop.f32.mrf.mxu0
  %965 = vmatprep.mubr.f32.mxu0 0.0
  %966 = vmatmul.mubr.f32.gmra.mxu0 %v852
  %v967 = vpop.f32.mrf.mxu0
  %v968 = vadd.f32 0.0, %v967
  %v969 = vpop.f32.mrf.mxu0
  %970 = vmatprep.mubr.f32.mxu0 0.0
  %971 = vmatmul.mubr.f32.gmra.mxu0 %v854
  %v972 = vpop.f32.mrf.mxu0
  %v973 = vadd.f32 0.0, %v972
  %v974 = vpop.f32.mrf.mxu0
  %975 = vmatprep.mubr.f32.mxu0 0.0
  %976 = vmatmul.mubr.f32.gmra.mxu0 %v856
  %v977 = vpop.f32.mrf.mxu0
  %v978 = vadd.f32 0.0, %v977
  %v979 = vpop.f32.mrf.mxu0
  %980 = vmatprep.mubr.f32.mxu0 0.0
  %981 = vmatmul.mubr.f32.gmra.mxu0 %v858
  %v982 = vpop.f32.mrf.mxu0
  %v983 = vadd.f32 0.0, %v982
  %v984 = vpop.f32.mrf.mxu0
  %985 = vmatprep.mubr.f32.mxu0 0.0
  %986 = vmatmul.mubr.f32.gmra.mxu0 %v860
  %v987 = vpop.f32.mrf.mxu0
  %v988 = vadd.f32 0.0, %v987
  %v989 = vpop.f32.mrf.mxu0
  %990 = vmatprep.mubr.f32.mxu0 0.0
  %991 = vmatmul.mubr.f32.gmra.mxu0 %v862
  %v992 = vpop.f32.mrf.mxu0
  %v993 = vadd.f32 0.0, %v992
  %v994 = vpop.f32.mrf.mxu0
  %995 = vmatprep.mubr.f32.mxu0 0.0
  %996 = vmatmul.mubr.f32.gmra.mxu0 %v864
  %v997 = vpop.f32.mrf.mxu0
  %v998 = vadd.f32 0.0, %v997
  %v999 = vpop.f32.mrf.mxu0
  %1000 = vmatprep.mubr.f32.mxu0 0.0
  %1001 = vmatmul.mubr.f32.gmra.mxu0 %v866
  %v1002 = vpop.f32.mrf.mxu0
  %v1003 = vadd.f32 0.0, %v1002
  %v1004 = vpop.f32.mrf.mxu0
  %1005 = vmatprep.mubr.f32.mxu0 0.0
  %1006 = vmatmul.mubr.f32.gmra.mxu0 %v868
  %v1007 = vpop.f32.mrf.mxu0
  %v1008 = vadd.f32 0.0, %v1007
  %v1009 = vpop.f32.mrf.mxu0
  %1010 = vmatprep.mubr.f32.mxu0 0.0
  %1011 = vmatmul.mubr.f32.gmra.mxu0 %v870
  %v1012 = vpop.f32.mrf.mxu0
  %v1013 = vadd.f32 0.0, %v1012
  %v1014 = vpop.f32.mrf.mxu0
  %1015 = vmatprep.mubr.f32.mxu0 0.0
  %1016 = vmatmul.mubr.f32.gmra.mxu0 %v872
  %v1017 = vpop.f32.mrf.mxu0
  %v1018 = vadd.f32 0.0, %v1017
  %v1019 = vpop.f32.mrf.mxu0
  %1020 = vmatprep.mubr.f32.mxu0 0.0
  %1021 = vmatmul.mubr.f32.gmra.mxu0 %v874
  %v1022 = vpop.f32.mrf.mxu0
  %v1023 = vadd.f32 0.0, %v1022
  %v1024 = vpop.f32.mrf.mxu0
  %1025 = vmatprep.mubr.f32.mxu0 0.0
  %1026 = vmatmul.mubr.f32.gmra.mxu0 %v876
  %v1027 = vpop.f32.mrf.mxu0
  %v1028 = vadd.f32 0.0, %v1027
  %v1029 = vpop.f32.mrf.mxu0
  %1030 = vmatprep.mubr.f32.mxu0 0.0
  %1031 = vmatmul.mubr.f32.gmra.mxu0 %v878
  %v1032 = vpop.f32.mrf.mxu0
  %v1033 = vadd.f32 0.0, %v1032
  %v1034 = vpop.f32.mrf.mxu0
  %1035 = vmatprep.mubr.f32.mxu0 0.0
  %1036 = vmatmul.mubr.f32.gmra.mxu0 %v880
  %v1037 = vpop.f32.mrf.mxu0
  %v1038 = vadd.f32 0.0, %v1037
  %v1039 = vpop.f32.mrf.mxu0
  %1040 = vmatprep.mubr.f32.mxu0 0.0
  %1041 = vmatmul.mubr.f32.gmra.mxu0 %v882
  %v1042 = vpop.f32.mrf.mxu0
  %v1043 = vadd.f32 0.0, %v1042
  %v1044 = vpop.f32.mrf.mxu0
  %1045 = vmatprep.mubr.f32.mxu0 0.0
  %1046 = vmatmul.mubr.f32.gmra.mxu0 %v884
  %v1047 = vpop.f32.mrf.mxu0
  %v1048 = vadd.f32 0.0, %v1047
  %v1049 = vpop.f32.mrf.mxu0
  %1050 = vdwg.mxu0
  %v1051 = vadd.f32 %v779, %v953
  %v1052 = vadd.f32 %v780, %v958
  %v1053 = vadd.f32 %v781, %v963
  %v1054 = vadd.f32 %v782, %v968
  %v1055 = vadd.f32 %v783, %v973
  %v1056 = vadd.f32 %v784, %v978
  %v1057 = vadd.f32 %v785, %v983
  %v1058 = vadd.f32 %v786, %v988
  %v1059 = vadd.f32 %v787, %v993
  %v1060 = vadd.f32 %v788, %v998
  %v1061 = vadd.f32 %v789, %v1003
  %v1062 = vadd.f32 %v790, %v1008
  %v1063 = vadd.f32 %v791, %v1013
  %v1064 = vadd.f32 %v792, %v1018
  %v1065 = vadd.f32 %v793, %v1023
  %v1066 = vadd.f32 %v794, %v1028
  %v1067 = vadd.f32 %v795, %v1033
  %v1068 = vadd.f32 %v796, %v1038
  %v1069 = vadd.f32 %v797, %v1043
  %v1070 = vadd.f32 %v798, %v1048
  %s1071 = scalar_lea.vmem %s1, 128
  %v1072 = vld [vmem:[%s1071] sm:$0xff]
  %v1073 = vld [vmem:[%s1071 + $0x8] sm:$0xff]
  %v1074 = vld [vmem:[%s1071 + $0x10] sm:$0xff]
  %v1075 = vld [vmem:[%s1071 + $0x18] sm:$0xff]
  %s1076 = scalar_lea.vmem %s1, 160
  %v1077 = vld [vmem:[%s1076] sm:$0xff]
  %v1078 = vld [vmem:[%s1076 + $0x8] sm:$0xff]
  %v1079 = vld [vmem:[%s1076 + $0x10] sm:$0xff]
  %v1080 = vld [vmem:[%s1076 + $0x18] sm:$0xff]
  %v1081 = vrot.slane %v16, 4
  %v1082 = vrot.slane %v17, 4
  %v1083 = vsel %vm532, %v1081, %v1082
  %v1084 = vsel %vm532, %v1082, %v533
  %v1085 = vsel %vm114, %v1083, 0
  %v1087 = vsel %vm114, %v1084, 0
  %1089 = vmatprep.subr.mxu0 0.0
  %1090 = vmatpush1.msra.mxu0 0.0
  %1091 = vmatprep.subr.mxu0 0.0
  %1092 = vmatpush1.msra.mxu0 0.0
  %1093 = vmatprep.subr.mxu0 0.0
  %1094 = vmatpush1.msra.mxu0 0.0
  %1095 = vmatprep.subr.mxu0 0.0
  %1096 = vmatpush1.msra.mxu0 0.0
  %1097 = vmatprep.subr.mxu0 0.0
  %1098 = vmatpush1.msra.mxu0 0.0
  %1099 = vmatprep.subr.mxu0 0.0
  %1100 = vmatpush1.msra.mxu0 0.0
  %1101 = vmatprep.subr.mxu0 0.0
  %1102 = vmatpush1.msra.mxu0 0.0
  %1103 = vmatprep.subr.mxu0 0.0
  %1104 = vmatpush1.msra.mxu0 0.0
  %1105 = vmatprep.subr.mxu0 0.0
  %1106 = vmatpush1.msra.mxu0 0.0
  %1107 = vmatprep.subr.mxu0 0.0
  %1108 = vmatpush1.msra.mxu0 0.0
  %1109 = vmatprep.subr.mxu0 0.0
  %1110 = vmatpush1.msra.mxu0 0.0
  %1111 = vmatprep.subr.mxu0 0.0
  %1112 = vmatpush1.msra.mxu0 0.0
  %1113 = vmatprep.subr.mxu0 0.0
  %1114 = vmatpush1.msra.mxu0 %v1080
  %1115 = vmatprep.subr.mxu0 0.0
  %1116 = vmatpush1.msra.mxu0 %v1079
  %1117 = vmatprep.subr.mxu0 0.0
  %1118 = vmatpush1.msra.mxu0 %v1078
  %1119 = vmatprep.subr.mxu0 0.0
  %1120 = vmatpush1.msra.mxu0 %v1077
  %1121 = vmatprep.subr.mxu0 0.0
  %1122 = vmatpush2.msra.mxu0 0.0
  %1123 = vmatprep.subr.mxu0 0.0
  %1124 = vmatpush2.msra.mxu0 0.0
  %1125 = vmatprep.subr.mxu0 0.0
  %1126 = vmatpush2.msra.mxu0 0.0
  %1127 = vmatprep.subr.mxu0 0.0
  %1128 = vmatpush2.msra.mxu0 0.0
  %1129 = vmatprep.subr.mxu0 0.0
  %1130 = vmatpush2.msra.mxu0 0.0
  %1131 = vmatprep.subr.mxu0 0.0
  %1132 = vmatpush2.msra.mxu0 0.0
  %1133 = vmatprep.subr.mxu0 0.0
  %1134 = vmatpush2.msra.mxu0 0.0
  %1135 = vmatprep.subr.mxu0 0.0
  %1136 = vmatpush2.msra.mxu0 0.0
  %1137 = vmatprep.subr.mxu0 0.0
  %1138 = vmatpush2.msra.mxu0 0.0
  %1139 = vmatprep.subr.mxu0 0.0
  %1140 = vmatpush2.msra.mxu0 0.0
  %1141 = vmatprep.subr.mxu0 0.0
  %1142 = vmatpush2.msra.mxu0 0.0
  %1143 = vmatprep.subr.mxu0 0.0
  %1144 = vmatpush2.msra.mxu0 0.0
  %1145 = vmatprep.subr.mxu0 0.0
  %1146 = vmatpush2.msra.mxu0 0.0
  %1147 = vmatprep.subr.mxu0 0.0
  %1148 = vmatpush2.msra.mxu0 0.0
  %1149 = vmatprep.subr.mxu0 0.0
  %1150 = vmatpush2.msra.mxu0 0.0
  %1151 = vmatprep.subr.mxu0 0.0
  %1152 = vmatpush2.msra.mxu0 0.0
  %1153 = vmatprep.mubr.f32.mxu0 0.0
  %1154 = vmatmul.mubr.f32.gmra.mxu0 %v1085
  %v1155 = vpop.f32.mrf.mxu0
  %v1156 = vadd.f32 0.0, %v1155
  %v1157 = vpop.f32.mrf.mxu0
  %1158 = vmatprep.mubr.f32.mxu0 0.0
  %1159 = vmatmul.mubr.f32.gmra.mxu0 %v1087
  %v1160 = vpop.f32.mrf.mxu0
  %v1161 = vadd.f32 0.0, %v1160
  %v1162 = vpop.f32.mrf.mxu0
  %1163 = vmatprep.mubr.f32.mxu0 0.0
  %1164 = vmatmul.mubr.f32.gmra.mxu0 %v574
  %v1165 = vpop.f32.mrf.mxu0
  %v1166 = vadd.f32 0.0, %v1165
  %v1167 = vpop.f32.mrf.mxu0
  %1168 = vmatprep.mubr.f32.mxu0 0.0
  %1169 = vmatmul.mubr.f32.gmra.mxu0 %v576
  %v1170 = vpop.f32.mrf.mxu0
  %v1171 = vadd.f32 0.0, %v1170
  %v1172 = vpop.f32.mrf.mxu0
  %1173 = vmatprep.mubr.f32.mxu0 0.0
  %1174 = vmatmul.mubr.f32.gmra.mxu0 %v578
  %v1175 = vpop.f32.mrf.mxu0
  %v1176 = vadd.f32 0.0, %v1175
  %v1177 = vpop.f32.mrf.mxu0
  %1178 = vmatprep.mubr.f32.mxu0 0.0
  %1179 = vmatmul.mubr.f32.gmra.mxu0 %v580
  %v1180 = vpop.f32.mrf.mxu0
  %v1181 = vadd.f32 0.0, %v1180
  %v1182 = vpop.f32.mrf.mxu0
  %1183 = vmatprep.mubr.f32.mxu0 0.0
  %1184 = vmatmul.mubr.f32.gmra.mxu0 %v582
  %v1185 = vpop.f32.mrf.mxu0
  %v1186 = vadd.f32 0.0, %v1185
  %v1187 = vpop.f32.mrf.mxu0
  %1188 = vmatprep.mubr.f32.mxu0 0.0
  %1189 = vmatmul.mubr.f32.gmra.mxu0 %v584
  %v1190 = vpop.f32.mrf.mxu0
  %v1191 = vadd.f32 0.0, %v1190
  %v1192 = vpop.f32.mrf.mxu0
  %1193 = vmatprep.mubr.f32.mxu0 0.0
  %1194 = vmatmul.mubr.f32.gmra.mxu0 %v586
  %v1195 = vpop.f32.mrf.mxu0
  %v1196 = vadd.f32 0.0, %v1195
  %v1197 = vpop.f32.mrf.mxu0
  %1198 = vmatprep.mubr.f32.mxu0 0.0
  %1199 = vmatmul.mubr.f32.gmra.mxu0 %v588
  %v1200 = vpop.f32.mrf.mxu0
  %v1201 = vadd.f32 0.0, %v1200
  %v1202 = vpop.f32.mrf.mxu0
  %1203 = vmatprep.mubr.f32.mxu0 0.0
  %1204 = vmatmul.mubr.f32.gmra.mxu0 %v590
  %v1205 = vpop.f32.mrf.mxu0
  %v1206 = vadd.f32 0.0, %v1205
  %v1207 = vpop.f32.mrf.mxu0
  %1208 = vmatprep.mubr.f32.mxu0 0.0
  %1209 = vmatmul.mubr.f32.gmra.mxu0 %v592
  %v1210 = vpop.f32.mrf.mxu0
  %v1211 = vadd.f32 0.0, %v1210
  %v1212 = vpop.f32.mrf.mxu0
  %1213 = vmatprep.mubr.f32.mxu0 0.0
  %1214 = vmatmul.mubr.f32.gmra.mxu0 %v594
  %v1215 = vpop.f32.mrf.mxu0
  %v1216 = vadd.f32 0.0, %v1215
  %v1217 = vpop.f32.mrf.mxu0
  %1218 = vmatprep.mubr.f32.mxu0 0.0
  %1219 = vmatmul.mubr.f32.gmra.mxu0 %v596
  %v1220 = vpop.f32.mrf.mxu0
  %v1221 = vadd.f32 0.0, %v1220
  %v1222 = vpop.f32.mrf.mxu0
  %1223 = vmatprep.mubr.f32.mxu0 0.0
  %1224 = vmatmul.mubr.f32.gmra.mxu0 %v598
  %v1225 = vpop.f32.mrf.mxu0
  %v1226 = vadd.f32 0.0, %v1225
  %v1227 = vpop.f32.mrf.mxu0
  %1228 = vmatprep.mubr.f32.mxu0 0.0
  %1229 = vmatmul.mubr.f32.gmra.mxu0 %v600
  %v1230 = vpop.f32.mrf.mxu0
  %v1231 = vadd.f32 0.0, %v1230
  %v1232 = vpop.f32.mrf.mxu0
  %1233 = vmatprep.mubr.f32.mxu0 0.0
  %1234 = vmatmul.mubr.f32.gmra.mxu0 %v602
  %v1235 = vpop.f32.mrf.mxu0
  %v1236 = vadd.f32 0.0, %v1235
  %v1237 = vpop.f32.mrf.mxu0
  %1238 = vmatprep.mubr.f32.mxu0 0.0
  %1239 = vmatmul.mubr.f32.gmra.mxu0 %v604
  %v1240 = vpop.f32.mrf.mxu0
  %v1241 = vadd.f32 0.0, %v1240
  %v1242 = vpop.f32.mrf.mxu0
  %1243 = vmatprep.mubr.f32.mxu0 0.0
  %1244 = vmatmul.mubr.f32.gmra.mxu0 %v606
  %v1245 = vpop.f32.mrf.mxu0
  %v1246 = vadd.f32 0.0, %v1245
  %v1247 = vpop.f32.mrf.mxu0
  %1248 = vmatprep.mubr.f32.mxu0 0.0
  %1249 = vmatmul.mubr.f32.gmra.mxu0 %v608
  %v1250 = vpop.f32.mrf.mxu0
  %v1251 = vadd.f32 0.0, %v1250
  %v1252 = vpop.f32.mrf.mxu0
  %1253 = vdwg.mxu0
  %1254 = vmatprep.subr.mxu0 0.0
  %1255 = vmatpush1.msra.mxu0 0.0
  %1256 = vmatprep.subr.mxu0 0.0
  %1257 = vmatpush1.msra.mxu0 0.0
  %1258 = vmatprep.subr.mxu0 0.0
  %1259 = vmatpush1.msra.mxu0 0.0
  %1260 = vmatprep.subr.mxu0 0.0
  %1261 = vmatpush1.msra.mxu0 0.0
  %1262 = vmatprep.subr.mxu0 0.0
  %1263 = vmatpush1.msra.mxu0 0.0
  %1264 = vmatprep.subr.mxu0 0.0
  %1265 = vmatpush1.msra.mxu0 0.0
  %1266 = vmatprep.subr.mxu0 0.0
  %1267 = vmatpush1.msra.mxu0 0.0
  %1268 = vmatprep.subr.mxu0 0.0
  %1269 = vmatpush1.msra.mxu0 0.0
  %1270 = vmatprep.subr.mxu0 0.0
  %1271 = vmatpush1.msra.mxu0 0.0
  %1272 = vmatprep.subr.mxu0 0.0
  %1273 = vmatpush1.msra.mxu0 0.0
  %1274 = vmatprep.subr.mxu0 0.0
  %1275 = vmatpush1.msra.mxu0 0.0
  %1276 = vmatprep.subr.mxu0 0.0
  %1277 = vmatpush1.msra.mxu0 0.0
  %1278 = vmatprep.subr.mxu0 0.0
  %1279 = vmatpush1.msra.mxu0 %v1075
  %1280 = vmatprep.subr.mxu0 0.0
  %1281 = vmatpush1.msra.mxu0 %v1074
  %1282 = vmatprep.subr.mxu0 0.0
  %1283 = vmatpush1.msra.mxu0 %v1073
  %1284 = vmatprep.subr.mxu0 0.0
  %1285 = vmatpush1.msra.mxu0 %v1072
  %1286 = vmatprep.subr.mxu0 0.0
  %1287 = vmatpush2.msra.mxu0 0.0
  %1288 = vmatprep.subr.mxu0 0.0
  %1289 = vmatpush2.msra.mxu0 0.0
  %1290 = vmatprep.subr.mxu0 0.0
  %1291 = vmatpush2.msra.mxu0 0.0
  %1292 = vmatprep.subr.mxu0 0.0
  %1293 = vmatpush2.msra.mxu0 0.0
  %1294 = vmatprep.subr.mxu0 0.0
  %1295 = vmatpush2.msra.mxu0 0.0
  %1296 = vmatprep.subr.mxu0 0.0
  %1297 = vmatpush2.msra.mxu0 0.0
  %1298 = vmatprep.subr.mxu0 0.0
  %1299 = vmatpush2.msra.mxu0 0.0
  %1300 = vmatprep.subr.mxu0 0.0
  %1301 = vmatpush2.msra.mxu0 0.0
  %1302 = vmatprep.subr.mxu0 0.0
  %1303 = vmatpush2.msra.mxu0 0.0
  %1304 = vmatprep.subr.mxu0 0.0
  %1305 = vmatpush2.msra.mxu0 0.0
  %1306 = vmatprep.subr.mxu0 0.0
  %1307 = vmatpush2.msra.mxu0 0.0
  %1308 = vmatprep.subr.mxu0 0.0
  %1309 = vmatpush2.msra.mxu0 0.0
  %1310 = vmatprep.subr.mxu0 0.0
  %1311 = vmatpush2.msra.mxu0 0.0
  %1312 = vmatprep.subr.mxu0 0.0
  %1313 = vmatpush2.msra.mxu0 0.0
  %1314 = vmatprep.subr.mxu0 0.0
  %1315 = vmatpush2.msra.mxu0 0.0
  %1316 = vmatprep.subr.mxu0 0.0
  %1317 = vmatpush2.msra.mxu0 0.0
  %1318 = vmatprep.mubr.f32.mxu0 0.0
  %1319 = vmatmul.mubr.f32.gmra.mxu0 %v115
  %v1320 = vpop.f32.mrf.mxu0
  %v1321 = vadd.f32 %v1156, %v1320
  %v1322 = vpop.f32.mrf.mxu0
  %1323 = vmatprep.mubr.f32.mxu0 0.0
  %1324 = vmatmul.mubr.f32.gmra.mxu0 %v117
  %v1325 = vpop.f32.mrf.mxu0
  %v1326 = vadd.f32 %v1161, %v1325
  %v1327 = vpop.f32.mrf.mxu0
  %1328 = vmatprep.mubr.f32.mxu0 0.0
  %1329 = vmatmul.mubr.f32.gmra.mxu0 %v119
  %v1330 = vpop.f32.mrf.mxu0
  %v1331 = vadd.f32 %v1166, %v1330
  %v1332 = vpop.f32.mrf.mxu0
  %1333 = vmatprep.mubr.f32.mxu0 0.0
  %1334 = vmatmul.mubr.f32.gmra.mxu0 %v121
  %v1335 = vpop.f32.mrf.mxu0
  %v1336 = vadd.f32 %v1171, %v1335
  %v1337 = vpop.f32.mrf.mxu0
  %1338 = vmatprep.mubr.f32.mxu0 0.0
  %1339 = vmatmul.mubr.f32.gmra.mxu0 %v123
  %v1340 = vpop.f32.mrf.mxu0
  %v1341 = vadd.f32 %v1176, %v1340
  %v1342 = vpop.f32.mrf.mxu0
  %1343 = vmatprep.mubr.f32.mxu0 0.0
  %1344 = vmatmul.mubr.f32.gmra.mxu0 %v125
  %v1345 = vpop.f32.mrf.mxu0
  %v1346 = vadd.f32 %v1181, %v1345
  %v1347 = vpop.f32.mrf.mxu0
  %1348 = vmatprep.mubr.f32.mxu0 0.0
  %1349 = vmatmul.mubr.f32.gmra.mxu0 %v127
  %v1350 = vpop.f32.mrf.mxu0
  %v1351 = vadd.f32 %v1186, %v1350
  %v1352 = vpop.f32.mrf.mxu0
  %1353 = vmatprep.mubr.f32.mxu0 0.0
  %1354 = vmatmul.mubr.f32.gmra.mxu0 %v129
  %v1355 = vpop.f32.mrf.mxu0
  %v1356 = vadd.f32 %v1191, %v1355
  %v1357 = vpop.f32.mrf.mxu0
  %1358 = vmatprep.mubr.f32.mxu0 0.0
  %1359 = vmatmul.mubr.f32.gmra.mxu0 %v131
  %v1360 = vpop.f32.mrf.mxu0
  %v1361 = vadd.f32 %v1196, %v1360
  %v1362 = vpop.f32.mrf.mxu0
  %1363 = vmatprep.mubr.f32.mxu0 0.0
  %1364 = vmatmul.mubr.f32.gmra.mxu0 %v133
  %v1365 = vpop.f32.mrf.mxu0
  %v1366 = vadd.f32 %v1201, %v1365
  %v1367 = vpop.f32.mrf.mxu0
  %1368 = vmatprep.mubr.f32.mxu0 0.0
  %1369 = vmatmul.mubr.f32.gmra.mxu0 %v135
  %v1370 = vpop.f32.mrf.mxu0
  %v1371 = vadd.f32 %v1206, %v1370
  %v1372 = vpop.f32.mrf.mxu0
  %1373 = vmatprep.mubr.f32.mxu0 0.0
  %1374 = vmatmul.mubr.f32.gmra.mxu0 %v137
  %v1375 = vpop.f32.mrf.mxu0
  %v1376 = vadd.f32 %v1211, %v1375
  %v1377 = vpop.f32.mrf.mxu0
  %1378 = vmatprep.mubr.f32.mxu0 0.0
  %1379 = vmatmul.mubr.f32.gmra.mxu0 %v139
  %v1380 = vpop.f32.mrf.mxu0
  %v1381 = vadd.f32 %v1216, %v1380
  %v1382 = vpop.f32.mrf.mxu0
  %1383 = vmatprep.mubr.f32.mxu0 0.0
  %1384 = vmatmul.mubr.f32.gmra.mxu0 %v141
  %v1385 = vpop.f32.mrf.mxu0
  %v1386 = vadd.f32 %v1221, %v1385
  %v1387 = vpop.f32.mrf.mxu0
  %1388 = vmatprep.mubr.f32.mxu0 0.0
  %1389 = vmatmul.mubr.f32.gmra.mxu0 %v143
  %v1390 = vpop.f32.mrf.mxu0
  %v1391 = vadd.f32 %v1226, %v1390
  %v1392 = vpop.f32.mrf.mxu0
  %1393 = vmatprep.mubr.f32.mxu0 0.0
  %1394 = vmatmul.mubr.f32.gmra.mxu0 %v145
  %v1395 = vpop.f32.mrf.mxu0
  %v1396 = vadd.f32 %v1231, %v1395
  %v1397 = vpop.f32.mrf.mxu0
  %1398 = vmatprep.mubr.f32.mxu0 0.0
  %1399 = vmatmul.mubr.f32.gmra.mxu0 %v147
  %v1400 = vpop.f32.mrf.mxu0
  %v1401 = vadd.f32 %v1236, %v1400
  %v1402 = vpop.f32.mrf.mxu0
  %1403 = vmatprep.mubr.f32.mxu0 0.0
  %1404 = vmatmul.mubr.f32.gmra.mxu0 %v149
  %v1405 = vpop.f32.mrf.mxu0
  %v1406 = vadd.f32 %v1241, %v1405
  %v1407 = vpop.f32.mrf.mxu0
  %1408 = vmatprep.mubr.f32.mxu0 0.0
  %1409 = vmatmul.mubr.f32.gmra.mxu0 %v151
  %v1410 = vpop.f32.mrf.mxu0
  %v1411 = vadd.f32 %v1246, %v1410
  %v1412 = vpop.f32.mrf.mxu0
  %1413 = vmatprep.mubr.f32.mxu0 0.0
  %1414 = vmatmul.mubr.f32.gmra.mxu0 %v153
  %v1415 = vpop.f32.mrf.mxu0
  %v1416 = vadd.f32 %v1251, %v1415
  %v1417 = vpop.f32.mrf.mxu0
  %1418 = vdwg.mxu0
  %s1419 = scalar_lea.vmem %s1, 192
  %v1420 = vld [vmem:[%s1419] sm:$0xff]
  %v1421 = vld [vmem:[%s1419 + $0x8] sm:$0xff]
  %v1422 = vld [vmem:[%s1419 + $0x10] sm:$0xff]
  %v1423 = vld [vmem:[%s1419 + $0x18] sm:$0xff]
  %1424 = vmatprep.subr.mxu0 0.0
  %1425 = vmatpush1.msra.mxu0 0.0
  %1426 = vmatprep.subr.mxu0 0.0
  %1427 = vmatpush1.msra.mxu0 0.0
  %1428 = vmatprep.subr.mxu0 0.0
  %1429 = vmatpush1.msra.mxu0 0.0
  %1430 = vmatprep.subr.mxu0 0.0
  %1431 = vmatpush1.msra.mxu0 0.0
  %1432 = vmatprep.subr.mxu0 0.0
  %1433 = vmatpush1.msra.mxu0 0.0
  %1434 = vmatprep.subr.mxu0 0.0
  %1435 = vmatpush1.msra.mxu0 0.0
  %1436 = vmatprep.subr.mxu0 0.0
  %1437 = vmatpush1.msra.mxu0 0.0
  %1438 = vmatprep.subr.mxu0 0.0
  %1439 = vmatpush1.msra.mxu0 0.0
  %1440 = vmatprep.subr.mxu0 0.0
  %1441 = vmatpush1.msra.mxu0 0.0
  %1442 = vmatprep.subr.mxu0 0.0
  %1443 = vmatpush1.msra.mxu0 0.0
  %1444 = vmatprep.subr.mxu0 0.0
  %1445 = vmatpush1.msra.mxu0 0.0
  %1446 = vmatprep.subr.mxu0 0.0
  %1447 = vmatpush1.msra.mxu0 0.0
  %1448 = vmatprep.subr.mxu0 0.0
  %1449 = vmatpush1.msra.mxu0 %v1423
  %1450 = vmatprep.subr.mxu0 0.0
  %1451 = vmatpush1.msra.mxu0 %v1422
  %1452 = vmatprep.subr.mxu0 0.0
  %1453 = vmatpush1.msra.mxu0 %v1421
  %1454 = vmatprep.subr.mxu0 0.0
  %1455 = vmatpush1.msra.mxu0 %v1420
  %1456 = vmatprep.subr.mxu0 0.0
  %1457 = vmatpush2.msra.mxu0 0.0
  %1458 = vmatprep.subr.mxu0 0.0
  %1459 = vmatpush2.msra.mxu0 0.0
  %1460 = vmatprep.subr.mxu0 0.0
  %1461 = vmatpush2.msra.mxu0 0.0
  %1462 = vmatprep.subr.mxu0 0.0
  %1463 = vmatpush2.msra.mxu0 0.0
  %1464 = vmatprep.subr.mxu0 0.0
  %1465 = vmatpush2.msra.mxu0 0.0
  %1466 = vmatprep.subr.mxu0 0.0
  %1467 = vmatpush2.msra.mxu0 0.0
  %1468 = vmatprep.subr.mxu0 0.0
  %1469 = vmatpush2.msra.mxu0 0.0
  %1470 = vmatprep.subr.mxu0 0.0
  %1471 = vmatpush2.msra.mxu0 0.0
  %1472 = vmatprep.subr.mxu0 0.0
  %1473 = vmatpush2.msra.mxu0 0.0
  %1474 = vmatprep.subr.mxu0 0.0
  %1475 = vmatpush2.msra.mxu0 0.0
  %1476 = vmatprep.subr.mxu0 0.0
  %1477 = vmatpush2.msra.mxu0 0.0
  %1478 = vmatprep.subr.mxu0 0.0
  %1479 = vmatpush2.msra.mxu0 0.0
  %1480 = vmatprep.subr.mxu0 0.0
  %1481 = vmatpush2.msra.mxu0 0.0
  %1482 = vmatprep.subr.mxu0 0.0
  %1483 = vmatpush2.msra.mxu0 0.0
  %1484 = vmatprep.subr.mxu0 0.0
  %1485 = vmatpush2.msra.mxu0 0.0
  %1486 = vmatprep.subr.mxu0 0.0
  %1487 = vmatpush2.msra.mxu0 0.0
  %1488 = vmatprep.mubr.f32.mxu0 0.0
  %1489 = vmatmul.mubr.f32.gmra.mxu0 %v846
  %v1490 = vpop.f32.mrf.mxu0
  %v1491 = vadd.f32 0.0, %v1490
  %v1492 = vpop.f32.mrf.mxu0
  %1493 = vmatprep.mubr.f32.mxu0 0.0
  %1494 = vmatmul.mubr.f32.gmra.mxu0 %v848
  %v1495 = vpop.f32.mrf.mxu0
  %v1496 = vadd.f32 0.0, %v1495
  %v1497 = vpop.f32.mrf.mxu0
  %1498 = vmatprep.mubr.f32.mxu0 0.0
  %1499 = vmatmul.mubr.f32.gmra.mxu0 %v850
  %v1500 = vpop.f32.mrf.mxu0
  %v1501 = vadd.f32 0.0, %v1500
  %v1502 = vpop.f32.mrf.mxu0
  %1503 = vmatprep.mubr.f32.mxu0 0.0
  %1504 = vmatmul.mubr.f32.gmra.mxu0 %v852
  %v1505 = vpop.f32.mrf.mxu0
  %v1506 = vadd.f32 0.0, %v1505
  %v1507 = vpop.f32.mrf.mxu0
  %1508 = vmatprep.mubr.f32.mxu0 0.0
  %1509 = vmatmul.mubr.f32.gmra.mxu0 %v854
  %v1510 = vpop.f32.mrf.mxu0
  %v1511 = vadd.f32 0.0, %v1510
  %v1512 = vpop.f32.mrf.mxu0
  %1513 = vmatprep.mubr.f32.mxu0 0.0
  %1514 = vmatmul.mubr.f32.gmra.mxu0 %v856
  %v1515 = vpop.f32.mrf.mxu0
  %v1516 = vadd.f32 0.0, %v1515
  %v1517 = vpop.f32.mrf.mxu0
  %1518 = vmatprep.mubr.f32.mxu0 0.0
  %1519 = vmatmul.mubr.f32.gmra.mxu0 %v858
  %v1520 = vpop.f32.mrf.mxu0
  %v1521 = vadd.f32 0.0, %v1520
  %v1522 = vpop.f32.mrf.mxu0
  %1523 = vmatprep.mubr.f32.mxu0 0.0
  %1524 = vmatmul.mubr.f32.gmra.mxu0 %v860
  %v1525 = vpop.f32.mrf.mxu0
  %v1526 = vadd.f32 0.0, %v1525
  %v1527 = vpop.f32.mrf.mxu0
  %1528 = vmatprep.mubr.f32.mxu0 0.0
  %1529 = vmatmul.mubr.f32.gmra.mxu0 %v862
  %v1530 = vpop.f32.mrf.mxu0
  %v1531 = vadd.f32 0.0, %v1530
  %v1532 = vpop.f32.mrf.mxu0
  %1533 = vmatprep.mubr.f32.mxu0 0.0
  %1534 = vmatmul.mubr.f32.gmra.mxu0 %v864
  %v1535 = vpop.f32.mrf.mxu0
  %v1536 = vadd.f32 0.0, %v1535
  %v1537 = vpop.f32.mrf.mxu0
  %1538 = vmatprep.mubr.f32.mxu0 0.0
  %1539 = vmatmul.mubr.f32.gmra.mxu0 %v866
  %v1540 = vpop.f32.mrf.mxu0
  %v1541 = vadd.f32 0.0, %v1540
  %v1542 = vpop.f32.mrf.mxu0
  %1543 = vmatprep.mubr.f32.mxu0 0.0
  %1544 = vmatmul.mubr.f32.gmra.mxu0 %v868
  %v1545 = vpop.f32.mrf.mxu0
  %v1546 = vadd.f32 0.0, %v1545
  %v1547 = vpop.f32.mrf.mxu0
  %1548 = vmatprep.mubr.f32.mxu0 0.0
  %1549 = vmatmul.mubr.f32.gmra.mxu0 %v870
  %v1550 = vpop.f32.mrf.mxu0
  %v1551 = vadd.f32 0.0, %v1550
  %v1552 = vpop.f32.mrf.mxu0
  %1553 = vmatprep.mubr.f32.mxu0 0.0
  %1554 = vmatmul.mubr.f32.gmra.mxu0 %v872
  %v1555 = vpop.f32.mrf.mxu0
  %v1556 = vadd.f32 0.0, %v1555
  %v1557 = vpop.f32.mrf.mxu0
  %1558 = vmatprep.mubr.f32.mxu0 0.0
  %1559 = vmatmul.mubr.f32.gmra.mxu0 %v874
  %v1560 = vpop.f32.mrf.mxu0
  %v1561 = vadd.f32 0.0, %v1560
  %v1562 = vpop.f32.mrf.mxu0
  %1563 = vmatprep.mubr.f32.mxu0 0.0
  %1564 = vmatmul.mubr.f32.gmra.mxu0 %v876
  %v1565 = vpop.f32.mrf.mxu0
  %v1566 = vadd.f32 0.0, %v1565
  %v1567 = vpop.f32.mrf.mxu0
  %1568 = vmatprep.mubr.f32.mxu0 0.0
  %1569 = vmatmul.mubr.f32.gmra.mxu0 %v878
  %v1570 = vpop.f32.mrf.mxu0
  %v1571 = vadd.f32 0.0, %v1570
  %v1572 = vpop.f32.mrf.mxu0
  %1573 = vmatprep.mubr.f32.mxu0 0.0
  %1574 = vmatmul.mubr.f32.gmra.mxu0 %v880
  %v1575 = vpop.f32.mrf.mxu0
  %v1576 = vadd.f32 0.0, %v1575
  %v1577 = vpop.f32.mrf.mxu0
  %1578 = vmatprep.mubr.f32.mxu0 0.0
  %1579 = vmatmul.mubr.f32.gmra.mxu0 %v882
  %v1580 = vpop.f32.mrf.mxu0
  %v1581 = vadd.f32 0.0, %v1580
  %v1582 = vpop.f32.mrf.mxu0
  %1583 = vmatprep.mubr.f32.mxu0 0.0
  %1584 = vmatmul.mubr.f32.gmra.mxu0 %v884
  %v1585 = vpop.f32.mrf.mxu0
  %v1586 = vadd.f32 0.0, %v1585
  %v1587 = vpop.f32.mrf.mxu0
  %1588 = vdwg.mxu0
  %v1589 = vadd.f32 %v1321, %v1491
  %v1590 = vadd.f32 %v1326, %v1496
  %v1591 = vadd.f32 %v1331, %v1501
  %v1592 = vadd.f32 %v1336, %v1506
  %v1593 = vadd.f32 %v1341, %v1511
  %v1594 = vadd.f32 %v1346, %v1516
  %v1595 = vadd.f32 %v1351, %v1521
  %v1596 = vadd.f32 %v1356, %v1526
  %v1597 = vadd.f32 %v1361, %v1531
  %v1598 = vadd.f32 %v1366, %v1536
  %v1599 = vadd.f32 %v1371, %v1541
  %v1600 = vadd.f32 %v1376, %v1546
  %v1601 = vadd.f32 %v1381, %v1551
  %v1602 = vadd.f32 %v1386, %v1556
  %v1603 = vadd.f32 %v1391, %v1561
  %v1604 = vadd.f32 %v1396, %v1566
  %v1605 = vadd.f32 %v1401, %v1571
  %v1606 = vadd.f32 %v1406, %v1576
  %v1607 = vadd.f32 %v1411, %v1581
  %v1608 = vadd.f32 %v1416, %v1586
  %s1609 = scalar_lea.vmem %s1, 224
  %v1610 = vld [vmem:[%s1609] sm:$0xff]
  %v1611 = vld [vmem:[%s1609 + $0x8] sm:$0xff]
  %v1612 = vld [vmem:[%s1609 + $0x10] sm:$0xff]
  %v1613 = vld [vmem:[%s1609 + $0x18] sm:$0xff]
  %v1614 = vsel %vm114, %v36, 0
  %v1616 = vsel %vm114, %v37, 0
  %v1618 = vsel %vm114, %v38, 0
  %1620 = vmatprep.subr.mxu0 0.0
  %1621 = vmatpush1.msra.mxu0 0.0
  %1622 = vmatprep.subr.mxu0 0.0
  %1623 = vmatpush1.msra.mxu0 0.0
  %1624 = vmatprep.subr.mxu0 0.0
  %1625 = vmatpush1.msra.mxu0 0.0
  %1626 = vmatprep.subr.mxu0 0.0
  %1627 = vmatpush1.msra.mxu0 0.0
  %1628 = vmatprep.subr.mxu0 0.0
  %1629 = vmatpush1.msra.mxu0 0.0
  %1630 = vmatprep.subr.mxu0 0.0
  %1631 = vmatpush1.msra.mxu0 0.0
  %1632 = vmatprep.subr.mxu0 0.0
  %1633 = vmatpush1.msra.mxu0 0.0
  %1634 = vmatprep.subr.mxu0 0.0
  %1635 = vmatpush1.msra.mxu0 0.0
  %1636 = vmatprep.subr.mxu0 0.0
  %1637 = vmatpush1.msra.mxu0 0.0
  %1638 = vmatprep.subr.mxu0 0.0
  %1639 = vmatpush1.msra.mxu0 0.0
  %1640 = vmatprep.subr.mxu0 0.0
  %1641 = vmatpush1.msra.mxu0 0.0
  %1642 = vmatprep.subr.mxu0 0.0
  %1643 = vmatpush1.msra.mxu0 0.0
  %1644 = vmatprep.subr.mxu0 0.0
  %1645 = vmatpush1.msra.mxu0 %v1613
  %1646 = vmatprep.subr.mxu0 0.0
  %1647 = vmatpush1.msra.mxu0 %v1612
  %1648 = vmatprep.subr.mxu0 0.0
  %1649 = vmatpush1.msra.mxu0 %v1611
  %1650 = vmatprep.subr.mxu0 0.0
  %1651 = vmatpush1.msra.mxu0 %v1610
  %1652 = vmatprep.subr.mxu0 0.0
  %1653 = vmatpush2.msra.mxu0 0.0
  %1654 = vmatprep.subr.mxu0 0.0
  %1655 = vmatpush2.msra.mxu0 0.0
  %1656 = vmatprep.subr.mxu0 0.0
  %1657 = vmatpush2.msra.mxu0 0.0
  %1658 = vmatprep.subr.mxu0 0.0
  %1659 = vmatpush2.msra.mxu0 0.0
  %1660 = vmatprep.subr.mxu0 0.0
  %1661 = vmatpush2.msra.mxu0 0.0
  %1662 = vmatprep.subr.mxu0 0.0
  %1663 = vmatpush2.msra.mxu0 0.0
  %1664 = vmatprep.subr.mxu0 0.0
  %1665 = vmatpush2.msra.mxu0 0.0
  %1666 = vmatprep.subr.mxu0 0.0
  %1667 = vmatpush2.msra.mxu0 0.0
  %1668 = vmatprep.subr.mxu0 0.0
  %1669 = vmatpush2.msra.mxu0 0.0
  %1670 = vmatprep.subr.mxu0 0.0
  %1671 = vmatpush2.msra.mxu0 0.0
  %1672 = vmatprep.subr.mxu0 0.0
  %1673 = vmatpush2.msra.mxu0 0.0
  %1674 = vmatprep.subr.mxu0 0.0
  %1675 = vmatpush2.msra.mxu0 0.0
  %1676 = vmatprep.subr.mxu0 0.0
  %1677 = vmatpush2.msra.mxu0 0.0
  %1678 = vmatprep.subr.mxu0 0.0
  %1679 = vmatpush2.msra.mxu0 0.0
  %1680 = vmatprep.subr.mxu0 0.0
  %1681 = vmatpush2.msra.mxu0 0.0
  %1682 = vmatprep.subr.mxu0 0.0
  %1683 = vmatpush2.msra.mxu0 0.0
  %1684 = vmatprep.mubr.f32.mxu0 0.0
  %1685 = vmatmul.mubr.f32.gmra.mxu0 %v326
  %v1686 = vpop.f32.mrf.mxu0
  %v1687 = vadd.f32 0.0, %v1686
  %v1688 = vpop.f32.mrf.mxu0
  %1689 = vmatprep.mubr.f32.mxu0 0.0
  %1690 = vmatmul.mubr.f32.gmra.mxu0 %v328
  %v1691 = vpop.f32.mrf.mxu0
  %v1692 = vadd.f32 0.0, %v1691
  %v1693 = vpop.f32.mrf.mxu0
  %1694 = vmatprep.mubr.f32.mxu0 0.0
  %1695 = vmatmul.mubr.f32.gmra.mxu0 %v330
  %v1696 = vpop.f32.mrf.mxu0
  %v1697 = vadd.f32 0.0, %v1696
  %v1698 = vpop.f32.mrf.mxu0
  %1699 = vmatprep.mubr.f32.mxu0 0.0
  %1700 = vmatmul.mubr.f32.gmra.mxu0 %v332
  %v1701 = vpop.f32.mrf.mxu0
  %v1702 = vadd.f32 0.0, %v1701
  %v1703 = vpop.f32.mrf.mxu0
  %1704 = vmatprep.mubr.f32.mxu0 0.0
  %1705 = vmatmul.mubr.f32.gmra.mxu0 %v334
  %v1706 = vpop.f32.mrf.mxu0
  %v1707 = vadd.f32 0.0, %v1706
  %v1708 = vpop.f32.mrf.mxu0
  %1709 = vmatprep.mubr.f32.mxu0 0.0
  %1710 = vmatmul.mubr.f32.gmra.mxu0 %v336
  %v1711 = vpop.f32.mrf.mxu0
  %v1712 = vadd.f32 0.0, %v1711
  %v1713 = vpop.f32.mrf.mxu0
  %1714 = vmatprep.mubr.f32.mxu0 0.0
  %1715 = vmatmul.mubr.f32.gmra.mxu0 %v338
  %v1716 = vpop.f32.mrf.mxu0
  %v1717 = vadd.f32 0.0, %v1716
  %v1718 = vpop.f32.mrf.mxu0
  %1719 = vmatprep.mubr.f32.mxu0 0.0
  %1720 = vmatmul.mubr.f32.gmra.mxu0 %v340
  %v1721 = vpop.f32.mrf.mxu0
  %v1722 = vadd.f32 0.0, %v1721
  %v1723 = vpop.f32.mrf.mxu0
  %1724 = vmatprep.mubr.f32.mxu0 0.0
  %1725 = vmatmul.mubr.f32.gmra.mxu0 %v342
  %v1726 = vpop.f32.mrf.mxu0
  %v1727 = vadd.f32 0.0, %v1726
  %v1728 = vpop.f32.mrf.mxu0
  %1729 = vmatprep.mubr.f32.mxu0 0.0
  %1730 = vmatmul.mubr.f32.gmra.mxu0 %v344
  %v1731 = vpop.f32.mrf.mxu0
  %v1732 = vadd.f32 0.0, %v1731
  %v1733 = vpop.f32.mrf.mxu0
  %1734 = vmatprep.mubr.f32.mxu0 0.0
  %1735 = vmatmul.mubr.f32.gmra.mxu0 %v346
  %v1736 = vpop.f32.mrf.mxu0
  %v1737 = vadd.f32 0.0, %v1736
  %v1738 = vpop.f32.mrf.mxu0
  %1739 = vmatprep.mubr.f32.mxu0 0.0
  %1740 = vmatmul.mubr.f32.gmra.mxu0 %v348
  %v1741 = vpop.f32.mrf.mxu0
  %v1742 = vadd.f32 0.0, %v1741
  %v1743 = vpop.f32.mrf.mxu0
  %1744 = vmatprep.mubr.f32.mxu0 0.0
  %1745 = vmatmul.mubr.f32.gmra.mxu0 %v350
  %v1746 = vpop.f32.mrf.mxu0
  %v1747 = vadd.f32 0.0, %v1746
  %v1748 = vpop.f32.mrf.mxu0
  %1749 = vmatprep.mubr.f32.mxu0 0.0
  %1750 = vmatmul.mubr.f32.gmra.mxu0 %v352
  %v1751 = vpop.f32.mrf.mxu0
  %v1752 = vadd.f32 0.0, %v1751
  %v1753 = vpop.f32.mrf.mxu0
  %1754 = vmatprep.mubr.f32.mxu0 0.0
  %1755 = vmatmul.mubr.f32.gmra.mxu0 %v354
  %v1756 = vpop.f32.mrf.mxu0
  %v1757 = vadd.f32 0.0, %v1756
  %v1758 = vpop.f32.mrf.mxu0
  %1759 = vmatprep.mubr.f32.mxu0 0.0
  %1760 = vmatmul.mubr.f32.gmra.mxu0 %v356
  %v1761 = vpop.f32.mrf.mxu0
  %v1762 = vadd.f32 0.0, %v1761
  %v1763 = vpop.f32.mrf.mxu0
  %1764 = vmatprep.mubr.f32.mxu0 0.0
  %1765 = vmatmul.mubr.f32.gmra.mxu0 %v358
  %v1766 = vpop.f32.mrf.mxu0
  %v1767 = vadd.f32 0.0, %v1766
  %v1768 = vpop.f32.mrf.mxu0
  %1769 = vmatprep.mubr.f32.mxu0 0.0
  %1770 = vmatmul.mubr.f32.gmra.mxu0 %v1614
  %v1771 = vpop.f32.mrf.mxu0
  %v1772 = vadd.f32 0.0, %v1771
  %v1773 = vpop.f32.mrf.mxu0
  %1774 = vmatprep.mubr.f32.mxu0 0.0
  %1775 = vmatmul.mubr.f32.gmra.mxu0 %v1616
  %v1776 = vpop.f32.mrf.mxu0
  %v1777 = vadd.f32 0.0, %v1776
  %v1778 = vpop.f32.mrf.mxu0
  %1779 = vmatprep.mubr.f32.mxu0 0.0
  %1780 = vmatmul.mubr.f32.gmra.mxu0 %v1618
  %v1781 = vpop.f32.mrf.mxu0
  %v1782 = vadd.f32 0.0, %v1781
  %v1783 = vpop.f32.mrf.mxu0
  %1784 = vdwg.mxu0
  %v1785 = vadd.f32 %v1589, %v1687
  %v1786 = vadd.f32 %v1590, %v1692
  %v1787 = vadd.f32 %v1591, %v1697
  %v1788 = vadd.f32 %v1592, %v1702
  %v1789 = vadd.f32 %v1593, %v1707
  %v1790 = vadd.f32 %v1594, %v1712
  %v1791 = vadd.f32 %v1595, %v1717
  %v1792 = vadd.f32 %v1596, %v1722
  %v1793 = vadd.f32 %v1597, %v1727
  %v1794 = vadd.f32 %v1598, %v1732
  %v1795 = vadd.f32 %v1599, %v1737
  %v1796 = vadd.f32 %v1600, %v1742
  %v1797 = vadd.f32 %v1601, %v1747
  %v1798 = vadd.f32 %v1602, %v1752
  %v1799 = vadd.f32 %v1603, %v1757
  %v1800 = vadd.f32 %v1604, %v1762
  %v1801 = vadd.f32 %v1605, %v1767
  %v1802 = vadd.f32 %v1606, %v1772
  %v1803 = vadd.f32 %v1607, %v1777
  %v1804 = vadd.f32 %v1608, %v1782
  %s1805 = scalar_lea.vmem %s1, 256
  %v1806 = vld [vmem:[%s1805] sm:$0xff]
  %v1807 = vld [vmem:[%s1805 + $0x8] sm:$0xff]
  %v1808 = vld [vmem:[%s1805 + $0x10] sm:$0xff]
  %v1809 = vld [vmem:[%s1805 + $0x18] sm:$0xff]
  %s1810 = scalar_lea.vmem %s1, 288
  %v1811 = vld [vmem:[%s1810] sm:$0xff]
  %v1812 = vld [vmem:[%s1810 + $0x8] sm:$0xff]
  %v1813 = vld [vmem:[%s1810 + $0x10] sm:$0xff]
  %v1814 = vld [vmem:[%s1810 + $0x18] sm:$0xff]
  %1815 = vmatprep.subr.mxu0 0.0
  %1816 = vmatpush1.msra.mxu0 0.0
  %1817 = vmatprep.subr.mxu0 0.0
  %1818 = vmatpush1.msra.mxu0 0.0
  %1819 = vmatprep.subr.mxu0 0.0
  %1820 = vmatpush1.msra.mxu0 0.0
  %1821 = vmatprep.subr.mxu0 0.0
  %1822 = vmatpush1.msra.mxu0 0.0
  %1823 = vmatprep.subr.mxu0 0.0
  %1824 = vmatpush1.msra.mxu0 0.0
  %1825 = vmatprep.subr.mxu0 0.0
  %1826 = vmatpush1.msra.mxu0 0.0
  %1827 = vmatprep.subr.mxu0 0.0
  %1828 = vmatpush1.msra.mxu0 0.0
  %1829 = vmatprep.subr.mxu0 0.0
  %1830 = vmatpush1.msra.mxu0 0.0
  %1831 = vmatprep.subr.mxu0 0.0
  %1832 = vmatpush1.msra.mxu0 0.0
  %1833 = vmatprep.subr.mxu0 0.0
  %1834 = vmatpush1.msra.mxu0 0.0
  %1835 = vmatprep.subr.mxu0 0.0
  %1836 = vmatpush1.msra.mxu0 0.0
  %1837 = vmatprep.subr.mxu0 0.0
  %1838 = vmatpush1.msra.mxu0 0.0
  %1839 = vmatprep.subr.mxu0 0.0
  %1840 = vmatpush1.msra.mxu0 %v1814
  %1841 = vmatprep.subr.mxu0 0.0
  %1842 = vmatpush1.msra.mxu0 %v1813
  %1843 = vmatprep.subr.mxu0 0.0
  %1844 = vmatpush1.msra.mxu0 %v1812
  %1845 = vmatprep.subr.mxu0 0.0
  %1846 = vmatpush1.msra.mxu0 %v1811
  %1847 = vmatprep.subr.mxu0 0.0
  %1848 = vmatpush2.msra.mxu0 0.0
  %1849 = vmatprep.subr.mxu0 0.0
  %1850 = vmatpush2.msra.mxu0 0.0
  %1851 = vmatprep.subr.mxu0 0.0
  %1852 = vmatpush2.msra.mxu0 0.0
  %1853 = vmatprep.subr.mxu0 0.0
  %1854 = vmatpush2.msra.mxu0 0.0
  %1855 = vmatprep.subr.mxu0 0.0
  %1856 = vmatpush2.msra.mxu0 0.0
  %1857 = vmatprep.subr.mxu0 0.0
  %1858 = vmatpush2.msra.mxu0 0.0
  %1859 = vmatprep.subr.mxu0 0.0
  %1860 = vmatpush2.msra.mxu0 0.0
  %1861 = vmatprep.subr.mxu0 0.0
  %1862 = vmatpush2.msra.mxu0 0.0
  %1863 = vmatprep.subr.mxu0 0.0
  %1864 = vmatpush2.msra.mxu0 0.0
  %1865 = vmatprep.subr.mxu0 0.0
  %1866 = vmatpush2.msra.mxu0 0.0
  %1867 = vmatprep.subr.mxu0 0.0
  %1868 = vmatpush2.msra.mxu0 0.0
  %1869 = vmatprep.subr.mxu0 0.0
  %1870 = vmatpush2.msra.mxu0 0.0
  %1871 = vmatprep.subr.mxu0 0.0
  %1872 = vmatpush2.msra.mxu0 0.0
  %1873 = vmatprep.subr.mxu0 0.0
  %1874 = vmatpush2.msra.mxu0 0.0
  %1875 = vmatprep.subr.mxu0 0.0
  %1876 = vmatpush2.msra.mxu0 0.0
  %1877 = vmatprep.subr.mxu0 0.0
  %1878 = vmatpush2.msra.mxu0 0.0
  %1879 = vmatprep.mubr.f32.mxu0 0.0
  %1880 = vmatmul.mubr.f32.gmra.mxu0 %v846
  %v1881 = vpop.f32.mrf.mxu0
  %v1882 = vadd.f32 0.0, %v1881
  %v1883 = vpop.f32.mrf.mxu0
  %1884 = vmatprep.mubr.f32.mxu0 0.0
  %1885 = vmatmul.mubr.f32.gmra.mxu0 %v848
  %v1886 = vpop.f32.mrf.mxu0
  %v1887 = vadd.f32 0.0, %v1886
  %v1888 = vpop.f32.mrf.mxu0
  %1889 = vmatprep.mubr.f32.mxu0 0.0
  %1890 = vmatmul.mubr.f32.gmra.mxu0 %v850
  %v1891 = vpop.f32.mrf.mxu0
  %v1892 = vadd.f32 0.0, %v1891
  %v1893 = vpop.f32.mrf.mxu0
  %1894 = vmatprep.mubr.f32.mxu0 0.0
  %1895 = vmatmul.mubr.f32.gmra.mxu0 %v852
  %v1896 = vpop.f32.mrf.mxu0
  %v1897 = vadd.f32 0.0, %v1896
  %v1898 = vpop.f32.mrf.mxu0
  %1899 = vmatprep.mubr.f32.mxu0 0.0
  %1900 = vmatmul.mubr.f32.gmra.mxu0 %v854
  %v1901 = vpop.f32.mrf.mxu0
  %v1902 = vadd.f32 0.0, %v1901
  %v1903 = vpop.f32.mrf.mxu0
  %1904 = vmatprep.mubr.f32.mxu0 0.0
  %1905 = vmatmul.mubr.f32.gmra.mxu0 %v856
  %v1906 = vpop.f32.mrf.mxu0
  %v1907 = vadd.f32 0.0, %v1906
  %v1908 = vpop.f32.mrf.mxu0
  %1909 = vmatprep.mubr.f32.mxu0 0.0
  %1910 = vmatmul.mubr.f32.gmra.mxu0 %v858
  %v1911 = vpop.f32.mrf.mxu0
  %v1912 = vadd.f32 0.0, %v1911
  %v1913 = vpop.f32.mrf.mxu0
  %1914 = vmatprep.mubr.f32.mxu0 0.0
  %1915 = vmatmul.mubr.f32.gmra.mxu0 %v860
  %v1916 = vpop.f32.mrf.mxu0
  %v1917 = vadd.f32 0.0, %v1916
  %v1918 = vpop.f32.mrf.mxu0
  %1919 = vmatprep.mubr.f32.mxu0 0.0
  %1920 = vmatmul.mubr.f32.gmra.mxu0 %v862
  %v1921 = vpop.f32.mrf.mxu0
  %v1922 = vadd.f32 0.0, %v1921
  %v1923 = vpop.f32.mrf.mxu0
  %1924 = vmatprep.mubr.f32.mxu0 0.0
  %1925 = vmatmul.mubr.f32.gmra.mxu0 %v864
  %v1926 = vpop.f32.mrf.mxu0
  %v1927 = vadd.f32 0.0, %v1926
  %v1928 = vpop.f32.mrf.mxu0
  %1929 = vmatprep.mubr.f32.mxu0 0.0
  %1930 = vmatmul.mubr.f32.gmra.mxu0 %v866
  %v1931 = vpop.f32.mrf.mxu0
  %v1932 = vadd.f32 0.0, %v1931
  %v1933 = vpop.f32.mrf.mxu0
  %1934 = vmatprep.mubr.f32.mxu0 0.0
  %1935 = vmatmul.mubr.f32.gmra.mxu0 %v868
  %v1936 = vpop.f32.mrf.mxu0
  %v1937 = vadd.f32 0.0, %v1936
  %v1938 = vpop.f32.mrf.mxu0
  %1939 = vmatprep.mubr.f32.mxu0 0.0
  %1940 = vmatmul.mubr.f32.gmra.mxu0 %v870
  %v1941 = vpop.f32.mrf.mxu0
  %v1942 = vadd.f32 0.0, %v1941
  %v1943 = vpop.f32.mrf.mxu0
  %1944 = vmatprep.mubr.f32.mxu0 0.0
  %1945 = vmatmul.mubr.f32.gmra.mxu0 %v872
  %v1946 = vpop.f32.mrf.mxu0
  %v1947 = vadd.f32 0.0, %v1946
  %v1948 = vpop.f32.mrf.mxu0
  %1949 = vmatprep.mubr.f32.mxu0 0.0
  %1950 = vmatmul.mubr.f32.gmra.mxu0 %v874
  %v1951 = vpop.f32.mrf.mxu0
  %v1952 = vadd.f32 0.0, %v1951
  %v1953 = vpop.f32.mrf.mxu0
  %1954 = vmatprep.mubr.f32.mxu0 0.0
  %1955 = vmatmul.mubr.f32.gmra.mxu0 %v876
  %v1956 = vpop.f32.mrf.mxu0
  %v1957 = vadd.f32 0.0, %v1956
  %v1958 = vpop.f32.mrf.mxu0
  %1959 = vmatprep.mubr.f32.mxu0 0.0
  %1960 = vmatmul.mubr.f32.gmra.mxu0 %v878
  %v1961 = vpop.f32.mrf.mxu0
  %v1962 = vadd.f32 0.0, %v1961
  %v1963 = vpop.f32.mrf.mxu0
  %1964 = vmatprep.mubr.f32.mxu0 0.0
  %1965 = vmatmul.mubr.f32.gmra.mxu0 %v880
  %v1966 = vpop.f32.mrf.mxu0
  %v1967 = vadd.f32 0.0, %v1966
  %v1968 = vpop.f32.mrf.mxu0
  %1969 = vmatprep.mubr.f32.mxu0 0.0
  %1970 = vmatmul.mubr.f32.gmra.mxu0 %v882
  %v1971 = vpop.f32.mrf.mxu0
  %v1972 = vadd.f32 0.0, %v1971
  %v1973 = vpop.f32.mrf.mxu0
  %1974 = vmatprep.mubr.f32.mxu0 0.0
  %1975 = vmatmul.mubr.f32.gmra.mxu0 %v884
  %v1976 = vpop.f32.mrf.mxu0
  %v1977 = vadd.f32 0.0, %v1976
  %v1978 = vpop.f32.mrf.mxu0
  %1979 = vdwg.mxu0
  %1980 = vmatprep.subr.mxu0 0.0
  %1981 = vmatpush1.msra.mxu0 0.0
  %1982 = vmatprep.subr.mxu0 0.0
  %1983 = vmatpush1.msra.mxu0 0.0
  %1984 = vmatprep.subr.mxu0 0.0
  %1985 = vmatpush1.msra.mxu0 0.0
  %1986 = vmatprep.subr.mxu0 0.0
  %1987 = vmatpush1.msra.mxu0 0.0
  %1988 = vmatprep.subr.mxu0 0.0
  %1989 = vmatpush1.msra.mxu0 0.0
  %1990 = vmatprep.subr.mxu0 0.0
  %1991 = vmatpush1.msra.mxu0 0.0
  %1992 = vmatprep.subr.mxu0 0.0
  %1993 = vmatpush1.msra.mxu0 0.0
  %1994 = vmatprep.subr.mxu0 0.0
  %1995 = vmatpush1.msra.mxu0 0.0
  %1996 = vmatprep.subr.mxu0 0.0
  %1997 = vmatpush1.msra.mxu0 0.0
  %1998 = vmatprep.subr.mxu0 0.0
  %1999 = vmatpush1.msra.mxu0 0.0
  %2000 = vmatprep.subr.mxu0 0.0
  %2001 = vmatpush1.msra.mxu0 0.0
  %2002 = vmatprep.subr.mxu0 0.0
  %2003 = vmatpush1.msra.mxu0 0.0
  %2004 = vmatprep.subr.mxu0 0.0
  %2005 = vmatpush1.msra.mxu0 %v1809
  %2006 = vmatprep.subr.mxu0 0.0
  %2007 = vmatpush1.msra.mxu0 %v1808
  %2008 = vmatprep.subr.mxu0 0.0
  %2009 = vmatpush1.msra.mxu0 %v1807
  %2010 = vmatprep.subr.mxu0 0.0
  %2011 = vmatpush1.msra.mxu0 %v1806
  %2012 = vmatprep.subr.mxu0 0.0
  %2013 = vmatpush2.msra.mxu0 0.0
  %2014 = vmatprep.subr.mxu0 0.0
  %2015 = vmatpush2.msra.mxu0 0.0
  %2016 = vmatprep.subr.mxu0 0.0
  %2017 = vmatpush2.msra.mxu0 0.0
  %2018 = vmatprep.subr.mxu0 0.0
  %2019 = vmatpush2.msra.mxu0 0.0
  %2020 = vmatprep.subr.mxu0 0.0
  %2021 = vmatpush2.msra.mxu0 0.0
  %2022 = vmatprep.subr.mxu0 0.0
  %2023 = vmatpush2.msra.mxu0 0.0
  %2024 = vmatprep.subr.mxu0 0.0
  %2025 = vmatpush2.msra.mxu0 0.0
  %2026 = vmatprep.subr.mxu0 0.0
  %2027 = vmatpush2.msra.mxu0 0.0
  %2028 = vmatprep.subr.mxu0 0.0
  %2029 = vmatpush2.msra.mxu0 0.0
  %2030 = vmatprep.subr.mxu0 0.0
  %2031 = vmatpush2.msra.mxu0 0.0
  %2032 = vmatprep.subr.mxu0 0.0
  %2033 = vmatpush2.msra.mxu0 0.0
  %2034 = vmatprep.subr.mxu0 0.0
  %2035 = vmatpush2.msra.mxu0 0.0
  %2036 = vmatprep.subr.mxu0 0.0
  %2037 = vmatpush2.msra.mxu0 0.0
  %2038 = vmatprep.subr.mxu0 0.0
  %2039 = vmatpush2.msra.mxu0 0.0
  %2040 = vmatprep.subr.mxu0 0.0
  %2041 = vmatpush2.msra.mxu0 0.0
  %2042 = vmatprep.subr.mxu0 0.0
  %2043 = vmatpush2.msra.mxu0 0.0
  %2044 = vmatprep.mubr.f32.mxu0 0.0
  %2045 = vmatmul.mubr.f32.gmra.mxu0 %v574
  %v2046 = vpop.f32.mrf.mxu0
  %v2047 = vadd.f32 %v1882, %v2046
  %v2048 = vpop.f32.mrf.mxu0
  %2049 = vmatprep.mubr.f32.mxu0 0.0
  %2050 = vmatmul.mubr.f32.gmra.mxu0 %v576
  %v2051 = vpop.f32.mrf.mxu0
  %v2052 = vadd.f32 %v1887, %v2051
  %v2053 = vpop.f32.mrf.mxu0
  %2054 = vmatprep.mubr.f32.mxu0 0.0
  %2055 = vmatmul.mubr.f32.gmra.mxu0 %v578
  %v2056 = vpop.f32.mrf.mxu0
  %v2057 = vadd.f32 %v1892, %v2056
  %v2058 = vpop.f32.mrf.mxu0
  %2059 = vmatprep.mubr.f32.mxu0 0.0
  %2060 = vmatmul.mubr.f32.gmra.mxu0 %v580
  %v2061 = vpop.f32.mrf.mxu0
  %v2062 = vadd.f32 %v1897, %v2061
  %v2063 = vpop.f32.mrf.mxu0
  %2064 = vmatprep.mubr.f32.mxu0 0.0
  %2065 = vmatmul.mubr.f32.gmra.mxu0 %v582
  %v2066 = vpop.f32.mrf.mxu0
  %v2067 = vadd.f32 %v1902, %v2066
  %v2068 = vpop.f32.mrf.mxu0
  %2069 = vmatprep.mubr.f32.mxu0 0.0
  %2070 = vmatmul.mubr.f32.gmra.mxu0 %v584
  %v2071 = vpop.f32.mrf.mxu0
  %v2072 = vadd.f32 %v1907, %v2071
  %v2073 = vpop.f32.mrf.mxu0
  %2074 = vmatprep.mubr.f32.mxu0 0.0
  %2075 = vmatmul.mubr.f32.gmra.mxu0 %v586
  %v2076 = vpop.f32.mrf.mxu0
  %v2077 = vadd.f32 %v1912, %v2076
  %v2078 = vpop.f32.mrf.mxu0
  %2079 = vmatprep.mubr.f32.mxu0 0.0
  %2080 = vmatmul.mubr.f32.gmra.mxu0 %v588
  %v2081 = vpop.f32.mrf.mxu0
  %v2082 = vadd.f32 %v1917, %v2081
  %v2083 = vpop.f32.mrf.mxu0
  %2084 = vmatprep.mubr.f32.mxu0 0.0
  %2085 = vmatmul.mubr.f32.gmra.mxu0 %v590
  %v2086 = vpop.f32.mrf.mxu0
  %v2087 = vadd.f32 %v1922, %v2086
  %v2088 = vpop.f32.mrf.mxu0
  %2089 = vmatprep.mubr.f32.mxu0 0.0
  %2090 = vmatmul.mubr.f32.gmra.mxu0 %v592
  %v2091 = vpop.f32.mrf.mxu0
  %v2092 = vadd.f32 %v1927, %v2091
  %v2093 = vpop.f32.mrf.mxu0
  %2094 = vmatprep.mubr.f32.mxu0 0.0
  %2095 = vmatmul.mubr.f32.gmra.mxu0 %v594
  %v2096 = vpop.f32.mrf.mxu0
  %v2097 = vadd.f32 %v1932, %v2096
  %v2098 = vpop.f32.mrf.mxu0
  %2099 = vmatprep.mubr.f32.mxu0 0.0
  %2100 = vmatmul.mubr.f32.gmra.mxu0 %v596
  %v2101 = vpop.f32.mrf.mxu0
  %v2102 = vadd.f32 %v1937, %v2101
  %v2103 = vpop.f32.mrf.mxu0
  %2104 = vmatprep.mubr.f32.mxu0 0.0
  %2105 = vmatmul.mubr.f32.gmra.mxu0 %v598
  %v2106 = vpop.f32.mrf.mxu0
  %v2107 = vadd.f32 %v1942, %v2106
  %v2108 = vpop.f32.mrf.mxu0
  %2109 = vmatprep.mubr.f32.mxu0 0.0
  %2110 = vmatmul.mubr.f32.gmra.mxu0 %v600
  %v2111 = vpop.f32.mrf.mxu0
  %v2112 = vadd.f32 %v1947, %v2111
  %v2113 = vpop.f32.mrf.mxu0
  %2114 = vmatprep.mubr.f32.mxu0 0.0
  %2115 = vmatmul.mubr.f32.gmra.mxu0 %v602
  %v2116 = vpop.f32.mrf.mxu0
  %v2117 = vadd.f32 %v1952, %v2116
  %v2118 = vpop.f32.mrf.mxu0
  %2119 = vmatprep.mubr.f32.mxu0 0.0
  %2120 = vmatmul.mubr.f32.gmra.mxu0 %v604
  %v2121 = vpop.f32.mrf.mxu0
  %v2122 = vadd.f32 %v1957, %v2121
  %v2123 = vpop.f32.mrf.mxu0
  %2124 = vmatprep.mubr.f32.mxu0 0.0
  %2125 = vmatmul.mubr.f32.gmra.mxu0 %v606
  %v2126 = vpop.f32.mrf.mxu0
  %v2127 = vadd.f32 %v1962, %v2126
  %v2128 = vpop.f32.mrf.mxu0
  %2129 = vmatprep.mubr.f32.mxu0 0.0
  %2130 = vmatmul.mubr.f32.gmra.mxu0 %v608
  %v2131 = vpop.f32.mrf.mxu0
  %v2132 = vadd.f32 %v1967, %v2131
  %v2133 = vpop.f32.mrf.mxu0
  %2134 = vmatprep.mubr.f32.mxu0 0.0
  %2135 = vmatmul.mubr.f32.gmra.mxu0 %v610
  %v2136 = vpop.f32.mrf.mxu0
  %v2137 = vadd.f32 %v1972, %v2136
  %v2138 = vpop.f32.mrf.mxu0
  %2139 = vmatprep.mubr.f32.mxu0 0.0
  %2140 = vmatmul.mubr.f32.gmra.mxu0 %v612
  %v2141 = vpop.f32.mrf.mxu0
  %v2142 = vadd.f32 %v1977, %v2141
  %v2143 = vpop.f32.mrf.mxu0
  %2144 = vdwg.mxu0
  %s2145 = scalar_lea.vmem %s1, 320
  %v2146 = vld [vmem:[%s2145] sm:$0xff]
  %v2147 = vld [vmem:[%s2145 + $0x8] sm:$0xff]
  %v2148 = vld [vmem:[%s2145 + $0x10] sm:$0xff]
  %v2149 = vld [vmem:[%s2145 + $0x18] sm:$0xff]
  %v2151 = vsel %vm114, %v39, 0
  %v2154 = vsel %vm114, %v40, 0
  %2156 = vmatprep.subr.mxu0 0.0
  %2157 = vmatpush1.msra.mxu0 0.0
  %2158 = vmatprep.subr.mxu0 0.0
  %2159 = vmatpush1.msra.mxu0 0.0
  %2160 = vmatprep.subr.mxu0 0.0
  %2161 = vmatpush1.msra.mxu0 0.0
  %2162 = vmatprep.subr.mxu0 0.0
  %2163 = vmatpush1.msra.mxu0 0.0
  %2164 = vmatprep.subr.mxu0 0.0
  %2165 = vmatpush1.msra.mxu0 0.0
  %2166 = vmatprep.subr.mxu0 0.0
  %2167 = vmatpush1.msra.mxu0 0.0
  %2168 = vmatprep.subr.mxu0 0.0
  %2169 = vmatpush1.msra.mxu0 0.0
  %2170 = vmatprep.subr.mxu0 0.0
  %2171 = vmatpush1.msra.mxu0 0.0
  %2172 = vmatprep.subr.mxu0 0.0
  %2173 = vmatpush1.msra.mxu0 0.0
  %2174 = vmatprep.subr.mxu0 0.0
  %2175 = vmatpush1.msra.mxu0 0.0
  %2176 = vmatprep.subr.mxu0 0.0
  %2177 = vmatpush1.msra.mxu0 0.0
  %2178 = vmatprep.subr.mxu0 0.0
  %2179 = vmatpush1.msra.mxu0 0.0
  %2180 = vmatprep.subr.mxu0 0.0
  %2181 = vmatpush1.msra.mxu0 %v2149
  %2182 = vmatprep.subr.mxu0 0.0
  %2183 = vmatpush1.msra.mxu0 %v2148
  %2184 = vmatprep.subr.mxu0 0.0
  %2185 = vmatpush1.msra.mxu0 %v2147
  %2186 = vmatprep.subr.mxu0 0.0
  %2187 = vmatpush1.msra.mxu0 %v2146
  %2188 = vmatprep.subr.mxu0 0.0
  %2189 = vmatpush2.msra.mxu0 0.0
  %2190 = vmatprep.subr.mxu0 0.0
  %2191 = vmatpush2.msra.mxu0 0.0
  %2192 = vmatprep.subr.mxu0 0.0
  %2193 = vmatpush2.msra.mxu0 0.0
  %2194 = vmatprep.subr.mxu0 0.0
  %2195 = vmatpush2.msra.mxu0 0.0
  %2196 = vmatprep.subr.mxu0 0.0
  %2197 = vmatpush2.msra.mxu0 0.0
  %2198 = vmatprep.subr.mxu0 0.0
  %2199 = vmatpush2.msra.mxu0 0.0
  %2200 = vmatprep.subr.mxu0 0.0
  %2201 = vmatpush2.msra.mxu0 0.0
  %2202 = vmatprep.subr.mxu0 0.0
  %2203 = vmatpush2.msra.mxu0 0.0
  %2204 = vmatprep.subr.mxu0 0.0
  %2205 = vmatpush2.msra.mxu0 0.0
  %2206 = vmatprep.subr.mxu0 0.0
  %2207 = vmatpush2.msra.mxu0 0.0
  %2208 = vmatprep.subr.mxu0 0.0
  %2209 = vmatpush2.msra.mxu0 0.0
  %2210 = vmatprep.subr.mxu0 0.0
  %2211 = vmatpush2.msra.mxu0 0.0
  %2212 = vmatprep.subr.mxu0 0.0
  %2213 = vmatpush2.msra.mxu0 0.0
  %2214 = vmatprep.subr.mxu0 0.0
  %2215 = vmatpush2.msra.mxu0 0.0
  %2216 = vmatprep.subr.mxu0 0.0
  %2217 = vmatpush2.msra.mxu0 0.0
  %2218 = vmatprep.subr.mxu0 0.0
  %2219 = vmatpush2.msra.mxu0 0.0
  %2220 = vmatprep.mubr.f32.mxu0 0.0
  %2221 = vmatmul.mubr.f32.gmra.mxu0 %v330
  %v2222 = vpop.f32.mrf.mxu0
  %v2223 = vadd.f32 0.0, %v2222
  %v2224 = vpop.f32.mrf.mxu0
  %2225 = vmatprep.mubr.f32.mxu0 0.0
  %2226 = vmatmul.mubr.f32.gmra.mxu0 %v332
  %v2227 = vpop.f32.mrf.mxu0
  %v2228 = vadd.f32 0.0, %v2227
  %v2229 = vpop.f32.mrf.mxu0
  %2230 = vmatprep.mubr.f32.mxu0 0.0
  %2231 = vmatmul.mubr.f32.gmra.mxu0 %v334
  %v2232 = vpop.f32.mrf.mxu0
  %v2233 = vadd.f32 0.0, %v2232
  %v2234 = vpop.f32.mrf.mxu0
  %2235 = vmatprep.mubr.f32.mxu0 0.0
  %2236 = vmatmul.mubr.f32.gmra.mxu0 %v336
  %v2237 = vpop.f32.mrf.mxu0
  %v2238 = vadd.f32 0.0, %v2237
  %v2239 = vpop.f32.mrf.mxu0
  %2240 = vmatprep.mubr.f32.mxu0 0.0
  %2241 = vmatmul.mubr.f32.gmra.mxu0 %v338
  %v2242 = vpop.f32.mrf.mxu0
  %v2243 = vadd.f32 0.0, %v2242
  %v2244 = vpop.f32.mrf.mxu0
  %2245 = vmatprep.mubr.f32.mxu0 0.0
  %2246 = vmatmul.mubr.f32.gmra.mxu0 %v340
  %v2247 = vpop.f32.mrf.mxu0
  %v2248 = vadd.f32 0.0, %v2247
  %v2249 = vpop.f32.mrf.mxu0
  %2250 = vmatprep.mubr.f32.mxu0 0.0
  %2251 = vmatmul.mubr.f32.gmra.mxu0 %v342
  %v2252 = vpop.f32.mrf.mxu0
  %v2253 = vadd.f32 0.0, %v2252
  %v2254 = vpop.f32.mrf.mxu0
  %2255 = vmatprep.mubr.f32.mxu0 0.0
  %2256 = vmatmul.mubr.f32.gmra.mxu0 %v344
  %v2257 = vpop.f32.mrf.mxu0
  %v2258 = vadd.f32 0.0, %v2257
  %v2259 = vpop.f32.mrf.mxu0
  %2260 = vmatprep.mubr.f32.mxu0 0.0
  %2261 = vmatmul.mubr.f32.gmra.mxu0 %v346
  %v2262 = vpop.f32.mrf.mxu0
  %v2263 = vadd.f32 0.0, %v2262
  %v2264 = vpop.f32.mrf.mxu0
  %2265 = vmatprep.mubr.f32.mxu0 0.0
  %2266 = vmatmul.mubr.f32.gmra.mxu0 %v348
  %v2267 = vpop.f32.mrf.mxu0
  %v2268 = vadd.f32 0.0, %v2267
  %v2269 = vpop.f32.mrf.mxu0
  %2270 = vmatprep.mubr.f32.mxu0 0.0
  %2271 = vmatmul.mubr.f32.gmra.mxu0 %v350
  %v2272 = vpop.f32.mrf.mxu0
  %v2273 = vadd.f32 0.0, %v2272
  %v2274 = vpop.f32.mrf.mxu0
  %2275 = vmatprep.mubr.f32.mxu0 0.0
  %2276 = vmatmul.mubr.f32.gmra.mxu0 %v352
  %v2277 = vpop.f32.mrf.mxu0
  %v2278 = vadd.f32 0.0, %v2277
  %v2279 = vpop.f32.mrf.mxu0
  %2280 = vmatprep.mubr.f32.mxu0 0.0
  %2281 = vmatmul.mubr.f32.gmra.mxu0 %v354
  %v2282 = vpop.f32.mrf.mxu0
  %v2283 = vadd.f32 0.0, %v2282
  %v2284 = vpop.f32.mrf.mxu0
  %2285 = vmatprep.mubr.f32.mxu0 0.0
  %2286 = vmatmul.mubr.f32.gmra.mxu0 %v356
  %v2287 = vpop.f32.mrf.mxu0
  %v2288 = vadd.f32 0.0, %v2287
  %v2289 = vpop.f32.mrf.mxu0
  %2290 = vmatprep.mubr.f32.mxu0 0.0
  %2291 = vmatmul.mubr.f32.gmra.mxu0 %v358
  %v2292 = vpop.f32.mrf.mxu0
  %v2293 = vadd.f32 0.0, %v2292
  %v2294 = vpop.f32.mrf.mxu0
  %2295 = vmatprep.mubr.f32.mxu0 0.0
  %2296 = vmatmul.mubr.f32.gmra.mxu0 %v1614
  %v2297 = vpop.f32.mrf.mxu0
  %v2298 = vadd.f32 0.0, %v2297
  %v2299 = vpop.f32.mrf.mxu0
  %2300 = vmatprep.mubr.f32.mxu0 0.0
  %2301 = vmatmul.mubr.f32.gmra.mxu0 %v1616
  %v2302 = vpop.f32.mrf.mxu0
  %v2303 = vadd.f32 0.0, %v2302
  %v2304 = vpop.f32.mrf.mxu0
  %2305 = vmatprep.mubr.f32.mxu0 0.0
  %2306 = vmatmul.mubr.f32.gmra.mxu0 %v1618
  %v2307 = vpop.f32.mrf.mxu0
  %v2308 = vadd.f32 0.0, %v2307
  %v2309 = vpop.f32.mrf.mxu0
  %2310 = vmatprep.mubr.f32.mxu0 0.0
  %2311 = vmatmul.mubr.f32.gmra.mxu0 %v2151
  %v2312 = vpop.f32.mrf.mxu0
  %v2313 = vadd.f32 0.0, %v2312
  %v2314 = vpop.f32.mrf.mxu0
  %2315 = vmatprep.mubr.f32.mxu0 0.0
  %2316 = vmatmul.mubr.f32.gmra.mxu0 %v2154
  %v2317 = vpop.f32.mrf.mxu0
  %v2318 = vadd.f32 0.0, %v2317
  %v2319 = vpop.f32.mrf.mxu0
  %2320 = vdwg.mxu0
  %v2321 = vadd.f32 %v2047, %v2223
  %v2322 = vadd.f32 %v2052, %v2228
  %v2323 = vadd.f32 %v2057, %v2233
  %v2324 = vadd.f32 %v2062, %v2238
  %v2325 = vadd.f32 %v2067, %v2243
  %v2326 = vadd.f32 %v2072, %v2248
  %v2327 = vadd.f32 %v2077, %v2253
  %v2328 = vadd.f32 %v2082, %v2258
  %v2329 = vadd.f32 %v2087, %v2263
  %v2330 = vadd.f32 %v2092, %v2268
  %v2331 = vadd.f32 %v2097, %v2273
  %v2332 = vadd.f32 %v2102, %v2278
  %v2333 = vadd.f32 %v2107, %v2283
  %v2334 = vadd.f32 %v2112, %v2288
  %v2335 = vadd.f32 %v2117, %v2293
  %v2336 = vadd.f32 %v2122, %v2298
  %v2337 = vadd.f32 %v2127, %v2303
  %v2338 = vadd.f32 %v2132, %v2308
  %v2339 = vadd.f32 %v2137, %v2313
  %v2340 = vadd.f32 %v2142, %v2318
  %s2341 = scalar_lea.vmem %s1, 352
  %v2342 = vld [vmem:[%s2341] sm:$0xff]
  %v2343 = vld [vmem:[%s2341 + $0x8] sm:$0xff]
  %v2344 = vld [vmem:[%s2341 + $0x10] sm:$0xff]
  %v2345 = vld [vmem:[%s2341 + $0x18] sm:$0xff]
  %v2347 = vrot.slane %v37, 2
  %v2348 = vsel %vm72, %v112, %v2347
  %v2349 = vrot.slane %v38, 2
  %v2350 = vsel %vm72, %v2347, %v2349
  %v2351 = vrot.slane %v39, 2
  %v2352 = vsel %vm72, %v2349, %v2351
  %v2353 = vrot.slane %v40, 2
  %v2354 = vsel %vm72, %v2351, %v2353
  %v2355 = vrot.slane %v41, 2
  %v2356 = vsel %vm72, %v2353, %v2355
  %v2357 = vsel %vm114, %v2348, 0
  %v2359 = vsel %vm114, %v2350, 0
  %v2361 = vsel %vm114, %v2352, 0
  %v2363 = vsel %vm114, %v2354, 0
  %v2365 = vsel %vm114, %v2356, 0
  %2367 = vmatprep.subr.mxu0 0.0
  %2368 = vmatpush1.msra.mxu0 0.0
  %2369 = vmatprep.subr.mxu0 0.0
  %2370 = vmatpush1.msra.mxu0 0.0
  %2371 = vmatprep.subr.mxu0 0.0
  %2372 = vmatpush1.msra.mxu0 0.0
  %2373 = vmatprep.subr.mxu0 0.0
  %2374 = vmatpush1.msra.mxu0 0.0
  %2375 = vmatprep.subr.mxu0 0.0
  %2376 = vmatpush1.msra.mxu0 0.0
  %2377 = vmatprep.subr.mxu0 0.0
  %2378 = vmatpush1.msra.mxu0 0.0
  %2379 = vmatprep.subr.mxu0 0.0
  %2380 = vmatpush1.msra.mxu0 0.0
  %2381 = vmatprep.subr.mxu0 0.0
  %2382 = vmatpush1.msra.mxu0 0.0
  %2383 = vmatprep.subr.mxu0 0.0
  %2384 = vmatpush1.msra.mxu0 0.0
  %2385 = vmatprep.subr.mxu0 0.0
  %2386 = vmatpush1.msra.mxu0 0.0
  %2387 = vmatprep.subr.mxu0 0.0
  %2388 = vmatpush1.msra.mxu0 0.0
  %2389 = vmatprep.subr.mxu0 0.0
  %2390 = vmatpush1.msra.mxu0 0.0
  %2391 = vmatprep.subr.mxu0 0.0
  %2392 = vmatpush1.msra.mxu0 %v2345
  %2393 = vmatprep.subr.mxu0 0.0
  %2394 = vmatpush1.msra.mxu0 %v2344
  %2395 = vmatprep.subr.mxu0 0.0
  %2396 = vmatpush1.msra.mxu0 %v2343
  %2397 = vmatprep.subr.mxu0 0.0
  %2398 = vmatpush1.msra.mxu0 %v2342
  %2399 = vmatprep.subr.mxu0 0.0
  %2400 = vmatpush2.msra.mxu0 0.0
  %2401 = vmatprep.subr.mxu0 0.0
  %2402 = vmatpush2.msra.mxu0 0.0
  %2403 = vmatprep.subr.mxu0 0.0
  %2404 = vmatpush2.msra.mxu0 0.0
  %2405 = vmatprep.subr.mxu0 0.0
  %2406 = vmatpush2.msra.mxu0 0.0
  %2407 = vmatprep.subr.mxu0 0.0
  %2408 = vmatpush2.msra.mxu0 0.0
  %2409 = vmatprep.subr.mxu0 0.0
  %2410 = vmatpush2.msra.mxu0 0.0
  %2411 = vmatprep.subr.mxu0 0.0
  %2412 = vmatpush2.msra.mxu0 0.0
  %2413 = vmatprep.subr.mxu0 0.0
  %2414 = vmatpush2.msra.mxu0 0.0
  %2415 = vmatprep.subr.mxu0 0.0
  %2416 = vmatpush2.msra.mxu0 0.0
  %2417 = vmatprep.subr.mxu0 0.0
  %2418 = vmatpush2.msra.mxu0 0.0
  %2419 = vmatprep.subr.mxu0 0.0
  %2420 = vmatpush2.msra.mxu0 0.0
  %2421 = vmatprep.subr.mxu0 0.0
  %2422 = vmatpush2.msra.mxu0 0.0
  %2423 = vmatprep.subr.mxu0 0.0
  %2424 = vmatpush2.msra.mxu0 0.0
  %2425 = vmatprep.subr.mxu0 0.0
  %2426 = vmatpush2.msra.mxu0 0.0
  %2427 = vmatprep.subr.mxu0 0.0
  %2428 = vmatpush2.msra.mxu0 0.0
  %2429 = vmatprep.subr.mxu0 0.0
  %2430 = vmatpush2.msra.mxu0 0.0
  %2431 = vmatprep.mubr.f32.mxu0 0.0
  %2432 = vmatmul.mubr.f32.gmra.mxu0 %v125
  %v2433 = vpop.f32.mrf.mxu0
  %v2434 = vadd.f32 0.0, %v2433
  %v2435 = vpop.f32.mrf.mxu0
  %2436 = vmatprep.mubr.f32.mxu0 0.0
  %2437 = vmatmul.mubr.f32.gmra.mxu0 %v127
  %v2438 = vpop.f32.mrf.mxu0
  %v2439 = vadd.f32 0.0, %v2438
  %v2440 = vpop.f32.mrf.mxu0
  %2441 = vmatprep.mubr.f32.mxu0 0.0
  %2442 = vmatmul.mubr.f32.gmra.mxu0 %v129
  %v2443 = vpop.f32.mrf.mxu0
  %v2444 = vadd.f32 0.0, %v2443
  %v2445 = vpop.f32.mrf.mxu0
  %2446 = vmatprep.mubr.f32.mxu0 0.0
  %2447 = vmatmul.mubr.f32.gmra.mxu0 %v131
  %v2448 = vpop.f32.mrf.mxu0
  %v2449 = vadd.f32 0.0, %v2448
  %v2450 = vpop.f32.mrf.mxu0
  %2451 = vmatprep.mubr.f32.mxu0 0.0
  %2452 = vmatmul.mubr.f32.gmra.mxu0 %v133
  %v2453 = vpop.f32.mrf.mxu0
  %v2454 = vadd.f32 0.0, %v2453
  %v2455 = vpop.f32.mrf.mxu0
  %2456 = vmatprep.mubr.f32.mxu0 0.0
  %2457 = vmatmul.mubr.f32.gmra.mxu0 %v135
  %v2458 = vpop.f32.mrf.mxu0
  %v2459 = vadd.f32 0.0, %v2458
  %v2460 = vpop.f32.mrf.mxu0
  %2461 = vmatprep.mubr.f32.mxu0 0.0
  %2462 = vmatmul.mubr.f32.gmra.mxu0 %v137
  %v2463 = vpop.f32.mrf.mxu0
  %v2464 = vadd.f32 0.0, %v2463
  %v2465 = vpop.f32.mrf.mxu0
  %2466 = vmatprep.mubr.f32.mxu0 0.0
  %2467 = vmatmul.mubr.f32.gmra.mxu0 %v139
  %v2468 = vpop.f32.mrf.mxu0
  %v2469 = vadd.f32 0.0, %v2468
  %v2470 = vpop.f32.mrf.mxu0
  %2471 = vmatprep.mubr.f32.mxu0 0.0
  %2472 = vmatmul.mubr.f32.gmra.mxu0 %v141
  %v2473 = vpop.f32.mrf.mxu0
  %v2474 = vadd.f32 0.0, %v2473
  %v2475 = vpop.f32.mrf.mxu0
  %2476 = vmatprep.mubr.f32.mxu0 0.0
  %2477 = vmatmul.mubr.f32.gmra.mxu0 %v143
  %v2478 = vpop.f32.mrf.mxu0
  %v2479 = vadd.f32 0.0, %v2478
  %v2480 = vpop.f32.mrf.mxu0
  %2481 = vmatprep.mubr.f32.mxu0 0.0
  %2482 = vmatmul.mubr.f32.gmra.mxu0 %v145
  %v2483 = vpop.f32.mrf.mxu0
  %v2484 = vadd.f32 0.0, %v2483
  %v2485 = vpop.f32.mrf.mxu0
  %2486 = vmatprep.mubr.f32.mxu0 0.0
  %2487 = vmatmul.mubr.f32.gmra.mxu0 %v147
  %v2488 = vpop.f32.mrf.mxu0
  %v2489 = vadd.f32 0.0, %v2488
  %v2490 = vpop.f32.mrf.mxu0
  %2491 = vmatprep.mubr.f32.mxu0 0.0
  %2492 = vmatmul.mubr.f32.gmra.mxu0 %v149
  %v2493 = vpop.f32.mrf.mxu0
  %v2494 = vadd.f32 0.0, %v2493
  %v2495 = vpop.f32.mrf.mxu0
  %2496 = vmatprep.mubr.f32.mxu0 0.0
  %2497 = vmatmul.mubr.f32.gmra.mxu0 %v151
  %v2498 = vpop.f32.mrf.mxu0
  %v2499 = vadd.f32 0.0, %v2498
  %v2500 = vpop.f32.mrf.mxu0
  %2501 = vmatprep.mubr.f32.mxu0 0.0
  %2502 = vmatmul.mubr.f32.gmra.mxu0 %v153
  %v2503 = vpop.f32.mrf.mxu0
  %v2504 = vadd.f32 0.0, %v2503
  %v2505 = vpop.f32.mrf.mxu0
  %2506 = vmatprep.mubr.f32.mxu0 0.0
  %2507 = vmatmul.mubr.f32.gmra.mxu0 %v2357
  %v2508 = vpop.f32.mrf.mxu0
  %v2509 = vadd.f32 0.0, %v2508
  %v2510 = vpop.f32.mrf.mxu0
  %2511 = vmatprep.mubr.f32.mxu0 0.0
  %2512 = vmatmul.mubr.f32.gmra.mxu0 %v2359
  %v2513 = vpop.f32.mrf.mxu0
  %v2514 = vadd.f32 0.0, %v2513
  %v2515 = vpop.f32.mrf.mxu0
  %2516 = vmatprep.mubr.f32.mxu0 0.0
  %2517 = vmatmul.mubr.f32.gmra.mxu0 %v2361
  %v2518 = vpop.f32.mrf.mxu0
  %v2519 = vadd.f32 0.0, %v2518
  %v2520 = vpop.f32.mrf.mxu0
  %2521 = vmatprep.mubr.f32.mxu0 0.0
  %2522 = vmatmul.mubr.f32.gmra.mxu0 %v2363
  %v2523 = vpop.f32.mrf.mxu0
  %v2524 = vadd.f32 0.0, %v2523
  %v2525 = vpop.f32.mrf.mxu0
  %2526 = vmatprep.mubr.f32.mxu0 0.0
  %2527 = vmatmul.mubr.f32.gmra.mxu0 %v2365
  %v2528 = vpop.f32.mrf.mxu0
  %v2529 = vadd.f32 0.0, %v2528
  %v2530 = vpop.f32.mrf.mxu0
  %2531 = vdwg.mxu0
  %v2532 = vadd.f32 %v2321, %v2434
  %v2533 = vadd.f32 %v2322, %v2439
  %v2534 = vadd.f32 %v2323, %v2444
  %v2535 = vadd.f32 %v2324, %v2449
  %v2536 = vadd.f32 %v2325, %v2454
  %v2537 = vadd.f32 %v2326, %v2459
  %v2538 = vadd.f32 %v2327, %v2464
  %v2539 = vadd.f32 %v2328, %v2469
  %v2540 = vadd.f32 %v2329, %v2474
  %v2541 = vadd.f32 %v2330, %v2479
  %v2542 = vadd.f32 %v2331, %v2484
  %v2543 = vadd.f32 %v2332, %v2489
  %v2544 = vadd.f32 %v2333, %v2494
  %v2545 = vadd.f32 %v2334, %v2499
  %v2546 = vadd.f32 %v2335, %v2504
  %v2547 = vadd.f32 %v2336, %v2509
  %v2548 = vadd.f32 %v2337, %v2514
  %v2549 = vadd.f32 %v2338, %v2519
  %v2550 = vadd.f32 %v2339, %v2524
  %v2551 = vadd.f32 %v2340, %v2529
  %s2552 = scalar_lea.vmem %s1, 384
  %v2553 = vld [vmem:[%s2552] sm:$0xff]
  %v2554 = vld [vmem:[%s2552 + $0x8] sm:$0xff]
  %v2555 = vld [vmem:[%s2552 + $0x10] sm:$0xff]
  %v2556 = vld [vmem:[%s2552 + $0x18] sm:$0xff]
  %s2557 = scalar_lea.vmem %s1, 416
  %v2558 = vld [vmem:[%s2557] sm:$0xff]
  %v2559 = vld [vmem:[%s2557 + $0x8] sm:$0xff]
  %v2560 = vld [vmem:[%s2557 + $0x10] sm:$0xff]
  %v2561 = vld [vmem:[%s2557 + $0x18] sm:$0xff]
  %2562 = vmatprep.subr.mxu0 0.0
  %2563 = vmatpush1.msra.mxu0 0.0
  %2564 = vmatprep.subr.mxu0 0.0
  %2565 = vmatpush1.msra.mxu0 0.0
  %2566 = vmatprep.subr.mxu0 0.0
  %2567 = vmatpush1.msra.mxu0 0.0
  %2568 = vmatprep.subr.mxu0 0.0
  %2569 = vmatpush1.msra.mxu0 0.0
  %2570 = vmatprep.subr.mxu0 0.0
  %2571 = vmatpush1.msra.mxu0 0.0
  %2572 = vmatprep.subr.mxu0 0.0
  %2573 = vmatpush1.msra.mxu0 0.0
  %2574 = vmatprep.subr.mxu0 0.0
  %2575 = vmatpush1.msra.mxu0 0.0
  %2576 = vmatprep.subr.mxu0 0.0
  %2577 = vmatpush1.msra.mxu0 0.0
  %2578 = vmatprep.subr.mxu0 0.0
  %2579 = vmatpush1.msra.mxu0 0.0
  %2580 = vmatprep.subr.mxu0 0.0
  %2581 = vmatpush1.msra.mxu0 0.0
  %2582 = vmatprep.subr.mxu0 0.0
  %2583 = vmatpush1.msra.mxu0 0.0
  %2584 = vmatprep.subr.mxu0 0.0
  %2585 = vmatpush1.msra.mxu0 0.0
  %2586 = vmatprep.subr.mxu0 0.0
  %2587 = vmatpush1.msra.mxu0 %v2561
  %2588 = vmatprep.subr.mxu0 0.0
  %2589 = vmatpush1.msra.mxu0 %v2560
  %2590 = vmatprep.subr.mxu0 0.0
  %2591 = vmatpush1.msra.mxu0 %v2559
  %2592 = vmatprep.subr.mxu0 0.0
  %2593 = vmatpush1.msra.mxu0 %v2558
  %2594 = vmatprep.subr.mxu0 0.0
  %2595 = vmatpush2.msra.mxu0 0.0
  %2596 = vmatprep.subr.mxu0 0.0
  %2597 = vmatpush2.msra.mxu0 0.0
  %2598 = vmatprep.subr.mxu0 0.0
  %2599 = vmatpush2.msra.mxu0 0.0
  %2600 = vmatprep.subr.mxu0 0.0
  %2601 = vmatpush2.msra.mxu0 0.0
  %2602 = vmatprep.subr.mxu0 0.0
  %2603 = vmatpush2.msra.mxu0 0.0
  %2604 = vmatprep.subr.mxu0 0.0
  %2605 = vmatpush2.msra.mxu0 0.0
  %2606 = vmatprep.subr.mxu0 0.0
  %2607 = vmatpush2.msra.mxu0 0.0
  %2608 = vmatprep.subr.mxu0 0.0
  %2609 = vmatpush2.msra.mxu0 0.0
  %2610 = vmatprep.subr.mxu0 0.0
  %2611 = vmatpush2.msra.mxu0 0.0
  %2612 = vmatprep.subr.mxu0 0.0
  %2613 = vmatpush2.msra.mxu0 0.0
  %2614 = vmatprep.subr.mxu0 0.0
  %2615 = vmatpush2.msra.mxu0 0.0
  %2616 = vmatprep.subr.mxu0 0.0
  %2617 = vmatpush2.msra.mxu0 0.0
  %2618 = vmatprep.subr.mxu0 0.0
  %2619 = vmatpush2.msra.mxu0 0.0
  %2620 = vmatprep.subr.mxu0 0.0
  %2621 = vmatpush2.msra.mxu0 0.0
  %2622 = vmatprep.subr.mxu0 0.0
  %2623 = vmatpush2.msra.mxu0 0.0
  %2624 = vmatprep.subr.mxu0 0.0
  %2625 = vmatpush2.msra.mxu0 0.0
  %2626 = vmatprep.mubr.f32.mxu0 0.0
  %2627 = vmatmul.mubr.f32.gmra.mxu0 %v326
  %v2628 = vpop.f32.mrf.mxu0
  %v2629 = vadd.f32 0.0, %v2628
  %v2630 = vpop.f32.mrf.mxu0
  %2631 = vmatprep.mubr.f32.mxu0 0.0
  %2632 = vmatmul.mubr.f32.gmra.mxu0 %v328
  %v2633 = vpop.f32.mrf.mxu0
  %v2634 = vadd.f32 0.0, %v2633
  %v2635 = vpop.f32.mrf.mxu0
  %2636 = vmatprep.mubr.f32.mxu0 0.0
  %2637 = vmatmul.mubr.f32.gmra.mxu0 %v330
  %v2638 = vpop.f32.mrf.mxu0
  %v2639 = vadd.f32 0.0, %v2638
  %v2640 = vpop.f32.mrf.mxu0
  %2641 = vmatprep.mubr.f32.mxu0 0.0
  %2642 = vmatmul.mubr.f32.gmra.mxu0 %v332
  %v2643 = vpop.f32.mrf.mxu0
  %v2644 = vadd.f32 0.0, %v2643
  %v2645 = vpop.f32.mrf.mxu0
  %2646 = vmatprep.mubr.f32.mxu0 0.0
  %2647 = vmatmul.mubr.f32.gmra.mxu0 %v334
  %v2648 = vpop.f32.mrf.mxu0
  %v2649 = vadd.f32 0.0, %v2648
  %v2650 = vpop.f32.mrf.mxu0
  %2651 = vmatprep.mubr.f32.mxu0 0.0
  %2652 = vmatmul.mubr.f32.gmra.mxu0 %v336
  %v2653 = vpop.f32.mrf.mxu0
  %v2654 = vadd.f32 0.0, %v2653
  %v2655 = vpop.f32.mrf.mxu0
  %2656 = vmatprep.mubr.f32.mxu0 0.0
  %2657 = vmatmul.mubr.f32.gmra.mxu0 %v338
  %v2658 = vpop.f32.mrf.mxu0
  %v2659 = vadd.f32 0.0, %v2658
  %v2660 = vpop.f32.mrf.mxu0
  %2661 = vmatprep.mubr.f32.mxu0 0.0
  %2662 = vmatmul.mubr.f32.gmra.mxu0 %v340
  %v2663 = vpop.f32.mrf.mxu0
  %v2664 = vadd.f32 0.0, %v2663
  %v2665 = vpop.f32.mrf.mxu0
  %2666 = vmatprep.mubr.f32.mxu0 0.0
  %2667 = vmatmul.mubr.f32.gmra.mxu0 %v342
  %v2668 = vpop.f32.mrf.mxu0
  %v2669 = vadd.f32 0.0, %v2668
  %v2670 = vpop.f32.mrf.mxu0
  %2671 = vmatprep.mubr.f32.mxu0 0.0
  %2672 = vmatmul.mubr.f32.gmra.mxu0 %v344
  %v2673 = vpop.f32.mrf.mxu0
  %v2674 = vadd.f32 0.0, %v2673
  %v2675 = vpop.f32.mrf.mxu0
  %2676 = vmatprep.mubr.f32.mxu0 0.0
  %2677 = vmatmul.mubr.f32.gmra.mxu0 %v346
  %v2678 = vpop.f32.mrf.mxu0
  %v2679 = vadd.f32 0.0, %v2678
  %v2680 = vpop.f32.mrf.mxu0
  %2681 = vmatprep.mubr.f32.mxu0 0.0
  %2682 = vmatmul.mubr.f32.gmra.mxu0 %v348
  %v2683 = vpop.f32.mrf.mxu0
  %v2684 = vadd.f32 0.0, %v2683
  %v2685 = vpop.f32.mrf.mxu0
  %2686 = vmatprep.mubr.f32.mxu0 0.0
  %2687 = vmatmul.mubr.f32.gmra.mxu0 %v350
  %v2688 = vpop.f32.mrf.mxu0
  %v2689 = vadd.f32 0.0, %v2688
  %v2690 = vpop.f32.mrf.mxu0
  %2691 = vmatprep.mubr.f32.mxu0 0.0
  %2692 = vmatmul.mubr.f32.gmra.mxu0 %v352
  %v2693 = vpop.f32.mrf.mxu0
  %v2694 = vadd.f32 0.0, %v2693
  %v2695 = vpop.f32.mrf.mxu0
  %2696 = vmatprep.mubr.f32.mxu0 0.0
  %2697 = vmatmul.mubr.f32.gmra.mxu0 %v354
  %v2698 = vpop.f32.mrf.mxu0
  %v2699 = vadd.f32 0.0, %v2698
  %v2700 = vpop.f32.mrf.mxu0
  %2701 = vmatprep.mubr.f32.mxu0 0.0
  %2702 = vmatmul.mubr.f32.gmra.mxu0 %v356
  %v2703 = vpop.f32.mrf.mxu0
  %v2704 = vadd.f32 0.0, %v2703
  %v2705 = vpop.f32.mrf.mxu0
  %2706 = vmatprep.mubr.f32.mxu0 0.0
  %2707 = vmatmul.mubr.f32.gmra.mxu0 %v358
  %v2708 = vpop.f32.mrf.mxu0
  %v2709 = vadd.f32 0.0, %v2708
  %v2710 = vpop.f32.mrf.mxu0
  %2711 = vmatprep.mubr.f32.mxu0 0.0
  %2712 = vmatmul.mubr.f32.gmra.mxu0 %v1614
  %v2713 = vpop.f32.mrf.mxu0
  %v2714 = vadd.f32 0.0, %v2713
  %v2715 = vpop.f32.mrf.mxu0
  %2716 = vmatprep.mubr.f32.mxu0 0.0
  %2717 = vmatmul.mubr.f32.gmra.mxu0 %v1616
  %v2718 = vpop.f32.mrf.mxu0
  %v2719 = vadd.f32 0.0, %v2718
  %v2720 = vpop.f32.mrf.mxu0
  %2721 = vmatprep.mubr.f32.mxu0 0.0
  %2722 = vmatmul.mubr.f32.gmra.mxu0 %v1618
  %v2723 = vpop.f32.mrf.mxu0
  %v2724 = vadd.f32 0.0, %v2723
  %v2725 = vpop.f32.mrf.mxu0
  %2726 = vdwg.mxu0
  %2727 = vmatprep.subr.mxu0 0.0
  %2728 = vmatpush1.msra.mxu0 0.0
  %2729 = vmatprep.subr.mxu0 0.0
  %2730 = vmatpush1.msra.mxu0 0.0
  %2731 = vmatprep.subr.mxu0 0.0
  %2732 = vmatpush1.msra.mxu0 0.0
  %2733 = vmatprep.subr.mxu0 0.0
  %2734 = vmatpush1.msra.mxu0 0.0
  %2735 = vmatprep.subr.mxu0 0.0
  %2736 = vmatpush1.msra.mxu0 0.0
  %2737 = vmatprep.subr.mxu0 0.0
  %2738 = vmatpush1.msra.mxu0 0.0
  %2739 = vmatprep.subr.mxu0 0.0
  %2740 = vmatpush1.msra.mxu0 0.0
  %2741 = vmatprep.subr.mxu0 0.0
  %2742 = vmatpush1.msra.mxu0 0.0
  %2743 = vmatprep.subr.mxu0 0.0
  %2744 = vmatpush1.msra.mxu0 0.0
  %2745 = vmatprep.subr.mxu0 0.0
  %2746 = vmatpush1.msra.mxu0 0.0
  %2747 = vmatprep.subr.mxu0 0.0
  %2748 = vmatpush1.msra.mxu0 0.0
  %2749 = vmatprep.subr.mxu0 0.0
  %2750 = vmatpush1.msra.mxu0 0.0
  %2751 = vmatprep.subr.mxu0 0.0
  %2752 = vmatpush1.msra.mxu0 %v2556
  %2753 = vmatprep.subr.mxu0 0.0
  %2754 = vmatpush1.msra.mxu0 %v2555
  %2755 = vmatprep.subr.mxu0 0.0
  %2756 = vmatpush1.msra.mxu0 %v2554
  %2757 = vmatprep.subr.mxu0 0.0
  %2758 = vmatpush1.msra.mxu0 %v2553
  %2759 = vmatprep.subr.mxu0 0.0
  %2760 = vmatpush2.msra.mxu0 0.0
  %2761 = vmatprep.subr.mxu0 0.0
  %2762 = vmatpush2.msra.mxu0 0.0
  %2763 = vmatprep.subr.mxu0 0.0
  %2764 = vmatpush2.msra.mxu0 0.0
  %2765 = vmatprep.subr.mxu0 0.0
  %2766 = vmatpush2.msra.mxu0 0.0
  %2767 = vmatprep.subr.mxu0 0.0
  %2768 = vmatpush2.msra.mxu0 0.0
  %2769 = vmatprep.subr.mxu0 0.0
  %2770 = vmatpush2.msra.mxu0 0.0
  %2771 = vmatprep.subr.mxu0 0.0
  %2772 = vmatpush2.msra.mxu0 0.0
  %2773 = vmatprep.subr.mxu0 0.0
  %2774 = vmatpush2.msra.mxu0 0.0
  %2775 = vmatprep.subr.mxu0 0.0
  %2776 = vmatpush2.msra.mxu0 0.0
  %2777 = vmatprep.subr.mxu0 0.0
  %2778 = vmatpush2.msra.mxu0 0.0
  %2779 = vmatprep.subr.mxu0 0.0
  %2780 = vmatpush2.msra.mxu0 0.0
  %2781 = vmatprep.subr.mxu0 0.0
  %2782 = vmatpush2.msra.mxu0 0.0
  %2783 = vmatprep.subr.mxu0 0.0
  %2784 = vmatpush2.msra.mxu0 0.0
  %2785 = vmatprep.subr.mxu0 0.0
  %2786 = vmatpush2.msra.mxu0 0.0
  %2787 = vmatprep.subr.mxu0 0.0
  %2788 = vmatpush2.msra.mxu0 0.0
  %2789 = vmatprep.subr.mxu0 0.0
  %2790 = vmatpush2.msra.mxu0 0.0
  %2791 = vmatprep.mubr.f32.mxu0 0.0
  %2792 = vmatmul.mubr.f32.gmra.mxu0 %v846
  %v2793 = vpop.f32.mrf.mxu0
  %v2794 = vadd.f32 %v2629, %v2793
  %v2795 = vpop.f32.mrf.mxu0
  %2796 = vmatprep.mubr.f32.mxu0 0.0
  %2797 = vmatmul.mubr.f32.gmra.mxu0 %v848
  %v2798 = vpop.f32.mrf.mxu0
  %v2799 = vadd.f32 %v2634, %v2798
  %v2800 = vpop.f32.mrf.mxu0
  %2801 = vmatprep.mubr.f32.mxu0 0.0
  %2802 = vmatmul.mubr.f32.gmra.mxu0 %v850
  %v2803 = vpop.f32.mrf.mxu0
  %v2804 = vadd.f32 %v2639, %v2803
  %v2805 = vpop.f32.mrf.mxu0
  %2806 = vmatprep.mubr.f32.mxu0 0.0
  %2807 = vmatmul.mubr.f32.gmra.mxu0 %v852
  %v2808 = vpop.f32.mrf.mxu0
  %v2809 = vadd.f32 %v2644, %v2808
  %v2810 = vpop.f32.mrf.mxu0
  %2811 = vmatprep.mubr.f32.mxu0 0.0
  %2812 = vmatmul.mubr.f32.gmra.mxu0 %v854
  %v2813 = vpop.f32.mrf.mxu0
  %v2814 = vadd.f32 %v2649, %v2813
  %v2815 = vpop.f32.mrf.mxu0
  %2816 = vmatprep.mubr.f32.mxu0 0.0
  %2817 = vmatmul.mubr.f32.gmra.mxu0 %v856
  %v2818 = vpop.f32.mrf.mxu0
  %v2819 = vadd.f32 %v2654, %v2818
  %v2820 = vpop.f32.mrf.mxu0
  %2821 = vmatprep.mubr.f32.mxu0 0.0
  %2822 = vmatmul.mubr.f32.gmra.mxu0 %v858
  %v2823 = vpop.f32.mrf.mxu0
  %v2824 = vadd.f32 %v2659, %v2823
  %v2825 = vpop.f32.mrf.mxu0
  %2826 = vmatprep.mubr.f32.mxu0 0.0
  %2827 = vmatmul.mubr.f32.gmra.mxu0 %v860
  %v2828 = vpop.f32.mrf.mxu0
  %v2829 = vadd.f32 %v2664, %v2828
  %v2830 = vpop.f32.mrf.mxu0
  %2831 = vmatprep.mubr.f32.mxu0 0.0
  %2832 = vmatmul.mubr.f32.gmra.mxu0 %v862
  %v2833 = vpop.f32.mrf.mxu0
  %v2834 = vadd.f32 %v2669, %v2833
  %v2835 = vpop.f32.mrf.mxu0
  %2836 = vmatprep.mubr.f32.mxu0 0.0
  %2837 = vmatmul.mubr.f32.gmra.mxu0 %v864
  %v2838 = vpop.f32.mrf.mxu0
  %v2839 = vadd.f32 %v2674, %v2838
  %v2840 = vpop.f32.mrf.mxu0
  %2841 = vmatprep.mubr.f32.mxu0 0.0
  %2842 = vmatmul.mubr.f32.gmra.mxu0 %v866
  %v2843 = vpop.f32.mrf.mxu0
  %v2844 = vadd.f32 %v2679, %v2843
  %v2845 = vpop.f32.mrf.mxu0
  %2846 = vmatprep.mubr.f32.mxu0 0.0
  %2847 = vmatmul.mubr.f32.gmra.mxu0 %v868
  %v2848 = vpop.f32.mrf.mxu0
  %v2849 = vadd.f32 %v2684, %v2848
  %v2850 = vpop.f32.mrf.mxu0
  %2851 = vmatprep.mubr.f32.mxu0 0.0
  %2852 = vmatmul.mubr.f32.gmra.mxu0 %v870
  %v2853 = vpop.f32.mrf.mxu0
  %v2854 = vadd.f32 %v2689, %v2853
  %v2855 = vpop.f32.mrf.mxu0
  %2856 = vmatprep.mubr.f32.mxu0 0.0
  %2857 = vmatmul.mubr.f32.gmra.mxu0 %v872
  %v2858 = vpop.f32.mrf.mxu0
  %v2859 = vadd.f32 %v2694, %v2858
  %v2860 = vpop.f32.mrf.mxu0
  %2861 = vmatprep.mubr.f32.mxu0 0.0
  %2862 = vmatmul.mubr.f32.gmra.mxu0 %v874
  %v2863 = vpop.f32.mrf.mxu0
  %v2864 = vadd.f32 %v2699, %v2863
  %v2865 = vpop.f32.mrf.mxu0
  %2866 = vmatprep.mubr.f32.mxu0 0.0
  %2867 = vmatmul.mubr.f32.gmra.mxu0 %v876
  %v2868 = vpop.f32.mrf.mxu0
  %v2869 = vadd.f32 %v2704, %v2868
  %v2870 = vpop.f32.mrf.mxu0
  %2871 = vmatprep.mubr.f32.mxu0 0.0
  %2872 = vmatmul.mubr.f32.gmra.mxu0 %v878
  %v2873 = vpop.f32.mrf.mxu0
  %v2874 = vadd.f32 %v2709, %v2873
  %v2875 = vpop.f32.mrf.mxu0
  %2876 = vmatprep.mubr.f32.mxu0 0.0
  %2877 = vmatmul.mubr.f32.gmra.mxu0 %v880
  %v2878 = vpop.f32.mrf.mxu0
  %v2879 = vadd.f32 %v2714, %v2878
  %v2880 = vpop.f32.mrf.mxu0
  %2881 = vmatprep.mubr.f32.mxu0 0.0
  %2882 = vmatmul.mubr.f32.gmra.mxu0 %v882
  %v2883 = vpop.f32.mrf.mxu0
  %v2884 = vadd.f32 %v2719, %v2883
  %v2885 = vpop.f32.mrf.mxu0
  %2886 = vmatprep.mubr.f32.mxu0 0.0
  %2887 = vmatmul.mubr.f32.gmra.mxu0 %v884
  %v2888 = vpop.f32.mrf.mxu0
  %v2889 = vadd.f32 %v2724, %v2888
  %v2890 = vpop.f32.mrf.mxu0
  %2891 = vdwg.mxu0
  %s2892 = scalar_lea.vmem %s1, 448
  %v2893 = vld [vmem:[%s2892] sm:$0xff]
  %v2894 = vld [vmem:[%s2892 + $0x8] sm:$0xff]
  %v2895 = vld [vmem:[%s2892 + $0x10] sm:$0xff]
  %v2896 = vld [vmem:[%s2892 + $0x18] sm:$0xff]
  %2897 = vmatprep.subr.mxu0 0.0
  %2898 = vmatpush1.msra.mxu0 0.0
  %2899 = vmatprep.subr.mxu0 0.0
  %2900 = vmatpush1.msra.mxu0 0.0
  %2901 = vmatprep.subr.mxu0 0.0
  %2902 = vmatpush1.msra.mxu0 0.0
  %2903 = vmatprep.subr.mxu0 0.0
  %2904 = vmatpush1.msra.mxu0 0.0
  %2905 = vmatprep.subr.mxu0 0.0
  %2906 = vmatpush1.msra.mxu0 0.0
  %2907 = vmatprep.subr.mxu0 0.0
  %2908 = vmatpush1.msra.mxu0 0.0
  %2909 = vmatprep.subr.mxu0 0.0
  %2910 = vmatpush1.msra.mxu0 0.0
  %2911 = vmatprep.subr.mxu0 0.0
  %2912 = vmatpush1.msra.mxu0 0.0
  %2913 = vmatprep.subr.mxu0 0.0
  %2914 = vmatpush1.msra.mxu0 0.0
  %2915 = vmatprep.subr.mxu0 0.0
  %2916 = vmatpush1.msra.mxu0 0.0
  %2917 = vmatprep.subr.mxu0 0.0
  %2918 = vmatpush1.msra.mxu0 0.0
  %2919 = vmatprep.subr.mxu0 0.0
  %2920 = vmatpush1.msra.mxu0 0.0
  %2921 = vmatprep.subr.mxu0 0.0
  %2922 = vmatpush1.msra.mxu0 %v2896
  %2923 = vmatprep.subr.mxu0 0.0
  %2924 = vmatpush1.msra.mxu0 %v2895
  %2925 = vmatprep.subr.mxu0 0.0
  %2926 = vmatpush1.msra.mxu0 %v2894
  %2927 = vmatprep.subr.mxu0 0.0
  %2928 = vmatpush1.msra.mxu0 %v2893
  %2929 = vmatprep.subr.mxu0 0.0
  %2930 = vmatpush2.msra.mxu0 0.0
  %2931 = vmatprep.subr.mxu0 0.0
  %2932 = vmatpush2.msra.mxu0 0.0
  %2933 = vmatprep.subr.mxu0 0.0
  %2934 = vmatpush2.msra.mxu0 0.0
  %2935 = vmatprep.subr.mxu0 0.0
  %2936 = vmatpush2.msra.mxu0 0.0
  %2937 = vmatprep.subr.mxu0 0.0
  %2938 = vmatpush2.msra.mxu0 0.0
  %2939 = vmatprep.subr.mxu0 0.0
  %2940 = vmatpush2.msra.mxu0 0.0
  %2941 = vmatprep.subr.mxu0 0.0
  %2942 = vmatpush2.msra.mxu0 0.0
  %2943 = vmatprep.subr.mxu0 0.0
  %2944 = vmatpush2.msra.mxu0 0.0
  %2945 = vmatprep.subr.mxu0 0.0
  %2946 = vmatpush2.msra.mxu0 0.0
  %2947 = vmatprep.subr.mxu0 0.0
  %2948 = vmatpush2.msra.mxu0 0.0
  %2949 = vmatprep.subr.mxu0 0.0
  %2950 = vmatpush2.msra.mxu0 0.0
  %2951 = vmatprep.subr.mxu0 0.0
  %2952 = vmatpush2.msra.mxu0 0.0
  %2953 = vmatprep.subr.mxu0 0.0
  %2954 = vmatpush2.msra.mxu0 0.0
  %2955 = vmatprep.subr.mxu0 0.0
  %2956 = vmatpush2.msra.mxu0 0.0
  %2957 = vmatprep.subr.mxu0 0.0
  %2958 = vmatpush2.msra.mxu0 0.0
  %2959 = vmatprep.subr.mxu0 0.0
  %2960 = vmatpush2.msra.mxu0 0.0
  %2961 = vmatprep.mubr.f32.mxu0 0.0
  %2962 = vmatmul.mubr.f32.gmra.mxu0 %v125
  %v2963 = vpop.f32.mrf.mxu0
  %v2964 = vadd.f32 0.0, %v2963
  %v2965 = vpop.f32.mrf.mxu0
  %2966 = vmatprep.mubr.f32.mxu0 0.0
  %2967 = vmatmul.mubr.f32.gmra.mxu0 %v127
  %v2968 = vpop.f32.mrf.mxu0
  %v2969 = vadd.f32 0.0, %v2968
  %v2970 = vpop.f32.mrf.mxu0
  %2971 = vmatprep.mubr.f32.mxu0 0.0
  %2972 = vmatmul.mubr.f32.gmra.mxu0 %v129
  %v2973 = vpop.f32.mrf.mxu0
  %v2974 = vadd.f32 0.0, %v2973
  %v2975 = vpop.f32.mrf.mxu0
  %2976 = vmatprep.mubr.f32.mxu0 0.0
  %2977 = vmatmul.mubr.f32.gmra.mxu0 %v131
  %v2978 = vpop.f32.mrf.mxu0
  %v2979 = vadd.f32 0.0, %v2978
  %v2980 = vpop.f32.mrf.mxu0
  %2981 = vmatprep.mubr.f32.mxu0 0.0
  %2982 = vmatmul.mubr.f32.gmra.mxu0 %v133
  %v2983 = vpop.f32.mrf.mxu0
  %v2984 = vadd.f32 0.0, %v2983
  %v2985 = vpop.f32.mrf.mxu0
  %2986 = vmatprep.mubr.f32.mxu0 0.0
  %2987 = vmatmul.mubr.f32.gmra.mxu0 %v135
  %v2988 = vpop.f32.mrf.mxu0
  %v2989 = vadd.f32 0.0, %v2988
  %v2990 = vpop.f32.mrf.mxu0
  %2991 = vmatprep.mubr.f32.mxu0 0.0
  %2992 = vmatmul.mubr.f32.gmra.mxu0 %v137
  %v2993 = vpop.f32.mrf.mxu0
  %v2994 = vadd.f32 0.0, %v2993
  %v2995 = vpop.f32.mrf.mxu0
  %2996 = vmatprep.mubr.f32.mxu0 0.0
  %2997 = vmatmul.mubr.f32.gmra.mxu0 %v139
  %v2998 = vpop.f32.mrf.mxu0
  %v2999 = vadd.f32 0.0, %v2998
  %v3000 = vpop.f32.mrf.mxu0
  %3001 = vmatprep.mubr.f32.mxu0 0.0
  %3002 = vmatmul.mubr.f32.gmra.mxu0 %v141
  %v3003 = vpop.f32.mrf.mxu0
  %v3004 = vadd.f32 0.0, %v3003
  %v3005 = vpop.f32.mrf.mxu0
  %3006 = vmatprep.mubr.f32.mxu0 0.0
  %3007 = vmatmul.mubr.f32.gmra.mxu0 %v143
  %v3008 = vpop.f32.mrf.mxu0
  %v3009 = vadd.f32 0.0, %v3008
  %v3010 = vpop.f32.mrf.mxu0
  %3011 = vmatprep.mubr.f32.mxu0 0.0
  %3012 = vmatmul.mubr.f32.gmra.mxu0 %v145
  %v3013 = vpop.f32.mrf.mxu0
  %v3014 = vadd.f32 0.0, %v3013
  %v3015 = vpop.f32.mrf.mxu0
  %3016 = vmatprep.mubr.f32.mxu0 0.0
  %3017 = vmatmul.mubr.f32.gmra.mxu0 %v147
  %v3018 = vpop.f32.mrf.mxu0
  %v3019 = vadd.f32 0.0, %v3018
  %v3020 = vpop.f32.mrf.mxu0
  %3021 = vmatprep.mubr.f32.mxu0 0.0
  %3022 = vmatmul.mubr.f32.gmra.mxu0 %v149
  %v3023 = vpop.f32.mrf.mxu0
  %v3024 = vadd.f32 0.0, %v3023
  %v3025 = vpop.f32.mrf.mxu0
  %3026 = vmatprep.mubr.f32.mxu0 0.0
  %3027 = vmatmul.mubr.f32.gmra.mxu0 %v151
  %v3028 = vpop.f32.mrf.mxu0
  %v3029 = vadd.f32 0.0, %v3028
  %v3030 = vpop.f32.mrf.mxu0
  %3031 = vmatprep.mubr.f32.mxu0 0.0
  %3032 = vmatmul.mubr.f32.gmra.mxu0 %v153
  %v3033 = vpop.f32.mrf.mxu0
  %v3034 = vadd.f32 0.0, %v3033
  %v3035 = vpop.f32.mrf.mxu0
  %3036 = vmatprep.mubr.f32.mxu0 0.0
  %3037 = vmatmul.mubr.f32.gmra.mxu0 %v2357
  %v3038 = vpop.f32.mrf.mxu0
  %v3039 = vadd.f32 0.0, %v3038
  %v3040 = vpop.f32.mrf.mxu0
  %3041 = vmatprep.mubr.f32.mxu0 0.0
  %3042 = vmatmul.mubr.f32.gmra.mxu0 %v2359
  %v3043 = vpop.f32.mrf.mxu0
  %v3044 = vadd.f32 0.0, %v3043
  %v3045 = vpop.f32.mrf.mxu0
  %3046 = vmatprep.mubr.f32.mxu0 0.0
  %3047 = vmatmul.mubr.f32.gmra.mxu0 %v2361
  %v3048 = vpop.f32.mrf.mxu0
  %v3049 = vadd.f32 0.0, %v3048
  %v3050 = vpop.f32.mrf.mxu0
  %3051 = vmatprep.mubr.f32.mxu0 0.0
  %3052 = vmatmul.mubr.f32.gmra.mxu0 %v2363
  %v3053 = vpop.f32.mrf.mxu0
  %v3054 = vadd.f32 0.0, %v3053
  %v3055 = vpop.f32.mrf.mxu0
  %3056 = vmatprep.mubr.f32.mxu0 0.0
  %3057 = vmatmul.mubr.f32.gmra.mxu0 %v2365
  %v3058 = vpop.f32.mrf.mxu0
  %v3059 = vadd.f32 0.0, %v3058
  %v3060 = vpop.f32.mrf.mxu0
  %3061 = vdwg.mxu0
  %v3062 = vadd.f32 %v2794, %v2964
  %v3063 = vadd.f32 %v2799, %v2969
  %v3064 = vadd.f32 %v2804, %v2974
  %v3065 = vadd.f32 %v2809, %v2979
  %v3066 = vadd.f32 %v2814, %v2984
  %v3067 = vadd.f32 %v2819, %v2989
  %v3068 = vadd.f32 %v2824, %v2994
  %v3069 = vadd.f32 %v2829, %v2999
  %v3070 = vadd.f32 %v2834, %v3004
  %v3071 = vadd.f32 %v2839, %v3009
  %v3072 = vadd.f32 %v2844, %v3014
  %v3073 = vadd.f32 %v2849, %v3019
  %v3074 = vadd.f32 %v2854, %v3024
  %v3075 = vadd.f32 %v2859, %v3029
  %v3076 = vadd.f32 %v2864, %v3034
  %v3077 = vadd.f32 %v2869, %v3039
  %v3078 = vadd.f32 %v2874, %v3044
  %v3079 = vadd.f32 %v2879, %v3049
  %v3080 = vadd.f32 %v2884, %v3054
  %v3081 = vadd.f32 %v2889, %v3059
  %s3082 = scalar_lea.vmem %s1, 480
  %v3083 = vld [vmem:[%s3082] sm:$0xff]
  %v3084 = vld [vmem:[%s3082 + $0x8] sm:$0xff]
  %v3085 = vld [vmem:[%s3082 + $0x10] sm:$0xff]
  %v3086 = vld [vmem:[%s3082 + $0x18] sm:$0xff]
  %v3087 = vrot.slane %v39, 4
  %v3088 = vsel %vm532, %v572, %v3087
  %v3089 = vrot.slane %v40, 4
  %v3090 = vsel %vm532, %v3087, %v3089
  %v3091 = vrot.slane %v41, 4
  %v3092 = vsel %vm532, %v3089, %v3091
  %v3093 = vsel %vm114, %v3088, 0
  %v3095 = vsel %vm114, %v3090, 0
  %v3097 = vsel %vm114, %v3092, 0
  %3099 = vmatprep.subr.mxu0 0.0
  %3100 = vmatpush1.msra.mxu0 0.0
  %3101 = vmatprep.subr.mxu0 0.0
  %3102 = vmatpush1.msra.mxu0 0.0
  %3103 = vmatprep.subr.mxu0 0.0
  %3104 = vmatpush1.msra.mxu0 0.0
  %3105 = vmatprep.subr.mxu0 0.0
  %3106 = vmatpush1.msra.mxu0 0.0
  %3107 = vmatprep.subr.mxu0 0.0
  %3108 = vmatpush1.msra.mxu0 0.0
  %3109 = vmatprep.subr.mxu0 0.0
  %3110 = vmatpush1.msra.mxu0 0.0
  %3111 = vmatprep.subr.mxu0 0.0
  %3112 = vmatpush1.msra.mxu0 0.0
  %3113 = vmatprep.subr.mxu0 0.0
  %3114 = vmatpush1.msra.mxu0 0.0
  %3115 = vmatprep.subr.mxu0 0.0
  %3116 = vmatpush1.msra.mxu0 0.0
  %3117 = vmatprep.subr.mxu0 0.0
  %3118 = vmatpush1.msra.mxu0 0.0
  %3119 = vmatprep.subr.mxu0 0.0
  %3120 = vmatpush1.msra.mxu0 0.0
  %3121 = vmatprep.subr.mxu0 0.0
  %3122 = vmatpush1.msra.mxu0 0.0
  %3123 = vmatprep.subr.mxu0 0.0
  %3124 = vmatpush1.msra.mxu0 %v3086
  %3125 = vmatprep.subr.mxu0 0.0
  %3126 = vmatpush1.msra.mxu0 %v3085
  %3127 = vmatprep.subr.mxu0 0.0
  %3128 = vmatpush1.msra.mxu0 %v3084
  %3129 = vmatprep.subr.mxu0 0.0
  %3130 = vmatpush1.msra.mxu0 %v3083
  %3131 = vmatprep.subr.mxu0 0.0
  %3132 = vmatpush2.msra.mxu0 0.0
  %3133 = vmatprep.subr.mxu0 0.0
  %3134 = vmatpush2.msra.mxu0 0.0
  %3135 = vmatprep.subr.mxu0 0.0
  %3136 = vmatpush2.msra.mxu0 0.0
  %3137 = vmatprep.subr.mxu0 0.0
  %3138 = vmatpush2.msra.mxu0 0.0
  %3139 = vmatprep.subr.mxu0 0.0
  %3140 = vmatpush2.msra.mxu0 0.0
  %3141 = vmatprep.subr.mxu0 0.0
  %3142 = vmatpush2.msra.mxu0 0.0
  %3143 = vmatprep.subr.mxu0 0.0
  %3144 = vmatpush2.msra.mxu0 0.0
  %3145 = vmatprep.subr.mxu0 0.0
  %3146 = vmatpush2.msra.mxu0 0.0
  %3147 = vmatprep.subr.mxu0 0.0
  %3148 = vmatpush2.msra.mxu0 0.0
  %3149 = vmatprep.subr.mxu0 0.0
  %3150 = vmatpush2.msra.mxu0 0.0
  %3151 = vmatprep.subr.mxu0 0.0
  %3152 = vmatpush2.msra.mxu0 0.0
  %3153 = vmatprep.subr.mxu0 0.0
  %3154 = vmatpush2.msra.mxu0 0.0
  %3155 = vmatprep.subr.mxu0 0.0
  %3156 = vmatpush2.msra.mxu0 0.0
  %3157 = vmatprep.subr.mxu0 0.0
  %3158 = vmatpush2.msra.mxu0 0.0
  %3159 = vmatprep.subr.mxu0 0.0
  %3160 = vmatpush2.msra.mxu0 0.0
  %3161 = vmatprep.subr.mxu0 0.0
  %3162 = vmatpush2.msra.mxu0 0.0
  %3163 = vmatprep.mubr.f32.mxu0 0.0
  %3164 = vmatmul.mubr.f32.gmra.mxu0 %v580
  %v3165 = vpop.f32.mrf.mxu0
  %v3166 = vadd.f32 0.0, %v3165
  %v3167 = vpop.f32.mrf.mxu0
  %3168 = vmatprep.mubr.f32.mxu0 0.0
  %3169 = vmatmul.mubr.f32.gmra.mxu0 %v582
  %v3170 = vpop.f32.mrf.mxu0
  %v3171 = vadd.f32 0.0, %v3170
  %v3172 = vpop.f32.mrf.mxu0
  %3173 = vmatprep.mubr.f32.mxu0 0.0
  %3174 = vmatmul.mubr.f32.gmra.mxu0 %v584
  %v3175 = vpop.f32.mrf.mxu0
  %v3176 = vadd.f32 0.0, %v3175
  %v3177 = vpop.f32.mrf.mxu0
  %3178 = vmatprep.mubr.f32.mxu0 0.0
  %3179 = vmatmul.mubr.f32.gmra.mxu0 %v586
  %v3180 = vpop.f32.mrf.mxu0
  %v3181 = vadd.f32 0.0, %v3180
  %v3182 = vpop.f32.mrf.mxu0
  %3183 = vmatprep.mubr.f32.mxu0 0.0
  %3184 = vmatmul.mubr.f32.gmra.mxu0 %v588
  %v3185 = vpop.f32.mrf.mxu0
  %v3186 = vadd.f32 0.0, %v3185
  %v3187 = vpop.f32.mrf.mxu0
  %3188 = vmatprep.mubr.f32.mxu0 0.0
  %3189 = vmatmul.mubr.f32.gmra.mxu0 %v590
  %v3190 = vpop.f32.mrf.mxu0
  %v3191 = vadd.f32 0.0, %v3190
  %v3192 = vpop.f32.mrf.mxu0
  %3193 = vmatprep.mubr.f32.mxu0 0.0
  %3194 = vmatmul.mubr.f32.gmra.mxu0 %v592
  %v3195 = vpop.f32.mrf.mxu0
  %v3196 = vadd.f32 0.0, %v3195
  %v3197 = vpop.f32.mrf.mxu0
  %3198 = vmatprep.mubr.f32.mxu0 0.0
  %3199 = vmatmul.mubr.f32.gmra.mxu0 %v594
  %v3200 = vpop.f32.mrf.mxu0
  %v3201 = vadd.f32 0.0, %v3200
  %v3202 = vpop.f32.mrf.mxu0
  %3203 = vmatprep.mubr.f32.mxu0 0.0
  %3204 = vmatmul.mubr.f32.gmra.mxu0 %v596
  %v3205 = vpop.f32.mrf.mxu0
  %v3206 = vadd.f32 0.0, %v3205
  %v3207 = vpop.f32.mrf.mxu0
  %3208 = vmatprep.mubr.f32.mxu0 0.0
  %3209 = vmatmul.mubr.f32.gmra.mxu0 %v598
  %v3210 = vpop.f32.mrf.mxu0
  %v3211 = vadd.f32 0.0, %v3210
  %v3212 = vpop.f32.mrf.mxu0
  %3213 = vmatprep.mubr.f32.mxu0 0.0
  %3214 = vmatmul.mubr.f32.gmra.mxu0 %v600
  %v3215 = vpop.f32.mrf.mxu0
  %v3216 = vadd.f32 0.0, %v3215
  %v3217 = vpop.f32.mrf.mxu0
  %3218 = vmatprep.mubr.f32.mxu0 0.0
  %3219 = vmatmul.mubr.f32.gmra.mxu0 %v602
  %v3220 = vpop.f32.mrf.mxu0
  %v3221 = vadd.f32 0.0, %v3220
  %v3222 = vpop.f32.mrf.mxu0
  %3223 = vmatprep.mubr.f32.mxu0 0.0
  %3224 = vmatmul.mubr.f32.gmra.mxu0 %v604
  %v3225 = vpop.f32.mrf.mxu0
  %v3226 = vadd.f32 0.0, %v3225
  %v3227 = vpop.f32.mrf.mxu0
  %3228 = vmatprep.mubr.f32.mxu0 0.0
  %3229 = vmatmul.mubr.f32.gmra.mxu0 %v606
  %v3230 = vpop.f32.mrf.mxu0
  %v3231 = vadd.f32 0.0, %v3230
  %v3232 = vpop.f32.mrf.mxu0
  %3233 = vmatprep.mubr.f32.mxu0 0.0
  %3234 = vmatmul.mubr.f32.gmra.mxu0 %v608
  %v3235 = vpop.f32.mrf.mxu0
  %v3236 = vadd.f32 0.0, %v3235
  %v3237 = vpop.f32.mrf.mxu0
  %3238 = vmatprep.mubr.f32.mxu0 0.0
  %3239 = vmatmul.mubr.f32.gmra.mxu0 %v610
  %v3240 = vpop.f32.mrf.mxu0
  %v3241 = vadd.f32 0.0, %v3240
  %v3242 = vpop.f32.mrf.mxu0
  %3243 = vmatprep.mubr.f32.mxu0 0.0
  %3244 = vmatmul.mubr.f32.gmra.mxu0 %v612
  %v3245 = vpop.f32.mrf.mxu0
  %v3246 = vadd.f32 0.0, %v3245
  %v3247 = vpop.f32.mrf.mxu0
  %3248 = vmatprep.mubr.f32.mxu0 0.0
  %3249 = vmatmul.mubr.f32.gmra.mxu0 %v3093
  %v3250 = vpop.f32.mrf.mxu0
  %v3251 = vadd.f32 0.0, %v3250
  %v3252 = vpop.f32.mrf.mxu0
  %3253 = vmatprep.mubr.f32.mxu0 0.0
  %3254 = vmatmul.mubr.f32.gmra.mxu0 %v3095
  %v3255 = vpop.f32.mrf.mxu0
  %v3256 = vadd.f32 0.0, %v3255
  %v3257 = vpop.f32.mrf.mxu0
  %3258 = vmatprep.mubr.f32.mxu0 0.0
  %3259 = vmatmul.mubr.f32.gmra.mxu0 %v3097
  %v3260 = vpop.f32.mrf.mxu0
  %v3261 = vadd.f32 0.0, %v3260
  %v3262 = vpop.f32.mrf.mxu0
  %3263 = vdwg.mxu0
  %v3264 = vadd.f32 %v3062, %v3166
  %v3265 = vadd.f32 %v3063, %v3171
  %v3266 = vadd.f32 %v3064, %v3176
  %v3267 = vadd.f32 %v3065, %v3181
  %v3268 = vadd.f32 %v3066, %v3186
  %v3269 = vadd.f32 %v3067, %v3191
  %v3270 = vadd.f32 %v3068, %v3196
  %v3271 = vadd.f32 %v3069, %v3201
  %v3272 = vadd.f32 %v3070, %v3206
  %v3273 = vadd.f32 %v3071, %v3211
  %v3274 = vadd.f32 %v3072, %v3216
  %v3275 = vadd.f32 %v3073, %v3221
  %v3276 = vadd.f32 %v3074, %v3226
  %v3277 = vadd.f32 %v3075, %v3231
  %v3278 = vadd.f32 %v3076, %v3236
  %v3279 = vadd.f32 %v3077, %v3241
  %v3280 = vadd.f32 %v3078, %v3246
  %v3281 = vadd.f32 %v3079, %v3251
  %v3282 = vadd.f32 %v3080, %v3256
  %v3283 = vadd.f32 %v3081, %v3261
  %v3284 = vld [vmem:[#allocation2] sm:$0x1]
  %v3286 = vlaneseq
  %v3287 = vshrl.u32 %v3286, 7
  %v3288 = vsub.s32 0, %v3287
  %v3289 = vrot.slane %v3284, %v3288
  %v3291 = vadd.f32 %v1051, %v3289
  %v3292 = vadd.f32 %v1052, %v3289
  %v3293 = vadd.f32 %v1053, %v3289
  %v3294 = vadd.f32 %v1054, %v3289
  %v3295 = vadd.f32 %v1055, %v3289
  %v3296 = vadd.f32 %v1056, %v3289
  %v3297 = vadd.f32 %v1057, %v3289
  %v3298 = vadd.f32 %v1058, %v3289
  %v3299 = vadd.f32 %v1059, %v3289
  %v3300 = vadd.f32 %v1060, %v3289
  %v3301 = vadd.f32 %v1061, %v3289
  %v3302 = vadd.f32 %v1062, %v3289
  %v3303 = vadd.f32 %v1063, %v3289
  %v3304 = vadd.f32 %v1064, %v3289
  %v3305 = vadd.f32 %v1065, %v3289
  %v3306 = vadd.f32 %v1066, %v3289
  %v3307 = vadd.f32 %v1067, %v3289
  %v3308 = vadd.f32 %v1068, %v3289
  %v3309 = vadd.f32 %v1069, %v3289
  %v3310 = vadd.f32 %v1070, %v3289
  %v3311 = vadd.f32 %v1785, %v3289
  %v3312 = vadd.f32 %v1786, %v3289
  %v3313 = vadd.f32 %v1787, %v3289
  %v3314 = vadd.f32 %v1788, %v3289
  %v3315 = vadd.f32 %v1789, %v3289
  %v3316 = vadd.f32 %v1790, %v3289
  %v3317 = vadd.f32 %v1791, %v3289
  %v3318 = vadd.f32 %v1792, %v3289
  %v3319 = vadd.f32 %v1793, %v3289
  %v3320 = vadd.f32 %v1794, %v3289
  %v3321 = vadd.f32 %v1795, %v3289
  %v3322 = vadd.f32 %v1796, %v3289
  %v3323 = vadd.f32 %v1797, %v3289
  %v3324 = vadd.f32 %v1798, %v3289
  %v3325 = vadd.f32 %v1799, %v3289
  %v3326 = vadd.f32 %v1800, %v3289
  %v3327 = vadd.f32 %v1801, %v3289
  %v3328 = vadd.f32 %v1802, %v3289
  %v3329 = vadd.f32 %v1803, %v3289
  %v3330 = vadd.f32 %v1804, %v3289
  %v3331 = vadd.f32 %v2532, %v3289
  %v3332 = vadd.f32 %v2533, %v3289
  %v3333 = vadd.f32 %v2534, %v3289
  %v3334 = vadd.f32 %v2535, %v3289
  %v3335 = vadd.f32 %v2536, %v3289
  %v3336 = vadd.f32 %v2537, %v3289
  %v3337 = vadd.f32 %v2538, %v3289
  %v3338 = vadd.f32 %v2539, %v3289
  %v3339 = vadd.f32 %v2540, %v3289
  %v3340 = vadd.f32 %v2541, %v3289
  %v3341 = vadd.f32 %v2542, %v3289
  %v3342 = vadd.f32 %v2543, %v3289
  %v3343 = vadd.f32 %v2544, %v3289
  %v3344 = vadd.f32 %v2545, %v3289
  %v3345 = vadd.f32 %v2546, %v3289
  %v3346 = vadd.f32 %v2547, %v3289
  %v3347 = vadd.f32 %v2548, %v3289
  %v3348 = vadd.f32 %v2549, %v3289
  %v3349 = vadd.f32 %v2550, %v3289
  %v3350 = vadd.f32 %v2551, %v3289
  %v3351 = vadd.f32 %v3264, %v3289
  %v3352 = vadd.f32 %v3265, %v3289
  %v3353 = vadd.f32 %v3266, %v3289
  %v3354 = vadd.f32 %v3267, %v3289
  %v3355 = vadd.f32 %v3268, %v3289
  %v3356 = vadd.f32 %v3269, %v3289
  %v3357 = vadd.f32 %v3270, %v3289
  %v3358 = vadd.f32 %v3271, %v3289
  %v3359 = vadd.f32 %v3272, %v3289
  %v3360 = vadd.f32 %v3273, %v3289
  %v3361 = vadd.f32 %v3274, %v3289
  %v3362 = vadd.f32 %v3275, %v3289
  %v3363 = vadd.f32 %v3276, %v3289
  %v3364 = vadd.f32 %v3277, %v3289
  %v3365 = vadd.f32 %v3278, %v3289
  %v3366 = vadd.f32 %v3279, %v3289
  %v3367 = vadd.f32 %v3280, %v3289
  %v3368 = vadd.f32 %v3281, %v3289
  %v3369 = vadd.f32 %v3282, %v3289
  %v3370 = vadd.f32 %v3283, %v3289
  %v3371 = vxor.u32 %v3291, 2147483648
  %v3372 = vxor.u32 %v3292, 2147483648
  %v3373 = vxor.u32 %v3293, 2147483648
  %v3374 = vxor.u32 %v3294, 2147483648
  %v3375 = vxor.u32 %v3295, 2147483648
  %v3376 = vxor.u32 %v3296, 2147483648
  %v3377 = vxor.u32 %v3297, 2147483648
  %v3378 = vxor.u32 %v3298, 2147483648
  %v3379 = vxor.u32 %v3299, 2147483648
  %v3380 = vxor.u32 %v3300, 2147483648
  %v3381 = vxor.u32 %v3301, 2147483648
  %v3382 = vxor.u32 %v3302, 2147483648
  %v3383 = vxor.u32 %v3303, 2147483648
  %v3384 = vxor.u32 %v3304, 2147483648
  %v3385 = vxor.u32 %v3305, 2147483648
  %v3386 = vxor.u32 %v3306, 2147483648
  %v3387 = vxor.u32 %v3307, 2147483648
  %v3388 = vxor.u32 %v3308, 2147483648
  %v3389 = vxor.u32 %v3309, 2147483648
  %v3390 = vxor.u32 %v3310, 2147483648
  %v3391 = vxor.u32 %v3311, 2147483648
  %v3392 = vxor.u32 %v3312, 2147483648
  %v3393 = vxor.u32 %v3313, 2147483648
  %v3394 = vxor.u32 %v3314, 2147483648
  %v3395 = vxor.u32 %v3315, 2147483648
  %v3396 = vxor.u32 %v3316, 2147483648
  %v3397 = vxor.u32 %v3317, 2147483648
  %v3398 = vxor.u32 %v3318, 2147483648
  %v3399 = vxor.u32 %v3319, 2147483648
  %v3400 = vxor.u32 %v3320, 2147483648
  %v3401 = vxor.u32 %v3321, 2147483648
  %v3402 = vxor.u32 %v3322, 2147483648
  %v3403 = vxor.u32 %v3323, 2147483648
  %v3404 = vxor.u32 %v3324, 2147483648
  %v3405 = vxor.u32 %v3325, 2147483648
  %v3406 = vxor.u32 %v3326, 2147483648
  %v3407 = vxor.u32 %v3327, 2147483648
  %v3408 = vxor.u32 %v3328, 2147483648
  %v3409 = vxor.u32 %v3329, 2147483648
  %v3410 = vxor.u32 %v3330, 2147483648
  %v3411 = vxor.u32 %v3331, 2147483648
  %v3412 = vxor.u32 %v3332, 2147483648
  %v3413 = vxor.u32 %v3333, 2147483648
  %v3414 = vxor.u32 %v3334, 2147483648
  %v3415 = vxor.u32 %v3335, 2147483648
  %v3416 = vxor.u32 %v3336, 2147483648
  %v3417 = vxor.u32 %v3337, 2147483648
  %v3418 = vxor.u32 %v3338, 2147483648
  %v3419 = vxor.u32 %v3339, 2147483648
  %v3420 = vxor.u32 %v3340, 2147483648
  %v3421 = vxor.u32 %v3341, 2147483648
  %v3422 = vxor.u32 %v3342, 2147483648
  %v3423 = vxor.u32 %v3343, 2147483648
  %v3424 = vxor.u32 %v3344, 2147483648
  %v3425 = vxor.u32 %v3345, 2147483648
  %v3426 = vxor.u32 %v3346, 2147483648
  %v3427 = vxor.u32 %v3347, 2147483648
  %v3428 = vxor.u32 %v3348, 2147483648
  %v3429 = vxor.u32 %v3349, 2147483648
  %v3430 = vxor.u32 %v3350, 2147483648
  %v3431 = vxor.u32 %v3351, 2147483648
  %v3432 = vxor.u32 %v3352, 2147483648
  %v3433 = vxor.u32 %v3353, 2147483648
  %v3434 = vxor.u32 %v3354, 2147483648
  %v3435 = vxor.u32 %v3355, 2147483648
  %v3436 = vxor.u32 %v3356, 2147483648
  %v3437 = vxor.u32 %v3357, 2147483648
  %v3438 = vxor.u32 %v3358, 2147483648
  %v3439 = vxor.u32 %v3359, 2147483648
  %v3440 = vxor.u32 %v3360, 2147483648
  %v3441 = vxor.u32 %v3361, 2147483648
  %v3442 = vxor.u32 %v3362, 2147483648
  %v3443 = vxor.u32 %v3363, 2147483648
  %v3444 = vxor.u32 %v3364, 2147483648
  %v3445 = vxor.u32 %v3365, 2147483648
  %v3446 = vxor.u32 %v3366, 2147483648
  %v3447 = vxor.u32 %v3367, 2147483648
  %v3448 = vxor.u32 %v3368, 2147483648
  %v3449 = vxor.u32 %v3369, 2147483648
  %v3450 = vxor.u32 %v3370, 2147483648
  %v3451 = vmul.f32 %v3371, 1.442695
  %v3452 = vpow.pop %v3451
  %v3453 = vmul.f32 %v3372, 1.442695
  %v3454 = vpow.pop %v3453
  %v3455 = vmul.f32 %v3373, 1.442695
  %v3456 = vpow.pop %v3455
  %v3457 = vmul.f32 %v3374, 1.442695
  %v3458 = vpow.pop %v3457
  %v3459 = vmul.f32 %v3375, 1.442695
  %v3460 = vpow.pop %v3459
  %v3461 = vmul.f32 %v3376, 1.442695
  %v3462 = vpow.pop %v3461
  %v3463 = vmul.f32 %v3377, 1.442695
  %v3464 = vpow.pop %v3463
  %v3465 = vmul.f32 %v3378, 1.442695
  %v3466 = vpow.pop %v3465
  %v3467 = vmul.f32 %v3379, 1.442695
  %v3468 = vpow.pop %v3467
  %v3469 = vmul.f32 %v3380, 1.442695
  %v3470 = vpow.pop %v3469
  %v3471 = vmul.f32 %v3381, 1.442695
  %v3472 = vpow.pop %v3471
  %v3473 = vmul.f32 %v3382, 1.442695
  %v3474 = vpow.pop %v3473
  %v3475 = vmul.f32 %v3383, 1.442695
  %v3476 = vpow.pop %v3475
  %v3477 = vmul.f32 %v3384, 1.442695
  %v3478 = vpow.pop %v3477
  %v3479 = vmul.f32 %v3385, 1.442695
  %v3480 = vpow.pop %v3479
  %v3481 = vmul.f32 %v3386, 1.442695
  %v3482 = vpow.pop %v3481
  %v3483 = vmul.f32 %v3387, 1.442695
  %v3484 = vpow.pop %v3483
  %v3485 = vmul.f32 %v3388, 1.442695
  %v3486 = vpow.pop %v3485
  %v3487 = vmul.f32 %v3389, 1.442695
  %v3488 = vpow.pop %v3487
  %v3489 = vmul.f32 %v3390, 1.442695
  %v3490 = vpow.pop %v3489
  %v3491 = vmul.f32 %v3391, 1.442695
  %v3492 = vpow.pop %v3491
  %v3493 = vmul.f32 %v3392, 1.442695
  %v3494 = vpow.pop %v3493
  %v3495 = vmul.f32 %v3393, 1.442695
  %v3496 = vpow.pop %v3495
  %v3497 = vmul.f32 %v3394, 1.442695
  %v3498 = vpow.pop %v3497
  %v3499 = vmul.f32 %v3395, 1.442695
  %v3500 = vpow.pop %v3499
  %v3501 = vmul.f32 %v3396, 1.442695
  %v3502 = vpow.pop %v3501
  %v3503 = vmul.f32 %v3397, 1.442695
  %v3504 = vpow.pop %v3503
  %v3505 = vmul.f32 %v3398, 1.442695
  %v3506 = vpow.pop %v3505
  %v3507 = vmul.f32 %v3399, 1.442695
  %v3508 = vpow.pop %v3507
  %v3509 = vmul.f32 %v3400, 1.442695
  %v3510 = vpow.pop %v3509
  %v3511 = vmul.f32 %v3401, 1.442695
  %v3512 = vpow.pop %v3511
  %v3513 = vmul.f32 %v3402, 1.442695
  %v3514 = vpow.pop %v3513
  %v3515 = vmul.f32 %v3403, 1.442695
  %v3516 = vpow.pop %v3515
  %v3517 = vmul.f32 %v3404, 1.442695
  %v3518 = vpow.pop %v3517
  %v3519 = vmul.f32 %v3405, 1.442695
  %v3520 = vpow.pop %v3519
  %v3521 = vmul.f32 %v3406, 1.442695
  %v3522 = vpow.pop %v3521
  %v3523 = vmul.f32 %v3407, 1.442695
  %v3524 = vpow.pop %v3523
  %v3525 = vmul.f32 %v3408, 1.442695
  %v3526 = vpow.pop %v3525
  %v3527 = vmul.f32 %v3409, 1.442695
  %v3528 = vpow.pop %v3527
  %v3529 = vmul.f32 %v3410, 1.442695
  %v3530 = vpow.pop %v3529
  %v3531 = vmul.f32 %v3411, 1.442695
  %v3532 = vpow.pop %v3531
  %v3533 = vmul.f32 %v3412, 1.442695
  %v3534 = vpow.pop %v3533
  %v3535 = vmul.f32 %v3413, 1.442695
  %v3536 = vpow.pop %v3535
  %v3537 = vmul.f32 %v3414, 1.442695
  %v3538 = vpow.pop %v3537
  %v3539 = vmul.f32 %v3415, 1.442695
  %v3540 = vpow.pop %v3539
  %v3541 = vmul.f32 %v3416, 1.442695
  %v3542 = vpow.pop %v3541
  %v3543 = vmul.f32 %v3417, 1.442695
  %v3544 = vpow.pop %v3543
  %v3545 = vmul.f32 %v3418, 1.442695
  %v3546 = vpow.pop %v3545
  %v3547 = vmul.f32 %v3419, 1.442695
  %v3548 = vpow.pop %v3547
  %v3549 = vmul.f32 %v3420, 1.442695
  %v3550 = vpow.pop %v3549
  %v3551 = vmul.f32 %v3421, 1.442695
  %v3552 = vpow.pop %v3551
  %v3553 = vmul.f32 %v3422, 1.442695
  %v3554 = vpow.pop %v3553
  %v3555 = vmul.f32 %v3423, 1.442695
  %v3556 = vpow.pop %v3555
  %v3557 = vmul.f32 %v3424, 1.442695
  %v3558 = vpow.pop %v3557
  %v3559 = vmul.f32 %v3425, 1.442695
  %v3560 = vpow.pop %v3559
  %v3561 = vmul.f32 %v3426, 1.442695
  %v3562 = vpow.pop %v3561
  %v3563 = vmul.f32 %v3427, 1.442695
  %v3564 = vpow.pop %v3563
  %v3565 = vmul.f32 %v3428, 1.442695
  %v3566 = vpow.pop %v3565
  %v3567 = vmul.f32 %v3429, 1.442695
  %v3568 = vpow.pop %v3567
  %v3569 = vmul.f32 %v3430, 1.442695
  %v3570 = vpow.pop %v3569
  %v3571 = vmul.f32 %v3431, 1.442695
  %v3572 = vpow.pop %v3571
  %v3573 = vmul.f32 %v3432, 1.442695
  %v3574 = vpow.pop %v3573
  %v3575 = vmul.f32 %v3433, 1.442695
  %v3576 = vpow.pop %v3575
  %v3577 = vmul.f32 %v3434, 1.442695
  %v3578 = vpow.pop %v3577
  %v3579 = vmul.f32 %v3435, 1.442695
  %v3580 = vpow.pop %v3579
  %v3581 = vmul.f32 %v3436, 1.442695
  %v3582 = vpow.pop %v3581
  %v3583 = vmul.f32 %v3437, 1.442695
  %v3584 = vpow.pop %v3583
  %v3585 = vmul.f32 %v3438, 1.442695
  %v3586 = vpow.pop %v3585
  %v3587 = vmul.f32 %v3439, 1.442695
  %v3588 = vpow.pop %v3587
  %v3589 = vmul.f32 %v3440, 1.442695
  %v3590 = vpow.pop %v3589
  %v3591 = vmul.f32 %v3441, 1.442695
  %v3592 = vpow.pop %v3591
  %v3593 = vmul.f32 %v3442, 1.442695
  %v3594 = vpow.pop %v3593
  %v3595 = vmul.f32 %v3443, 1.442695
  %v3596 = vpow.pop %v3595
  %v3597 = vmul.f32 %v3444, 1.442695
  %v3598 = vpow.pop %v3597
  %v3599 = vmul.f32 %v3445, 1.442695
  %v3600 = vpow.pop %v3599
  %v3601 = vmul.f32 %v3446, 1.442695
  %v3602 = vpow.pop %v3601
  %v3603 = vmul.f32 %v3447, 1.442695
  %v3604 = vpow.pop %v3603
  %v3605 = vmul.f32 %v3448, 1.442695
  %v3606 = vpow.pop %v3605
  %v3607 = vmul.f32 %v3449, 1.442695
  %v3608 = vpow.pop %v3607
  %v3609 = vmul.f32 %v3450, 1.442695
  %v3610 = vpow.pop %v3609
  %v3611 = vadd.f32 %v3452, 1.0
  %v3612 = vadd.f32 %v3454, 1.0
  %v3613 = vadd.f32 %v3456, 1.0
  %v3614 = vadd.f32 %v3458, 1.0
  %v3615 = vadd.f32 %v3460, 1.0
  %v3616 = vadd.f32 %v3462, 1.0
  %v3617 = vadd.f32 %v3464, 1.0
  %v3618 = vadd.f32 %v3466, 1.0
  %v3619 = vadd.f32 %v3468, 1.0
  %v3620 = vadd.f32 %v3470, 1.0
  %v3621 = vadd.f32 %v3472, 1.0
  %v3622 = vadd.f32 %v3474, 1.0
  %v3623 = vadd.f32 %v3476, 1.0
  %v3624 = vadd.f32 %v3478, 1.0
  %v3625 = vadd.f32 %v3480, 1.0
  %v3626 = vadd.f32 %v3482, 1.0
  %v3627 = vadd.f32 %v3484, 1.0
  %v3628 = vadd.f32 %v3486, 1.0
  %v3629 = vadd.f32 %v3488, 1.0
  %v3630 = vadd.f32 %v3490, 1.0
  %v3631 = vadd.f32 %v3492, 1.0
  %v3632 = vadd.f32 %v3494, 1.0
  %v3633 = vadd.f32 %v3496, 1.0
  %v3634 = vadd.f32 %v3498, 1.0
  %v3635 = vadd.f32 %v3500, 1.0
  %v3636 = vadd.f32 %v3502, 1.0
  %v3637 = vadd.f32 %v3504, 1.0
  %v3638 = vadd.f32 %v3506, 1.0
  %v3639 = vadd.f32 %v3508, 1.0
  %v3640 = vadd.f32 %v3510, 1.0
  %v3641 = vadd.f32 %v3512, 1.0
  %v3642 = vadd.f32 %v3514, 1.0
  %v3643 = vadd.f32 %v3516, 1.0
  %v3644 = vadd.f32 %v3518, 1.0
  %v3645 = vadd.f32 %v3520, 1.0
  %v3646 = vadd.f32 %v3522, 1.0
  %v3647 = vadd.f32 %v3524, 1.0
  %v3648 = vadd.f32 %v3526, 1.0
  %v3649 = vadd.f32 %v3528, 1.0
  %v3650 = vadd.f32 %v3530, 1.0
  %v3651 = vadd.f32 %v3532, 1.0
  %v3652 = vadd.f32 %v3534, 1.0
  %v3653 = vadd.f32 %v3536, 1.0
  %v3654 = vadd.f32 %v3538, 1.0
  %v3655 = vadd.f32 %v3540, 1.0
  %v3656 = vadd.f32 %v3542, 1.0
  %v3657 = vadd.f32 %v3544, 1.0
  %v3658 = vadd.f32 %v3546, 1.0
  %v3659 = vadd.f32 %v3548, 1.0
  %v3660 = vadd.f32 %v3550, 1.0
  %v3661 = vadd.f32 %v3552, 1.0
  %v3662 = vadd.f32 %v3554, 1.0
  %v3663 = vadd.f32 %v3556, 1.0
  %v3664 = vadd.f32 %v3558, 1.0
  %v3665 = vadd.f32 %v3560, 1.0
  %v3666 = vadd.f32 %v3562, 1.0
  %v3667 = vadd.f32 %v3564, 1.0
  %v3668 = vadd.f32 %v3566, 1.0
  %v3669 = vadd.f32 %v3568, 1.0
  %v3670 = vadd.f32 %v3570, 1.0
  %v3671 = vadd.f32 %v3572, 1.0
  %v3672 = vadd.f32 %v3574, 1.0
  %v3673 = vadd.f32 %v3576, 1.0
  %v3674 = vadd.f32 %v3578, 1.0
  %v3675 = vadd.f32 %v3580, 1.0
  %v3676 = vadd.f32 %v3582, 1.0
  %v3677 = vadd.f32 %v3584, 1.0
  %v3678 = vadd.f32 %v3586, 1.0
  %v3679 = vadd.f32 %v3588, 1.0
  %v3680 = vadd.f32 %v3590, 1.0
  %v3681 = vadd.f32 %v3592, 1.0
  %v3682 = vadd.f32 %v3594, 1.0
  %v3683 = vadd.f32 %v3596, 1.0
  %v3684 = vadd.f32 %v3598, 1.0
  %v3685 = vadd.f32 %v3600, 1.0
  %v3686 = vadd.f32 %v3602, 1.0
  %v3687 = vadd.f32 %v3604, 1.0
  %v3688 = vadd.f32 %v3606, 1.0
  %v3689 = vadd.f32 %v3608, 1.0
  %v3690 = vadd.f32 %v3610, 1.0
  %v3691 = vrcp.pop %v3611
  %v3692 = vmul.f32 1.0, %v3691
  %v3693 = vrcp.pop %v3612
  %v3694 = vmul.f32 1.0, %v3693
  %v3695 = vrcp.pop %v3613
  %v3696 = vmul.f32 1.0, %v3695
  %v3697 = vrcp.pop %v3614
  %v3698 = vmul.f32 1.0, %v3697
  %v3699 = vrcp.pop %v3615
  %v3700 = vmul.f32 1.0, %v3699
  %v3701 = vrcp.pop %v3616
  %v3702 = vmul.f32 1.0, %v3701
  %v3703 = vrcp.pop %v3617
  %v3704 = vmul.f32 1.0, %v3703
  %v3705 = vrcp.pop %v3618
  %v3706 = vmul.f32 1.0, %v3705
  %v3707 = vrcp.pop %v3619
  %v3708 = vmul.f32 1.0, %v3707
  %v3709 = vrcp.pop %v3620
  %v3710 = vmul.f32 1.0, %v3709
  %v3711 = vrcp.pop %v3621
  %v3712 = vmul.f32 1.0, %v3711
  %v3713 = vrcp.pop %v3622
  %v3714 = vmul.f32 1.0, %v3713
  %v3715 = vrcp.pop %v3623
  %v3716 = vmul.f32 1.0, %v3715
  %v3717 = vrcp.pop %v3624
  %v3718 = vmul.f32 1.0, %v3717
  %v3719 = vrcp.pop %v3625
  %v3720 = vmul.f32 1.0, %v3719
  %v3721 = vrcp.pop %v3626
  %v3722 = vmul.f32 1.0, %v3721
  %v3723 = vrcp.pop %v3627
  %v3724 = vmul.f32 1.0, %v3723
  %v3725 = vrcp.pop %v3628
  %v3726 = vmul.f32 1.0, %v3725
  %v3727 = vrcp.pop %v3629
  %v3728 = vmul.f32 1.0, %v3727
  %v3729 = vrcp.pop %v3630
  %v3730 = vmul.f32 1.0, %v3729
  %v3731 = vrcp.pop %v3631
  %v3732 = vmul.f32 1.0, %v3731
  %v3733 = vrcp.pop %v3632
  %v3734 = vmul.f32 1.0, %v3733
  %v3735 = vrcp.pop %v3633
  %v3736 = vmul.f32 1.0, %v3735
  %v3737 = vrcp.pop %v3634
  %v3738 = vmul.f32 1.0, %v3737
  %v3739 = vrcp.pop %v3635
  %v3740 = vmul.f32 1.0, %v3739
  %v3741 = vrcp.pop %v3636
  %v3742 = vmul.f32 1.0, %v3741
  %v3743 = vrcp.pop %v3637
  %v3744 = vmul.f32 1.0, %v3743
  %v3745 = vrcp.pop %v3638
  %v3746 = vmul.f32 1.0, %v3745
  %v3747 = vrcp.pop %v3639
  %v3748 = vmul.f32 1.0, %v3747
  %v3749 = vrcp.pop %v3640
  %v3750 = vmul.f32 1.0, %v3749
  %v3751 = vrcp.pop %v3641
  %v3752 = vmul.f32 1.0, %v3751
  %v3753 = vrcp.pop %v3642
  %v3754 = vmul.f32 1.0, %v3753
  %v3755 = vrcp.pop %v3643
  %v3756 = vmul.f32 1.0, %v3755
  %v3757 = vrcp.pop %v3644
  %v3758 = vmul.f32 1.0, %v3757
  %v3759 = vrcp.pop %v3645
  %v3760 = vmul.f32 1.0, %v3759
  %v3761 = vrcp.pop %v3646
  %v3762 = vmul.f32 1.0, %v3761
  %v3763 = vrcp.pop %v3647
  %v3764 = vmul.f32 1.0, %v3763
  %v3765 = vrcp.pop %v3648
  %v3766 = vmul.f32 1.0, %v3765
  %v3767 = vrcp.pop %v3649
  %v3768 = vmul.f32 1.0, %v3767
  %v3769 = vrcp.pop %v3650
  %v3770 = vmul.f32 1.0, %v3769
  %v3771 = vrcp.pop %v3651
  %v3772 = vmul.f32 1.0, %v3771
  %v3773 = vrcp.pop %v3652
  %v3774 = vmul.f32 1.0, %v3773
  %v3775 = vrcp.pop %v3653
  %v3776 = vmul.f32 1.0, %v3775
  %v3777 = vrcp.pop %v3654
  %v3778 = vmul.f32 1.0, %v3777
  %v3779 = vrcp.pop %v3655
  %v3780 = vmul.f32 1.0, %v3779
  %v3781 = vrcp.pop %v3656
  %v3782 = vmul.f32 1.0, %v3781
  %v3783 = vrcp.pop %v3657
  %v3784 = vmul.f32 1.0, %v3783
  %v3785 = vrcp.pop %v3658
  %v3786 = vmul.f32 1.0, %v3785
  %v3787 = vrcp.pop %v3659
  %v3788 = vmul.f32 1.0, %v3787
  %v3789 = vrcp.pop %v3660
  %v3790 = vmul.f32 1.0, %v3789
  %v3791 = vrcp.pop %v3661
  %v3792 = vmul.f32 1.0, %v3791
  %v3793 = vrcp.pop %v3662
  %v3794 = vmul.f32 1.0, %v3793
  %v3795 = vrcp.pop %v3663
  %v3796 = vmul.f32 1.0, %v3795
  %v3797 = vrcp.pop %v3664
  %v3798 = vmul.f32 1.0, %v3797
  %v3799 = vrcp.pop %v3665
  %v3800 = vmul.f32 1.0, %v3799
  %v3801 = vrcp.pop %v3666
  %v3802 = vmul.f32 1.0, %v3801
  %v3803 = vrcp.pop %v3667
  %v3804 = vmul.f32 1.0, %v3803
  %v3805 = vrcp.pop %v3668
  %v3806 = vmul.f32 1.0, %v3805
  %v3807 = vrcp.pop %v3669
  %v3808 = vmul.f32 1.0, %v3807
  %v3809 = vrcp.pop %v3670
  %v3810 = vmul.f32 1.0, %v3809
  %v3811 = vrcp.pop %v3671
  %v3812 = vmul.f32 1.0, %v3811
  %v3813 = vrcp.pop %v3672
  %v3814 = vmul.f32 1.0, %v3813
  %v3815 = vrcp.pop %v3673
  %v3816 = vmul.f32 1.0, %v3815
  %v3817 = vrcp.pop %v3674
  %v3818 = vmul.f32 1.0, %v3817
  %v3819 = vrcp.pop %v3675
  %v3820 = vmul.f32 1.0, %v3819
  %v3821 = vrcp.pop %v3676
  %v3822 = vmul.f32 1.0, %v3821
  %v3823 = vrcp.pop %v3677
  %v3824 = vmul.f32 1.0, %v3823
  %v3825 = vrcp.pop %v3678
  %v3826 = vmul.f32 1.0, %v3825
  %v3827 = vrcp.pop %v3679
  %v3828 = vmul.f32 1.0, %v3827
  %v3829 = vrcp.pop %v3680
  %v3830 = vmul.f32 1.0, %v3829
  %v3831 = vrcp.pop %v3681
  %v3832 = vmul.f32 1.0, %v3831
  %v3833 = vrcp.pop %v3682
  %v3834 = vmul.f32 1.0, %v3833
  %v3835 = vrcp.pop %v3683
  %v3836 = vmul.f32 1.0, %v3835
  %v3837 = vrcp.pop %v3684
  %v3838 = vmul.f32 1.0, %v3837
  %v3839 = vrcp.pop %v3685
  %v3840 = vmul.f32 1.0, %v3839
  %v3841 = vrcp.pop %v3686
  %v3842 = vmul.f32 1.0, %v3841
  %v3843 = vrcp.pop %v3687
  %v3844 = vmul.f32 1.0, %v3843
  %v3845 = vrcp.pop %v3688
  %v3846 = vmul.f32 1.0, %v3845
  %v3847 = vrcp.pop %v3689
  %v3848 = vmul.f32 1.0, %v3847
  %v3849 = vrcp.pop %v3690
  %v3850 = vmul.f32 1.0, %v3849
  %vm3851 = vcmask 7168
  %3852 = vst.msk [vmem:[%s3] sm:$0xff] %vm3851, %v3692
  %3853 = vst.msk [vmem:[%s3 + $0x8] sm:$0xff] %vm3851, %v3694
  %3854 = vst.msk [vmem:[%s3 + $0x10] sm:$0xff] %vm3851, %v3696
  %3855 = vst.msk [vmem:[%s3 + $0x18] sm:$0xff] %vm3851, %v3698
  %3856 = vst.msk [vmem:[%s3 + $0x20] sm:$0xff] %vm3851, %v3700
  %3857 = vst.msk [vmem:[%s3 + $0x28] sm:$0xff] %vm3851, %v3702
  %3858 = vst.msk [vmem:[%s3 + $0x30] sm:$0xff] %vm3851, %v3704
  %3859 = vst.msk [vmem:[%s3 + $0x38] sm:$0xff] %vm3851, %v3706
  %3860 = vst.msk [vmem:[%s3 + $0x40] sm:$0xff] %vm3851, %v3708
  %3861 = vst.msk [vmem:[%s3 + $0x48] sm:$0xff] %vm3851, %v3710
  %3862 = vst.msk [vmem:[%s3 + $0x50] sm:$0xff] %vm3851, %v3712
  %3863 = vst.msk [vmem:[%s3 + $0x58] sm:$0xff] %vm3851, %v3714
  %3864 = vst.msk [vmem:[%s3 + $0x60] sm:$0xff] %vm3851, %v3716
  %3865 = vst.msk [vmem:[%s3 + $0x68] sm:$0xff] %vm3851, %v3718
  %3866 = vst.msk [vmem:[%s3 + $0x70] sm:$0xff] %vm3851, %v3720
  %3867 = vst.msk [vmem:[%s3 + $0x78] sm:$0xff] %vm3851, %v3722
  %3868 = vst.msk [vmem:[%s3 + $0x80] sm:$0xff] %vm3851, %v3724
  %3869 = vst.msk [vmem:[%s3 + $0x88] sm:$0xff] %vm3851, %v3726
  %3870 = vst.msk [vmem:[%s3 + $0x90] sm:$0xff] %vm3851, %v3728
  %3871 = vst.msk [vmem:[%s3 + $0x98] sm:$0xff] %vm3851, %v3730
  %3872 = vst.msk [vmem:[%s3 + $0xa0] sm:$0xff] %vm3851, %v3732
  %3873 = vst.msk [vmem:[%s3 + $0xa8] sm:$0xff] %vm3851, %v3734
  %3874 = vst.msk [vmem:[%s3 + $0xb0] sm:$0xff] %vm3851, %v3736
  %3875 = vst.msk [vmem:[%s3 + $0xb8] sm:$0xff] %vm3851, %v3738
  %3876 = vst.msk [vmem:[%s3 + $0xc0] sm:$0xff] %vm3851, %v3740
  %3877 = vst.msk [vmem:[%s3 + $0xc8] sm:$0xff] %vm3851, %v3742
  %3878 = vst.msk [vmem:[%s3 + $0xd0] sm:$0xff] %vm3851, %v3744
  %3879 = vst.msk [vmem:[%s3 + $0xd8] sm:$0xff] %vm3851, %v3746
  %3880 = vst.msk [vmem:[%s3 + $0xe0] sm:$0xff] %vm3851, %v3748
  %3881 = vst.msk [vmem:[%s3 + $0xe8] sm:$0xff] %vm3851, %v3750
  %3882 = vst.msk [vmem:[%s3 + $0xf0] sm:$0xff] %vm3851, %v3752
  %3883 = vst.msk [vmem:[%s3 + $0xf8] sm:$0xff] %vm3851, %v3754
  %3884 = vst.msk [vmem:[%s3 + $0x100] sm:$0xff] %vm3851, %v3756
  %3885 = vst.msk [vmem:[%s3 + $0x108] sm:$0xff] %vm3851, %v3758
  %3886 = vst.msk [vmem:[%s3 + $0x110] sm:$0xff] %vm3851, %v3760
  %3887 = vst.msk [vmem:[%s3 + $0x118] sm:$0xff] %vm3851, %v3762
  %3888 = vst.msk [vmem:[%s3 + $0x120] sm:$0xff] %vm3851, %v3764
  %3889 = vst.msk [vmem:[%s3 + $0x128] sm:$0xff] %vm3851, %v3766
  %3890 = vst.msk [vmem:[%s3 + $0x130] sm:$0xff] %vm3851, %v3768
  %3891 = vst.msk [vmem:[%s3 + $0x138] sm:$0xff] %vm3851, %v3770
  %3892 = vst.msk [vmem:[%s3 + $0x140] sm:$0xff] %vm3851, %v3772
  %3893 = vst.msk [vmem:[%s3 + $0x148] sm:$0xff] %vm3851, %v3774
  %3894 = vst.msk [vmem:[%s3 + $0x150] sm:$0xff] %vm3851, %v3776
  %3895 = vst.msk [vmem:[%s3 + $0x158] sm:$0xff] %vm3851, %v3778
  %3896 = vst.msk [vmem:[%s3 + $0x160] sm:$0xff] %vm3851, %v3780
  %3897 = vst.msk [vmem:[%s3 + $0x168] sm:$0xff] %vm3851, %v3782
  %3898 = vst.msk [vmem:[%s3 + $0x170] sm:$0xff] %vm3851, %v3784
  %3899 = vst.msk [vmem:[%s3 + $0x178] sm:$0xff] %vm3851, %v3786
  %3900 = vst.msk [vmem:[%s3 + $0x180] sm:$0xff] %vm3851, %v3788
  %3901 = vst.msk [vmem:[%s3 + $0x188] sm:$0xff] %vm3851, %v3790
  %3902 = vst.msk [vmem:[%s3 + $0x190] sm:$0xff] %vm3851, %v3792
  %3903 = vst.msk [vmem:[%s3 + $0x198] sm:$0xff] %vm3851, %v3794
  %3904 = vst.msk [vmem:[%s3 + $0x1a0] sm:$0xff] %vm3851, %v3796
  %3905 = vst.msk [vmem:[%s3 + $0x1a8] sm:$0xff] %vm3851, %v3798
  %3906 = vst.msk [vmem:[%s3 + $0x1b0] sm:$0xff] %vm3851, %v3800
  %3907 = vst.msk [vmem:[%s3 + $0x1b8] sm:$0xff] %vm3851, %v3802
  %3908 = vst.msk [vmem:[%s3 + $0x1c0] sm:$0xff] %vm3851, %v3804
  %3909 = vst.msk [vmem:[%s3 + $0x1c8] sm:$0xff] %vm3851, %v3806
  %3910 = vst.msk [vmem:[%s3 + $0x1d0] sm:$0xff] %vm3851, %v3808
  %3911 = vst.msk [vmem:[%s3 + $0x1d8] sm:$0xff] %vm3851, %v3810
  %3912 = vst.msk [vmem:[%s3 + $0x1e0] sm:$0xff] %vm3851, %v3812
  %3913 = vst.msk [vmem:[%s3 + $0x1e8] sm:$0xff] %vm3851, %v3814
  %3914 = vst.msk [vmem:[%s3 + $0x1f0] sm:$0xff] %vm3851, %v3816
  %3915 = vst.msk [vmem:[%s3 + $0x1f8] sm:$0xff] %vm3851, %v3818
  %3916 = vst.msk [vmem:[%s3 + $0x200] sm:$0xff] %vm3851, %v3820
  %3917 = vst.msk [vmem:[%s3 + $0x208] sm:$0xff] %vm3851, %v3822
  %3918 = vst.msk [vmem:[%s3 + $0x210] sm:$0xff] %vm3851, %v3824
  %3919 = vst.msk [vmem:[%s3 + $0x218] sm:$0xff] %vm3851, %v3826
  %3920 = vst.msk [vmem:[%s3 + $0x220] sm:$0xff] %vm3851, %v3828
  %3921 = vst.msk [vmem:[%s3 + $0x228] sm:$0xff] %vm3851, %v3830
  %3922 = vst.msk [vmem:[%s3 + $0x230] sm:$0xff] %vm3851, %v3832
  %3923 = vst.msk [vmem:[%s3 + $0x238] sm:$0xff] %vm3851, %v3834
  %3924 = vst.msk [vmem:[%s3 + $0x240] sm:$0xff] %vm3851, %v3836
  %3925 = vst.msk [vmem:[%s3 + $0x248] sm:$0xff] %vm3851, %v3838
  %3926 = vst.msk [vmem:[%s3 + $0x250] sm:$0xff] %vm3851, %v3840
  %3927 = vst.msk [vmem:[%s3 + $0x258] sm:$0xff] %vm3851, %v3842
  %3928 = vst.msk [vmem:[%s3 + $0x260] sm:$0xff] %vm3851, %v3844
  %3929 = vst.msk [vmem:[%s3 + $0x268] sm:$0xff] %vm3851, %v3846
  %3930 = vst.msk [vmem:[%s3 + $0x270] sm:$0xff] %vm3851, %v3848
  %3931 = vst.msk [vmem:[%s3 + $0x278] sm:$0xff] %vm3851, %v3850
  // Predicated region
  $region14: #{vqvae_forward.17} parent=0 // pred_check
    _
  $region15: #{vqvae_forward.17} parent=0 // pred_check_branch
    %3933 = sbr.rel (0) target = $region17
  $region16: #{vqvae_forward.17} parent=0 // pred_region
    _
  $region17: #{vqvae_forward.17} parent=0 // pred_fallthru
    _
  // Predicated region
  $region18: #{vqvae_forward.17} parent=0 // pred_check
    _
  $region19: #{vqvae_forward.17} parent=0 // pred_check_branch
    %3935 = sbr.rel (0) target = $region21
  $region20: #{vqvae_forward.17} parent=0 // pred_region
    _
  $region21: #{vqvae_forward.17} parent=0 // pred_fallthru
    _

</llo_original>
